<compile_context>
chip_gen: v7x
topology: tpu7x:2x2x1
jax: 0.10.0
libtpu: 0.0.40
codegen_flags: <defaults>
</compile_context>

<pallas_src>
import functools

import jax
import jax.numpy as jnp
from jax import lax
from jax.experimental import pallas as pl
from jax.experimental.pallas import tpu as pltpu

KSIZE = 5
N_LAYERS = 5
BN_EPS = 1e-5
LANE = 128


def _round_up(n, m):
    return ((n + m - 1) // m) * m


# ----------------------------- Pallas kernel ------------------------------ #
def _postnet_fused_kernel(halo_ref, cur_ref,
                          w0_ref, w1_ref, w2_ref, w3_ref, w4_ref,
                          s0_ref, s1_ref, s2_ref, s3_ref, s4_ref,
                          o_ref, *, ksize, n_layers, halo_rows, fold,
                          compute_dtype):
    """One (batch, time-tile) step: full 5-layer PostNet on a T_TILE window.

    halo_ref: (halo_rows, C0_pad)  tail of the previous tile (zeros for tile 0
              == the causal left padding of the whole network).
    cur_ref:  (t_tile, C0_pad)     current time tile.
    w*_ref:   BN-folded, channel-padded conv weights; shape (5*cin, cout) for
              tap-folded layers, (5, cin, cout) otherwise (VMEM-resident).
    s*_ref:   (1, cout_pad) folded conv-bias + BN shift (f32).
    o_ref:    (t_tile, Cout_pad)
    """
    t_tile = o_ref.shape[0]
    lead = halo_rows - (ksize - 1) * n_layers   # alignment-pad rows (discarded)
    tile_start = pl.program_id(1) * t_tile      # absolute time of cur row 0

    ws = (w0_ref, w1_ref, w2_ref, w3_ref, w4_ref)
    ss = (s0_ref, s1_ref, s2_ref, s3_ref, s4_ref)

    # Layer-0 input window: [previous-tile tail (or zeros) | current tile].
    h = jnp.concatenate([halo_ref[...], cur_ref[...]], axis=0)

    for l in range(n_layers):
        t_out = t_tile + halo_rows - (ksize - 1) * (l + 1)
        if fold[l]:
            # Taps folded into the contraction: one MXU matmul with K = 5*cin
            # (fills the 256-deep v6e/v7x MXU when cin_pad == 128).
            h_cat = jnp.concatenate([h[k:k + t_out, :] for k in range(ksize)],
                                    axis=-1)
            acc = jnp.dot(h_cat, ws[l][...], preferred_element_type=jnp.float32)
        else:
            acc = jnp.dot(h[0:t_out, :], ws[l][0],
                          preferred_element_type=jnp.float32)
            for k in range(1, ksize):   # causal conv = time-shifted matmuls
                acc += jnp.dot(h[k:k + t_out, :], ws[l][k],
                               preferred_element_type=jnp.float32)
        y = acc + ss[l][...]            # folded conv-bias + BN affine (f32)
        if l < n_layers - 1:
            a = jnp.tanh(y.astype(compute_dtype))   # tanh in compute dtype
            # PyTorch zero-pads EVERY layer's input on the left: rows of this
            # activation at t < 0 must be zero, not tanh(shift).  Row j of this
            # layer's output is time  tile_start - halo_rows + 4*(l+1) + j,
            # so only the first tile has rows to mask.
            neg = halo_rows - (ksize - 1) * (l + 1) - tile_start
            row = lax.broadcasted_iota(jnp.int32, (t_out, 1), 0)
            h = jnp.where(row < neg, jnp.zeros_like(a), a)
        else:
            o_ref[...] = y[lead:, :].astype(o_ref.dtype)   # conv5: no BN/tanh


# ----------------------------- Parameter prep ------------------------------ #
def init_postnet_params(key, mel_dims, hidden_dims):
    """Random params in (K, cin, cout) layout (== torch weight[cout, cin, k])."""
    dims = [(mel_dims, hidden_dims),
            (hidden_dims, hidden_dims),
            (hidden_dims, hidden_dims),
            (hidden_dims, hidden_dims),
            (hidden_dims, mel_dims)]
    params = []
    for (cin, cout) in dims:
        key, kw, kb, kg, kbeta, km, kv = jax.random.split(key, 7)
        w = jax.random.normal(kw, (KSIZE, cin, cout), jnp.float32) * 0.1
        b = jax.random.normal(kb, (cout,), jnp.float32) * 0.1
        gamma = 1.0 + 0.1 * jax.random.normal(kg, (cout,), jnp.float32)
        beta = 0.1 * jax.random.normal(kbeta, (cout,), jnp.float32)
        rmean = 0.1 * jax.random.normal(km, (cout,), jnp.float32)
        rvar = 0.5 + jnp.abs(jax.random.normal(kv, (cout,), jnp.float32))
        scale = gamma / jnp.sqrt(rvar + BN_EPS)
        shift = beta - rmean * scale
        params.append(dict(w=w, b=b, scale=scale, shift=shift))
    # Last layer (conv5) has no BatchNorm / tanh: identity affine.
    params[-1]["scale"] = jnp.ones((mel_dims,), jnp.float32)
    params[-1]["shift"] = jnp.zeros((mel_dims,), jnp.float32)
    return params


def prepare_postnet_params(params, compute_dtype=jnp.bfloat16):
    """One-time prep (call once, reuse): fold BN into the conv weights, pad
    channels to 128 lanes, fold taps into the contraction for 128-wide layers,
    cast to the MXU compute dtype (bf16 by default, f32 accumulation kept)."""
    assert len(params) == N_LAYERS
    mel = params[0]["w"].shape[1]
    hidden = params[0]["w"].shape[2]
    mel_pad, hid_pad = _round_up(mel, LANE), _round_up(hidden, LANE)
    cin_pads = [mel_pad] + [hid_pad] * (N_LAYERS - 1)
    cout_pads = [hid_pad] * (N_LAYERS - 1) + [mel_pad]

    weights, shifts, fold = [], [], []
    for l, p in enumerate(params):
        k, cin, cout = p["w"].shape
        w_f = p["w"] * p["scale"][None, None, :]        # w' = w * gamma/sqrt(var+eps)
        s_f = p["b"] * p["scale"] + p["shift"]          # shift' = b*scale + shift
        w_p = jnp.zeros((k, cin_pads[l], cout_pads[l]), jnp.float32)
        w_p = w_p.at[:, :cin, :cout].set(w_f)
        s_p = jnp.zeros((1, cout_pads[l]), jnp.float32).at[0, :cout].set(s_f)
        do_fold = cin_pads[l] < 256     # 128-deep contraction -> fold 5 taps
        if do_fold:
            w_p = w_p.reshape(k * cin_pads[l], cout_pads[l])
        weights.append(w_p.astype(compute_dtype))
        shifts.append(s_p)              # f32: added to the f32 accumulator
        fold.append(do_fold)
    return dict(weights=tuple(weights), shifts=tuple(shifts), fold=tuple(fold),
                mel=mel, hidden=hidden, mel_pad=mel_pad, hid_pad=hid_pad,
                cin_pads=tuple(cin_pads), cout_pads=tuple(cout_pads),
                compute_dtype=jnp.dtype(compute_dtype))


# ----------------------------- PostNet forward ----------------------------- #
def postnet_forward(x, prepared, *, t_tile=None, max_t_tile=1024):
    """x: (B, T, mel_dims) -> (B, T, mel_dims). Matches PostNet.forward (eval)."""
    B, T, mel = x.shape
    assert mel == prepared["mel"], (mel, prepared["mel"])
    cdt = prepared["compute_dtype"]
    mel_pad = prepared["mel_pad"]
    cin_pads, cout_pads = prepared["cin_pads"], prepared["cout_pads"]
    w_list, s_list = list(prepared["weights"]), list(prepared["shifts"])

    halo = (KSIZE - 1) * N_LAYERS          # 20 rows of causal context
    halo_rows = _round_up(halo, 16)        # 32: bf16 sublane-tile aligned
    if t_tile is None:
        # Bigger tiles amortize the ~20-row halo recompute + grid-step overhead;
        # on v7x (64 MiB VMEM) keep t_tile <= ~1024, larger is fine on v5e/v6e.
        t_tile = min(max_t_tile, _round_up(T, 16))
    t_tile = max(halo_rows, _round_up(t_tile, 16))
    num_tiles = pl.cdiv(T, t_tile)
    t_work = num_tiles * t_tile

    # Current-tile input (channel + tail padded) and halo-only input: the last
    # halo_rows rows of the previous tile (zeros for tile 0 == causal padding).
    x_cur = jnp.pad(x.astype(cdt), ((0, 0), (0, t_work - T), (0, mel_pad - mel)))
    x_lead = jnp.pad(x_cur, ((0, 0), (halo_rows, 0), (0, 0)))[:, :t_work, :]
    halo_in = x_lead.reshape(B, num_tiles, t_tile, mel_pad)[:, :, :halo_rows, :]

    kernel = functools.partial(
        _postnet_fused_kernel, ksize=KSIZE, n_layers=N_LAYERS,
        halo_rows=halo_rows, fold=prepared["fold"], compute_dtype=cdt)

    act_isz = jnp.dtype(cdt).itemsize
    out_isz = jnp.dtype(x.dtype).itemsize
    flops, transc = 0, 0
    for l in range(N_LAYERS):
        t_out = t_tile + halo_rows - (KSIZE - 1) * (l + 1)
        flops += 2 * B * num_tiles * t_out * KSIZE * cin_pads[l] * cout_pads[l]
        if l < N_LAYERS - 1:
            transc += B * num_tiles * t_out * cout_pads[l]
    w_bytes = (sum(int(w.size) for w in w_list) * act_isz
               + sum(int(s.size) for s in s_list) * 4)
    bytes_accessed = int(int(halo_in.size) * act_isz + int(x_cur.size) * act_isz
                         + B * t_work * mel_pad * out_isz + w_bytes)

    out_spec = pl.BlockSpec((None, t_tile, mel_pad), lambda b, i: (b, i, 0))

    def run(single_buffer_weights):
        def const_spec(shape):
            imap = (lambda b, i: (0, 0, 0)) if len(shape) == 3 else (lambda b, i: (0, 0))
            if single_buffer_weights:
                return pl.BlockSpec(shape, imap, pipeline_mode=pl.Buffered(1))
            return pl.BlockSpec(shape, imap)

        w_bufs = 1 if single_buffer_weights else 2
        vmem_limit = int(min(max(
            w_bufs * w_bytes
            + 2 * (halo_rows + t_tile) * mel_pad * act_isz     # input blocks (x2 bufs)
            + 2 * t_tile * mel_pad * out_isz                   # output blocks (x2 bufs)
            + 8 * (t_tile + halo_rows) * max(cout_pads) * 4    # live intermediates (f32)
            + (8 << 20), 32 << 20), 64 << 20))                 # floor 32 MiB, cap v7x physical

        in_specs = [
            pl.BlockSpec((None, None, halo_rows, mel_pad), lambda b, i: (b, i, 0, 0)),
            pl.BlockSpec((None, t_tile, mel_pad), lambda b, i: (b, i, 0)),
            *[const_spec(tuple(w.shape)) for w in w_list],
            *[const_spec(tuple(s.shape)) for s in s_list],
        ]
        return pl.pallas_call(
            kernel,
            out_shape=jax.ShapeDtypeStruct((B, t_work, mel_pad), x.dtype),
            grid=(B, num_tiles),
            in_specs=in_specs,
            out_specs=out_spec,
            compiler_params=pltpu.CompilerParams(
                dimension_semantics=("parallel", "parallel"),
                vmem_limit_bytes=vmem_limit),
            cost_estimate=pl.CostEstimate(flops=int(flops),
                                          transcendentals=int(transc),
                                          bytes_accessed=bytes_accessed),
        )(halo_in, x_cur, *w_list, *s_list)

    if hasattr(pl, "Buffered"):
        try:
            out = run(True)    # constant weights/shifts single-buffered in VMEM
        except Exception:
            out = run(False)   # fallback: default (double-buffered) constants
    else:
        out = run(False)

    return out[:, :T, :mel]


# ----------------------------- Pure-JAX reference -------------------------- #
def _ref_layer(x, p, apply_tanh):
    K = p["w"].shape[0]
    T = x.shape[1]
    xp = jnp.pad(x, ((0, 0), (K - 1, 0), (0, 0)))   # per-layer causal zero pad
    y = sum(jnp.einsum("btc,cd->btd", xp[:, k:k + T, :], p["w"][k],
                       precision=lax.Precision.HIGHEST)
            for k in range(K)) + p["b"]
    y = y * p["scale"] + p["shift"]
    return jnp.tanh(y) if apply_tanh else y


def postnet_ref(x, params):
    h = x
    for i, p in enumerate(params):
        h = _ref_layer(h, p, i < len(params) - 1)
    return h


if __name__ == "__main__":
    B, T = 2, 16
    mel_dims, hidden_dims = 16, 32

    key = jax.random.PRNGKey(0)
    k_x, k_p = jax.random.split(key)
    x = jax.random.normal(k_x, (B, T, mel_dims), jnp.float32)
    params = init_postnet_params(k_p, mel_dims, hidden_dims)

    # TODO(synk): Dropout is stochastic in training mode; treated as identity (eval).
    ref = jax.block_until_ready(postnet_ref(x, params))

    # f32 compute path: exact semantics check (tolerance leaves headroom for the
    # MXU's f32 matmul mode differing from the XLA reference einsum).
    prep_f32 = prepare_postnet_params(params, compute_dtype=jnp.float32)
    out_f32 = jax.block_until_ready(postnet_forward(x, prep_f32))
    assert out_f32.shape == (B, T, mel_dims), out_f32.shape
    err32 = float(jnp.max(jnp.abs(out_f32 - ref)))
    assert jnp.allclose(out_f32, ref, atol=2e-2, rtol=2e-2), err32

    # Default fast path: bf16 weights/activations, f32 accumulation.
    prep_bf16 = prepare_postnet_params(params)   # compute_dtype=bfloat16 default
    out_bf16 = jax.block_until_ready(postnet_forward(x, prep_bf16))
    assert out_bf16.shape == (B, T, mel_dims), out_bf16.shape
    err16 = float(jnp.max(jnp.abs(out_bf16 - ref)))
    assert jnp.allclose(out_bf16, ref, atol=5e-2, rtol=5e-2), err16

    print("KERNEL_OK")
</pallas_src>

<mosaic_0001>
module attributes {stable_mosaic.version = 11 : i64} {
  func.func @_postnet_fused_kernel(%arg0: i32, %arg1: i32, %arg2: memref<1x1x32x128xf32, #tpu.memory_space<vmem>>, %arg3: memref<1x32x128xf32, #tpu.memory_space<vmem>>, %arg4: memref<640x128xf32, #tpu.memory_space<vmem>>, %arg5: memref<640x128xf32, #tpu.memory_space<vmem>>, %arg6: memref<640x128xf32, #tpu.memory_space<vmem>>, %arg7: memref<640x128xf32, #tpu.memory_space<vmem>>, %arg8: memref<640x128xf32, #tpu.memory_space<vmem>>, %arg9: memref<1x128xf32, #tpu.memory_space<vmem>>, %arg10: memref<1x128xf32, #tpu.memory_space<vmem>>, %arg11: memref<1x128xf32, #tpu.memory_space<vmem>>, %arg12: memref<1x128xf32, #tpu.memory_space<vmem>>, %arg13: memref<1x128xf32, #tpu.memory_space<vmem>>, %arg14: memref<1x32x128xf32, #tpu.memory_space<vmem>>) attributes {dimension_semantics = [#tpu.dimension_semantics<parallel>, #tpu.dimension_semantics<parallel>], iteration_bounds = array<i64: 2, 1>, scalar_prefetch = 0 : i64, scratch_operands = 0 : i64, tpu.core_type = #tpu.core_type<tc>, window_params = [{transform_indices = @transform_0, window_bounds = array<i64: 1, 1, 32, 128>}, {transform_indices = @transform_1, window_bounds = array<i64: 1, 32, 128>}, {pipeline_mode = #tpu.pipeline_mode<synchronous>, transform_indices = @transform_2, window_bounds = array<i64: 640, 128>}, {pipeline_mode = #tpu.pipeline_mode<synchronous>, transform_indices = @transform_3, window_bounds = array<i64: 640, 128>}, {pipeline_mode = #tpu.pipeline_mode<synchronous>, transform_indices = @transform_4, window_bounds = array<i64: 640, 128>}, {pipeline_mode = #tpu.pipeline_mode<synchronous>, transform_indices = @transform_5, window_bounds = array<i64: 640, 128>}, {pipeline_mode = #tpu.pipeline_mode<synchronous>, transform_indices = @transform_6, window_bounds = array<i64: 640, 128>}, {pipeline_mode = #tpu.pipeline_mode<synchronous>, transform_indices = @transform_7, window_bounds = array<i64: 1, 128>}, {pipeline_mode = #tpu.pipeline_mode<synchronous>, transform_indices = @transform_8, window_bounds = array<i64: 1, 128>}, {pipeline_mode = #tpu.pipeline_mode<synchronous>, transform_indices = @transform_9, window_bounds = array<i64: 1, 128>}, {pipeline_mode = #tpu.pipeline_mode<synchronous>, transform_indices = @transform_10, window_bounds = array<i64: 1, 128>}, {pipeline_mode = #tpu.pipeline_mode<synchronous>, transform_indices = @transform_11, window_bounds = array<i64: 1, 128>}, {transform_indices = @transform_12, window_bounds = array<i64: 1, 32, 128>}]} {
    %c32_i32 = arith.constant 32 : i32
    %0 = arith.muli %arg1, %c32_i32 : i32
    %c0 = arith.constant 0 : index
    %c0_0 = arith.constant 0 : index
    %c0_1 = arith.constant 0 : index
    %c0_2 = arith.constant 0 : index
    %1 = vector.load %arg2[%c0, %c0_0, %c0_1, %c0_2] : memref<1x1x32x128xf32, #tpu.memory_space<vmem>>, vector<1x1x32x128xf32>
    %2 = vector.shape_cast %1 : vector<1x1x32x128xf32> to vector<32x128xf32>
    %c0_3 = arith.constant 0 : index
    %c0_4 = arith.constant 0 : index
    %c0_5 = arith.constant 0 : index
    %3 = vector.load %arg3[%c0_3, %c0_4, %c0_5] : memref<1x32x128xf32, #tpu.memory_space<vmem>>, vector<1x32x128xf32>
    %4 = vector.shape_cast %3 : vector<1x32x128xf32> to vector<32x128xf32>
    %5 = tpu.concatenate %2, %4 in 0 : vector<32x128xf32>, vector<32x128xf32> -> vector<64x128xf32>
    %6 = vector.extract_strided_slice %5 {offsets = [0, 0], sizes = [60, 128], strides = [1, 1]} : vector<64x128xf32> to vector<60x128xf32>
    %7 = vector.extract_strided_slice %5 {offsets = [1, 0], sizes = [60, 128], strides = [1, 1]} : vector<64x128xf32> to vector<60x128xf32>
    %8 = vector.extract_strided_slice %5 {offsets = [2, 0], sizes = [60, 128], strides = [1, 1]} : vector<64x128xf32> to vector<60x128xf32>
    %9 = vector.extract_strided_slice %5 {offsets = [3, 0], sizes = [60, 128], strides = [1, 1]} : vector<64x128xf32> to vector<60x128xf32>
    %10 = vector.extract_strided_slice %5 {offsets = [4, 0], sizes = [60, 128], strides = [1, 1]} : vector<64x128xf32> to vector<60x128xf32>
    %11 = tpu.concatenate %6, %7, %8, %9, %10 in 1 : vector<60x128xf32>, vector<60x128xf32>, vector<60x128xf32>, vector<60x128xf32>, vector<60x128xf32> -> vector<60x640xf32>
    %c0_6 = arith.constant 0 : index
    %c0_7 = arith.constant 0 : index
    %12 = vector.load %arg4[%c0_6, %c0_7] : memref<640x128xf32, #tpu.memory_space<vmem>>, vector<640x128xf32>
    %cst = arith.constant dense<0.000000e+00> : vector<60x128xf32>
    %13 = tpu.matmul %11, %12, %cst {dimension_numbers = #tpu.dot_dimension_numbers<[1], [0], [0], [1], [0, 0, 1, 1], [], []>} : vector<60x640xf32>, vector<640x128xf32>, vector<60x128xf32> -> vector<60x128xf32>
    %c0_8 = arith.constant 0 : index
    %c0_9 = arith.constant 0 : index
    %14 = vector.load %arg9[%c0_8, %c0_9] : memref<1x128xf32, #tpu.memory_space<vmem>>, vector<1x128xf32>
    %15 = vector.broadcast %14 : vector<1x128xf32> to vector<60x128xf32>
    %16 = arith.addf %13, %15 : vector<60x128xf32>
    %17 = math.tanh %16 : vector<60x128xf32>
    %c28_i32 = arith.constant 28 : i32
    %18 = arith.subi %c28_i32, %0 : i32
    %19 = tpu.iota {dimensions = array<i32: 0>} : vector<60x1xi32>
    %20 = vector.broadcast %18 : i32 to vector<60x1xi32>
    %21 = arith.cmpi slt, %19, %20 : vector<60x1xi32>
    %cst_10 = arith.constant 0.000000e+00 : f32
    %22 = vector.broadcast %cst_10 : f32 to vector<60x128xf32>
    %23 = vector.shape_cast %21 : vector<60x1xi1> to vector<60x1xi1>
    %24 = vector.broadcast %23 : vector<60x1xi1> to vector<60x128xi1>
    %25 = arith.select %24, %22, %17 : vector<60x128xi1>, vector<60x128xf32>
    %26 = vector.extract_strided_slice %25 {offsets = [0, 0], sizes = [56, 128], strides = [1, 1]} : vector<60x128xf32> to vector<56x128xf32>
    %27 = vector.extract_strided_slice %25 {offsets = [1, 0], sizes = [56, 128], strides = [1, 1]} : vector<60x128xf32> to vector<56x128xf32>
    %28 = vector.extract_strided_slice %25 {offsets = [2, 0], sizes = [56, 128], strides = [1, 1]} : vector<60x128xf32> to vector<56x128xf32>
    %29 = vector.extract_strided_slice %25 {offsets = [3, 0], sizes = [56, 128], strides = [1, 1]} : vector<60x128xf32> to vector<56x128xf32>
    %30 = vector.extract_strided_slice %25 {offsets = [4, 0], sizes = [56, 128], strides = [1, 1]} : vector<60x128xf32> to vector<56x128xf32>
    %31 = tpu.concatenate %26, %27, %28, %29, %30 in 1 : vector<56x128xf32>, vector<56x128xf32>, vector<56x128xf32>, vector<56x128xf32>, vector<56x128xf32> -> vector<56x640xf32>
    %c0_11 = arith.constant 0 : index
    %c0_12 = arith.constant 0 : index
    %32 = vector.load %arg5[%c0_11, %c0_12] : memref<640x128xf32, #tpu.memory_space<vmem>>, vector<640x128xf32>
    %cst_13 = arith.constant dense<0.000000e+00> : vector<56x128xf32>
    %33 = tpu.matmul %31, %32, %cst_13 {dimension_numbers = #tpu.dot_dimension_numbers<[1], [0], [0], [1], [0, 0, 1, 1], [], []>} : vector<56x640xf32>, vector<640x128xf32>, vector<56x128xf32> -> vector<56x128xf32>
    %c0_14 = arith.constant 0 : index
    %c0_15 = arith.constant 0 : index
    %34 = vector.load %arg10[%c0_14, %c0_15] : memref<1x128xf32, #tpu.memory_space<vmem>>, vector<1x128xf32>
    %35 = vector.broadcast %34 : vector<1x128xf32> to vector<56x128xf32>
    %36 = arith.addf %33, %35 : vector<56x128xf32>
    %37 = math.tanh %36 : vector<56x128xf32>
    %c24_i32 = arith.constant 24 : i32
    %38 = arith.subi %c24_i32, %0 : i32
    %39 = tpu.iota {dimensions = array<i32: 0>} : vector<56x1xi32>
    %40 = vector.broadcast %38 : i32 to vector<56x1xi32>
    %41 = arith.cmpi slt, %39, %40 : vector<56x1xi32>
    %cst_16 = arith.constant 0.000000e+00 : f32
    %42 = vector.broadcast %cst_16 : f32 to vector<56x128xf32>
    %43 = vector.shape_cast %41 : vector<56x1xi1> to vector<56x1xi1>
    %44 = vector.broadcast %43 : vector<56x1xi1> to vector<56x128xi1>
    %45 = arith.select %44, %42, %37 : vector<56x128xi1>, vector<56x128xf32>
    %46 = vector.extract_strided_slice %45 {offsets = [0, 0], sizes = [52, 128], strides = [1, 1]} : vector<56x128xf32> to vector<52x128xf32>
    %47 = vector.extract_strided_slice %45 {offsets = [1, 0], sizes = [52, 128], strides = [1, 1]} : vector<56x128xf32> to vector<52x128xf32>
    %48 = vector.extract_strided_slice %45 {offsets = [2, 0], sizes = [52, 128], strides = [1, 1]} : vector<56x128xf32> to vector<52x128xf32>
    %49 = vector.extract_strided_slice %45 {offsets = [3, 0], sizes = [52, 128], strides = [1, 1]} : vector<56x128xf32> to vector<52x128xf32>
    %50 = vector.extract_strided_slice %45 {offsets = [4, 0], sizes = [52, 128], strides = [1, 1]} : vector<56x128xf32> to vector<52x128xf32>
    %51 = tpu.concatenate %46, %47, %48, %49, %50 in 1 : vector<52x128xf32>, vector<52x128xf32>, vector<52x128xf32>, vector<52x128xf32>, vector<52x128xf32> -> vector<52x640xf32>
    %c0_17 = arith.constant 0 : index
    %c0_18 = arith.constant 0 : index
    %52 = vector.load %arg6[%c0_17, %c0_18] : memref<640x128xf32, #tpu.memory_space<vmem>>, vector<640x128xf32>
    %cst_19 = arith.constant dense<0.000000e+00> : vector<52x128xf32>
    %53 = tpu.matmul %51, %52, %cst_19 {dimension_numbers = #tpu.dot_dimension_numbers<[1], [0], [0], [1], [0, 0, 1, 1], [], []>} : vector<52x640xf32>, vector<640x128xf32>, vector<52x128xf32> -> vector<52x128xf32>
    %c0_20 = arith.constant 0 : index
    %c0_21 = arith.constant 0 : index
    %54 = vector.load %arg11[%c0_20, %c0_21] : memref<1x128xf32, #tpu.memory_space<vmem>>, vector<1x128xf32>
    %55 = vector.broadcast %54 : vector<1x128xf32> to vector<52x128xf32>
    %56 = arith.addf %53, %55 : vector<52x128xf32>
    %57 = math.tanh %56 : vector<52x128xf32>
    %c20_i32 = arith.constant 20 : i32
    %58 = arith.subi %c20_i32, %0 : i32
    %59 = tpu.iota {dimensions = array<i32: 0>} : vector<52x1xi32>
    %60 = vector.broadcast %58 : i32 to vector<52x1xi32>
    %61 = arith.cmpi slt, %59, %60 : vector<52x1xi32>
    %cst_22 = arith.constant 0.000000e+00 : f32
    %62 = vector.broadcast %cst_22 : f32 to vector<52x128xf32>
    %63 = vector.shape_cast %61 : vector<52x1xi1> to vector<52x1xi1>
    %64 = vector.broadcast %63 : vector<52x1xi1> to vector<52x128xi1>
    %65 = arith.select %64, %62, %57 : vector<52x128xi1>, vector<52x128xf32>
    %66 = vector.extract_strided_slice %65 {offsets = [0, 0], sizes = [48, 128], strides = [1, 1]} : vector<52x128xf32> to vector<48x128xf32>
    %67 = vector.extract_strided_slice %65 {offsets = [1, 0], sizes = [48, 128], strides = [1, 1]} : vector<52x128xf32> to vector<48x128xf32>
    %68 = vector.extract_strided_slice %65 {offsets = [2, 0], sizes = [48, 128], strides = [1, 1]} : vector<52x128xf32> to vector<48x128xf32>
    %69 = vector.extract_strided_slice %65 {offsets = [3, 0], sizes = [48, 128], strides = [1, 1]} : vector<52x128xf32> to vector<48x128xf32>
    %70 = vector.extract_strided_slice %65 {offsets = [4, 0], sizes = [48, 128], strides = [1, 1]} : vector<52x128xf32> to vector<48x128xf32>
    %71 = tpu.concatenate %66, %67, %68, %69, %70 in 1 : vector<48x128xf32>, vector<48x128xf32>, vector<48x128xf32>, vector<48x128xf32>, vector<48x128xf32> -> vector<48x640xf32>
    %c0_23 = arith.constant 0 : index
    %c0_24 = arith.constant 0 : index
    %72 = vector.load %arg7[%c0_23, %c0_24] : memref<640x128xf32, #tpu.memory_space<vmem>>, vector<640x128xf32>
    %cst_25 = arith.constant dense<0.000000e+00> : vector<48x128xf32>
    %73 = tpu.matmul %71, %72, %cst_25 {dimension_numbers = #tpu.dot_dimension_numbers<[1], [0], [0], [1], [0, 0, 1, 1], [], []>} : vector<48x640xf32>, vector<640x128xf32>, vector<48x128xf32> -> vector<48x128xf32>
    %c0_26 = arith.constant 0 : index
    %c0_27 = arith.constant 0 : index
    %74 = vector.load %arg12[%c0_26, %c0_27] : memref<1x128xf32, #tpu.memory_space<vmem>>, vector<1x128xf32>
    %75 = vector.broadcast %74 : vector<1x128xf32> to vector<48x128xf32>
    %76 = arith.addf %73, %75 : vector<48x128xf32>
    %77 = math.tanh %76 : vector<48x128xf32>
    %c16_i32 = arith.constant 16 : i32
    %78 = arith.subi %c16_i32, %0 : i32
    %79 = tpu.iota {dimensions = array<i32: 0>} : vector<48x1xi32>
    %80 = vector.broadcast %78 : i32 to vector<48x1xi32>
    %81 = arith.cmpi slt, %79, %80 : vector<48x1xi32>
    %cst_28 = arith.constant 0.000000e+00 : f32
    %82 = vector.broadcast %cst_28 : f32 to vector<48x128xf32>
    %83 = vector.shape_cast %81 : vector<48x1xi1> to vector<48x1xi1>
    %84 = vector.broadcast %83 : vector<48x1xi1> to vector<48x128xi1>
    %85 = arith.select %84, %82, %77 : vector<48x128xi1>, vector<48x128xf32>
    %86 = vector.extract_strided_slice %85 {offsets = [0, 0], sizes = [44, 128], strides = [1, 1]} : vector<48x128xf32> to vector<44x128xf32>
    %87 = vector.extract_strided_slice %85 {offsets = [1, 0], sizes = [44, 128], strides = [1, 1]} : vector<48x128xf32> to vector<44x128xf32>
    %88 = vector.extract_strided_slice %85 {offsets = [2, 0], sizes = [44, 128], strides = [1, 1]} : vector<48x128xf32> to vector<44x128xf32>
    %89 = vector.extract_strided_slice %85 {offsets = [3, 0], sizes = [44, 128], strides = [1, 1]} : vector<48x128xf32> to vector<44x128xf32>
    %90 = vector.extract_strided_slice %85 {offsets = [4, 0], sizes = [44, 128], strides = [1, 1]} : vector<48x128xf32> to vector<44x128xf32>
    %91 = tpu.concatenate %86, %87, %88, %89, %90 in 1 : vector<44x128xf32>, vector<44x128xf32>, vector<44x128xf32>, vector<44x128xf32>, vector<44x128xf32> -> vector<44x640xf32>
    %c0_29 = arith.constant 0 : index
    %c0_30 = arith.constant 0 : index
    %92 = vector.load %arg8[%c0_29, %c0_30] : memref<640x128xf32, #tpu.memory_space<vmem>>, vector<640x128xf32>
    %cst_31 = arith.constant dense<0.000000e+00> : vector<44x128xf32>
    %93 = tpu.matmul %91, %92, %cst_31 {dimension_numbers = #tpu.dot_dimension_numbers<[1], [0], [0], [1], [0, 0, 1, 1], [], []>} : vector<44x640xf32>, vector<640x128xf32>, vector<44x128xf32> -> vector<44x128xf32>
    %c0_32 = arith.constant 0 : index
    %c0_33 = arith.constant 0 : index
    %94 = vector.load %arg13[%c0_32, %c0_33] : memref<1x128xf32, #tpu.memory_space<vmem>>, vector<1x128xf32>
    %95 = vector.broadcast %94 : vector<1x128xf32> to vector<44x128xf32>
    %96 = arith.addf %93, %95 : vector<44x128xf32>
    %97 = vector.extract_strided_slice %96 {offsets = [12, 0], sizes = [32, 128], strides = [1, 1]} : vector<44x128xf32> to vector<32x128xf32>
    %c0_34 = arith.constant 0 : index
    %c0_35 = arith.constant 0 : index
    %c0_36 = arith.constant 0 : index
    %98 = vector.load %arg14[%c0_34, %c0_35, %c0_36] : memref<1x32x128xf32, #tpu.memory_space<vmem>>, vector<1x32x128xf32>
    %99 = vector.shape_cast %98 : vector<1x32x128xf32> to vector<32x128xf32>
    %100 = vector.shape_cast %97 : vector<32x128xf32> to vector<1x32x128xf32>
    tpu.vector_store %arg14[%c0_34, %c0_35, %c0_36], %100 {strides = array<i32>} : memref<1x32x128xf32, #tpu.memory_space<vmem>>, vector<1x32x128xf32>,
    return
  }
  func.func @transform_0(%arg0: i32, %arg1: i32) -> (i32, i32, i32, i32) {
    %c0_i32 = arith.constant 0 : i32
    %c0_i32_0 = arith.constant 0 : i32
    %c0_i32_1 = arith.constant 0 : i32
    return %arg0, %arg1, %c0_i32, %c0_i32_0 : i32, i32, i32, i32
  }
  func.func @transform_1(%arg0: i32, %arg1: i32) -> (i32, i32, i32) {
    %c0_i32 = arith.constant 0 : i32
    %c0_i32_0 = arith.constant 0 : i32
    return %arg0, %arg1, %c0_i32 : i32, i32, i32
  }
  func.func @transform_2(%arg0: i32, %arg1: i32) -> (i32, i32) {
    %c0_i32 = arith.constant 0 : i32
    %c0_i32_0 = arith.constant 0 : i32
    %c0_i32_1 = arith.constant 0 : i32
    return %c0_i32, %c0_i32_0 : i32, i32
  }
  func.func @transform_3(%arg0: i32, %arg1: i32) -> (i32, i32) {
    %c0_i32 = arith.constant 0 : i32
    %c0_i32_0 = arith.constant 0 : i32
    %c0_i32_1 = arith.constant 0 : i32
    return %c0_i32, %c0_i32_0 : i32, i32
  }
  func.func @transform_4(%arg0: i32, %arg1: i32) -> (i32, i32) {
    %c0_i32 = arith.constant 0 : i32
    %c0_i32_0 = arith.constant 0 : i32
    %c0_i32_1 = arith.constant 0 : i32
    return %c0_i32, %c0_i32_0 : i32, i32
  }
  func.func @transform_5(%arg0: i32, %arg1: i32) -> (i32, i32) {
    %c0_i32 = arith.constant 0 : i32
    %c0_i32_0 = arith.constant 0 : i32
    %c0_i32_1 = arith.constant 0 : i32
    return %c0_i32, %c0_i32_0 : i32, i32
  }
  func.func @transform_6(%arg0: i32, %arg1: i32) -> (i32, i32) {
    %c0_i32 = arith.constant 0 : i32
    %c0_i32_0 = arith.constant 0 : i32
    %c0_i32_1 = arith.constant 0 : i32
    return %c0_i32, %c0_i32_0 : i32, i32
  }
  func.func @transform_7(%arg0: i32, %arg1: i32) -> (i32, i32) {
    %c0_i32 = arith.constant 0 : i32
    %c0_i32_0 = arith.constant 0 : i32
    %c0_i32_1 = arith.constant 0 : i32
    return %c0_i32, %c0_i32_0 : i32, i32
  }
  func.func @transform_8(%arg0: i32, %arg1: i32) -> (i32, i32) {
    %c0_i32 = arith.constant 0 : i32
    %c0_i32_0 = arith.constant 0 : i32
    %c0_i32_1 = arith.constant 0 : i32
    return %c0_i32, %c0_i32_0 : i32, i32
  }
  func.func @transform_9(%arg0: i32, %arg1: i32) -> (i32, i32) {
    %c0_i32 = arith.constant 0 : i32
    %c0_i32_0 = arith.constant 0 : i32
    %c0_i32_1 = arith.constant 0 : i32
    return %c0_i32, %c0_i32_0 : i32, i32
  }
  func.func @transform_10(%arg0: i32, %arg1: i32) -> (i32, i32) {
    %c0_i32 = arith.constant 0 : i32
    %c0_i32_0 = arith.constant 0 : i32
    %c0_i32_1 = arith.constant 0 : i32
    return %c0_i32, %c0_i32_0 : i32, i32
  }
  func.func @transform_11(%arg0: i32, %arg1: i32) -> (i32, i32) {
    %c0_i32 = arith.constant 0 : i32
    %c0_i32_0 = arith.constant 0 : i32
    %c0_i32_1 = arith.constant 0 : i32
    return %c0_i32, %c0_i32_0 : i32, i32
  }
  func.func @transform_12(%arg0: i32, %arg1: i32) -> (i32, i32, i32) {
    %c0_i32 = arith.constant 0 : i32
    %c0_i32_0 = arith.constant 0 : i32
    return %arg0, %arg1, %c0_i32 : i32, i32, i32
  }
}

module attributes {stable_mosaic.version = 11 : i64} {
  func.func @_postnet_fused_kernel(%arg0: i32, %arg1: i32, %arg2: memref<1x1x32x128xf32, #tpu.memory_space<vmem>>, %arg3: memref<1x32x128xf32, #tpu.memory_space<vmem>>, %arg4: memref<640x128xf32, #tpu.memory_space<vmem>>, %arg5: memref<640x128xf32, #tpu.memory_space<vmem>>, %arg6: memref<640x128xf32, #tpu.memory_space<vmem>>, %arg7: memref<640x128xf32, #tpu.memory_space<vmem>>, %arg8: memref<640x128xf32, #tpu.memory_space<vmem>>, %arg9: memref<1x128xf32, #tpu.memory_space<vmem>>, %arg10: memref<1x128xf32, #tpu.memory_space<vmem>>, %arg11: memref<1x128xf32, #tpu.memory_space<vmem>>, %arg12: memref<1x128xf32, #tpu.memory_space<vmem>>, %arg13: memref<1x128xf32, #tpu.memory_space<vmem>>, %arg14: memref<1x32x128xf32, #tpu.memory_space<vmem>>) attributes {dimension_semantics = [#tpu.dimension_semantics<parallel>, #tpu.dimension_semantics<parallel>], iteration_bounds = array<i64: 2, 1>, scalar_prefetch = 0 : i64, scratch_operands = 0 : i64, tpu.core_type = #tpu.core_type<tc>, window_params = [{transform_indices = @transform_0, window_bounds = array<i64: 1, 1, 32, 128>}, {transform_indices = @transform_1, window_bounds = array<i64: 1, 32, 128>}, {pipeline_mode = #tpu.pipeline_mode<synchronous>, transform_indices = @transform_2, window_bounds = array<i64: 640, 128>}, {pipeline_mode = #tpu.pipeline_mode<synchronous>, transform_indices = @transform_3, window_bounds = array<i64: 640, 128>}, {pipeline_mode = #tpu.pipeline_mode<synchronous>, transform_indices = @transform_4, window_bounds = array<i64: 640, 128>}, {pipeline_mode = #tpu.pipeline_mode<synchronous>, transform_indices = @transform_5, window_bounds = array<i64: 640, 128>}, {pipeline_mode = #tpu.pipeline_mode<synchronous>, transform_indices = @transform_6, window_bounds = array<i64: 640, 128>}, {pipeline_mode = #tpu.pipeline_mode<synchronous>, transform_indices = @transform_7, window_bounds = array<i64: 1, 128>}, {pipeline_mode = #tpu.pipeline_mode<synchronous>, transform_indices = @transform_8, window_bounds = array<i64: 1, 128>}, {pipeline_mode = #tpu.pipeline_mode<synchronous>, transform_indices = @transform_9, window_bounds = array<i64: 1, 128>}, {pipeline_mode = #tpu.pipeline_mode<synchronous>, transform_indices = @transform_10, window_bounds = array<i64: 1, 128>}, {pipeline_mode = #tpu.pipeline_mode<synchronous>, transform_indices = @transform_11, window_bounds = array<i64: 1, 128>}, {transform_indices = @transform_12, window_bounds = array<i64: 1, 32, 128>}]} {
    %c32_i32 = arith.constant 32 : i32
    %0 = arith.muli %arg1, %c32_i32 : i32
    %c0 = arith.constant 0 : index
    %c0_0 = arith.constant 0 : index
    %c0_1 = arith.constant 0 : index
    %c0_2 = arith.constant 0 : index
    %1 = vector.load %arg2[%c0, %c0_0, %c0_1, %c0_2] : memref<1x1x32x128xf32, #tpu.memory_space<vmem>>, vector<1x1x32x128xf32>
    %2 = vector.shape_cast %1 : vector<1x1x32x128xf32> to vector<32x128xf32>
    %c0_3 = arith.constant 0 : index
    %c0_4 = arith.constant 0 : index
    %c0_5 = arith.constant 0 : index
    %3 = vector.load %arg3[%c0_3, %c0_4, %c0_5] : memref<1x32x128xf32, #tpu.memory_space<vmem>>, vector<1x32x128xf32>
    %4 = vector.shape_cast %3 : vector<1x32x128xf32> to vector<32x128xf32>
    %5 = tpu.concatenate %2, %4 in 0 : vector<32x128xf32>, vector<32x128xf32> -> vector<64x128xf32>
    %6 = vector.extract_strided_slice %5 {offsets = [0, 0], sizes = [60, 128], strides = [1, 1]} : vector<64x128xf32> to vector<60x128xf32>
    %7 = vector.extract_strided_slice %5 {offsets = [1, 0], sizes = [60, 128], strides = [1, 1]} : vector<64x128xf32> to vector<60x128xf32>
    %8 = vector.extract_strided_slice %5 {offsets = [2, 0], sizes = [60, 128], strides = [1, 1]} : vector<64x128xf32> to vector<60x128xf32>
    %9 = vector.extract_strided_slice %5 {offsets = [3, 0], sizes = [60, 128], strides = [1, 1]} : vector<64x128xf32> to vector<60x128xf32>
    %10 = vector.extract_strided_slice %5 {offsets = [4, 0], sizes = [60, 128], strides = [1, 1]} : vector<64x128xf32> to vector<60x128xf32>
    %11 = tpu.concatenate %6, %7, %8, %9, %10 in 1 : vector<60x128xf32>, vector<60x128xf32>, vector<60x128xf32>, vector<60x128xf32>, vector<60x128xf32> -> vector<60x640xf32>
    %c0_6 = arith.constant 0 : index
    %c0_7 = arith.constant 0 : index
    %12 = vector.load %arg4[%c0_6, %c0_7] : memref<640x128xf32, #tpu.memory_space<vmem>>, vector<640x128xf32>
    %cst = arith.constant dense<0.000000e+00> : vector<60x128xf32>
    %13 = tpu.matmul %11, %12, %cst {dimension_numbers = #tpu.dot_dimension_numbers<[1], [0], [0], [1], [0, 0, 1, 1], [], []>} : vector<60x640xf32>, vector<640x128xf32>, vector<60x128xf32> -> vector<60x128xf32>
    %c0_8 = arith.constant 0 : index
    %c0_9 = arith.constant 0 : index
    %14 = vector.load %arg9[%c0_8, %c0_9] : memref<1x128xf32, #tpu.memory_space<vmem>>, vector<1x128xf32>
    %15 = vector.broadcast %14 : vector<1x128xf32> to vector<60x128xf32>
    %16 = arith.addf %13, %15 : vector<60x128xf32>
    %17 = math.tanh %16 : vector<60x128xf32>
    %c28_i32 = arith.constant 28 : i32
    %18 = arith.subi %c28_i32, %0 : i32
    %19 = tpu.iota {dimensions = array<i32: 0>} : vector<60x1xi32>
    %20 = vector.broadcast %18 : i32 to vector<60x1xi32>
    %21 = arith.cmpi slt, %19, %20 : vector<60x1xi32>
    %cst_10 = arith.constant 0.000000e+00 : f32
    %22 = vector.broadcast %cst_10 : f32 to vector<60x128xf32>
    %23 = vector.shape_cast %21 : vector<60x1xi1> to vector<60x1xi1>
    %24 = vector.broadcast %23 : vector<60x1xi1> to vector<60x128xi1>
    %25 = arith.select %24, %22, %17 : vector<60x128xi1>, vector<60x128xf32>
    %26 = vector.extract_strided_slice %25 {offsets = [0, 0], sizes = [56, 128], strides = [1, 1]} : vector<60x128xf32> to vector<56x128xf32>
    %27 = vector.extract_strided_slice %25 {offsets = [1, 0], sizes = [56, 128], strides = [1, 1]} : vector<60x128xf32> to vector<56x128xf32>
    %28 = vector.extract_strided_slice %25 {offsets = [2, 0], sizes = [56, 128], strides = [1, 1]} : vector<60x128xf32> to vector<56x128xf32>
    %29 = vector.extract_strided_slice %25 {offsets = [3, 0], sizes = [56, 128], strides = [1, 1]} : vector<60x128xf32> to vector<56x128xf32>
    %30 = vector.extract_strided_slice %25 {offsets = [4, 0], sizes = [56, 128], strides = [1, 1]} : vector<60x128xf32> to vector<56x128xf32>
    %31 = tpu.concatenate %26, %27, %28, %29, %30 in 1 : vector<56x128xf32>, vector<56x128xf32>, vector<56x128xf32>, vector<56x128xf32>, vector<56x128xf32> -> vector<56x640xf32>
    %c0_11 = arith.constant 0 : index
    %c0_12 = arith.constant 0 : index
    %32 = vector.load %arg5[%c0_11, %c0_12] : memref<640x128xf32, #tpu.memory_space<vmem>>, vector<640x128xf32>
    %cst_13 = arith.constant dense<0.000000e+00> : vector<56x128xf32>
    %33 = tpu.matmul %31, %32, %cst_13 {dimension_numbers = #tpu.dot_dimension_numbers<[1], [0], [0], [1], [0, 0, 1, 1], [], []>} : vector<56x640xf32>, vector<640x128xf32>, vector<56x128xf32> -> vector<56x128xf32>
    %c0_14 = arith.constant 0 : index
    %c0_15 = arith.constant 0 : index
    %34 = vector.load %arg10[%c0_14, %c0_15] : memref<1x128xf32, #tpu.memory_space<vmem>>, vector<1x128xf32>
    %35 = vector.broadcast %34 : vector<1x128xf32> to vector<56x128xf32>
    %36 = arith.addf %33, %35 : vector<56x128xf32>
    %37 = math.tanh %36 : vector<56x128xf32>
    %c24_i32 = arith.constant 24 : i32
    %38 = arith.subi %c24_i32, %0 : i32
    %39 = tpu.iota {dimensions = array<i32: 0>} : vector<56x1xi32>
    %40 = vector.broadcast %38 : i32 to vector<56x1xi32>
    %41 = arith.cmpi slt, %39, %40 : vector<56x1xi32>
    %cst_16 = arith.constant 0.000000e+00 : f32
    %42 = vector.broadcast %cst_16 : f32 to vector<56x128xf32>
    %43 = vector.shape_cast %41 : vector<56x1xi1> to vector<56x1xi1>
    %44 = vector.broadcast %43 : vector<56x1xi1> to vector<56x128xi1>
    %45 = arith.select %44, %42, %37 : vector<56x128xi1>, vector<56x128xf32>
    %46 = vector.extract_strided_slice %45 {offsets = [0, 0], sizes = [52, 128], strides = [1, 1]} : vector<56x128xf32> to vector<52x128xf32>
    %47 = vector.extract_strided_slice %45 {offsets = [1, 0], sizes = [52, 128], strides = [1, 1]} : vector<56x128xf32> to vector<52x128xf32>
    %48 = vector.extract_strided_slice %45 {offsets = [2, 0], sizes = [52, 128], strides = [1, 1]} : vector<56x128xf32> to vector<52x128xf32>
    %49 = vector.extract_strided_slice %45 {offsets = [3, 0], sizes = [52, 128], strides = [1, 1]} : vector<56x128xf32> to vector<52x128xf32>
    %50 = vector.extract_strided_slice %45 {offsets = [4, 0], sizes = [52, 128], strides = [1, 1]} : vector<56x128xf32> to vector<52x128xf32>
    %51 = tpu.concatenate %46, %47, %48, %49, %50 in 1 : vector<52x128xf32>, vector<52x128xf32>, vector<52x128xf32>, vector<52x128xf32>, vector<52x128xf32> -> vector<52x640xf32>
    %c0_17 = arith.constant 0 : index
    %c0_18 = arith.constant 0 : index
    %52 = vector.load %arg6[%c0_17, %c0_18] : memref<640x128xf32, #tpu.memory_space<vmem>>, vector<640x128xf32>
    %cst_19 = arith.constant dense<0.000000e+00> : vector<52x128xf32>
    %53 = tpu.matmul %51, %52, %cst_19 {dimension_numbers = #tpu.dot_dimension_numbers<[1], [0], [0], [1], [0, 0, 1, 1], [], []>} : vector<52x640xf32>, vector<640x128xf32>, vector<52x128xf32> -> vector<52x128xf32>
    %c0_20 = arith.constant 0 : index
    %c0_21 = arith.constant 0 : index
    %54 = vector.load %arg11[%c0_20, %c0_21] : memref<1x128xf32, #tpu.memory_space<vmem>>, vector<1x128xf32>
    %55 = vector.broadcast %54 : vector<1x128xf32> to vector<52x128xf32>
    %56 = arith.addf %53, %55 : vector<52x128xf32>
    %57 = math.tanh %56 : vector<52x128xf32>
    %c20_i32 = arith.constant 20 : i32
    %58 = arith.subi %c20_i32, %0 : i32
    %59 = tpu.iota {dimensions = array<i32: 0>} : vector<52x1xi32>
    %60 = vector.broadcast %58 : i32 to vector<52x1xi32>
    %61 = arith.cmpi slt, %59, %60 : vector<52x1xi32>
    %cst_22 = arith.constant 0.000000e+00 : f32
    %62 = vector.broadcast %cst_22 : f32 to vector<52x128xf32>
    %63 = vector.shape_cast %61 : vector<52x1xi1> to vector<52x1xi1>
    %64 = vector.broadcast %63 : vector<52x1xi1> to vector<52x128xi1>
    %65 = arith.select %64, %62, %57 : vector<52x128xi1>, vector<52x128xf32>
    %66 = vector.extract_strided_slice %65 {offsets = [0, 0], sizes = [48, 128], strides = [1, 1]} : vector<52x128xf32> to vector<48x128xf32>
    %67 = vector.extract_strided_slice %65 {offsets = [1, 0], sizes = [48, 128], strides = [1, 1]} : vector<52x128xf32> to vector<48x128xf32>
    %68 = vector.extract_strided_slice %65 {offsets = [2, 0], sizes = [48, 128], strides = [1, 1]} : vector<52x128xf32> to vector<48x128xf32>
    %69 = vector.extract_strided_slice %65 {offsets = [3, 0], sizes = [48, 128], strides = [1, 1]} : vector<52x128xf32> to vector<48x128xf32>
    %70 = vector.extract_strided_slice %65 {offsets = [4, 0], sizes = [48, 128], strides = [1, 1]} : vector<52x128xf32> to vector<48x128xf32>
    %71 = tpu.concatenate %66, %67, %68, %69, %70 in 1 : vector<48x128xf32>, vector<48x128xf32>, vector<48x128xf32>, vector<48x128xf32>, vector<48x128xf32> -> vector<48x640xf32>
    %c0_23 = arith.constant 0 : index
    %c0_24 = arith.constant 0 : index
    %72 = vector.load %arg7[%c0_23, %c0_24] : memref<640x128xf32, #tpu.memory_space<vmem>>, vector<640x128xf32>
    %cst_25 = arith.constant dense<0.000000e+00> : vector<48x128xf32>
    %73 = tpu.matmul %71, %72, %cst_25 {dimension_numbers = #tpu.dot_dimension_numbers<[1], [0], [0], [1], [0, 0, 1, 1], [], []>} : vector<48x640xf32>, vector<640x128xf32>, vector<48x128xf32> -> vector<48x128xf32>
    %c0_26 = arith.constant 0 : index
    %c0_27 = arith.constant 0 : index
    %74 = vector.load %arg12[%c0_26, %c0_27] : memref<1x128xf32, #tpu.memory_space<vmem>>, vector<1x128xf32>
    %75 = vector.broadcast %74 : vector<1x128xf32> to vector<48x128xf32>
    %76 = arith.addf %73, %75 : vector<48x128xf32>
    %77 = math.tanh %76 : vector<48x128xf32>
    %c16_i32 = arith.constant 16 : i32
    %78 = arith.subi %c16_i32, %0 : i32
    %79 = tpu.iota {dimensions = array<i32: 0>} : vector<48x1xi32>
    %80 = vector.broadcast %78 : i32 to vector<48x1xi32>
    %81 = arith.cmpi slt, %79, %80 : vector<48x1xi32>
    %cst_28 = arith.constant 0.000000e+00 : f32
    %82 = vector.broadcast %cst_28 : f32 to vector<48x128xf32>
    %83 = vector.shape_cast %81 : vector<48x1xi1> to vector<48x1xi1>
    %84 = vector.broadcast %83 : vector<48x1xi1> to vector<48x128xi1>
    %85 = arith.select %84, %82, %77 : vector<48x128xi1>, vector<48x128xf32>
    %86 = vector.extract_strided_slice %85 {offsets = [0, 0], sizes = [44, 128], strides = [1, 1]} : vector<48x128xf32> to vector<44x128xf32>
    %87 = vector.extract_strided_slice %85 {offsets = [1, 0], sizes = [44, 128], strides = [1, 1]} : vector<48x128xf32> to vector<44x128xf32>
    %88 = vector.extract_strided_slice %85 {offsets = [2, 0], sizes = [44, 128], strides = [1, 1]} : vector<48x128xf32> to vector<44x128xf32>
    %89 = vector.extract_strided_slice %85 {offsets = [3, 0], sizes = [44, 128], strides = [1, 1]} : vector<48x128xf32> to vector<44x128xf32>
    %90 = vector.extract_strided_slice %85 {offsets = [4, 0], sizes = [44, 128], strides = [1, 1]} : vector<48x128xf32> to vector<44x128xf32>
    %91 = tpu.concatenate %86, %87, %88, %89, %90 in 1 : vector<44x128xf32>, vector<44x128xf32>, vector<44x128xf32>, vector<44x128xf32>, vector<44x128xf32> -> vector<44x640xf32>
    %c0_29 = arith.constant 0 : index
    %c0_30 = arith.constant 0 : index
    %92 = vector.load %arg8[%c0_29, %c0_30] : memref<640x128xf32, #tpu.memory_space<vmem>>, vector<640x128xf32>
    %cst_31 = arith.constant dense<0.000000e+00> : vector<44x128xf32>
    %93 = tpu.matmul %91, %92, %cst_31 {dimension_numbers = #tpu.dot_dimension_numbers<[1], [0], [0], [1], [0, 0, 1, 1], [], []>} : vector<44x640xf32>, vector<640x128xf32>, vector<44x128xf32> -> vector<44x128xf32>
    %c0_32 = arith.constant 0 : index
    %c0_33 = arith.constant 0 : index
    %94 = vector.load %arg13[%c0_32, %c0_33] : memref<1x128xf32, #tpu.memory_space<vmem>>, vector<1x128xf32>
    %95 = vector.broadcast %94 : vector<1x128xf32> to vector<44x128xf32>
    %96 = arith.addf %93, %95 : vector<44x128xf32>
    %97 = vector.extract_strided_slice %96 {offsets = [12, 0], sizes = [32, 128], strides = [1, 1]} : vector<44x128xf32> to vector<32x128xf32>
    %c0_34 = arith.constant 0 : index
    %c0_35 = arith.constant 0 : index
    %c0_36 = arith.constant 0 : index
    %98 = vector.load %arg14[%c0_34, %c0_35, %c0_36] : memref<1x32x128xf32, #tpu.memory_space<vmem>>, vector<1x32x128xf32>
    %99 = vector.shape_cast %98 : vector<1x32x128xf32> to vector<32x128xf32>
    %100 = vector.shape_cast %97 : vector<32x128xf32> to vector<1x32x128xf32>
    tpu.vector_store %arg14[%c0_34, %c0_35, %c0_36], %100 {strides = array<i32>} : memref<1x32x128xf32, #tpu.memory_space<vmem>>, vector<1x32x128xf32>,
    return
  }
  func.func @transform_0(%arg0: i32, %arg1: i32) -> (i32, i32, i32, i32) {
    %c0_i32 = arith.constant 0 : i32
    %c0_i32_0 = arith.constant 0 : i32
    %c0_i32_1 = arith.constant 0 : i32
    return %arg0, %arg1, %c0_i32, %c0_i32_0 : i32, i32, i32, i32
  }
  func.func @transform_1(%arg0: i32, %arg1: i32) -> (i32, i32, i32) {
    %c0_i32 = arith.constant 0 : i32
    %c0_i32_0 = arith.constant 0 : i32
    return %arg0, %arg1, %c0_i32 : i32, i32, i32
  }
  func.func @transform_2(%arg0: i32, %arg1: i32) -> (i32, i32) {
    %c0_i32 = arith.constant 0 : i32
    %c0_i32_0 = arith.constant 0 : i32
    %c0_i32_1 = arith.constant 0 : i32
    return %c0_i32, %c0_i32_0 : i32, i32
  }
  func.func @transform_3(%arg0: i32, %arg1: i32) -> (i32, i32) {
    %c0_i32 = arith.constant 0 : i32
    %c0_i32_0 = arith.constant 0 : i32
    %c0_i32_1 = arith.constant 0 : i32
    return %c0_i32, %c0_i32_0 : i32, i32
  }
  func.func @transform_4(%arg0: i32, %arg1: i32) -> (i32, i32) {
    %c0_i32 = arith.constant 0 : i32
    %c0_i32_0 = arith.constant 0 : i32
    %c0_i32_1 = arith.constant 0 : i32
    return %c0_i32, %c0_i32_0 : i32, i32
  }
  func.func @transform_5(%arg0: i32, %arg1: i32) -> (i32, i32) {
    %c0_i32 = arith.constant 0 : i32
    %c0_i32_0 = arith.constant 0 : i32
    %c0_i32_1 = arith.constant 0 : i32
    return %c0_i32, %c0_i32_0 : i32, i32
  }
  func.func @transform_6(%arg0: i32, %arg1: i32) -> (i32, i32) {
    %c0_i32 = arith.constant 0 : i32
    %c0_i32_0 = arith.constant 0 : i32
    %c0_i32_1 = arith.constant 0 : i32
    return %c0_i32, %c0_i32_0 : i32, i32
  }
  func.func @transform_7(%arg0: i32, %arg1: i32) -> (i32, i32) {
    %c0_i32 = arith.constant 0 : i32
    %c0_i32_0 = arith.constant 0 : i32
    %c0_i32_1 = arith.constant 0 : i32
    return %c0_i32, %c0_i32_0 : i32, i32
  }
  func.func @transform_8(%arg0: i32, %arg1: i32) -> (i32, i32) {
    %c0_i32 = arith.constant 0 : i32
    %c0_i32_0 = arith.constant 0 : i32
    %c0_i32_1 = arith.constant 0 : i32
    return %c0_i32, %c0_i32_0 : i32, i32
  }
  func.func @transform_9(%arg0: i32, %arg1: i32) -> (i32, i32) {
    %c0_i32 = arith.constant 0 : i32
    %c0_i32_0 = arith.constant 0 : i32
    %c0_i32_1 = arith.constant 0 : i32
    return %c0_i32, %c0_i32_0 : i32, i32
  }
  func.func @transform_10(%arg0: i32, %arg1: i32) -> (i32, i32) {
    %c0_i32 = arith.constant 0 : i32
    %c0_i32_0 = arith.constant 0 : i32
    %c0_i32_1 = arith.constant 0 : i32
    return %c0_i32, %c0_i32_0 : i32, i32
  }
  func.func @transform_11(%arg0: i32, %arg1: i32) -> (i32, i32) {
    %c0_i32 = arith.constant 0 : i32
    %c0_i32_0 = arith.constant 0 : i32
    %c0_i32_1 = arith.constant 0 : i32
    return %c0_i32, %c0_i32_0 : i32, i32
  }
  func.func @transform_12(%arg0: i32, %arg1: i32) -> (i32, i32, i32) {
    %c0_i32 = arith.constant 0 : i32
    %c0_i32_0 = arith.constant 0 : i32
    return %arg0, %arg1, %c0_i32 : i32, i32, i32
  }
}

</mosaic_0001>

<llo_original>
// kernel: tpu_custom_call.1
$region0: #{tpu_custom_call.1}
  #allocation0 [shape = 'u32[]', space=smem, size = 0x4, offset = 0x4, fixed_abs, tag = 'smem constant byte address 0x4 - core index']
  #allocation1 [shape = 'u32[144,128]{1,0:T(1,128)}', space=vmem, size = 0x12000, scoped, tag = 'internal scratch']
  %s0 = inlined_call_operand.hbm [shape: f32[2,1,32,128], index: 0, kind: input, shape index: {}]
  %s1 = inlined_call_operand.hbm [shape: f32[2,32,128], index: 1, kind: input, shape index: {}]
  %s2 = inlined_call_operand.hbm [shape: f32[640,128], index: 2, kind: input, shape index: {}]
  %s3 = inlined_call_operand.hbm [shape: f32[640,128], index: 3, kind: input, shape index: {}]
  %s4 = inlined_call_operand.hbm [shape: f32[640,128], index: 4, kind: input, shape index: {}]
  %s5 = inlined_call_operand.hbm [shape: f32[640,128], index: 5, kind: input, shape index: {}]
  %s6 = inlined_call_operand.hbm [shape: f32[640,128], index: 6, kind: input, shape index: {}]
  %s7 = inlined_call_operand.vmem [shape: f32[1,128], index: 7, kind: input, shape index: {}]
  %s8 = inlined_call_operand.vmem [shape: f32[1,128], index: 8, kind: input, shape index: {}]
  %s9 = inlined_call_operand.vmem [shape: f32[1,128], index: 9, kind: input, shape index: {}]
  %s10 = inlined_call_operand.vmem [shape: f32[1,128], index: 10, kind: input, shape index: {}]
  %s11 = inlined_call_operand.vmem [shape: f32[1,128], index: 11, kind: input, shape index: {}]
  %s12 = inlined_call_operand.hbm [shape: f32[2,32,128], index: 12, kind: output, shape index: {}]
  %s13 = sld [smem:[#allocation0]]
  $region109: #{tpu_custom_call.1} parent=0
    _
  %s15 = ssub.s32 1, %s13
  %s16 = scalar_select 0, %s15, %s13
  $region1: #{tpu_custom_call.1} parent=0
    #allocation2 [shape = 'u8[32768]{0}', space=vmem, size = 0x8000, scoped, tag = 'input window, operand 0']
    #allocation3 [shape = 's32[2]{0}', space=sflag, size = 0x8, scoped, tag = 'scoped memory for tpu_custom_call.1']
    #allocation4 [shape = 's32[2]{0}', space=sflag, size = 0x8, scoped, tag = 'scoped memory for tpu_custom_call.1']
    #allocation5 [shape = 'u8[32768]{0}', space=vmem, size = 0x8000, scoped, tag = 'input window, operand 1']
    #allocation6 [shape = 's32[2]{0}', space=sflag, size = 0x8, scoped, tag = 'scoped memory for tpu_custom_call.1']
    #allocation7 [shape = 'u8[327680]{0}', space=vmem, size = 0x50000, scoped, tag = 'input window, operand 2, single buffered']
    #allocation8 [shape = 'u8[327680]{0}', space=vmem, size = 0x50000, scoped, tag = 'input window, operand 3, single buffered']
    #allocation9 [shape = 's32[1]{0}', space=sflag, size = 0x4, scoped, tag = 'scoped memory for tpu_custom_call.1']
    #allocation10 [shape = 'u8[327680]{0}', space=vmem, size = 0x50000, scoped, tag = 'input window, operand 4, single buffered']
    #allocation11 [shape = 'u8[327680]{0}', space=vmem, size = 0x50000, scoped, tag = 'input window, operand 5, single buffered']
    #allocation12 [shape = 's32[1]{0}', space=sflag, size = 0x4, scoped, tag = 'scoped memory for tpu_custom_call.1']
    #allocation13 [shape = 'u8[327680]{0}', space=vmem, size = 0x50000, scoped, tag = 'input window, operand 6, single buffered']
    #allocation14 [shape = 'u8[32768]{0}', space=vmem, size = 0x8000, scoped, tag = 'output window, operand 0']
    %17 = vsyncpa [#allocation3], 0
    %s18 = scalar_lea.sflag [#allocation3], 1
    %19 = vsyncpa %s18, 0
    %20 = vsyncpa [#allocation6], 0
    %s21 = scalar_lea.sflag [#allocation6], 1
    %22 = vsyncpa %s21, 0
    %23 = vsyncpa [#allocation9], 0
    %24 = vsyncpa [#allocation12], 0
    %25 = vsyncpa [#allocation4], 0
    %s26 = scalar_lea.sflag [#allocation4], 1
    %27 = vsyncpa %s26, 0
    loop: start=0, step=1, limit=4
    $region2: #{tpu_custom_call.1} parent=1 // loop_pre_header
      _
    $region3: #{tpu_custom_call.1} parent=1 // loop_header
      %s29 = sphi 0, %s33
      %p30 = scmp.ge.s32.totalorder %s29, 4
      %s36 = sphi 0, %s48
      %s37 = sphi 0, %s44
      %s38 = sphi 0, %s36
      %s39 = sphi 0, %s37
      %s40 = sphi 0, %s38
      %s41 = sphi 0, %s39
      %s53 = sphi 0, %s55
      %s56 = sphi 0, %s53
      %s57 = sphi 0, %s56
      %s73 = sphi 0, %s57
      %s81 = sphi 0, %s83
      %s84 = sphi 0, %s81
      %s85 = sphi 0, %s84
      %s101 = sphi 0, %s85
      %s105 = sphi 0, %s105
      %s107 = sphi 0, %s105
      %s108 = sphi 0, %s107
      %s122 = sphi 0, %s108
      %s126 = sphi 0, %s126
      %s128 = sphi 0, %s126
      %s129 = sphi 0, %s128
      %s143 = sphi 0, %s129
      %s147 = sphi 0, %s147
      %s149 = sphi 0, %s147
      %s150 = sphi 0, %s149
      %s164 = sphi 0, %s150
      %s168 = sphi 0, %s168
      %s170 = sphi 0, %s168
      %s171 = sphi 0, %s170
      %s185 = sphi 0, %s171
      %s189 = sphi 0, %s189
      %s191 = sphi 0, %s189
      %s192 = sphi 0, %s191
      %s206 = sphi 0, %s192
      %s210 = sphi 0, %s210
      %s212 = sphi 0, %s210
      %s213 = sphi 0, %s212
      %s227 = sphi 0, %s213
      %s231 = sphi 0, %s231
      %s233 = sphi 0, %s231
      %s234 = sphi 0, %s233
      %s248 = sphi 0, %s234
      %s252 = sphi 0, %s252
      %s254 = sphi 0, %s252
      %s255 = sphi 0, %s254
      %s269 = sphi 0, %s255
      %s273 = sphi 0, %s273
      %s275 = sphi 0, %s273
      %s276 = sphi 0, %s275
      %s290 = sphi 0, %s276
      %s294 = sphi 0, %s294
      %s296 = sphi 0, %s294
      %s297 = sphi 0, %s296
      %s311 = sphi 0, %s297
      %s319 = sphi 0, %s321
      %s322 = sphi 0, %s319
      %s323 = sphi 0, %s322
      %s339 = sphi 0, %s323
    $region4: #{tpu_custom_call.1} parent=1 // loop_header_branch
      %32 = sbr.rel (%p30) target = $region8
    $region5: #{tpu_custom_call.1} parent=1 // loop_body
      %s34 = ssub.s32 %s29, 1
      %s35 = ssub.s32 %s29, 2
      %s42 = sadd.s32 1, %s37
      %p43 = scmp.ge.s32.totalorder %s42, 1
      %s44 = scalar_select %p43, 0, %s42
      %s45 = sadd.s32 1, %s36
      %s46 = scalar_select %p43, %s45, %s36
      %p47 = scmp.ge.s32.totalorder %s46, 2
      %s48 = scalar_select %p47, 0, %s46
      %s49 = ssub.s32 %s36, %s48
      %s50 = ssub.s32 %s37, %s44
      %s51 = sor.u32 %s49, %s50
      %p52 = scmp.eq.s32.totalorder %s51, 0
      %s54 = sadd.s32 %s53, 1
      %s55 = scalar_select %p52, %s53, %s54
      %p58 = pneg %p52
      %p59 = scmp.eq.s32.totalorder %s29, 1
      %p60 = por %p58, %p59
      %p61 = scmp.ne.s32.totalorder %s53, %s56
      %p62 = scmp.eq.s32.totalorder %s29, 0
      %p63 = por %p61, %p62
      %p64 = scmp.ne.s32.totalorder %s53, %s56
      %p65 = scmp.eq.s32.totalorder %s34, 1
      %p66 = por %p64, %p65
      %p67 = scmp.ne.s32.totalorder %s56, %s57
      %p68 = scmp.eq.s32.totalorder %s34, 0
      %p69 = por %p67, %p68
      %p70 = scmp.ne.s32.totalorder %s56, %s57
      %p71 = scmp.eq.s32.totalorder %s35, 1
      %p72 = por %p70, %p71
      %p74 = scmp.ne.s32.totalorder %s57, %s73
      %p75 = scmp.eq.s32.totalorder %s35, 0
      %p76 = por %p74, %p75
      %s77 = ssub.s32 %s36, %s48
      %s78 = ssub.s32 %s37, %s44
      %s79 = sor.u32 %s77, %s78
      %p80 = scmp.eq.s32.totalorder %s79, 0
      %s82 = sadd.s32 %s81, 1
      %s83 = scalar_select %p80, %s81, %s82
      %p86 = pneg %p80
      %p87 = scmp.eq.s32.totalorder %s29, 1
      %p88 = por %p86, %p87
      %p89 = scmp.ne.s32.totalorder %s81, %s84
      %p90 = scmp.eq.s32.totalorder %s29, 0
      %p91 = por %p89, %p90
      %p92 = scmp.ne.s32.totalorder %s81, %s84
      %p93 = scmp.eq.s32.totalorder %s34, 1
      %p94 = por %p92, %p93
      %p95 = scmp.ne.s32.totalorder %s84, %s85
      %p96 = scmp.eq.s32.totalorder %s34, 0
      %p97 = por %p95, %p96
      %p98 = scmp.ne.s32.totalorder %s84, %s85
      %p99 = scmp.eq.s32.totalorder %s35, 1
      %p100 = por %p98, %p99
      %p102 = scmp.ne.s32.totalorder %s85, %s101
      %p103 = scmp.eq.s32.totalorder %s35, 0
      %p104 = por %p102, %p103
      %s106 = sadd.s32 %s105, 1
      %p109 = scmp.eq.s32.totalorder %s29, 1
      %p110 = scmp.ne.s32.totalorder %s105, %s107
      %p111 = scmp.eq.s32.totalorder %s29, 0
      %p112 = por %p110, %p111
      %p113 = scmp.ne.s32.totalorder %s105, %s107
      %p114 = scmp.eq.s32.totalorder %s34, 1
      %p115 = por %p113, %p114
      %p116 = scmp.ne.s32.totalorder %s107, %s108
      %p117 = scmp.eq.s32.totalorder %s34, 0
      %p118 = por %p116, %p117
      %p119 = scmp.ne.s32.totalorder %s107, %s108
      %p120 = scmp.eq.s32.totalorder %s35, 1
      %p121 = por %p119, %p120
      %p123 = scmp.ne.s32.totalorder %s108, %s122
      %p124 = scmp.eq.s32.totalorder %s35, 0
      %p125 = por %p123, %p124
      %s127 = sadd.s32 %s126, 1
      %p130 = scmp.eq.s32.totalorder %s29, 1
      %p131 = scmp.ne.s32.totalorder %s126, %s128
      %p132 = scmp.eq.s32.totalorder %s29, 0
      %p133 = por %p131, %p132
      %p134 = scmp.ne.s32.totalorder %s126, %s128
      %p135 = scmp.eq.s32.totalorder %s34, 1
      %p136 = por %p134, %p135
      %p137 = scmp.ne.s32.totalorder %s128, %s129
      %p138 = scmp.eq.s32.totalorder %s34, 0
      %p139 = por %p137, %p138
      %p140 = scmp.ne.s32.totalorder %s128, %s129
      %p141 = scmp.eq.s32.totalorder %s35, 1
      %p142 = por %p140, %p141
      %p144 = scmp.ne.s32.totalorder %s129, %s143
      %p145 = scmp.eq.s32.totalorder %s35, 0
      %p146 = por %p144, %p145
      %s148 = sadd.s32 %s147, 1
      %p151 = scmp.eq.s32.totalorder %s29, 1
      %p152 = scmp.ne.s32.totalorder %s147, %s149
      %p153 = scmp.eq.s32.totalorder %s29, 0
      %p154 = por %p152, %p153
      %p155 = scmp.ne.s32.totalorder %s147, %s149
      %p156 = scmp.eq.s32.totalorder %s34, 1
      %p157 = por %p155, %p156
      %p158 = scmp.ne.s32.totalorder %s149, %s150
      %p159 = scmp.eq.s32.totalorder %s34, 0
      %p160 = por %p158, %p159
      %p161 = scmp.ne.s32.totalorder %s149, %s150
      %p162 = scmp.eq.s32.totalorder %s35, 1
      %p163 = por %p161, %p162
      %p165 = scmp.ne.s32.totalorder %s150, %s164
      %p166 = scmp.eq.s32.totalorder %s35, 0
      %p167 = por %p165, %p166
      %s169 = sadd.s32 %s168, 1
      %p172 = scmp.eq.s32.totalorder %s29, 1
      %p173 = scmp.ne.s32.totalorder %s168, %s170
      %p174 = scmp.eq.s32.totalorder %s29, 0
      %p175 = por %p173, %p174
      %p176 = scmp.ne.s32.totalorder %s168, %s170
      %p177 = scmp.eq.s32.totalorder %s34, 1
      %p178 = por %p176, %p177
      %p179 = scmp.ne.s32.totalorder %s170, %s171
      %p180 = scmp.eq.s32.totalorder %s34, 0
      %p181 = por %p179, %p180
      %p182 = scmp.ne.s32.totalorder %s170, %s171
      %p183 = scmp.eq.s32.totalorder %s35, 1
      %p184 = por %p182, %p183
      %p186 = scmp.ne.s32.totalorder %s171, %s185
      %p187 = scmp.eq.s32.totalorder %s35, 0
      %p188 = por %p186, %p187
      %s190 = sadd.s32 %s189, 1
      %p193 = scmp.eq.s32.totalorder %s29, 1
      %p194 = scmp.ne.s32.totalorder %s189, %s191
      %p195 = scmp.eq.s32.totalorder %s29, 0
      %p196 = por %p194, %p195
      %p197 = scmp.ne.s32.totalorder %s189, %s191
      %p198 = scmp.eq.s32.totalorder %s34, 1
      %p199 = por %p197, %p198
      %p200 = scmp.ne.s32.totalorder %s191, %s192
      %p201 = scmp.eq.s32.totalorder %s34, 0
      %p202 = por %p200, %p201
      %p203 = scmp.ne.s32.totalorder %s191, %s192
      %p204 = scmp.eq.s32.totalorder %s35, 1
      %p205 = por %p203, %p204
      %p207 = scmp.ne.s32.totalorder %s192, %s206
      %p208 = scmp.eq.s32.totalorder %s35, 0
      %p209 = por %p207, %p208
      %s211 = sadd.s32 %s210, 1
      %p214 = scmp.eq.s32.totalorder %s29, 1
      %p215 = scmp.ne.s32.totalorder %s210, %s212
      %p216 = scmp.eq.s32.totalorder %s29, 0
      %p217 = por %p215, %p216
      %p218 = scmp.ne.s32.totalorder %s210, %s212
      %p219 = scmp.eq.s32.totalorder %s34, 1
      %p220 = por %p218, %p219
      %p221 = scmp.ne.s32.totalorder %s212, %s213
      %p222 = scmp.eq.s32.totalorder %s34, 0
      %p223 = por %p221, %p222
      %p224 = scmp.ne.s32.totalorder %s212, %s213
      %p225 = scmp.eq.s32.totalorder %s35, 1
      %p226 = por %p224, %p225
      %p228 = scmp.ne.s32.totalorder %s213, %s227
      %p229 = scmp.eq.s32.totalorder %s35, 0
      %p230 = por %p228, %p229
      %s232 = sadd.s32 %s231, 1
      %p235 = scmp.eq.s32.totalorder %s29, 1
      %p236 = scmp.ne.s32.totalorder %s231, %s233
      %p237 = scmp.eq.s32.totalorder %s29, 0
      %p238 = por %p236, %p237
      %p239 = scmp.ne.s32.totalorder %s231, %s233
      %p240 = scmp.eq.s32.totalorder %s34, 1
      %p241 = por %p239, %p240
      %p242 = scmp.ne.s32.totalorder %s233, %s234
      %p243 = scmp.eq.s32.totalorder %s34, 0
      %p244 = por %p242, %p243
      %p245 = scmp.ne.s32.totalorder %s233, %s234
      %p246 = scmp.eq.s32.totalorder %s35, 1
      %p247 = por %p245, %p246
      %p249 = scmp.ne.s32.totalorder %s234, %s248
      %p250 = scmp.eq.s32.totalorder %s35, 0
      %p251 = por %p249, %p250
      %s253 = sadd.s32 %s252, 1
      %p256 = scmp.eq.s32.totalorder %s29, 1
      %p257 = scmp.ne.s32.totalorder %s252, %s254
      %p258 = scmp.eq.s32.totalorder %s29, 0
      %p259 = por %p257, %p258
      %p260 = scmp.ne.s32.totalorder %s252, %s254
      %p261 = scmp.eq.s32.totalorder %s34, 1
      %p262 = por %p260, %p261
      %p263 = scmp.ne.s32.totalorder %s254, %s255
      %p264 = scmp.eq.s32.totalorder %s34, 0
      %p265 = por %p263, %p264
      %p266 = scmp.ne.s32.totalorder %s254, %s255
      %p267 = scmp.eq.s32.totalorder %s35, 1
      %p268 = por %p266, %p267
      %p270 = scmp.ne.s32.totalorder %s255, %s269
      %p271 = scmp.eq.s32.totalorder %s35, 0
      %p272 = por %p270, %p271
      %s274 = sadd.s32 %s273, 1
      %p277 = scmp.eq.s32.totalorder %s29, 1
      %p278 = scmp.ne.s32.totalorder %s273, %s275
      %p279 = scmp.eq.s32.totalorder %s29, 0
      %p280 = por %p278, %p279
      %p281 = scmp.ne.s32.totalorder %s273, %s275
      %p282 = scmp.eq.s32.totalorder %s34, 1
      %p283 = por %p281, %p282
      %p284 = scmp.ne.s32.totalorder %s275, %s276
      %p285 = scmp.eq.s32.totalorder %s34, 0
      %p286 = por %p284, %p285
      %p287 = scmp.ne.s32.totalorder %s275, %s276
      %p288 = scmp.eq.s32.totalorder %s35, 1
      %p289 = por %p287, %p288
      %p291 = scmp.ne.s32.totalorder %s276, %s290
      %p292 = scmp.eq.s32.totalorder %s35, 0
      %p293 = por %p291, %p292
      %s295 = sadd.s32 %s294, 1
      %p298 = scmp.eq.s32.totalorder %s29, 1
      %p299 = scmp.ne.s32.totalorder %s294, %s296
      %p300 = scmp.eq.s32.totalorder %s29, 0
      %p301 = por %p299, %p300
      %p302 = scmp.ne.s32.totalorder %s294, %s296
      %p303 = scmp.eq.s32.totalorder %s34, 1
      %p304 = por %p302, %p303
      %p305 = scmp.ne.s32.totalorder %s296, %s297
      %p306 = scmp.eq.s32.totalorder %s34, 0
      %p307 = por %p305, %p306
      %p308 = scmp.ne.s32.totalorder %s296, %s297
      %p309 = scmp.eq.s32.totalorder %s35, 1
      %p310 = por %p308, %p309
      %p312 = scmp.ne.s32.totalorder %s297, %s311
      %p313 = scmp.eq.s32.totalorder %s35, 0
      %p314 = por %p312, %p313
      %s315 = ssub.s32 %s36, %s48
      %s316 = ssub.s32 %s37, %s44
      %s317 = sor.u32 %s315, %s316
      %p318 = scmp.eq.s32.totalorder %s317, 0
      %s320 = sadd.s32 %s319, 1
      %s321 = scalar_select %p318, %s319, %s320
      %p324 = pneg %p318
      %p325 = scmp.eq.s32.totalorder %s29, 1
      %p326 = por %p324, %p325
      %p327 = scmp.ne.s32.totalorder %s319, %s322
      %p328 = scmp.eq.s32.totalorder %s29, 0
      %p329 = por %p327, %p328
      %p330 = scmp.ne.s32.totalorder %s319, %s322
      %p331 = scmp.eq.s32.totalorder %s34, 1
      %p332 = por %p330, %p331
      %p333 = scmp.ne.s32.totalorder %s322, %s323
      %p334 = scmp.eq.s32.totalorder %s34, 0
      %p335 = por %p333, %p334
      %p336 = scmp.ne.s32.totalorder %s322, %s323
      %p337 = scmp.eq.s32.totalorder %s35, 1
      %p338 = por %p336, %p337
      %p340 = scmp.ne.s32.totalorder %s323, %s339
      %p341 = scmp.eq.s32.totalorder %s35, 0
      %p342 = por %p340, %p341
      %p343 = scmp.le.s32.totalorder 1, %s29
      %p344 = scmp.lt.s32.totalorder %s29, 3
      %p345 = pnand %p343, %p344
      %p346 = pneg %p345
      // Predicated region
      $region9: #{tpu_custom_call.1} parent=5 // pred_check
        _
      $region10: #{tpu_custom_call.1} parent=5 // pred_check_branch
        %348 = sbr.rel (%p345) target = $region12
      $region11: #{tpu_custom_call.1} parent=5 // pred_region
        %s349 = ssub.s32 %s29, 1
        // Predicated region
        $region13: #{tpu_custom_call.1} parent=11 // pred_check
          %p350 = pneg %p118
        $region14: #{tpu_custom_call.1} parent=11 // pred_check_branch
          %352 = sbr.rel (%p350) target = $region16
        $region15: #{tpu_custom_call.1} parent=11 // pred_region
          %s354 = ssub.s32 10240, 10240
          %355 = vsyncadd [#allocation6], %s354
          %s356 = sshll.u32 [#allocation7], 4
          %s357 = int_to_ptr.vmem [resolvable:$true] %s356
          %362 = dma.hbm_to_vmem [thread:$0]  %s2, 10240, %s357, [#allocation6], 128, 128, 8
        $region16: #{tpu_custom_call.1} parent=11 // pred_fallthru
          _
        // Predicated region
        $region17: #{tpu_custom_call.1} parent=11 // pred_check
          %p363 = pneg %p139
        $region18: #{tpu_custom_call.1} parent=11 // pred_check_branch
          %365 = sbr.rel (%p363) target = $region20
        $region19: #{tpu_custom_call.1} parent=11 // pred_region
          %s367 = ssub.s32 10240, 10240
          %368 = vsyncadd [#allocation9], %s367
          %s369 = sshll.u32 [#allocation8], 4
          %s370 = int_to_ptr.vmem [resolvable:$true] %s369
          %375 = dma.hbm_to_vmem [thread:$0]  %s3, 10240, %s370, [#allocation9], 128, 128, 8
        $region20: #{tpu_custom_call.1} parent=11 // pred_fallthru
          _
        // Predicated region
        $region21: #{tpu_custom_call.1} parent=11 // pred_check
          %p376 = pneg %p160
        $region22: #{tpu_custom_call.1} parent=11 // pred_check_branch
          %378 = sbr.rel (%p376) target = $region24
        $region23: #{tpu_custom_call.1} parent=11 // pred_region
          %s380 = ssub.s32 10240, 10240
          %381 = vsyncadd [#allocation9], %s380
          %s382 = sshll.u32 [#allocation10], 4
          %s383 = int_to_ptr.vmem [resolvable:$true] %s382
          %388 = dma.hbm_to_vmem [thread:$0]  %s4, 10240, %s383, [#allocation9], 128, 128, 8
        $region24: #{tpu_custom_call.1} parent=11 // pred_fallthru
          _
        // Predicated region
        $region25: #{tpu_custom_call.1} parent=11 // pred_check
          %p389 = pneg %p181
        $region26: #{tpu_custom_call.1} parent=11 // pred_check_branch
          %391 = sbr.rel (%p389) target = $region28
        $region27: #{tpu_custom_call.1} parent=11 // pred_region
          %s393 = ssub.s32 10240, 10240
          %394 = vsyncadd [#allocation12], %s393
          %s395 = sshll.u32 [#allocation11], 4
          %s396 = int_to_ptr.vmem [resolvable:$true] %s395
          %401 = dma.hbm_to_vmem [thread:$0]  %s5, 10240, %s396, [#allocation12], 128, 128, 8
        $region28: #{tpu_custom_call.1} parent=11 // pred_fallthru
          _
        // Predicated region
        $region29: #{tpu_custom_call.1} parent=11 // pred_check
          %p402 = pneg %p202
        $region30: #{tpu_custom_call.1} parent=11 // pred_check_branch
          %404 = sbr.rel (%p402) target = $region32
        $region31: #{tpu_custom_call.1} parent=11 // pred_region
          %s406 = ssub.s32 10240, 10240
          %407 = vsyncadd [#allocation12], %s406
          %s408 = sshll.u32 [#allocation13], 4
          %s409 = int_to_ptr.vmem [resolvable:$true] %s408
          %414 = dma.hbm_to_vmem [thread:$0]  %s6, 10240, %s409, [#allocation12], 128, 128, 8
        $region32: #{tpu_custom_call.1} parent=11 // pred_fallthru
          _
        // Predicated region
        $region33: #{tpu_custom_call.1} parent=11 // pred_check
          %p415 = pneg %p223
        $region34: #{tpu_custom_call.1} parent=11 // pred_check_branch
          %417 = sbr.rel (%p415) target = $region36
        $region35: #{tpu_custom_call.1} parent=11 // pred_region
          _
        $region36: #{tpu_custom_call.1} parent=11 // pred_fallthru
          _
        // Predicated region
        $region37: #{tpu_custom_call.1} parent=11 // pred_check
          %p418 = pneg %p244
        $region38: #{tpu_custom_call.1} parent=11 // pred_check_branch
          %420 = sbr.rel (%p418) target = $region40
        $region39: #{tpu_custom_call.1} parent=11 // pred_region
          _
        $region40: #{tpu_custom_call.1} parent=11 // pred_fallthru
          _
        // Predicated region
        $region41: #{tpu_custom_call.1} parent=11 // pred_check
          %p421 = pneg %p265
        $region42: #{tpu_custom_call.1} parent=11 // pred_check_branch
          %423 = sbr.rel (%p421) target = $region44
        $region43: #{tpu_custom_call.1} parent=11 // pred_region
          _
        $region44: #{tpu_custom_call.1} parent=11 // pred_fallthru
          _
        // Predicated region
        $region45: #{tpu_custom_call.1} parent=11 // pred_check
          %p424 = pneg %p286
        $region46: #{tpu_custom_call.1} parent=11 // pred_check_branch
          %426 = sbr.rel (%p424) target = $region48
        $region47: #{tpu_custom_call.1} parent=11 // pred_region
          _
        $region48: #{tpu_custom_call.1} parent=11 // pred_fallthru
          _
        // Predicated region
        $region49: #{tpu_custom_call.1} parent=11 // pred_check
          %p427 = pneg %p307
        $region50: #{tpu_custom_call.1} parent=11 // pred_check_branch
          %429 = sbr.rel (%p427) target = $region52
        $region51: #{tpu_custom_call.1} parent=11 // pred_region
          _
        $region52: #{tpu_custom_call.1} parent=11 // pred_fallthru
          _
      $region12: #{tpu_custom_call.1} parent=5 // pred_fallthru
        _
      %p430 = scmp.lt.s32.totalorder %s29, 2
      // Predicated region
      $region53: #{tpu_custom_call.1} parent=5 // pred_check
        %p431 = pneg %p430
      $region54: #{tpu_custom_call.1} parent=5 // pred_check_branch
        %433 = sbr.rel (%p431) target = $region56
      $region55: #{tpu_custom_call.1} parent=5 // pred_region
        // Predicated region
        $region57: #{tpu_custom_call.1} parent=55 // pred_check
          %p434 = pneg %p63
        $region58: #{tpu_custom_call.1} parent=55 // pred_check_branch
          %436 = sbr.rel (%p434) target = $region60
        $region59: #{tpu_custom_call.1} parent=55 // pred_region
          %s437 = sand.u32 %s53, 1
          %s438 = scalar_lea.sflag [#allocation3], %s437
          %s439 = sand.u32 %s53, 1
          %s440 = smul.addr %s439, 32
          %s441 = scalar_lea.vmem [#allocation2], %s440
          %s443 = ssub.s32 512, 512
          %444 = vsyncadd %s438, %s443
          %s445 = smul.addr %s37, 4
          %s446 = smul.addr %s36, 4
          %s447 = sadd.s32 %s445, %s446
          %s448 = smul.addr %s447, 128
          %s449 = scalar_lea.hbm %s0, %s448
          %s450 = sshll.u32 %s441, 4
          %s451 = int_to_ptr.vmem [resolvable:$true] %s450
          %456 = dma.hbm_to_vmem [thread:$0]  %s449, 512, %s451, %s438, 128, 128, 8
        $region60: #{tpu_custom_call.1} parent=55 // pred_fallthru
          _
        // Predicated region
        $region61: #{tpu_custom_call.1} parent=55 // pred_check
          %p457 = pneg %p91
        $region62: #{tpu_custom_call.1} parent=55 // pred_check_branch
          %459 = sbr.rel (%p457) target = $region64
        $region63: #{tpu_custom_call.1} parent=55 // pred_region
          %s460 = sand.u32 %s29, 1
          %s461 = scalar_lea.sflag [#allocation6], %s460
          %s462 = sand.u32 %s81, 1
          %s463 = smul.addr %s462, 32
          %s464 = scalar_lea.vmem [#allocation5], %s463
          %s465 = smul.u32 4, %s37
          %s467 = ssub.s32 512, 512
          %468 = vsyncadd %s461, %s467
          %s469 = smul.addr %s36, 4
          %s470 = sadd.s32 %s465, %s469
          %s471 = smul.addr %s470, 128
          %s472 = scalar_lea.hbm %s1, %s471
          %s473 = sshll.u32 %s464, 4
          %s474 = int_to_ptr.vmem [resolvable:$true] %s473
          %479 = dma.hbm_to_vmem [thread:$0]  %s472, 512, %s474, %s461, 128, 128, 8
        $region64: #{tpu_custom_call.1} parent=55 // pred_fallthru
          _
      $region56: #{tpu_custom_call.1} parent=5 // pred_fallthru
        _
      %p480 = scmp.le.s32.totalorder 1, %s29
      %p481 = scmp.lt.s32.totalorder %s29, 3
      %p482 = pnand %p480, %p481
      %p483 = pneg %p482
      // Predicated region
      $region65: #{tpu_custom_call.1} parent=5 // pred_check
        _
      $region66: #{tpu_custom_call.1} parent=5 // pred_check_branch
        %485 = sbr.rel (%p482) target = $region68
      $region67: #{tpu_custom_call.1} parent=5 // pred_region
        %s486 = ssub.s32 %s29, 1
        %s487 = sand.u32 %s56, 1
        %s488 = scalar_lea.sflag [#allocation3], %s487
        %s489 = sand.u32 %s56, 1
        %s490 = smul.addr %s489, 32
        %s491 = scalar_lea.vmem [#allocation2], %s490
        // Predicated region
        $region69: #{tpu_custom_call.1} parent=67 // pred_check
          %p492 = pneg %p69
        $region70: #{tpu_custom_call.1} parent=67 // pred_check_branch
          %494 = sbr.rel (%p492) target = $region72
        $region71: #{tpu_custom_call.1} parent=67 // pred_region
          %495 = dma.done %s488, 512
        $region72: #{tpu_custom_call.1} parent=67 // pred_fallthru
          _
        %s496 = sand.u32 %s34, 1
        %s497 = scalar_lea.sflag [#allocation6], %s496
        %s498 = sand.u32 %s84, 1
        %s499 = smul.addr %s498, 32
        %s500 = scalar_lea.vmem [#allocation5], %s499
        // Predicated region
        $region73: #{tpu_custom_call.1} parent=67 // pred_check
          %p501 = pneg %p97
        $region74: #{tpu_custom_call.1} parent=67 // pred_check_branch
          %503 = sbr.rel (%p501) target = $region76
        $region75: #{tpu_custom_call.1} parent=67 // pred_region
          %504 = dma.done %s497, 512
        $region76: #{tpu_custom_call.1} parent=67 // pred_fallthru
          _
        // Predicated region
        $region77: #{tpu_custom_call.1} parent=67 // pred_check
          %p505 = pneg %p118
        $region78: #{tpu_custom_call.1} parent=67 // pred_check_branch
          %507 = sbr.rel (%p505) target = $region80
        $region79: #{tpu_custom_call.1} parent=67 // pred_region
          %508 = dma.done [#allocation6], 10240
        $region80: #{tpu_custom_call.1} parent=67 // pred_fallthru
          _
        // Predicated region
        $region81: #{tpu_custom_call.1} parent=67 // pred_check
          %p509 = pneg %p139
        $region82: #{tpu_custom_call.1} parent=67 // pred_check_branch
          %511 = sbr.rel (%p509) target = $region84
        $region83: #{tpu_custom_call.1} parent=67 // pred_region
          %512 = dma.done [#allocation9], 10240
        $region84: #{tpu_custom_call.1} parent=67 // pred_fallthru
          _
        // Predicated region
        $region85: #{tpu_custom_call.1} parent=67 // pred_check
          %p513 = pneg %p160
        $region86: #{tpu_custom_call.1} parent=67 // pred_check_branch
          %515 = sbr.rel (%p513) target = $region88
        $region87: #{tpu_custom_call.1} parent=67 // pred_region
          %516 = dma.done [#allocation9], 10240
        $region88: #{tpu_custom_call.1} parent=67 // pred_fallthru
          _
        // Predicated region
        $region89: #{tpu_custom_call.1} parent=67 // pred_check
          %p517 = pneg %p181
        $region90: #{tpu_custom_call.1} parent=67 // pred_check_branch
          %519 = sbr.rel (%p517) target = $region92
        $region91: #{tpu_custom_call.1} parent=67 // pred_region
          %520 = dma.done [#allocation12], 10240
        $region92: #{tpu_custom_call.1} parent=67 // pred_fallthru
          _
        // Predicated region
        $region93: #{tpu_custom_call.1} parent=67 // pred_check
          %p521 = pneg %p202
        $region94: #{tpu_custom_call.1} parent=67 // pred_check_branch
          %523 = sbr.rel (%p521) target = $region96
        $region95: #{tpu_custom_call.1} parent=67 // pred_region
          %524 = dma.done [#allocation12], 10240
        $region96: #{tpu_custom_call.1} parent=67 // pred_fallthru
          _
        %s525 = sand.u32 %s56, 1
        %s526 = scalar_lea.sflag [#allocation3], %s525
        %s527 = sand.u32 %s56, 1
        %s528 = smul.addr %s527, 32
        %s529 = scalar_lea.vmem [#allocation2], %s528
        %p530 = pneg %p69
        %p531 = pneg %p66
        %s532 = sand.u32 %s34, 1
        %s533 = scalar_lea.sflag [#allocation6], %s532
        %s534 = sand.u32 %s84, 1
        %s535 = smul.addr %s534, 32
        %s536 = scalar_lea.vmem [#allocation5], %s535
        %p537 = pneg %p97
        %p538 = pneg %p94
        %p539 = pneg %p118
        %p540 = pneg %p115
        %p541 = pneg %p139
        %p542 = pneg %p136
        %p543 = pneg %p160
        %p544 = pneg %p157
        %p545 = pneg %p181
        %p546 = pneg %p178
        %p547 = pneg %p202
        %p548 = pneg %p199
        %p549 = pneg %p223
        %p550 = pneg %p220
        %p551 = pneg %p244
        %p552 = pneg %p241
        %p553 = pneg %p265
        %p554 = pneg %p262
        %p555 = pneg %p286
        %p556 = pneg %p283
        %p557 = pneg %p307
        %p558 = pneg %p304
        %p559 = pneg %p335
        %p560 = pneg %p332
        %s561 = sand.u32 %s322, 1
        %s562 = scalar_lea.sflag [#allocation4], %s561
        %s563 = sand.u32 %s322, 1
        %s564 = smul.addr %s563, 32
        %s565 = scalar_lea.vmem [#allocation14], %s564
        %s566 = smul.u32 4, %s39
        %s567 = smul.u32 4, %s39
        %s568 = smul.u32 %s39, 32
        %v569 = vld [vmem:[%s491] sm:$0xff]
        %v570 = vld [vmem:[%s491 + $0x8] sm:$0xff]
        %v571 = vld [vmem:[%s491 + $0x10] sm:$0xff]
        %v572 = vld [vmem:[%s491 + $0x18] sm:$0xff]
        %v573 = vld [vmem:[%s500] sm:$0xff]
        %v574 = vld [vmem:[%s500 + $0x8] sm:$0xff]
        %v575 = vld [vmem:[%s500 + $0x10] sm:$0xff]
        %v576 = vld [vmem:[%s500 + $0x18] sm:$0xff]
        %vm585 = vcmask 1046528
        %v586 = vrot.slane %v569, 1
        %v587 = vrot.slane %v570, 1
        %v588 = vsel %vm585, %v586, %v587
        %v589 = vrot.slane %v571, 1
        %v590 = vsel %vm585, %v587, %v589
        %v591 = vrot.slane %v572, 1
        %v592 = vsel %vm585, %v589, %v591
        %v593 = vrot.slane %v573, 1
        %v594 = vsel %vm585, %v591, %v593
        %v595 = vrot.slane %v574, 1
        %v596 = vsel %vm585, %v593, %v595
        %v597 = vrot.slane %v575, 1
        %v598 = vsel %vm585, %v595, %v597
        %v599 = vrot.slane %v576, 1
        %v600 = vsel %vm585, %v597, %v599
        %vm609 = vcmask 1045504
        %v610 = vrot.slane %v569, 2
        %v611 = vrot.slane %v570, 2
        %v612 = vsel %vm609, %v610, %v611
        %v613 = vrot.slane %v571, 2
        %v614 = vsel %vm609, %v611, %v613
        %v615 = vrot.slane %v572, 2
        %v616 = vsel %vm609, %v613, %v615
        %v617 = vrot.slane %v573, 2
        %v618 = vsel %vm609, %v615, %v617
        %v619 = vrot.slane %v574, 2
        %v620 = vsel %vm609, %v617, %v619
        %v621 = vrot.slane %v575, 2
        %v622 = vsel %vm609, %v619, %v621
        %v623 = vrot.slane %v576, 2
        %v624 = vsel %vm609, %v621, %v623
        %vm633 = vcmask 1044480
        %v634 = vrot.slane %v569, 3
        %v635 = vrot.slane %v570, 3
        %v636 = vsel %vm633, %v634, %v635
        %v637 = vrot.slane %v571, 3
        %v638 = vsel %vm633, %v635, %v637
        %v639 = vrot.slane %v572, 3
        %v640 = vsel %vm633, %v637, %v639
        %v641 = vrot.slane %v573, 3
        %v642 = vsel %vm633, %v639, %v641
        %v643 = vrot.slane %v574, 3
        %v644 = vsel %vm633, %v641, %v643
        %v645 = vrot.slane %v575, 3
        %v646 = vsel %vm633, %v643, %v645
        %v647 = vrot.slane %v576, 3
        %v648 = vsel %vm633, %v645, %v647
        %vm657 = vcmask 1043456
        %v658 = vrot.slane %v569, 4
        %v659 = vrot.slane %v570, 4
        %v660 = vsel %vm657, %v658, %v659
        %v661 = vrot.slane %v571, 4
        %v662 = vsel %vm657, %v659, %v661
        %v663 = vrot.slane %v572, 4
        %v664 = vsel %vm657, %v661, %v663
        %v665 = vrot.slane %v573, 4
        %v666 = vsel %vm657, %v663, %v665
        %v667 = vrot.slane %v574, 4
        %v668 = vsel %vm657, %v665, %v667
        %v669 = vrot.slane %v575, 4
        %v670 = vsel %vm657, %v667, %v669
        %v671 = vrot.slane %v576, 4
        %v672 = vsel %vm657, %v669, %v671
        %v681 = vld [vmem:[#allocation7] sm:$0xff]
        %v682 = vld [vmem:[#allocation7 + $0x8] sm:$0xff]
        %v683 = vld [vmem:[#allocation7 + $0x10] sm:$0xff]
        %v684 = vld [vmem:[#allocation7 + $0x18] sm:$0xff]
        %v685 = vld [vmem:[#allocation7 + $0x20] sm:$0xff]
        %v686 = vld [vmem:[#allocation7 + $0x28] sm:$0xff]
        %v687 = vld [vmem:[#allocation7 + $0x30] sm:$0xff]
        %v688 = vld [vmem:[#allocation7 + $0x38] sm:$0xff]
        %v689 = vld [vmem:[#allocation7 + $0x40] sm:$0xff]
        %v690 = vld [vmem:[#allocation7 + $0x48] sm:$0xff]
        %v691 = vld [vmem:[#allocation7 + $0x50] sm:$0xff]
        %v692 = vld [vmem:[#allocation7 + $0x58] sm:$0xff]
        %v693 = vld [vmem:[#allocation7 + $0x60] sm:$0xff]
        %v694 = vld [vmem:[#allocation7 + $0x68] sm:$0xff]
        %v695 = vld [vmem:[#allocation7 + $0x70] sm:$0xff]
        %v696 = vld [vmem:[#allocation7 + $0x78] sm:$0xff]
        %v697 = vld [vmem:[#allocation7 + $0x80] sm:$0xff]
        %v698 = vld [vmem:[#allocation7 + $0x88] sm:$0xff]
        %v699 = vld [vmem:[#allocation7 + $0x90] sm:$0xff]
        %v700 = vld [vmem:[#allocation7 + $0x98] sm:$0xff]
        %v701 = vld [vmem:[#allocation7 + $0xa0] sm:$0xff]
        %v702 = vld [vmem:[#allocation7 + $0xa8] sm:$0xff]
        %v703 = vld [vmem:[#allocation7 + $0xb0] sm:$0xff]
        %v704 = vld [vmem:[#allocation7 + $0xb8] sm:$0xff]
        %v705 = vld [vmem:[#allocation7 + $0xc0] sm:$0xff]
        %v706 = vld [vmem:[#allocation7 + $0xc8] sm:$0xff]
        %v707 = vld [vmem:[#allocation7 + $0xd0] sm:$0xff]
        %v708 = vld [vmem:[#allocation7 + $0xd8] sm:$0xff]
        %v709 = vld [vmem:[#allocation7 + $0xe0] sm:$0xff]
        %v710 = vld [vmem:[#allocation7 + $0xe8] sm:$0xff]
        %v711 = vld [vmem:[#allocation7 + $0xf0] sm:$0xff]
        %v712 = vld [vmem:[#allocation7 + $0xf8] sm:$0xff]
        %v713 = vld [vmem:[#allocation7 + $0x100] sm:$0xff]
        %v714 = vld [vmem:[#allocation7 + $0x108] sm:$0xff]
        %v715 = vld [vmem:[#allocation7 + $0x110] sm:$0xff]
        %v716 = vld [vmem:[#allocation7 + $0x118] sm:$0xff]
        %v717 = vld [vmem:[#allocation7 + $0x120] sm:$0xff]
        %v718 = vld [vmem:[#allocation7 + $0x128] sm:$0xff]
        %v719 = vld [vmem:[#allocation7 + $0x130] sm:$0xff]
        %v720 = vld [vmem:[#allocation7 + $0x138] sm:$0xff]
        %v721 = vld [vmem:[#allocation7 + $0x140] sm:$0xff]
        %v722 = vld [vmem:[#allocation7 + $0x148] sm:$0xff]
        %v723 = vld [vmem:[#allocation7 + $0x150] sm:$0xff]
        %v724 = vld [vmem:[#allocation7 + $0x158] sm:$0xff]
        %v725 = vld [vmem:[#allocation7 + $0x160] sm:$0xff]
        %v726 = vld [vmem:[#allocation7 + $0x168] sm:$0xff]
        %v727 = vld [vmem:[#allocation7 + $0x170] sm:$0xff]
        %v728 = vld [vmem:[#allocation7 + $0x178] sm:$0xff]
        %v729 = vld [vmem:[#allocation7 + $0x180] sm:$0xff]
        %v730 = vld [vmem:[#allocation7 + $0x188] sm:$0xff]
        %v731 = vld [vmem:[#allocation7 + $0x190] sm:$0xff]
        %v732 = vld [vmem:[#allocation7 + $0x198] sm:$0xff]
        %v733 = vld [vmem:[#allocation7 + $0x1a0] sm:$0xff]
        %v734 = vld [vmem:[#allocation7 + $0x1a8] sm:$0xff]
        %v735 = vld [vmem:[#allocation7 + $0x1b0] sm:$0xff]
        %v736 = vld [vmem:[#allocation7 + $0x1b8] sm:$0xff]
        %v737 = vld [vmem:[#allocation7 + $0x1c0] sm:$0xff]
        %v738 = vld [vmem:[#allocation7 + $0x1c8] sm:$0xff]
        %v739 = vld [vmem:[#allocation7 + $0x1d0] sm:$0xff]
        %v740 = vld [vmem:[#allocation7 + $0x1d8] sm:$0xff]
        %v741 = vld [vmem:[#allocation7 + $0x1e0] sm:$0xff]
        %v742 = vld [vmem:[#allocation7 + $0x1e8] sm:$0xff]
        %v743 = vld [vmem:[#allocation7 + $0x1f0] sm:$0xff]
        %v744 = vld [vmem:[#allocation7 + $0x1f8] sm:$0xff]
        %v745 = vld [vmem:[#allocation7 + $0x200] sm:$0xff]
        %v746 = vld [vmem:[#allocation7 + $0x208] sm:$0xff]
        %v747 = vld [vmem:[#allocation7 + $0x210] sm:$0xff]
        %v748 = vld [vmem:[#allocation7 + $0x218] sm:$0xff]
        %v749 = vld [vmem:[#allocation7 + $0x220] sm:$0xff]
        %v750 = vld [vmem:[#allocation7 + $0x228] sm:$0xff]
        %v751 = vld [vmem:[#allocation7 + $0x230] sm:$0xff]
        %v752 = vld [vmem:[#allocation7 + $0x238] sm:$0xff]
        %v753 = vld [vmem:[#allocation7 + $0x240] sm:$0xff]
        %v754 = vld [vmem:[#allocation7 + $0x248] sm:$0xff]
        %v755 = vld [vmem:[#allocation7 + $0x250] sm:$0xff]
        %v756 = vld [vmem:[#allocation7 + $0x258] sm:$0xff]
        %v757 = vld [vmem:[#allocation7 + $0x260] sm:$0xff]
        %v758 = vld [vmem:[#allocation7 + $0x268] sm:$0xff]
        %v759 = vld [vmem:[#allocation7 + $0x270] sm:$0xff]
        %v760 = vld [vmem:[#allocation7 + $0x278] sm:$0xff]
        %v761 = vld [vmem:[%s7] sm:$0x1]
        %v763 = vlaneseq
        %v764 = vshrl.u32 %v763, 7
        %v765 = vsub.s32 0, %v764
        %v766 = vrot.slane %v761, %v765
        %768 = vmatprep.subr.mxu0 0.0
        %769 = vmatpush1.msra.mxu0 %v681
        %770 = vmatprep.subr.mxu0 0.0
        %771 = vmatpush1.msra.mxu0 %v682
        %772 = vmatprep.subr.mxu0 0.0
        %773 = vmatpush1.msra.mxu0 %v683
        %774 = vmatprep.subr.mxu0 0.0
        %775 = vmatpush1.msra.mxu0 %v684
        %776 = vmatprep.subr.mxu0 0.0
        %777 = vmatpush1.msra.mxu0 %v685
        %778 = vmatprep.subr.mxu0 0.0
        %779 = vmatpush1.msra.mxu0 %v686
        %780 = vmatprep.subr.mxu0 0.0
        %781 = vmatpush1.msra.mxu0 %v687
        %782 = vmatprep.subr.mxu0 0.0
        %783 = vmatpush1.msra.mxu0 %v688
        %784 = vmatprep.subr.mxu0 0.0
        %785 = vmatpush1.msra.mxu0 %v689
        %786 = vmatprep.subr.mxu0 0.0
        %787 = vmatpush1.msra.mxu0 %v690
        %788 = vmatprep.subr.mxu0 0.0
        %789 = vmatpush1.msra.mxu0 %v691
        %790 = vmatprep.subr.mxu0 0.0
        %791 = vmatpush1.msra.mxu0 %v692
        %792 = vmatprep.subr.mxu0 0.0
        %793 = vmatpush1.msra.mxu0 %v693
        %794 = vmatprep.subr.mxu0 0.0
        %795 = vmatpush1.msra.mxu0 %v694
        %796 = vmatprep.subr.mxu0 0.0
        %797 = vmatpush1.msra.mxu0 %v695
        %798 = vmatprep.subr.mxu0 0.0
        %799 = vmatpush1.msra.mxu0 %v696
        %800 = vmatprep.subr.mxu0 0.0
        %801 = vmatpush1.msra.mxu0 %v697
        %802 = vmatprep.subr.mxu0 0.0
        %803 = vmatpush1.msra.mxu0 %v698
        %804 = vmatprep.subr.mxu0 0.0
        %805 = vmatpush1.msra.mxu0 %v699
        %806 = vmatprep.subr.mxu0 0.0
        %807 = vmatpush1.msra.mxu0 %v700
        %808 = vmatprep.subr.mxu0 0.0
        %809 = vmatpush1.msra.mxu0 %v701
        %810 = vmatprep.subr.mxu0 0.0
        %811 = vmatpush1.msra.mxu0 %v702
        %812 = vmatprep.subr.mxu0 0.0
        %813 = vmatpush1.msra.mxu0 %v703
        %814 = vmatprep.subr.mxu0 0.0
        %815 = vmatpush1.msra.mxu0 %v704
        %816 = vmatprep.subr.mxu0 0.0
        %817 = vmatpush1.msra.mxu0 %v705
        %818 = vmatprep.subr.mxu0 0.0
        %819 = vmatpush1.msra.mxu0 %v706
        %820 = vmatprep.subr.mxu0 0.0
        %821 = vmatpush1.msra.mxu0 %v707
        %822 = vmatprep.subr.mxu0 0.0
        %823 = vmatpush1.msra.mxu0 %v708
        %824 = vmatprep.subr.mxu0 0.0
        %825 = vmatpush1.msra.mxu0 %v709
        %826 = vmatprep.subr.mxu0 0.0
        %827 = vmatpush1.msra.mxu0 %v710
        %828 = vmatprep.subr.mxu0 0.0
        %829 = vmatpush1.msra.mxu0 %v711
        %830 = vmatprep.subr.mxu0 0.0
        %831 = vmatpush1.msra.mxu0 %v712
        %832 = vmatprep.mubr.f32.mxu0 %v588
        %833 = vmatmul.mubr.f32.gmra.mrb[0].mxu0 %v569
        %v834 = vpop.f32.mrb[0].mxu0
        %v835 = vadd.f32 %v766, %v834
        %v836 = vpop.f32.mrb[0].mxu0
        %837 = vmatprep.mubr.f32.mxu0 %v590
        %838 = vmatmul.mubr.f32.gmra.mrb[0].mxu0 %v570
        %v839 = vpop.f32.mrb[0].mxu0
        %v840 = vadd.f32 %v766, %v839
        %v841 = vpop.f32.mrb[0].mxu0
        %842 = vmatprep.mubr.f32.mxu0 %v592
        %843 = vmatmul.mubr.f32.gmra.mrb[0].mxu0 %v571
        %v844 = vpop.f32.mrb[0].mxu0
        %v845 = vadd.f32 %v766, %v844
        %v846 = vpop.f32.mrb[0].mxu0
        %847 = vmatprep.mubr.f32.mxu0 %v594
        %848 = vmatmul.mubr.f32.gmra.mrb[0].mxu0 %v572
        %v849 = vpop.f32.mrb[0].mxu0
        %v850 = vadd.f32 %v766, %v849
        %v851 = vpop.f32.mrb[0].mxu0
        %852 = vmatprep.mubr.f32.mxu0 %v596
        %853 = vmatmul.mubr.f32.gmra.mrb[0].mxu0 %v573
        %v854 = vpop.f32.mrb[0].mxu0
        %v855 = vadd.f32 %v766, %v854
        %v856 = vpop.f32.mrb[0].mxu0
        %857 = vmatprep.mubr.f32.mxu0 %v598
        %858 = vmatmul.mubr.f32.gmra.mrb[0].mxu0 %v574
        %v859 = vpop.f32.mrb[0].mxu0
        %v860 = vadd.f32 %v766, %v859
        %v861 = vpop.f32.mrb[0].mxu0
        %862 = vmatprep.mubr.f32.mxu0 %v600
        %863 = vmatmul.mubr.f32.gmra.mrb[0].mxu0 %v575
        %v864 = vpop.f32.mrb[0].mxu0
        %v865 = vadd.f32 %v766, %v864
        %v866 = vpop.f32.mrb[0].mxu0
        %867 = vmatprep.mubr.f32.mxu0 %v599
        %868 = vmatmul.mubr.f32.gmra.mrb[0].mxu0 %v576
        %v869 = vpop.f32.mrb[0].mxu0
        %v870 = vadd.f32 %v766, %v869
        %v871 = vpop.f32.mrb[0].mxu0
        %872 = vdwg.mxu0
        %873 = vmatprep.subr.mxu0 0.0
        %874 = vmatpush1.msra.mxu0 %v713
        %875 = vmatprep.subr.mxu0 0.0
        %876 = vmatpush1.msra.mxu0 %v714
        %877 = vmatprep.subr.mxu0 0.0
        %878 = vmatpush1.msra.mxu0 %v715
        %879 = vmatprep.subr.mxu0 0.0
        %880 = vmatpush1.msra.mxu0 %v716
        %881 = vmatprep.subr.mxu0 0.0
        %882 = vmatpush1.msra.mxu0 %v717
        %883 = vmatprep.subr.mxu0 0.0
        %884 = vmatpush1.msra.mxu0 %v718
        %885 = vmatprep.subr.mxu0 0.0
        %886 = vmatpush1.msra.mxu0 %v719
        %887 = vmatprep.subr.mxu0 0.0
        %888 = vmatpush1.msra.mxu0 %v720
        %889 = vmatprep.subr.mxu0 0.0
        %890 = vmatpush1.msra.mxu0 %v721
        %891 = vmatprep.subr.mxu0 0.0
        %892 = vmatpush1.msra.mxu0 %v722
        %893 = vmatprep.subr.mxu0 0.0
        %894 = vmatpush1.msra.mxu0 %v723
        %895 = vmatprep.subr.mxu0 0.0
        %896 = vmatpush1.msra.mxu0 %v724
        %897 = vmatprep.subr.mxu0 0.0
        %898 = vmatpush1.msra.mxu0 %v725
        %899 = vmatprep.subr.mxu0 0.0
        %900 = vmatpush1.msra.mxu0 %v726
        %901 = vmatprep.subr.mxu0 0.0
        %902 = vmatpush1.msra.mxu0 %v727
        %903 = vmatprep.subr.mxu0 0.0
        %904 = vmatpush1.msra.mxu0 %v728
        %905 = vmatprep.subr.mxu0 0.0
        %906 = vmatpush1.msra.mxu0 %v729
        %907 = vmatprep.subr.mxu0 0.0
        %908 = vmatpush1.msra.mxu0 %v730
        %909 = vmatprep.subr.mxu0 0.0
        %910 = vmatpush1.msra.mxu0 %v731
        %911 = vmatprep.subr.mxu0 0.0
        %912 = vmatpush1.msra.mxu0 %v732
        %913 = vmatprep.subr.mxu0 0.0
        %914 = vmatpush1.msra.mxu0 %v733
        %915 = vmatprep.subr.mxu0 0.0
        %916 = vmatpush1.msra.mxu0 %v734
        %917 = vmatprep.subr.mxu0 0.0
        %918 = vmatpush1.msra.mxu0 %v735
        %919 = vmatprep.subr.mxu0 0.0
        %920 = vmatpush1.msra.mxu0 %v736
        %921 = vmatprep.subr.mxu0 0.0
        %922 = vmatpush1.msra.mxu0 %v737
        %923 = vmatprep.subr.mxu0 0.0
        %924 = vmatpush1.msra.mxu0 %v738
        %925 = vmatprep.subr.mxu0 0.0
        %926 = vmatpush1.msra.mxu0 %v739
        %927 = vmatprep.subr.mxu0 0.0
        %928 = vmatpush1.msra.mxu0 %v740
        %929 = vmatprep.subr.mxu0 0.0
        %930 = vmatpush1.msra.mxu0 %v741
        %931 = vmatprep.subr.mxu0 0.0
        %932 = vmatpush1.msra.mxu0 %v742
        %933 = vmatprep.subr.mxu0 0.0
        %934 = vmatpush1.msra.mxu0 %v743
        %935 = vmatprep.subr.mxu0 0.0
        %936 = vmatpush1.msra.mxu0 %v744
        %937 = vmatprep.mubr.f32.mxu0 %v636
        %938 = vmatmul.mubr.f32.gmra.mrb[0].mxu0 %v612
        %v939 = vpop.f32.mrb[0].mxu0
        %v940 = vadd.f32 %v835, %v939
        %v941 = vpop.f32.mrb[0].mxu0
        %942 = vmatprep.mubr.f32.mxu0 %v638
        %943 = vmatmul.mubr.f32.gmra.mrb[0].mxu0 %v614
        %v944 = vpop.f32.mrb[0].mxu0
        %v945 = vadd.f32 %v840, %v944
        %v946 = vpop.f32.mrb[0].mxu0
        %947 = vmatprep.mubr.f32.mxu0 %v640
        %948 = vmatmul.mubr.f32.gmra.mrb[0].mxu0 %v616
        %v949 = vpop.f32.mrb[0].mxu0
        %v950 = vadd.f32 %v845, %v949
        %v951 = vpop.f32.mrb[0].mxu0
        %952 = vmatprep.mubr.f32.mxu0 %v642
        %953 = vmatmul.mubr.f32.gmra.mrb[0].mxu0 %v618
        %v954 = vpop.f32.mrb[0].mxu0
        %v955 = vadd.f32 %v850, %v954
        %v956 = vpop.f32.mrb[0].mxu0
        %957 = vmatprep.mubr.f32.mxu0 %v644
        %958 = vmatmul.mubr.f32.gmra.mrb[0].mxu0 %v620
        %v959 = vpop.f32.mrb[0].mxu0
        %v960 = vadd.f32 %v855, %v959
        %v961 = vpop.f32.mrb[0].mxu0
        %962 = vmatprep.mubr.f32.mxu0 %v646
        %963 = vmatmul.mubr.f32.gmra.mrb[0].mxu0 %v622
        %v964 = vpop.f32.mrb[0].mxu0
        %v965 = vadd.f32 %v860, %v964
        %v966 = vpop.f32.mrb[0].mxu0
        %967 = vmatprep.mubr.f32.mxu0 %v648
        %968 = vmatmul.mubr.f32.gmra.mrb[0].mxu0 %v624
        %v969 = vpop.f32.mrb[0].mxu0
        %v970 = vadd.f32 %v865, %v969
        %v971 = vpop.f32.mrb[0].mxu0
        %972 = vmatprep.mubr.f32.mxu0 %v647
        %973 = vmatmul.mubr.f32.gmra.mrb[0].mxu0 %v623
        %v974 = vpop.f32.mrb[0].mxu0
        %v975 = vadd.f32 %v870, %v974
        %v976 = vpop.f32.mrb[0].mxu0
        %977 = vdwg.mxu0
        %978 = vmatprep.subr.mxu0 0.0
        %979 = vmatpush1.msra.mxu0 %v745
        %980 = vmatprep.subr.mxu0 0.0
        %981 = vmatpush1.msra.mxu0 %v746
        %982 = vmatprep.subr.mxu0 0.0
        %983 = vmatpush1.msra.mxu0 %v747
        %984 = vmatprep.subr.mxu0 0.0
        %985 = vmatpush1.msra.mxu0 %v748
        %986 = vmatprep.subr.mxu0 0.0
        %987 = vmatpush1.msra.mxu0 %v749
        %988 = vmatprep.subr.mxu0 0.0
        %989 = vmatpush1.msra.mxu0 %v750
        %990 = vmatprep.subr.mxu0 0.0
        %991 = vmatpush1.msra.mxu0 %v751
        %992 = vmatprep.subr.mxu0 0.0
        %993 = vmatpush1.msra.mxu0 %v752
        %994 = vmatprep.subr.mxu0 0.0
        %995 = vmatpush1.msra.mxu0 %v753
        %996 = vmatprep.subr.mxu0 0.0
        %997 = vmatpush1.msra.mxu0 %v754
        %998 = vmatprep.subr.mxu0 0.0
        %999 = vmatpush1.msra.mxu0 %v755
        %1000 = vmatprep.subr.mxu0 0.0
        %1001 = vmatpush1.msra.mxu0 %v756
        %1002 = vmatprep.subr.mxu0 0.0
        %1003 = vmatpush1.msra.mxu0 %v757
        %1004 = vmatprep.subr.mxu0 0.0
        %1005 = vmatpush1.msra.mxu0 %v758
        %1006 = vmatprep.subr.mxu0 0.0
        %1007 = vmatpush1.msra.mxu0 %v759
        %1008 = vmatprep.subr.mxu0 0.0
        %1009 = vmatpush1.msra.mxu0 %v760
        %1010 = vmatprep.subr.mxu0 0.0
        %1011 = vmatpush1.msra.mxu0 0.0
        %1012 = vmatprep.subr.mxu0 0.0
        %1013 = vmatpush1.msra.mxu0 0.0
        %1014 = vmatprep.subr.mxu0 0.0
        %1015 = vmatpush1.msra.mxu0 0.0
        %1016 = vmatprep.subr.mxu0 0.0
        %1017 = vmatpush1.msra.mxu0 0.0
        %1018 = vmatprep.subr.mxu0 0.0
        %1019 = vmatpush1.msra.mxu0 0.0
        %1020 = vmatprep.subr.mxu0 0.0
        %1021 = vmatpush1.msra.mxu0 0.0
        %1022 = vmatprep.subr.mxu0 0.0
        %1023 = vmatpush1.msra.mxu0 0.0
        %1024 = vmatprep.subr.mxu0 0.0
        %1025 = vmatpush1.msra.mxu0 0.0
        %1026 = vmatprep.subr.mxu0 0.0
        %1027 = vmatpush1.msra.mxu0 0.0
        %1028 = vmatprep.subr.mxu0 0.0
        %1029 = vmatpush1.msra.mxu0 0.0
        %1030 = vmatprep.subr.mxu0 0.0
        %1031 = vmatpush1.msra.mxu0 0.0
        %1032 = vmatprep.subr.mxu0 0.0
        %1033 = vmatpush1.msra.mxu0 0.0
        %1034 = vmatprep.subr.mxu0 0.0
        %1035 = vmatpush1.msra.mxu0 0.0
        %1036 = vmatprep.subr.mxu0 0.0
        %1037 = vmatpush1.msra.mxu0 0.0
        %1038 = vmatprep.subr.mxu0 0.0
        %1039 = vmatpush1.msra.mxu0 0.0
        %1040 = vmatprep.subr.mxu0 0.0
        %1041 = vmatpush1.msra.mxu0 0.0
        %1042 = vmatprep.mubr.f32.mxu0 0.0
        %1043 = vmatmul.mubr.f32.gmra.mrb[0].mxu0 %v660
        %v1044 = vpop.f32.mrb[0].mxu0
        %v1045 = vadd.f32 %v940, %v1044
        %v1046 = vpop.f32.mrb[0].mxu0
        %1047 = vmatprep.mubr.f32.mxu0 0.0
        %1048 = vmatmul.mubr.f32.gmra.mrb[0].mxu0 %v662
        %v1049 = vpop.f32.mrb[0].mxu0
        %v1050 = vadd.f32 %v945, %v1049
        %v1051 = vpop.f32.mrb[0].mxu0
        %1052 = vmatprep.mubr.f32.mxu0 0.0
        %1053 = vmatmul.mubr.f32.gmra.mrb[0].mxu0 %v664
        %v1054 = vpop.f32.mrb[0].mxu0
        %v1055 = vadd.f32 %v950, %v1054
        %v1056 = vpop.f32.mrb[0].mxu0
        %1057 = vmatprep.mubr.f32.mxu0 0.0
        %1058 = vmatmul.mubr.f32.gmra.mrb[0].mxu0 %v666
        %v1059 = vpop.f32.mrb[0].mxu0
        %v1060 = vadd.f32 %v955, %v1059
        %v1061 = vpop.f32.mrb[0].mxu0
        %1062 = vmatprep.mubr.f32.mxu0 0.0
        %1063 = vmatmul.mubr.f32.gmra.mrb[0].mxu0 %v668
        %v1064 = vpop.f32.mrb[0].mxu0
        %v1065 = vadd.f32 %v960, %v1064
        %v1066 = vpop.f32.mrb[0].mxu0
        %1067 = vmatprep.mubr.f32.mxu0 0.0
        %1068 = vmatmul.mubr.f32.gmra.mrb[0].mxu0 %v670
        %v1069 = vpop.f32.mrb[0].mxu0
        %v1070 = vadd.f32 %v965, %v1069
        %v1071 = vpop.f32.mrb[0].mxu0
        %1072 = vmatprep.mubr.f32.mxu0 0.0
        %1073 = vmatmul.mubr.f32.gmra.mrb[0].mxu0 %v672
        %v1074 = vpop.f32.mrb[0].mxu0
        %v1075 = vadd.f32 %v970, %v1074
        %v1076 = vpop.f32.mrb[0].mxu0
        %1077 = vmatprep.mubr.f32.mxu0 0.0
        %1078 = vmatmul.mubr.f32.gmra.mrb[0].mxu0 %v671
        %v1079 = vpop.f32.mrb[0].mxu0
        %v1080 = vadd.f32 %v975, %v1079
        %v1081 = vpop.f32.mrb[0].mxu0
        %1082 = vdwg.mxu0
        %v1083 = vtanh.pop %v1045
        %v1084 = vtanh.pop %v1050
        %v1085 = vtanh.pop %v1055
        %v1086 = vtanh.pop %v1060
        %v1087 = vtanh.pop %v1065
        %v1088 = vtanh.pop %v1070
        %v1089 = vtanh.pop %v1075
        %v1090 = vtanh.pop %v1080
        %s1091 = ssub.s32 28, %s568
        %v1092 = vlaneseq
        %v1093 = vshrl.u32 %v1092, 7
        %v1094 = vadd.s32 %v1093, 8
        %v1095 = vadd.s32 %v1093, 16
        %v1096 = vadd.s32 %v1093, 24
        %v1097 = vadd.s32 %v1093, 32
        %v1098 = vadd.s32 %v1093, 40
        %v1099 = vadd.s32 %v1093, 48
        %v1100 = vadd.s32 %v1093, 56
        %v1101 = vstv %s1091
        %vm1102 = vcmp.lt.s32.totalorder %v1093, %v1101
        %vm1103 = vcmp.lt.s32.totalorder %v1094, %v1101
        %vm1104 = vcmp.lt.s32.totalorder %v1095, %v1101
        %vm1105 = vcmp.lt.s32.totalorder %v1096, %v1101
        %vm1106 = vcmp.lt.s32.totalorder %v1097, %v1101
        %vm1107 = vcmp.lt.s32.totalorder %v1098, %v1101
        %vm1108 = vcmp.lt.s32.totalorder %v1099, %v1101
        %vm1109 = vcmp.lt.s32.totalorder %v1100, %v1101
        %v1110 = vsel %vm1102, 1, 0
        %v1111 = vsel %vm1103, 1, 0
        %v1112 = vsel %vm1104, 1, 0
        %v1113 = vsel %vm1105, 1, 0
        %v1114 = vsel %vm1106, 1, 0
        %v1115 = vsel %vm1107, 1, 0
        %v1116 = vsel %vm1108, 1, 0
        %v1117 = vsel %vm1109, 1, 0
        %vm1118 = vcmp.eq.s32.totalorder %v1110, 1
        %vm1119 = vcmp.eq.s32.totalorder %v1111, 1
        %vm1120 = vcmp.eq.s32.totalorder %v1112, 1
        %vm1121 = vcmp.eq.s32.totalorder %v1113, 1
        %vm1122 = vcmp.eq.s32.totalorder %v1114, 1
        %vm1123 = vcmp.eq.s32.totalorder %v1115, 1
        %vm1124 = vcmp.eq.s32.totalorder %v1116, 1
        %vm1125 = vcmp.eq.s32.totalorder %v1117, 1
        %v1126 = vsel %vm1118, 0.0, %v1083
        %v1127 = vsel %vm1119, 0.0, %v1084
        %v1128 = vsel %vm1120, 0.0, %v1085
        %v1129 = vsel %vm1121, 0.0, %v1086
        %v1130 = vsel %vm1122, 0.0, %v1087
        %v1131 = vsel %vm1123, 0.0, %v1088
        %v1132 = vsel %vm1124, 0.0, %v1089
        %v1133 = vsel %vm1125, 0.0, %v1090
        %v1142 = vrot.slane %v1126, 1
        %v1143 = vrot.slane %v1127, 1
        %v1144 = vsel %vm585, %v1142, %v1143
        %v1145 = vrot.slane %v1128, 1
        %v1146 = vsel %vm585, %v1143, %v1145
        %v1147 = vrot.slane %v1129, 1
        %v1148 = vsel %vm585, %v1145, %v1147
        %v1149 = vrot.slane %v1130, 1
        %v1150 = vsel %vm585, %v1147, %v1149
        %v1151 = vrot.slane %v1131, 1
        %v1152 = vsel %vm585, %v1149, %v1151
        %v1153 = vrot.slane %v1132, 1
        %v1154 = vsel %vm585, %v1151, %v1153
        %v1155 = vrot.slane %v1133, 1
        %v1156 = vsel %vm585, %v1153, %v1155
        %v1164 = vrot.slane %v1126, 2
        %v1165 = vrot.slane %v1127, 2
        %v1166 = vsel %vm609, %v1164, %v1165
        %v1167 = vrot.slane %v1128, 2
        %v1168 = vsel %vm609, %v1165, %v1167
        %v1169 = vrot.slane %v1129, 2
        %v1170 = vsel %vm609, %v1167, %v1169
        %v1171 = vrot.slane %v1130, 2
        %v1172 = vsel %vm609, %v1169, %v1171
        %v1173 = vrot.slane %v1131, 2
        %v1174 = vsel %vm609, %v1171, %v1173
        %v1175 = vrot.slane %v1132, 2
        %v1176 = vsel %vm609, %v1173, %v1175
        %v1177 = vrot.slane %v1133, 2
        %v1178 = vsel %vm609, %v1175, %v1177
        %v1186 = vrot.slane %v1126, 3
        %v1187 = vrot.slane %v1127, 3
        %v1188 = vsel %vm633, %v1186, %v1187
        %v1189 = vrot.slane %v1128, 3
        %v1190 = vsel %vm633, %v1187, %v1189
        %v1191 = vrot.slane %v1129, 3
        %v1192 = vsel %vm633, %v1189, %v1191
        %v1193 = vrot.slane %v1130, 3
        %v1194 = vsel %vm633, %v1191, %v1193
        %v1195 = vrot.slane %v1131, 3
        %v1196 = vsel %vm633, %v1193, %v1195
        %v1197 = vrot.slane %v1132, 3
        %v1198 = vsel %vm633, %v1195, %v1197
        %v1199 = vrot.slane %v1133, 3
        %v1200 = vsel %vm633, %v1197, %v1199
        %v1208 = vrot.slane %v1126, 4
        %v1209 = vrot.slane %v1127, 4
        %v1210 = vsel %vm657, %v1208, %v1209
        %v1211 = vrot.slane %v1128, 4
        %v1212 = vsel %vm657, %v1209, %v1211
        %v1213 = vrot.slane %v1129, 4
        %v1214 = vsel %vm657, %v1211, %v1213
        %v1215 = vrot.slane %v1130, 4
        %v1216 = vsel %vm657, %v1213, %v1215
        %v1217 = vrot.slane %v1131, 4
        %v1218 = vsel %vm657, %v1215, %v1217
        %v1219 = vrot.slane %v1132, 4
        %v1220 = vsel %vm657, %v1217, %v1219
        %v1221 = vrot.slane %v1133, 4
        %v1222 = vsel %vm657, %v1219, %v1221
        %v1230 = vld [vmem:[#allocation8] sm:$0xff]
        %v1231 = vld [vmem:[#allocation8 + $0x8] sm:$0xff]
        %v1232 = vld [vmem:[#allocation8 + $0x10] sm:$0xff]
        %v1233 = vld [vmem:[#allocation8 + $0x18] sm:$0xff]
        %v1234 = vld [vmem:[#allocation8 + $0x20] sm:$0xff]
        %v1235 = vld [vmem:[#allocation8 + $0x28] sm:$0xff]
        %v1236 = vld [vmem:[#allocation8 + $0x30] sm:$0xff]
        %v1237 = vld [vmem:[#allocation8 + $0x38] sm:$0xff]
        %v1238 = vld [vmem:[#allocation8 + $0x40] sm:$0xff]
        %v1239 = vld [vmem:[#allocation8 + $0x48] sm:$0xff]
        %v1240 = vld [vmem:[#allocation8 + $0x50] sm:$0xff]
        %v1241 = vld [vmem:[#allocation8 + $0x58] sm:$0xff]
        %v1242 = vld [vmem:[#allocation8 + $0x60] sm:$0xff]
        %v1243 = vld [vmem:[#allocation8 + $0x68] sm:$0xff]
        %v1244 = vld [vmem:[#allocation8 + $0x70] sm:$0xff]
        %v1245 = vld [vmem:[#allocation8 + $0x78] sm:$0xff]
        %v1246 = vld [vmem:[#allocation8 + $0x80] sm:$0xff]
        %v1247 = vld [vmem:[#allocation8 + $0x88] sm:$0xff]
        %v1248 = vld [vmem:[#allocation8 + $0x90] sm:$0xff]
        %v1249 = vld [vmem:[#allocation8 + $0x98] sm:$0xff]
        %v1250 = vld [vmem:[#allocation8 + $0xa0] sm:$0xff]
        %v1251 = vld [vmem:[#allocation8 + $0xa8] sm:$0xff]
        %v1252 = vld [vmem:[#allocation8 + $0xb0] sm:$0xff]
        %v1253 = vld [vmem:[#allocation8 + $0xb8] sm:$0xff]
        %v1254 = vld [vmem:[#allocation8 + $0xc0] sm:$0xff]
        %v1255 = vld [vmem:[#allocation8 + $0xc8] sm:$0xff]
        %v1256 = vld [vmem:[#allocation8 + $0xd0] sm:$0xff]
        %v1257 = vld [vmem:[#allocation8 + $0xd8] sm:$0xff]
        %v1258 = vld [vmem:[#allocation8 + $0xe0] sm:$0xff]
        %v1259 = vld [vmem:[#allocation8 + $0xe8] sm:$0xff]
        %v1260 = vld [vmem:[#allocation8 + $0xf0] sm:$0xff]
        %v1261 = vld [vmem:[#allocation8 + $0xf8] sm:$0xff]
        %v1262 = vld [vmem:[#allocation8 + $0x100] sm:$0xff]
        %v1263 = vld [vmem:[#allocation8 + $0x108] sm:$0xff]
        %v1264 = vld [vmem:[#allocation8 + $0x110] sm:$0xff]
        %v1265 = vld [vmem:[#allocation8 + $0x118] sm:$0xff]
        %v1266 = vld [vmem:[#allocation8 + $0x120] sm:$0xff]
        %v1267 = vld [vmem:[#allocation8 + $0x128] sm:$0xff]
        %v1268 = vld [vmem:[#allocation8 + $0x130] sm:$0xff]
        %v1269 = vld [vmem:[#allocation8 + $0x138] sm:$0xff]
        %v1270 = vld [vmem:[#allocation8 + $0x140] sm:$0xff]
        %v1271 = vld [vmem:[#allocation8 + $0x148] sm:$0xff]
        %v1272 = vld [vmem:[#allocation8 + $0x150] sm:$0xff]
        %v1273 = vld [vmem:[#allocation8 + $0x158] sm:$0xff]
        %v1274 = vld [vmem:[#allocation8 + $0x160] sm:$0xff]
        %v1275 = vld [vmem:[#allocation8 + $0x168] sm:$0xff]
        %v1276 = vld [vmem:[#allocation8 + $0x170] sm:$0xff]
        %v1277 = vld [vmem:[#allocation8 + $0x178] sm:$0xff]
        %v1278 = vld [vmem:[#allocation8 + $0x180] sm:$0xff]
        %v1279 = vld [vmem:[#allocation8 + $0x188] sm:$0xff]
        %v1280 = vld [vmem:[#allocation8 + $0x190] sm:$0xff]
        %v1281 = vld [vmem:[#allocation8 + $0x198] sm:$0xff]
        %v1282 = vld [vmem:[#allocation8 + $0x1a0] sm:$0xff]
        %v1283 = vld [vmem:[#allocation8 + $0x1a8] sm:$0xff]
        %v1284 = vld [vmem:[#allocation8 + $0x1b0] sm:$0xff]
        %v1285 = vld [vmem:[#allocation8 + $0x1b8] sm:$0xff]
        %v1286 = vld [vmem:[#allocation8 + $0x1c0] sm:$0xff]
        %v1287 = vld [vmem:[#allocation8 + $0x1c8] sm:$0xff]
        %v1288 = vld [vmem:[#allocation8 + $0x1d0] sm:$0xff]
        %v1289 = vld [vmem:[#allocation8 + $0x1d8] sm:$0xff]
        %v1290 = vld [vmem:[#allocation8 + $0x1e0] sm:$0xff]
        %v1291 = vld [vmem:[#allocation8 + $0x1e8] sm:$0xff]
        %v1292 = vld [vmem:[#allocation8 + $0x1f0] sm:$0xff]
        %v1293 = vld [vmem:[#allocation8 + $0x1f8] sm:$0xff]
        %v1294 = vld [vmem:[#allocation8 + $0x200] sm:$0xff]
        %v1295 = vld [vmem:[#allocation8 + $0x208] sm:$0xff]
        %v1296 = vld [vmem:[#allocation8 + $0x210] sm:$0xff]
        %v1297 = vld [vmem:[#allocation8 + $0x218] sm:$0xff]
        %v1298 = vld [vmem:[#allocation8 + $0x220] sm:$0xff]
        %v1299 = vld [vmem:[#allocation8 + $0x228] sm:$0xff]
        %v1300 = vld [vmem:[#allocation8 + $0x230] sm:$0xff]
        %v1301 = vld [vmem:[#allocation8 + $0x238] sm:$0xff]
        %v1302 = vld [vmem:[#allocation8 + $0x240] sm:$0xff]
        %v1303 = vld [vmem:[#allocation8 + $0x248] sm:$0xff]
        %v1304 = vld [vmem:[#allocation8 + $0x250] sm:$0xff]
        %v1305 = vld [vmem:[#allocation8 + $0x258] sm:$0xff]
        %v1306 = vld [vmem:[#allocation8 + $0x260] sm:$0xff]
        %v1307 = vld [vmem:[#allocation8 + $0x268] sm:$0xff]
        %v1308 = vld [vmem:[#allocation8 + $0x270] sm:$0xff]
        %v1309 = vld [vmem:[#allocation8 + $0x278] sm:$0xff]
        %v1310 = vld [vmem:[%s8] sm:$0x1]
        %v1312 = vlaneseq
        %v1313 = vshrl.u32 %v1312, 7
        %v1314 = vsub.s32 0, %v1313
        %v1315 = vrot.slane %v1310, %v1314
        %1317 = vmatprep.subr.mxu0 0.0
        %1318 = vmatpush1.msra.mxu0 %v1230
        %1319 = vmatprep.subr.mxu0 0.0
        %1320 = vmatpush1.msra.mxu0 %v1231
        %1321 = vmatprep.subr.mxu0 0.0
        %1322 = vmatpush1.msra.mxu0 %v1232
        %1323 = vmatprep.subr.mxu0 0.0
        %1324 = vmatpush1.msra.mxu0 %v1233
        %1325 = vmatprep.subr.mxu0 0.0
        %1326 = vmatpush1.msra.mxu0 %v1234
        %1327 = vmatprep.subr.mxu0 0.0
        %1328 = vmatpush1.msra.mxu0 %v1235
        %1329 = vmatprep.subr.mxu0 0.0
        %1330 = vmatpush1.msra.mxu0 %v1236
        %1331 = vmatprep.subr.mxu0 0.0
        %1332 = vmatpush1.msra.mxu0 %v1237
        %1333 = vmatprep.subr.mxu0 0.0
        %1334 = vmatpush1.msra.mxu0 %v1238
        %1335 = vmatprep.subr.mxu0 0.0
        %1336 = vmatpush1.msra.mxu0 %v1239
        %1337 = vmatprep.subr.mxu0 0.0
        %1338 = vmatpush1.msra.mxu0 %v1240
        %1339 = vmatprep.subr.mxu0 0.0
        %1340 = vmatpush1.msra.mxu0 %v1241
        %1341 = vmatprep.subr.mxu0 0.0
        %1342 = vmatpush1.msra.mxu0 %v1242
        %1343 = vmatprep.subr.mxu0 0.0
        %1344 = vmatpush1.msra.mxu0 %v1243
        %1345 = vmatprep.subr.mxu0 0.0
        %1346 = vmatpush1.msra.mxu0 %v1244
        %1347 = vmatprep.subr.mxu0 0.0
        %1348 = vmatpush1.msra.mxu0 %v1245
        %1349 = vmatprep.subr.mxu0 0.0
        %1350 = vmatpush1.msra.mxu0 %v1246
        %1351 = vmatprep.subr.mxu0 0.0
        %1352 = vmatpush1.msra.mxu0 %v1247
        %1353 = vmatprep.subr.mxu0 0.0
        %1354 = vmatpush1.msra.mxu0 %v1248
        %1355 = vmatprep.subr.mxu0 0.0
        %1356 = vmatpush1.msra.mxu0 %v1249
        %1357 = vmatprep.subr.mxu0 0.0
        %1358 = vmatpush1.msra.mxu0 %v1250
        %1359 = vmatprep.subr.mxu0 0.0
        %1360 = vmatpush1.msra.mxu0 %v1251
        %1361 = vmatprep.subr.mxu0 0.0
        %1362 = vmatpush1.msra.mxu0 %v1252
        %1363 = vmatprep.subr.mxu0 0.0
        %1364 = vmatpush1.msra.mxu0 %v1253
        %1365 = vmatprep.subr.mxu0 0.0
        %1366 = vmatpush1.msra.mxu0 %v1254
        %1367 = vmatprep.subr.mxu0 0.0
        %1368 = vmatpush1.msra.mxu0 %v1255
        %1369 = vmatprep.subr.mxu0 0.0
        %1370 = vmatpush1.msra.mxu0 %v1256
        %1371 = vmatprep.subr.mxu0 0.0
        %1372 = vmatpush1.msra.mxu0 %v1257
        %1373 = vmatprep.subr.mxu0 0.0
        %1374 = vmatpush1.msra.mxu0 %v1258
        %1375 = vmatprep.subr.mxu0 0.0
        %1376 = vmatpush1.msra.mxu0 %v1259
        %1377 = vmatprep.subr.mxu0 0.0
        %1378 = vmatpush1.msra.mxu0 %v1260
        %1379 = vmatprep.subr.mxu0 0.0
        %1380 = vmatpush1.msra.mxu0 %v1261
        %1381 = vmatprep.mubr.f32.mxu0 %v1144
        %1382 = vmatmul.mubr.f32.gmra.mrb[0].mxu0 %v1126
        %v1383 = vpop.f32.mrb[0].mxu0
        %v1384 = vadd.f32 %v1315, %v1383
        %v1385 = vpop.f32.mrb[0].mxu0
        %1386 = vmatprep.mubr.f32.mxu0 %v1146
        %1387 = vmatmul.mubr.f32.gmra.mrb[0].mxu0 %v1127
        %v1388 = vpop.f32.mrb[0].mxu0
        %v1389 = vadd.f32 %v1315, %v1388
        %v1390 = vpop.f32.mrb[0].mxu0
        %1391 = vmatprep.mubr.f32.mxu0 %v1148
        %1392 = vmatmul.mubr.f32.gmra.mrb[0].mxu0 %v1128
        %v1393 = vpop.f32.mrb[0].mxu0
        %v1394 = vadd.f32 %v1315, %v1393
        %v1395 = vpop.f32.mrb[0].mxu0
        %1396 = vmatprep.mubr.f32.mxu0 %v1150
        %1397 = vmatmul.mubr.f32.gmra.mrb[0].mxu0 %v1129
        %v1398 = vpop.f32.mrb[0].mxu0
        %v1399 = vadd.f32 %v1315, %v1398
        %v1400 = vpop.f32.mrb[0].mxu0
        %1401 = vmatprep.mubr.f32.mxu0 %v1152
        %1402 = vmatmul.mubr.f32.gmra.mrb[0].mxu0 %v1130
        %v1403 = vpop.f32.mrb[0].mxu0
        %v1404 = vadd.f32 %v1315, %v1403
        %v1405 = vpop.f32.mrb[0].mxu0
        %1406 = vmatprep.mubr.f32.mxu0 %v1154
        %1407 = vmatmul.mubr.f32.gmra.mrb[0].mxu0 %v1131
        %v1408 = vpop.f32.mrb[0].mxu0
        %v1409 = vadd.f32 %v1315, %v1408
        %v1410 = vpop.f32.mrb[0].mxu0
        %1411 = vmatprep.mubr.f32.mxu0 %v1156
        %1412 = vmatmul.mubr.f32.gmra.mrb[0].mxu0 %v1132
        %v1413 = vpop.f32.mrb[0].mxu0
        %v1414 = vadd.f32 %v1315, %v1413
        %v1415 = vpop.f32.mrb[0].mxu0
        %1416 = vdwg.mxu0
        %1417 = vmatprep.subr.mxu0 0.0
        %1418 = vmatpush1.msra.mxu0 %v1262
        %1419 = vmatprep.subr.mxu0 0.0
        %1420 = vmatpush1.msra.mxu0 %v1263
        %1421 = vmatprep.subr.mxu0 0.0
        %1422 = vmatpush1.msra.mxu0 %v1264
        %1423 = vmatprep.subr.mxu0 0.0
        %1424 = vmatpush1.msra.mxu0 %v1265
        %1425 = vmatprep.subr.mxu0 0.0
        %1426 = vmatpush1.msra.mxu0 %v1266
        %1427 = vmatprep.subr.mxu0 0.0
        %1428 = vmatpush1.msra.mxu0 %v1267
        %1429 = vmatprep.subr.mxu0 0.0
        %1430 = vmatpush1.msra.mxu0 %v1268
        %1431 = vmatprep.subr.mxu0 0.0
        %1432 = vmatpush1.msra.mxu0 %v1269
        %1433 = vmatprep.subr.mxu0 0.0
        %1434 = vmatpush1.msra.mxu0 %v1270
        %1435 = vmatprep.subr.mxu0 0.0
        %1436 = vmatpush1.msra.mxu0 %v1271
        %1437 = vmatprep.subr.mxu0 0.0
        %1438 = vmatpush1.msra.mxu0 %v1272
        %1439 = vmatprep.subr.mxu0 0.0
        %1440 = vmatpush1.msra.mxu0 %v1273
        %1441 = vmatprep.subr.mxu0 0.0
        %1442 = vmatpush1.msra.mxu0 %v1274
        %1443 = vmatprep.subr.mxu0 0.0
        %1444 = vmatpush1.msra.mxu0 %v1275
        %1445 = vmatprep.subr.mxu0 0.0
        %1446 = vmatpush1.msra.mxu0 %v1276
        %1447 = vmatprep.subr.mxu0 0.0
        %1448 = vmatpush1.msra.mxu0 %v1277
        %1449 = vmatprep.subr.mxu0 0.0
        %1450 = vmatpush1.msra.mxu0 %v1278
        %1451 = vmatprep.subr.mxu0 0.0
        %1452 = vmatpush1.msra.mxu0 %v1279
        %1453 = vmatprep.subr.mxu0 0.0
        %1454 = vmatpush1.msra.mxu0 %v1280
        %1455 = vmatprep.subr.mxu0 0.0
        %1456 = vmatpush1.msra.mxu0 %v1281
        %1457 = vmatprep.subr.mxu0 0.0
        %1458 = vmatpush1.msra.mxu0 %v1282
        %1459 = vmatprep.subr.mxu0 0.0
        %1460 = vmatpush1.msra.mxu0 %v1283
        %1461 = vmatprep.subr.mxu0 0.0
        %1462 = vmatpush1.msra.mxu0 %v1284
        %1463 = vmatprep.subr.mxu0 0.0
        %1464 = vmatpush1.msra.mxu0 %v1285
        %1465 = vmatprep.subr.mxu0 0.0
        %1466 = vmatpush1.msra.mxu0 %v1286
        %1467 = vmatprep.subr.mxu0 0.0
        %1468 = vmatpush1.msra.mxu0 %v1287
        %1469 = vmatprep.subr.mxu0 0.0
        %1470 = vmatpush1.msra.mxu0 %v1288
        %1471 = vmatprep.subr.mxu0 0.0
        %1472 = vmatpush1.msra.mxu0 %v1289
        %1473 = vmatprep.subr.mxu0 0.0
        %1474 = vmatpush1.msra.mxu0 %v1290
        %1475 = vmatprep.subr.mxu0 0.0
        %1476 = vmatpush1.msra.mxu0 %v1291
        %1477 = vmatprep.subr.mxu0 0.0
        %1478 = vmatpush1.msra.mxu0 %v1292
        %1479 = vmatprep.subr.mxu0 0.0
        %1480 = vmatpush1.msra.mxu0 %v1293
        %1481 = vmatprep.mubr.f32.mxu0 %v1188
        %1482 = vmatmul.mubr.f32.gmra.mrb[0].mxu0 %v1166
        %v1483 = vpop.f32.mrb[0].mxu0
        %v1484 = vadd.f32 %v1384, %v1483
        %v1485 = vpop.f32.mrb[0].mxu0
        %1486 = vmatprep.mubr.f32.mxu0 %v1190
        %1487 = vmatmul.mubr.f32.gmra.mrb[0].mxu0 %v1168
        %v1488 = vpop.f32.mrb[0].mxu0
        %v1489 = vadd.f32 %v1389, %v1488
        %v1490 = vpop.f32.mrb[0].mxu0
        %1491 = vmatprep.mubr.f32.mxu0 %v1192
        %1492 = vmatmul.mubr.f32.gmra.mrb[0].mxu0 %v1170
        %v1493 = vpop.f32.mrb[0].mxu0
        %v1494 = vadd.f32 %v1394, %v1493
        %v1495 = vpop.f32.mrb[0].mxu0
        %1496 = vmatprep.mubr.f32.mxu0 %v1194
        %1497 = vmatmul.mubr.f32.gmra.mrb[0].mxu0 %v1172
        %v1498 = vpop.f32.mrb[0].mxu0
        %v1499 = vadd.f32 %v1399, %v1498
        %v1500 = vpop.f32.mrb[0].mxu0
        %1501 = vmatprep.mubr.f32.mxu0 %v1196
        %1502 = vmatmul.mubr.f32.gmra.mrb[0].mxu0 %v1174
        %v1503 = vpop.f32.mrb[0].mxu0
        %v1504 = vadd.f32 %v1404, %v1503
        %v1505 = vpop.f32.mrb[0].mxu0
        %1506 = vmatprep.mubr.f32.mxu0 %v1198
        %1507 = vmatmul.mubr.f32.gmra.mrb[0].mxu0 %v1176
        %v1508 = vpop.f32.mrb[0].mxu0
        %v1509 = vadd.f32 %v1409, %v1508
        %v1510 = vpop.f32.mrb[0].mxu0
        %1511 = vmatprep.mubr.f32.mxu0 %v1200
        %1512 = vmatmul.mubr.f32.gmra.mrb[0].mxu0 %v1178
        %v1513 = vpop.f32.mrb[0].mxu0
        %v1514 = vadd.f32 %v1414, %v1513
        %v1515 = vpop.f32.mrb[0].mxu0
        %1516 = vdwg.mxu0
        %1517 = vmatprep.subr.mxu0 0.0
        %1518 = vmatpush1.msra.mxu0 %v1294
        %1519 = vmatprep.subr.mxu0 0.0
        %1520 = vmatpush1.msra.mxu0 %v1295
        %1521 = vmatprep.subr.mxu0 0.0
        %1522 = vmatpush1.msra.mxu0 %v1296
        %1523 = vmatprep.subr.mxu0 0.0
        %1524 = vmatpush1.msra.mxu0 %v1297
        %1525 = vmatprep.subr.mxu0 0.0
        %1526 = vmatpush1.msra.mxu0 %v1298
        %1527 = vmatprep.subr.mxu0 0.0
        %1528 = vmatpush1.msra.mxu0 %v1299
        %1529 = vmatprep.subr.mxu0 0.0
        %1530 = vmatpush1.msra.mxu0 %v1300
        %1531 = vmatprep.subr.mxu0 0.0
        %1532 = vmatpush1.msra.mxu0 %v1301
        %1533 = vmatprep.subr.mxu0 0.0
        %1534 = vmatpush1.msra.mxu0 %v1302
        %1535 = vmatprep.subr.mxu0 0.0
        %1536 = vmatpush1.msra.mxu0 %v1303
        %1537 = vmatprep.subr.mxu0 0.0
        %1538 = vmatpush1.msra.mxu0 %v1304
        %1539 = vmatprep.subr.mxu0 0.0
        %1540 = vmatpush1.msra.mxu0 %v1305
        %1541 = vmatprep.subr.mxu0 0.0
        %1542 = vmatpush1.msra.mxu0 %v1306
        %1543 = vmatprep.subr.mxu0 0.0
        %1544 = vmatpush1.msra.mxu0 %v1307
        %1545 = vmatprep.subr.mxu0 0.0
        %1546 = vmatpush1.msra.mxu0 %v1308
        %1547 = vmatprep.subr.mxu0 0.0
        %1548 = vmatpush1.msra.mxu0 %v1309
        %1549 = vmatprep.subr.mxu0 0.0
        %1550 = vmatpush1.msra.mxu0 0.0
        %1551 = vmatprep.subr.mxu0 0.0
        %1552 = vmatpush1.msra.mxu0 0.0
        %1553 = vmatprep.subr.mxu0 0.0
        %1554 = vmatpush1.msra.mxu0 0.0
        %1555 = vmatprep.subr.mxu0 0.0
        %1556 = vmatpush1.msra.mxu0 0.0
        %1557 = vmatprep.subr.mxu0 0.0
        %1558 = vmatpush1.msra.mxu0 0.0
        %1559 = vmatprep.subr.mxu0 0.0
        %1560 = vmatpush1.msra.mxu0 0.0
        %1561 = vmatprep.subr.mxu0 0.0
        %1562 = vmatpush1.msra.mxu0 0.0
        %1563 = vmatprep.subr.mxu0 0.0
        %1564 = vmatpush1.msra.mxu0 0.0
        %1565 = vmatprep.subr.mxu0 0.0
        %1566 = vmatpush1.msra.mxu0 0.0
        %1567 = vmatprep.subr.mxu0 0.0
        %1568 = vmatpush1.msra.mxu0 0.0
        %1569 = vmatprep.subr.mxu0 0.0
        %1570 = vmatpush1.msra.mxu0 0.0
        %1571 = vmatprep.subr.mxu0 0.0
        %1572 = vmatpush1.msra.mxu0 0.0
        %1573 = vmatprep.subr.mxu0 0.0
        %1574 = vmatpush1.msra.mxu0 0.0
        %1575 = vmatprep.subr.mxu0 0.0
        %1576 = vmatpush1.msra.mxu0 0.0
        %1577 = vmatprep.subr.mxu0 0.0
        %1578 = vmatpush1.msra.mxu0 0.0
        %1579 = vmatprep.subr.mxu0 0.0
        %1580 = vmatpush1.msra.mxu0 0.0
        %1581 = vmatprep.mubr.f32.mxu0 0.0
        %1582 = vmatmul.mubr.f32.gmra.mrb[0].mxu0 %v1210
        %v1583 = vpop.f32.mrb[0].mxu0
        %v1584 = vadd.f32 %v1484, %v1583
        %v1585 = vpop.f32.mrb[0].mxu0
        %1586 = vmatprep.mubr.f32.mxu0 0.0
        %1587 = vmatmul.mubr.f32.gmra.mrb[0].mxu0 %v1212
        %v1588 = vpop.f32.mrb[0].mxu0
        %v1589 = vadd.f32 %v1489, %v1588
        %v1590 = vpop.f32.mrb[0].mxu0
        %1591 = vmatprep.mubr.f32.mxu0 0.0
        %1592 = vmatmul.mubr.f32.gmra.mrb[0].mxu0 %v1214
        %v1593 = vpop.f32.mrb[0].mxu0
        %v1594 = vadd.f32 %v1494, %v1593
        %v1595 = vpop.f32.mrb[0].mxu0
        %1596 = vmatprep.mubr.f32.mxu0 0.0
        %1597 = vmatmul.mubr.f32.gmra.mrb[0].mxu0 %v1216
        %v1598 = vpop.f32.mrb[0].mxu0
        %v1599 = vadd.f32 %v1499, %v1598
        %v1600 = vpop.f32.mrb[0].mxu0
        %1601 = vmatprep.mubr.f32.mxu0 0.0
        %1602 = vmatmul.mubr.f32.gmra.mrb[0].mxu0 %v1218
        %v1603 = vpop.f32.mrb[0].mxu0
        %v1604 = vadd.f32 %v1504, %v1603
        %v1605 = vpop.f32.mrb[0].mxu0
        %1606 = vmatprep.mubr.f32.mxu0 0.0
        %1607 = vmatmul.mubr.f32.gmra.mrb[0].mxu0 %v1220
        %v1608 = vpop.f32.mrb[0].mxu0
        %v1609 = vadd.f32 %v1509, %v1608
        %v1610 = vpop.f32.mrb[0].mxu0
        %1611 = vmatprep.mubr.f32.mxu0 0.0
        %1612 = vmatmul.mubr.f32.gmra.mrb[0].mxu0 %v1222
        %v1613 = vpop.f32.mrb[0].mxu0
        %v1614 = vadd.f32 %v1514, %v1613
        %v1615 = vpop.f32.mrb[0].mxu0
        %1616 = vdwg.mxu0
        %v1617 = vtanh.pop %v1584
        %v1618 = vtanh.pop %v1589
        %v1619 = vtanh.pop %v1594
        %v1620 = vtanh.pop %v1599
        %v1621 = vtanh.pop %v1604
        %v1622 = vtanh.pop %v1609
        %v1623 = vtanh.pop %v1614
        %s1624 = ssub.s32 24, %s568
        %v1625 = vstv %s1624
        %vm1626 = vcmp.lt.s32.totalorder %v1093, %v1625
        %vm1627 = vcmp.lt.s32.totalorder %v1094, %v1625
        %vm1628 = vcmp.lt.s32.totalorder %v1095, %v1625
        %vm1629 = vcmp.lt.s32.totalorder %v1096, %v1625
        %vm1630 = vcmp.lt.s32.totalorder %v1097, %v1625
        %vm1631 = vcmp.lt.s32.totalorder %v1098, %v1625
        %vm1632 = vcmp.lt.s32.totalorder %v1099, %v1625
        %v1633 = vsel %vm1626, 1, 0
        %v1634 = vsel %vm1627, 1, 0
        %v1635 = vsel %vm1628, 1, 0
        %v1636 = vsel %vm1629, 1, 0
        %v1637 = vsel %vm1630, 1, 0
        %v1638 = vsel %vm1631, 1, 0
        %v1639 = vsel %vm1632, 1, 0
        %vm1640 = vcmp.eq.s32.totalorder %v1633, 1
        %vm1641 = vcmp.eq.s32.totalorder %v1634, 1
        %vm1642 = vcmp.eq.s32.totalorder %v1635, 1
        %vm1643 = vcmp.eq.s32.totalorder %v1636, 1
        %vm1644 = vcmp.eq.s32.totalorder %v1637, 1
        %vm1645 = vcmp.eq.s32.totalorder %v1638, 1
        %vm1646 = vcmp.eq.s32.totalorder %v1639, 1
        %v1647 = vsel %vm1640, 0.0, %v1617
        %v1648 = vsel %vm1641, 0.0, %v1618
        %v1649 = vsel %vm1642, 0.0, %v1619
        %v1650 = vsel %vm1643, 0.0, %v1620
        %v1651 = vsel %vm1644, 0.0, %v1621
        %v1652 = vsel %vm1645, 0.0, %v1622
        %v1653 = vsel %vm1646, 0.0, %v1623
        %v1661 = vrot.slane %v1647, 1
        %v1662 = vrot.slane %v1648, 1
        %v1663 = vsel %vm585, %v1661, %v1662
        %v1664 = vrot.slane %v1649, 1
        %v1665 = vsel %vm585, %v1662, %v1664
        %v1666 = vrot.slane %v1650, 1
        %v1667 = vsel %vm585, %v1664, %v1666
        %v1668 = vrot.slane %v1651, 1
        %v1669 = vsel %vm585, %v1666, %v1668
        %v1670 = vrot.slane %v1652, 1
        %v1671 = vsel %vm585, %v1668, %v1670
        %v1672 = vrot.slane %v1653, 1
        %v1673 = vsel %vm585, %v1670, %v1672
        %v1681 = vrot.slane %v1647, 2
        %v1682 = vrot.slane %v1648, 2
        %v1683 = vsel %vm609, %v1681, %v1682
        %v1684 = vrot.slane %v1649, 2
        %v1685 = vsel %vm609, %v1682, %v1684
        %v1686 = vrot.slane %v1650, 2
        %v1687 = vsel %vm609, %v1684, %v1686
        %v1688 = vrot.slane %v1651, 2
        %v1689 = vsel %vm609, %v1686, %v1688
        %v1690 = vrot.slane %v1652, 2
        %v1691 = vsel %vm609, %v1688, %v1690
        %v1692 = vrot.slane %v1653, 2
        %v1693 = vsel %vm609, %v1690, %v1692
        %v1701 = vrot.slane %v1647, 3
        %v1702 = vrot.slane %v1648, 3
        %v1703 = vsel %vm633, %v1701, %v1702
        %v1704 = vrot.slane %v1649, 3
        %v1705 = vsel %vm633, %v1702, %v1704
        %v1706 = vrot.slane %v1650, 3
        %v1707 = vsel %vm633, %v1704, %v1706
        %v1708 = vrot.slane %v1651, 3
        %v1709 = vsel %vm633, %v1706, %v1708
        %v1710 = vrot.slane %v1652, 3
        %v1711 = vsel %vm633, %v1708, %v1710
        %v1712 = vrot.slane %v1653, 3
        %v1713 = vsel %vm633, %v1710, %v1712
        %v1721 = vrot.slane %v1647, 4
        %v1722 = vrot.slane %v1648, 4
        %v1723 = vsel %vm657, %v1721, %v1722
        %v1724 = vrot.slane %v1649, 4
        %v1725 = vsel %vm657, %v1722, %v1724
        %v1726 = vrot.slane %v1650, 4
        %v1727 = vsel %vm657, %v1724, %v1726
        %v1728 = vrot.slane %v1651, 4
        %v1729 = vsel %vm657, %v1726, %v1728
        %v1730 = vrot.slane %v1652, 4
        %v1731 = vsel %vm657, %v1728, %v1730
        %v1732 = vrot.slane %v1653, 4
        %v1733 = vsel %vm657, %v1730, %v1732
        %v1741 = vld [vmem:[#allocation10] sm:$0xff]
        %v1742 = vld [vmem:[#allocation10 + $0x8] sm:$0xff]
        %v1743 = vld [vmem:[#allocation10 + $0x10] sm:$0xff]
        %v1744 = vld [vmem:[#allocation10 + $0x18] sm:$0xff]
        %v1745 = vld [vmem:[#allocation10 + $0x20] sm:$0xff]
        %v1746 = vld [vmem:[#allocation10 + $0x28] sm:$0xff]
        %v1747 = vld [vmem:[#allocation10 + $0x30] sm:$0xff]
        %v1748 = vld [vmem:[#allocation10 + $0x38] sm:$0xff]
        %v1749 = vld [vmem:[#allocation10 + $0x40] sm:$0xff]
        %v1750 = vld [vmem:[#allocation10 + $0x48] sm:$0xff]
        %v1751 = vld [vmem:[#allocation10 + $0x50] sm:$0xff]
        %v1752 = vld [vmem:[#allocation10 + $0x58] sm:$0xff]
        %v1753 = vld [vmem:[#allocation10 + $0x60] sm:$0xff]
        %v1754 = vld [vmem:[#allocation10 + $0x68] sm:$0xff]
        %v1755 = vld [vmem:[#allocation10 + $0x70] sm:$0xff]
        %v1756 = vld [vmem:[#allocation10 + $0x78] sm:$0xff]
        %v1757 = vld [vmem:[#allocation10 + $0x80] sm:$0xff]
        %v1758 = vld [vmem:[#allocation10 + $0x88] sm:$0xff]
        %v1759 = vld [vmem:[#allocation10 + $0x90] sm:$0xff]
        %v1760 = vld [vmem:[#allocation10 + $0x98] sm:$0xff]
        %v1761 = vld [vmem:[#allocation10 + $0xa0] sm:$0xff]
        %v1762 = vld [vmem:[#allocation10 + $0xa8] sm:$0xff]
        %v1763 = vld [vmem:[#allocation10 + $0xb0] sm:$0xff]
        %v1764 = vld [vmem:[#allocation10 + $0xb8] sm:$0xff]
        %v1765 = vld [vmem:[#allocation10 + $0xc0] sm:$0xff]
        %v1766 = vld [vmem:[#allocation10 + $0xc8] sm:$0xff]
        %v1767 = vld [vmem:[#allocation10 + $0xd0] sm:$0xff]
        %v1768 = vld [vmem:[#allocation10 + $0xd8] sm:$0xff]
        %v1769 = vld [vmem:[#allocation10 + $0xe0] sm:$0xff]
        %v1770 = vld [vmem:[#allocation10 + $0xe8] sm:$0xff]
        %v1771 = vld [vmem:[#allocation10 + $0xf0] sm:$0xff]
        %v1772 = vld [vmem:[#allocation10 + $0xf8] sm:$0xff]
        %v1773 = vld [vmem:[#allocation10 + $0x100] sm:$0xff]
        %v1774 = vld [vmem:[#allocation10 + $0x108] sm:$0xff]
        %v1775 = vld [vmem:[#allocation10 + $0x110] sm:$0xff]
        %v1776 = vld [vmem:[#allocation10 + $0x118] sm:$0xff]
        %v1777 = vld [vmem:[#allocation10 + $0x120] sm:$0xff]
        %v1778 = vld [vmem:[#allocation10 + $0x128] sm:$0xff]
        %v1779 = vld [vmem:[#allocation10 + $0x130] sm:$0xff]
        %v1780 = vld [vmem:[#allocation10 + $0x138] sm:$0xff]
        %v1781 = vld [vmem:[#allocation10 + $0x140] sm:$0xff]
        %v1782 = vld [vmem:[#allocation10 + $0x148] sm:$0xff]
        %v1783 = vld [vmem:[#allocation10 + $0x150] sm:$0xff]
        %v1784 = vld [vmem:[#allocation10 + $0x158] sm:$0xff]
        %v1785 = vld [vmem:[#allocation10 + $0x160] sm:$0xff]
        %v1786 = vld [vmem:[#allocation10 + $0x168] sm:$0xff]
        %v1787 = vld [vmem:[#allocation10 + $0x170] sm:$0xff]
        %v1788 = vld [vmem:[#allocation10 + $0x178] sm:$0xff]
        %v1789 = vld [vmem:[#allocation10 + $0x180] sm:$0xff]
        %v1790 = vld [vmem:[#allocation10 + $0x188] sm:$0xff]
        %v1791 = vld [vmem:[#allocation10 + $0x190] sm:$0xff]
        %v1792 = vld [vmem:[#allocation10 + $0x198] sm:$0xff]
        %v1793 = vld [vmem:[#allocation10 + $0x1a0] sm:$0xff]
        %v1794 = vld [vmem:[#allocation10 + $0x1a8] sm:$0xff]
        %v1795 = vld [vmem:[#allocation10 + $0x1b0] sm:$0xff]
        %v1796 = vld [vmem:[#allocation10 + $0x1b8] sm:$0xff]
        %v1797 = vld [vmem:[#allocation10 + $0x1c0] sm:$0xff]
        %v1798 = vld [vmem:[#allocation10 + $0x1c8] sm:$0xff]
        %v1799 = vld [vmem:[#allocation10 + $0x1d0] sm:$0xff]
        %v1800 = vld [vmem:[#allocation10 + $0x1d8] sm:$0xff]
        %v1801 = vld [vmem:[#allocation10 + $0x1e0] sm:$0xff]
        %v1802 = vld [vmem:[#allocation10 + $0x1e8] sm:$0xff]
        %v1803 = vld [vmem:[#allocation10 + $0x1f0] sm:$0xff]
        %v1804 = vld [vmem:[#allocation10 + $0x1f8] sm:$0xff]
        %v1805 = vld [vmem:[#allocation10 + $0x200] sm:$0xff]
        %v1806 = vld [vmem:[#allocation10 + $0x208] sm:$0xff]
        %v1807 = vld [vmem:[#allocation10 + $0x210] sm:$0xff]
        %v1808 = vld [vmem:[#allocation10 + $0x218] sm:$0xff]
        %v1809 = vld [vmem:[#allocation10 + $0x220] sm:$0xff]
        %v1810 = vld [vmem:[#allocation10 + $0x228] sm:$0xff]
        %v1811 = vld [vmem:[#allocation10 + $0x230] sm:$0xff]
        %v1812 = vld [vmem:[#allocation10 + $0x238] sm:$0xff]
        %v1813 = vld [vmem:[#allocation10 + $0x240] sm:$0xff]
        %v1814 = vld [vmem:[#allocation10 + $0x248] sm:$0xff]
        %v1815 = vld [vmem:[#allocation10 + $0x250] sm:$0xff]
        %v1816 = vld [vmem:[#allocation10 + $0x258] sm:$0xff]
        %v1817 = vld [vmem:[#allocation10 + $0x260] sm:$0xff]
        %v1818 = vld [vmem:[#allocation10 + $0x268] sm:$0xff]
        %v1819 = vld [vmem:[#allocation10 + $0x270] sm:$0xff]
        %v1820 = vld [vmem:[#allocation10 + $0x278] sm:$0xff]
        %v1821 = vld [vmem:[%s9] sm:$0x1]
        %v1823 = vlaneseq
        %v1824 = vshrl.u32 %v1823, 7
        %v1825 = vsub.s32 0, %v1824
        %v1826 = vrot.slane %v1821, %v1825
        %1828 = vmatprep.subr.mxu0 0.0
        %1829 = vmatpush1.msra.mxu0 %v1741
        %1830 = vmatprep.subr.mxu0 0.0
        %1831 = vmatpush1.msra.mxu0 %v1742
        %1832 = vmatprep.subr.mxu0 0.0
        %1833 = vmatpush1.msra.mxu0 %v1743
        %1834 = vmatprep.subr.mxu0 0.0
        %1835 = vmatpush1.msra.mxu0 %v1744
        %1836 = vmatprep.subr.mxu0 0.0
        %1837 = vmatpush1.msra.mxu0 %v1745
        %1838 = vmatprep.subr.mxu0 0.0
        %1839 = vmatpush1.msra.mxu0 %v1746
        %1840 = vmatprep.subr.mxu0 0.0
        %1841 = vmatpush1.msra.mxu0 %v1747
        %1842 = vmatprep.subr.mxu0 0.0
        %1843 = vmatpush1.msra.mxu0 %v1748
        %1844 = vmatprep.subr.mxu0 0.0
        %1845 = vmatpush1.msra.mxu0 %v1749
        %1846 = vmatprep.subr.mxu0 0.0
        %1847 = vmatpush1.msra.mxu0 %v1750
        %1848 = vmatprep.subr.mxu0 0.0
        %1849 = vmatpush1.msra.mxu0 %v1751
        %1850 = vmatprep.subr.mxu0 0.0
        %1851 = vmatpush1.msra.mxu0 %v1752
        %1852 = vmatprep.subr.mxu0 0.0
        %1853 = vmatpush1.msra.mxu0 %v1753
        %1854 = vmatprep.subr.mxu0 0.0
        %1855 = vmatpush1.msra.mxu0 %v1754
        %1856 = vmatprep.subr.mxu0 0.0
        %1857 = vmatpush1.msra.mxu0 %v1755
        %1858 = vmatprep.subr.mxu0 0.0
        %1859 = vmatpush1.msra.mxu0 %v1756
        %1860 = vmatprep.subr.mxu0 0.0
        %1861 = vmatpush1.msra.mxu0 %v1757
        %1862 = vmatprep.subr.mxu0 0.0
        %1863 = vmatpush1.msra.mxu0 %v1758
        %1864 = vmatprep.subr.mxu0 0.0
        %1865 = vmatpush1.msra.mxu0 %v1759
        %1866 = vmatprep.subr.mxu0 0.0
        %1867 = vmatpush1.msra.mxu0 %v1760
        %1868 = vmatprep.subr.mxu0 0.0
        %1869 = vmatpush1.msra.mxu0 %v1761
        %1870 = vmatprep.subr.mxu0 0.0
        %1871 = vmatpush1.msra.mxu0 %v1762
        %1872 = vmatprep.subr.mxu0 0.0
        %1873 = vmatpush1.msra.mxu0 %v1763
        %1874 = vmatprep.subr.mxu0 0.0
        %1875 = vmatpush1.msra.mxu0 %v1764
        %1876 = vmatprep.subr.mxu0 0.0
        %1877 = vmatpush1.msra.mxu0 %v1765
        %1878 = vmatprep.subr.mxu0 0.0
        %1879 = vmatpush1.msra.mxu0 %v1766
        %1880 = vmatprep.subr.mxu0 0.0
        %1881 = vmatpush1.msra.mxu0 %v1767
        %1882 = vmatprep.subr.mxu0 0.0
        %1883 = vmatpush1.msra.mxu0 %v1768
        %1884 = vmatprep.subr.mxu0 0.0
        %1885 = vmatpush1.msra.mxu0 %v1769
        %1886 = vmatprep.subr.mxu0 0.0
        %1887 = vmatpush1.msra.mxu0 %v1770
        %1888 = vmatprep.subr.mxu0 0.0
        %1889 = vmatpush1.msra.mxu0 %v1771
        %1890 = vmatprep.subr.mxu0 0.0
        %1891 = vmatpush1.msra.mxu0 %v1772
        %1892 = vmatprep.mubr.f32.mxu0 %v1663
        %1893 = vmatmul.mubr.f32.gmra.mrb[0].mxu0 %v1647
        %v1894 = vpop.f32.mrb[0].mxu0
        %v1895 = vadd.f32 %v1826, %v1894
        %v1896 = vpop.f32.mrb[0].mxu0
        %1897 = vmatprep.mubr.f32.mxu0 %v1665
        %1898 = vmatmul.mubr.f32.gmra.mrb[0].mxu0 %v1648
        %v1899 = vpop.f32.mrb[0].mxu0
        %v1900 = vadd.f32 %v1826, %v1899
        %v1901 = vpop.f32.mrb[0].mxu0
        %1902 = vmatprep.mubr.f32.mxu0 %v1667
        %1903 = vmatmul.mubr.f32.gmra.mrb[0].mxu0 %v1649
        %v1904 = vpop.f32.mrb[0].mxu0
        %v1905 = vadd.f32 %v1826, %v1904
        %v1906 = vpop.f32.mrb[0].mxu0
        %1907 = vmatprep.mubr.f32.mxu0 %v1669
        %1908 = vmatmul.mubr.f32.gmra.mrb[0].mxu0 %v1650
        %v1909 = vpop.f32.mrb[0].mxu0
        %v1910 = vadd.f32 %v1826, %v1909
        %v1911 = vpop.f32.mrb[0].mxu0
        %1912 = vmatprep.mubr.f32.mxu0 %v1671
        %1913 = vmatmul.mubr.f32.gmra.mrb[0].mxu0 %v1651
        %v1914 = vpop.f32.mrb[0].mxu0
        %v1915 = vadd.f32 %v1826, %v1914
        %v1916 = vpop.f32.mrb[0].mxu0
        %1917 = vmatprep.mubr.f32.mxu0 %v1673
        %1918 = vmatmul.mubr.f32.gmra.mrb[0].mxu0 %v1652
        %v1919 = vpop.f32.mrb[0].mxu0
        %v1920 = vadd.f32 %v1826, %v1919
        %v1921 = vpop.f32.mrb[0].mxu0
        %1922 = vmatprep.mubr.f32.mxu0 %v1672
        %1923 = vmatmul.mubr.f32.gmra.mrb[0].mxu0 %v1653
        %v1924 = vpop.f32.mrb[0].mxu0
        %v1925 = vadd.f32 %v1826, %v1924
        %v1926 = vpop.f32.mrb[0].mxu0
        %1927 = vdwg.mxu0
        %1928 = vmatprep.subr.mxu0 0.0
        %1929 = vmatpush1.msra.mxu0 %v1773
        %1930 = vmatprep.subr.mxu0 0.0
        %1931 = vmatpush1.msra.mxu0 %v1774
        %1932 = vmatprep.subr.mxu0 0.0
        %1933 = vmatpush1.msra.mxu0 %v1775
        %1934 = vmatprep.subr.mxu0 0.0
        %1935 = vmatpush1.msra.mxu0 %v1776
        %1936 = vmatprep.subr.mxu0 0.0
        %1937 = vmatpush1.msra.mxu0 %v1777
        %1938 = vmatprep.subr.mxu0 0.0
        %1939 = vmatpush1.msra.mxu0 %v1778
        %1940 = vmatprep.subr.mxu0 0.0
        %1941 = vmatpush1.msra.mxu0 %v1779
        %1942 = vmatprep.subr.mxu0 0.0
        %1943 = vmatpush1.msra.mxu0 %v1780
        %1944 = vmatprep.subr.mxu0 0.0
        %1945 = vmatpush1.msra.mxu0 %v1781
        %1946 = vmatprep.subr.mxu0 0.0
        %1947 = vmatpush1.msra.mxu0 %v1782
        %1948 = vmatprep.subr.mxu0 0.0
        %1949 = vmatpush1.msra.mxu0 %v1783
        %1950 = vmatprep.subr.mxu0 0.0
        %1951 = vmatpush1.msra.mxu0 %v1784
        %1952 = vmatprep.subr.mxu0 0.0
        %1953 = vmatpush1.msra.mxu0 %v1785
        %1954 = vmatprep.subr.mxu0 0.0
        %1955 = vmatpush1.msra.mxu0 %v1786
        %1956 = vmatprep.subr.mxu0 0.0
        %1957 = vmatpush1.msra.mxu0 %v1787
        %1958 = vmatprep.subr.mxu0 0.0
        %1959 = vmatpush1.msra.mxu0 %v1788
        %1960 = vmatprep.subr.mxu0 0.0
        %1961 = vmatpush1.msra.mxu0 %v1789
        %1962 = vmatprep.subr.mxu0 0.0
        %1963 = vmatpush1.msra.mxu0 %v1790
        %1964 = vmatprep.subr.mxu0 0.0
        %1965 = vmatpush1.msra.mxu0 %v1791
        %1966 = vmatprep.subr.mxu0 0.0
        %1967 = vmatpush1.msra.mxu0 %v1792
        %1968 = vmatprep.subr.mxu0 0.0
        %1969 = vmatpush1.msra.mxu0 %v1793
        %1970 = vmatprep.subr.mxu0 0.0
        %1971 = vmatpush1.msra.mxu0 %v1794
        %1972 = vmatprep.subr.mxu0 0.0
        %1973 = vmatpush1.msra.mxu0 %v1795
        %1974 = vmatprep.subr.mxu0 0.0
        %1975 = vmatpush1.msra.mxu0 %v1796
        %1976 = vmatprep.subr.mxu0 0.0
        %1977 = vmatpush1.msra.mxu0 %v1797
        %1978 = vmatprep.subr.mxu0 0.0
        %1979 = vmatpush1.msra.mxu0 %v1798
        %1980 = vmatprep.subr.mxu0 0.0
        %1981 = vmatpush1.msra.mxu0 %v1799
        %1982 = vmatprep.subr.mxu0 0.0
        %1983 = vmatpush1.msra.mxu0 %v1800
        %1984 = vmatprep.subr.mxu0 0.0
        %1985 = vmatpush1.msra.mxu0 %v1801
        %1986 = vmatprep.subr.mxu0 0.0
        %1987 = vmatpush1.msra.mxu0 %v1802
        %1988 = vmatprep.subr.mxu0 0.0
        %1989 = vmatpush1.msra.mxu0 %v1803
        %1990 = vmatprep.subr.mxu0 0.0
        %1991 = vmatpush1.msra.mxu0 %v1804
        %1992 = vmatprep.mubr.f32.mxu0 %v1703
        %1993 = vmatmul.mubr.f32.gmra.mrb[0].mxu0 %v1683
        %v1994 = vpop.f32.mrb[0].mxu0
        %v1995 = vadd.f32 %v1895, %v1994
        %v1996 = vpop.f32.mrb[0].mxu0
        %1997 = vmatprep.mubr.f32.mxu0 %v1705
        %1998 = vmatmul.mubr.f32.gmra.mrb[0].mxu0 %v1685
        %v1999 = vpop.f32.mrb[0].mxu0
        %v2000 = vadd.f32 %v1900, %v1999
        %v2001 = vpop.f32.mrb[0].mxu0
        %2002 = vmatprep.mubr.f32.mxu0 %v1707
        %2003 = vmatmul.mubr.f32.gmra.mrb[0].mxu0 %v1687
        %v2004 = vpop.f32.mrb[0].mxu0
        %v2005 = vadd.f32 %v1905, %v2004
        %v2006 = vpop.f32.mrb[0].mxu0
        %2007 = vmatprep.mubr.f32.mxu0 %v1709
        %2008 = vmatmul.mubr.f32.gmra.mrb[0].mxu0 %v1689
        %v2009 = vpop.f32.mrb[0].mxu0
        %v2010 = vadd.f32 %v1910, %v2009
        %v2011 = vpop.f32.mrb[0].mxu0
        %2012 = vmatprep.mubr.f32.mxu0 %v1711
        %2013 = vmatmul.mubr.f32.gmra.mrb[0].mxu0 %v1691
        %v2014 = vpop.f32.mrb[0].mxu0
        %v2015 = vadd.f32 %v1915, %v2014
        %v2016 = vpop.f32.mrb[0].mxu0
        %2017 = vmatprep.mubr.f32.mxu0 %v1713
        %2018 = vmatmul.mubr.f32.gmra.mrb[0].mxu0 %v1693
        %v2019 = vpop.f32.mrb[0].mxu0
        %v2020 = vadd.f32 %v1920, %v2019
        %v2021 = vpop.f32.mrb[0].mxu0
        %2022 = vmatprep.mubr.f32.mxu0 %v1712
        %2023 = vmatmul.mubr.f32.gmra.mrb[0].mxu0 %v1692
        %v2024 = vpop.f32.mrb[0].mxu0
        %v2025 = vadd.f32 %v1925, %v2024
        %v2026 = vpop.f32.mrb[0].mxu0
        %2027 = vdwg.mxu0
        %2028 = vmatprep.subr.mxu0 0.0
        %2029 = vmatpush1.msra.mxu0 %v1805
        %2030 = vmatprep.subr.mxu0 0.0
        %2031 = vmatpush1.msra.mxu0 %v1806
        %2032 = vmatprep.subr.mxu0 0.0
        %2033 = vmatpush1.msra.mxu0 %v1807
        %2034 = vmatprep.subr.mxu0 0.0
        %2035 = vmatpush1.msra.mxu0 %v1808
        %2036 = vmatprep.subr.mxu0 0.0
        %2037 = vmatpush1.msra.mxu0 %v1809
        %2038 = vmatprep.subr.mxu0 0.0
        %2039 = vmatpush1.msra.mxu0 %v1810
        %2040 = vmatprep.subr.mxu0 0.0
        %2041 = vmatpush1.msra.mxu0 %v1811
        %2042 = vmatprep.subr.mxu0 0.0
        %2043 = vmatpush1.msra.mxu0 %v1812
        %2044 = vmatprep.subr.mxu0 0.0
        %2045 = vmatpush1.msra.mxu0 %v1813
        %2046 = vmatprep.subr.mxu0 0.0
        %2047 = vmatpush1.msra.mxu0 %v1814
        %2048 = vmatprep.subr.mxu0 0.0
        %2049 = vmatpush1.msra.mxu0 %v1815
        %2050 = vmatprep.subr.mxu0 0.0
        %2051 = vmatpush1.msra.mxu0 %v1816
        %2052 = vmatprep.subr.mxu0 0.0
        %2053 = vmatpush1.msra.mxu0 %v1817
        %2054 = vmatprep.subr.mxu0 0.0
        %2055 = vmatpush1.msra.mxu0 %v1818
        %2056 = vmatprep.subr.mxu0 0.0
        %2057 = vmatpush1.msra.mxu0 %v1819
        %2058 = vmatprep.subr.mxu0 0.0
        %2059 = vmatpush1.msra.mxu0 %v1820
        %2060 = vmatprep.subr.mxu0 0.0
        %2061 = vmatpush1.msra.mxu0 0.0
        %2062 = vmatprep.subr.mxu0 0.0
        %2063 = vmatpush1.msra.mxu0 0.0
        %2064 = vmatprep.subr.mxu0 0.0
        %2065 = vmatpush1.msra.mxu0 0.0
        %2066 = vmatprep.subr.mxu0 0.0
        %2067 = vmatpush1.msra.mxu0 0.0
        %2068 = vmatprep.subr.mxu0 0.0
        %2069 = vmatpush1.msra.mxu0 0.0
        %2070 = vmatprep.subr.mxu0 0.0
        %2071 = vmatpush1.msra.mxu0 0.0
        %2072 = vmatprep.subr.mxu0 0.0
        %2073 = vmatpush1.msra.mxu0 0.0
        %2074 = vmatprep.subr.mxu0 0.0
        %2075 = vmatpush1.msra.mxu0 0.0
        %2076 = vmatprep.subr.mxu0 0.0
        %2077 = vmatpush1.msra.mxu0 0.0
        %2078 = vmatprep.subr.mxu0 0.0
        %2079 = vmatpush1.msra.mxu0 0.0
        %2080 = vmatprep.subr.mxu0 0.0
        %2081 = vmatpush1.msra.mxu0 0.0
        %2082 = vmatprep.subr.mxu0 0.0
        %2083 = vmatpush1.msra.mxu0 0.0
        %2084 = vmatprep.subr.mxu0 0.0
        %2085 = vmatpush1.msra.mxu0 0.0
        %2086 = vmatprep.subr.mxu0 0.0
        %2087 = vmatpush1.msra.mxu0 0.0
        %2088 = vmatprep.subr.mxu0 0.0
        %2089 = vmatpush1.msra.mxu0 0.0
        %2090 = vmatprep.subr.mxu0 0.0
        %2091 = vmatpush1.msra.mxu0 0.0
        %2092 = vmatprep.mubr.f32.mxu0 0.0
        %2093 = vmatmul.mubr.f32.gmra.mrb[0].mxu0 %v1723
        %v2094 = vpop.f32.mrb[0].mxu0
        %v2095 = vadd.f32 %v1995, %v2094
        %v2096 = vpop.f32.mrb[0].mxu0
        %2097 = vmatprep.mubr.f32.mxu0 0.0
        %2098 = vmatmul.mubr.f32.gmra.mrb[0].mxu0 %v1725
        %v2099 = vpop.f32.mrb[0].mxu0
        %v2100 = vadd.f32 %v2000, %v2099
        %v2101 = vpop.f32.mrb[0].mxu0
        %2102 = vmatprep.mubr.f32.mxu0 0.0
        %2103 = vmatmul.mubr.f32.gmra.mrb[0].mxu0 %v1727
        %v2104 = vpop.f32.mrb[0].mxu0
        %v2105 = vadd.f32 %v2005, %v2104
        %v2106 = vpop.f32.mrb[0].mxu0
        %2107 = vmatprep.mubr.f32.mxu0 0.0
        %2108 = vmatmul.mubr.f32.gmra.mrb[0].mxu0 %v1729
        %v2109 = vpop.f32.mrb[0].mxu0
        %v2110 = vadd.f32 %v2010, %v2109
        %v2111 = vpop.f32.mrb[0].mxu0
        %2112 = vmatprep.mubr.f32.mxu0 0.0
        %2113 = vmatmul.mubr.f32.gmra.mrb[0].mxu0 %v1731
        %v2114 = vpop.f32.mrb[0].mxu0
        %v2115 = vadd.f32 %v2015, %v2114
        %v2116 = vpop.f32.mrb[0].mxu0
        %2117 = vmatprep.mubr.f32.mxu0 0.0
        %2118 = vmatmul.mubr.f32.gmra.mrb[0].mxu0 %v1733
        %v2119 = vpop.f32.mrb[0].mxu0
        %v2120 = vadd.f32 %v2020, %v2119
        %v2121 = vpop.f32.mrb[0].mxu0
        %2122 = vmatprep.mubr.f32.mxu0 0.0
        %2123 = vmatmul.mubr.f32.gmra.mrb[0].mxu0 %v1732
        %v2124 = vpop.f32.mrb[0].mxu0
        %v2125 = vadd.f32 %v2025, %v2124
        %v2126 = vpop.f32.mrb[0].mxu0
        %2127 = vdwg.mxu0
        %v2128 = vtanh.pop %v2095
        %v2129 = vtanh.pop %v2100
        %v2130 = vtanh.pop %v2105
        %v2131 = vtanh.pop %v2110
        %v2132 = vtanh.pop %v2115
        %v2133 = vtanh.pop %v2120
        %v2134 = vtanh.pop %v2125
        %s2135 = ssub.s32 20, %s568
        %v2136 = vstv %s2135
        %vm2137 = vcmp.lt.s32.totalorder %v1093, %v2136
        %vm2138 = vcmp.lt.s32.totalorder %v1094, %v2136
        %vm2139 = vcmp.lt.s32.totalorder %v1095, %v2136
        %vm2140 = vcmp.lt.s32.totalorder %v1096, %v2136
        %vm2141 = vcmp.lt.s32.totalorder %v1097, %v2136
        %vm2142 = vcmp.lt.s32.totalorder %v1098, %v2136
        %vm2143 = vcmp.lt.s32.totalorder %v1099, %v2136
        %v2144 = vsel %vm2137, 1, 0
        %v2145 = vsel %vm2138, 1, 0
        %v2146 = vsel %vm2139, 1, 0
        %v2147 = vsel %vm2140, 1, 0
        %v2148 = vsel %vm2141, 1, 0
        %v2149 = vsel %vm2142, 1, 0
        %v2150 = vsel %vm2143, 1, 0
        %vm2151 = vcmp.eq.s32.totalorder %v2144, 1
        %vm2152 = vcmp.eq.s32.totalorder %v2145, 1
        %vm2153 = vcmp.eq.s32.totalorder %v2146, 1
        %vm2154 = vcmp.eq.s32.totalorder %v2147, 1
        %vm2155 = vcmp.eq.s32.totalorder %v2148, 1
        %vm2156 = vcmp.eq.s32.totalorder %v2149, 1
        %vm2157 = vcmp.eq.s32.totalorder %v2150, 1
        %v2158 = vsel %vm2151, 0.0, %v2128
        %v2159 = vsel %vm2152, 0.0, %v2129
        %v2160 = vsel %vm2153, 0.0, %v2130
        %v2161 = vsel %vm2154, 0.0, %v2131
        %v2162 = vsel %vm2155, 0.0, %v2132
        %v2163 = vsel %vm2156, 0.0, %v2133
        %v2164 = vsel %vm2157, 0.0, %v2134
        %v2172 = vrot.slane %v2158, 1
        %v2173 = vrot.slane %v2159, 1
        %v2174 = vsel %vm585, %v2172, %v2173
        %v2175 = vrot.slane %v2160, 1
        %v2176 = vsel %vm585, %v2173, %v2175
        %v2177 = vrot.slane %v2161, 1
        %v2178 = vsel %vm585, %v2175, %v2177
        %v2179 = vrot.slane %v2162, 1
        %v2180 = vsel %vm585, %v2177, %v2179
        %v2181 = vrot.slane %v2163, 1
        %v2182 = vsel %vm585, %v2179, %v2181
        %v2183 = vrot.slane %v2164, 1
        %v2184 = vsel %vm585, %v2181, %v2183
        %v2191 = vrot.slane %v2158, 2
        %v2192 = vrot.slane %v2159, 2
        %v2193 = vsel %vm609, %v2191, %v2192
        %v2194 = vrot.slane %v2160, 2
        %v2195 = vsel %vm609, %v2192, %v2194
        %v2196 = vrot.slane %v2161, 2
        %v2197 = vsel %vm609, %v2194, %v2196
        %v2198 = vrot.slane %v2162, 2
        %v2199 = vsel %vm609, %v2196, %v2198
        %v2200 = vrot.slane %v2163, 2
        %v2201 = vsel %vm609, %v2198, %v2200
        %v2202 = vrot.slane %v2164, 2
        %v2203 = vsel %vm609, %v2200, %v2202
        %v2210 = vrot.slane %v2158, 3
        %v2211 = vrot.slane %v2159, 3
        %v2212 = vsel %vm633, %v2210, %v2211
        %v2213 = vrot.slane %v2160, 3
        %v2214 = vsel %vm633, %v2211, %v2213
        %v2215 = vrot.slane %v2161, 3
        %v2216 = vsel %vm633, %v2213, %v2215
        %v2217 = vrot.slane %v2162, 3
        %v2218 = vsel %vm633, %v2215, %v2217
        %v2219 = vrot.slane %v2163, 3
        %v2220 = vsel %vm633, %v2217, %v2219
        %v2221 = vrot.slane %v2164, 3
        %v2222 = vsel %vm633, %v2219, %v2221
        %v2229 = vrot.slane %v2158, 4
        %v2230 = vrot.slane %v2159, 4
        %v2231 = vsel %vm657, %v2229, %v2230
        %v2232 = vrot.slane %v2160, 4
        %v2233 = vsel %vm657, %v2230, %v2232
        %v2234 = vrot.slane %v2161, 4
        %v2235 = vsel %vm657, %v2232, %v2234
        %v2236 = vrot.slane %v2162, 4
        %v2237 = vsel %vm657, %v2234, %v2236
        %v2238 = vrot.slane %v2163, 4
        %v2239 = vsel %vm657, %v2236, %v2238
        %v2240 = vrot.slane %v2164, 4
        %v2241 = vsel %vm657, %v2238, %v2240
        %v2248 = vld [vmem:[#allocation11] sm:$0xff]
        %v2249 = vld [vmem:[#allocation11 + $0x8] sm:$0xff]
        %v2250 = vld [vmem:[#allocation11 + $0x10] sm:$0xff]
        %v2251 = vld [vmem:[#allocation11 + $0x18] sm:$0xff]
        %v2252 = vld [vmem:[#allocation11 + $0x20] sm:$0xff]
        %v2253 = vld [vmem:[#allocation11 + $0x28] sm:$0xff]
        %v2254 = vld [vmem:[#allocation11 + $0x30] sm:$0xff]
        %v2255 = vld [vmem:[#allocation11 + $0x38] sm:$0xff]
        %v2256 = vld [vmem:[#allocation11 + $0x40] sm:$0xff]
        %v2257 = vld [vmem:[#allocation11 + $0x48] sm:$0xff]
        %v2258 = vld [vmem:[#allocation11 + $0x50] sm:$0xff]
        %v2259 = vld [vmem:[#allocation11 + $0x58] sm:$0xff]
        %v2260 = vld [vmem:[#allocation11 + $0x60] sm:$0xff]
        %v2261 = vld [vmem:[#allocation11 + $0x68] sm:$0xff]
        %v2262 = vld [vmem:[#allocation11 + $0x70] sm:$0xff]
        %v2263 = vld [vmem:[#allocation11 + $0x78] sm:$0xff]
        %v2264 = vld [vmem:[#allocation11 + $0x80] sm:$0xff]
        %v2265 = vld [vmem:[#allocation11 + $0x88] sm:$0xff]
        %v2266 = vld [vmem:[#allocation11 + $0x90] sm:$0xff]
        %v2267 = vld [vmem:[#allocation11 + $0x98] sm:$0xff]
        %v2268 = vld [vmem:[#allocation11 + $0xa0] sm:$0xff]
        %v2269 = vld [vmem:[#allocation11 + $0xa8] sm:$0xff]
        %v2270 = vld [vmem:[#allocation11 + $0xb0] sm:$0xff]
        %v2271 = vld [vmem:[#allocation11 + $0xb8] sm:$0xff]
        %v2272 = vld [vmem:[#allocation11 + $0xc0] sm:$0xff]
        %v2273 = vld [vmem:[#allocation11 + $0xc8] sm:$0xff]
        %v2274 = vld [vmem:[#allocation11 + $0xd0] sm:$0xff]
        %v2275 = vld [vmem:[#allocation11 + $0xd8] sm:$0xff]
        %v2276 = vld [vmem:[#allocation11 + $0xe0] sm:$0xff]
        %v2277 = vld [vmem:[#allocation11 + $0xe8] sm:$0xff]
        %v2278 = vld [vmem:[#allocation11 + $0xf0] sm:$0xff]
        %v2279 = vld [vmem:[#allocation11 + $0xf8] sm:$0xff]
        %v2280 = vld [vmem:[#allocation11 + $0x100] sm:$0xff]
        %v2281 = vld [vmem:[#allocation11 + $0x108] sm:$0xff]
        %v2282 = vld [vmem:[#allocation11 + $0x110] sm:$0xff]
        %v2283 = vld [vmem:[#allocation11 + $0x118] sm:$0xff]
        %v2284 = vld [vmem:[#allocation11 + $0x120] sm:$0xff]
        %v2285 = vld [vmem:[#allocation11 + $0x128] sm:$0xff]
        %v2286 = vld [vmem:[#allocation11 + $0x130] sm:$0xff]
        %v2287 = vld [vmem:[#allocation11 + $0x138] sm:$0xff]
        %v2288 = vld [vmem:[#allocation11 + $0x140] sm:$0xff]
        %v2289 = vld [vmem:[#allocation11 + $0x148] sm:$0xff]
        %v2290 = vld [vmem:[#allocation11 + $0x150] sm:$0xff]
        %v2291 = vld [vmem:[#allocation11 + $0x158] sm:$0xff]
        %v2292 = vld [vmem:[#allocation11 + $0x160] sm:$0xff]
        %v2293 = vld [vmem:[#allocation11 + $0x168] sm:$0xff]
        %v2294 = vld [vmem:[#allocation11 + $0x170] sm:$0xff]
        %v2295 = vld [vmem:[#allocation11 + $0x178] sm:$0xff]
        %v2296 = vld [vmem:[#allocation11 + $0x180] sm:$0xff]
        %v2297 = vld [vmem:[#allocation11 + $0x188] sm:$0xff]
        %v2298 = vld [vmem:[#allocation11 + $0x190] sm:$0xff]
        %v2299 = vld [vmem:[#allocation11 + $0x198] sm:$0xff]
        %v2300 = vld [vmem:[#allocation11 + $0x1a0] sm:$0xff]
        %v2301 = vld [vmem:[#allocation11 + $0x1a8] sm:$0xff]
        %v2302 = vld [vmem:[#allocation11 + $0x1b0] sm:$0xff]
        %v2303 = vld [vmem:[#allocation11 + $0x1b8] sm:$0xff]
        %v2304 = vld [vmem:[#allocation11 + $0x1c0] sm:$0xff]
        %v2305 = vld [vmem:[#allocation11 + $0x1c8] sm:$0xff]
        %v2306 = vld [vmem:[#allocation11 + $0x1d0] sm:$0xff]
        %v2307 = vld [vmem:[#allocation11 + $0x1d8] sm:$0xff]
        %v2308 = vld [vmem:[#allocation11 + $0x1e0] sm:$0xff]
        %v2309 = vld [vmem:[#allocation11 + $0x1e8] sm:$0xff]
        %v2310 = vld [vmem:[#allocation11 + $0x1f0] sm:$0xff]
        %v2311 = vld [vmem:[#allocation11 + $0x1f8] sm:$0xff]
        %v2312 = vld [vmem:[#allocation11 + $0x200] sm:$0xff]
        %v2313 = vld [vmem:[#allocation11 + $0x208] sm:$0xff]
        %v2314 = vld [vmem:[#allocation11 + $0x210] sm:$0xff]
        %v2315 = vld [vmem:[#allocation11 + $0x218] sm:$0xff]
        %v2316 = vld [vmem:[#allocation11 + $0x220] sm:$0xff]
        %v2317 = vld [vmem:[#allocation11 + $0x228] sm:$0xff]
        %v2318 = vld [vmem:[#allocation11 + $0x230] sm:$0xff]
        %v2319 = vld [vmem:[#allocation11 + $0x238] sm:$0xff]
        %v2320 = vld [vmem:[#allocation11 + $0x240] sm:$0xff]
        %v2321 = vld [vmem:[#allocation11 + $0x248] sm:$0xff]
        %v2322 = vld [vmem:[#allocation11 + $0x250] sm:$0xff]
        %v2323 = vld [vmem:[#allocation11 + $0x258] sm:$0xff]
        %v2324 = vld [vmem:[#allocation11 + $0x260] sm:$0xff]
        %v2325 = vld [vmem:[#allocation11 + $0x268] sm:$0xff]
        %v2326 = vld [vmem:[#allocation11 + $0x270] sm:$0xff]
        %v2327 = vld [vmem:[#allocation11 + $0x278] sm:$0xff]
        %v2328 = vld [vmem:[%s10] sm:$0x1]
        %v2330 = vlaneseq
        %v2331 = vshrl.u32 %v2330, 7
        %v2332 = vsub.s32 0, %v2331
        %v2333 = vrot.slane %v2328, %v2332
        %2335 = vmatprep.subr.mxu0 0.0
        %2336 = vmatpush1.msra.mxu0 %v2248
        %2337 = vmatprep.subr.mxu0 0.0
        %2338 = vmatpush1.msra.mxu0 %v2249
        %2339 = vmatprep.subr.mxu0 0.0
        %2340 = vmatpush1.msra.mxu0 %v2250
        %2341 = vmatprep.subr.mxu0 0.0
        %2342 = vmatpush1.msra.mxu0 %v2251
        %2343 = vmatprep.subr.mxu0 0.0
        %2344 = vmatpush1.msra.mxu0 %v2252
        %2345 = vmatprep.subr.mxu0 0.0
        %2346 = vmatpush1.msra.mxu0 %v2253
        %2347 = vmatprep.subr.mxu0 0.0
        %2348 = vmatpush1.msra.mxu0 %v2254
        %2349 = vmatprep.subr.mxu0 0.0
        %2350 = vmatpush1.msra.mxu0 %v2255
        %2351 = vmatprep.subr.mxu0 0.0
        %2352 = vmatpush1.msra.mxu0 %v2256
        %2353 = vmatprep.subr.mxu0 0.0
        %2354 = vmatpush1.msra.mxu0 %v2257
        %2355 = vmatprep.subr.mxu0 0.0
        %2356 = vmatpush1.msra.mxu0 %v2258
        %2357 = vmatprep.subr.mxu0 0.0
        %2358 = vmatpush1.msra.mxu0 %v2259
        %2359 = vmatprep.subr.mxu0 0.0
        %2360 = vmatpush1.msra.mxu0 %v2260
        %2361 = vmatprep.subr.mxu0 0.0
        %2362 = vmatpush1.msra.mxu0 %v2261
        %2363 = vmatprep.subr.mxu0 0.0
        %2364 = vmatpush1.msra.mxu0 %v2262
        %2365 = vmatprep.subr.mxu0 0.0
        %2366 = vmatpush1.msra.mxu0 %v2263
        %2367 = vmatprep.subr.mxu0 0.0
        %2368 = vmatpush1.msra.mxu0 %v2264
        %2369 = vmatprep.subr.mxu0 0.0
        %2370 = vmatpush1.msra.mxu0 %v2265
        %2371 = vmatprep.subr.mxu0 0.0
        %2372 = vmatpush1.msra.mxu0 %v2266
        %2373 = vmatprep.subr.mxu0 0.0
        %2374 = vmatpush1.msra.mxu0 %v2267
        %2375 = vmatprep.subr.mxu0 0.0
        %2376 = vmatpush1.msra.mxu0 %v2268
        %2377 = vmatprep.subr.mxu0 0.0
        %2378 = vmatpush1.msra.mxu0 %v2269
        %2379 = vmatprep.subr.mxu0 0.0
        %2380 = vmatpush1.msra.mxu0 %v2270
        %2381 = vmatprep.subr.mxu0 0.0
        %2382 = vmatpush1.msra.mxu0 %v2271
        %2383 = vmatprep.subr.mxu0 0.0
        %2384 = vmatpush1.msra.mxu0 %v2272
        %2385 = vmatprep.subr.mxu0 0.0
        %2386 = vmatpush1.msra.mxu0 %v2273
        %2387 = vmatprep.subr.mxu0 0.0
        %2388 = vmatpush1.msra.mxu0 %v2274
        %2389 = vmatprep.subr.mxu0 0.0
        %2390 = vmatpush1.msra.mxu0 %v2275
        %2391 = vmatprep.subr.mxu0 0.0
        %2392 = vmatpush1.msra.mxu0 %v2276
        %2393 = vmatprep.subr.mxu0 0.0
        %2394 = vmatpush1.msra.mxu0 %v2277
        %2395 = vmatprep.subr.mxu0 0.0
        %2396 = vmatpush1.msra.mxu0 %v2278
        %2397 = vmatprep.subr.mxu0 0.0
        %2398 = vmatpush1.msra.mxu0 %v2279
        %2399 = vmatprep.mubr.f32.mxu0 %v2174
        %2400 = vmatmul.mubr.f32.gmra.mrb[0].mxu0 %v2158
        %v2401 = vpop.f32.mrb[0].mxu0
        %v2402 = vadd.f32 %v2333, %v2401
        %v2403 = vpop.f32.mrb[0].mxu0
        %2404 = vmatprep.mubr.f32.mxu0 %v2176
        %2405 = vmatmul.mubr.f32.gmra.mrb[0].mxu0 %v2159
        %v2406 = vpop.f32.mrb[0].mxu0
        %v2407 = vadd.f32 %v2333, %v2406
        %v2408 = vpop.f32.mrb[0].mxu0
        %2409 = vmatprep.mubr.f32.mxu0 %v2178
        %2410 = vmatmul.mubr.f32.gmra.mrb[0].mxu0 %v2160
        %v2411 = vpop.f32.mrb[0].mxu0
        %v2412 = vadd.f32 %v2333, %v2411
        %v2413 = vpop.f32.mrb[0].mxu0
        %2414 = vmatprep.mubr.f32.mxu0 %v2180
        %2415 = vmatmul.mubr.f32.gmra.mrb[0].mxu0 %v2161
        %v2416 = vpop.f32.mrb[0].mxu0
        %v2417 = vadd.f32 %v2333, %v2416
        %v2418 = vpop.f32.mrb[0].mxu0
        %2419 = vmatprep.mubr.f32.mxu0 %v2182
        %2420 = vmatmul.mubr.f32.gmra.mrb[0].mxu0 %v2162
        %v2421 = vpop.f32.mrb[0].mxu0
        %v2422 = vadd.f32 %v2333, %v2421
        %v2423 = vpop.f32.mrb[0].mxu0
        %2424 = vmatprep.mubr.f32.mxu0 %v2184
        %2425 = vmatmul.mubr.f32.gmra.mrb[0].mxu0 %v2163
        %v2426 = vpop.f32.mrb[0].mxu0
        %v2427 = vadd.f32 %v2333, %v2426
        %v2428 = vpop.f32.mrb[0].mxu0
        %2429 = vdwg.mxu0
        %2430 = vmatprep.subr.mxu0 0.0
        %2431 = vmatpush1.msra.mxu0 %v2280
        %2432 = vmatprep.subr.mxu0 0.0
        %2433 = vmatpush1.msra.mxu0 %v2281
        %2434 = vmatprep.subr.mxu0 0.0
        %2435 = vmatpush1.msra.mxu0 %v2282
        %2436 = vmatprep.subr.mxu0 0.0
        %2437 = vmatpush1.msra.mxu0 %v2283
        %2438 = vmatprep.subr.mxu0 0.0
        %2439 = vmatpush1.msra.mxu0 %v2284
        %2440 = vmatprep.subr.mxu0 0.0
        %2441 = vmatpush1.msra.mxu0 %v2285
        %2442 = vmatprep.subr.mxu0 0.0
        %2443 = vmatpush1.msra.mxu0 %v2286
        %2444 = vmatprep.subr.mxu0 0.0
        %2445 = vmatpush1.msra.mxu0 %v2287
        %2446 = vmatprep.subr.mxu0 0.0
        %2447 = vmatpush1.msra.mxu0 %v2288
        %2448 = vmatprep.subr.mxu0 0.0
        %2449 = vmatpush1.msra.mxu0 %v2289
        %2450 = vmatprep.subr.mxu0 0.0
        %2451 = vmatpush1.msra.mxu0 %v2290
        %2452 = vmatprep.subr.mxu0 0.0
        %2453 = vmatpush1.msra.mxu0 %v2291
        %2454 = vmatprep.subr.mxu0 0.0
        %2455 = vmatpush1.msra.mxu0 %v2292
        %2456 = vmatprep.subr.mxu0 0.0
        %2457 = vmatpush1.msra.mxu0 %v2293
        %2458 = vmatprep.subr.mxu0 0.0
        %2459 = vmatpush1.msra.mxu0 %v2294
        %2460 = vmatprep.subr.mxu0 0.0
        %2461 = vmatpush1.msra.mxu0 %v2295
        %2462 = vmatprep.subr.mxu0 0.0
        %2463 = vmatpush1.msra.mxu0 %v2296
        %2464 = vmatprep.subr.mxu0 0.0
        %2465 = vmatpush1.msra.mxu0 %v2297
        %2466 = vmatprep.subr.mxu0 0.0
        %2467 = vmatpush1.msra.mxu0 %v2298
        %2468 = vmatprep.subr.mxu0 0.0
        %2469 = vmatpush1.msra.mxu0 %v2299
        %2470 = vmatprep.subr.mxu0 0.0
        %2471 = vmatpush1.msra.mxu0 %v2300
        %2472 = vmatprep.subr.mxu0 0.0
        %2473 = vmatpush1.msra.mxu0 %v2301
        %2474 = vmatprep.subr.mxu0 0.0
        %2475 = vmatpush1.msra.mxu0 %v2302
        %2476 = vmatprep.subr.mxu0 0.0
        %2477 = vmatpush1.msra.mxu0 %v2303
        %2478 = vmatprep.subr.mxu0 0.0
        %2479 = vmatpush1.msra.mxu0 %v2304
        %2480 = vmatprep.subr.mxu0 0.0
        %2481 = vmatpush1.msra.mxu0 %v2305
        %2482 = vmatprep.subr.mxu0 0.0
        %2483 = vmatpush1.msra.mxu0 %v2306
        %2484 = vmatprep.subr.mxu0 0.0
        %2485 = vmatpush1.msra.mxu0 %v2307
        %2486 = vmatprep.subr.mxu0 0.0
        %2487 = vmatpush1.msra.mxu0 %v2308
        %2488 = vmatprep.subr.mxu0 0.0
        %2489 = vmatpush1.msra.mxu0 %v2309
        %2490 = vmatprep.subr.mxu0 0.0
        %2491 = vmatpush1.msra.mxu0 %v2310
        %2492 = vmatprep.subr.mxu0 0.0
        %2493 = vmatpush1.msra.mxu0 %v2311
        %2494 = vmatprep.mubr.f32.mxu0 %v2212
        %2495 = vmatmul.mubr.f32.gmra.mrb[0].mxu0 %v2193
        %v2496 = vpop.f32.mrb[0].mxu0
        %v2497 = vadd.f32 %v2402, %v2496
        %v2498 = vpop.f32.mrb[0].mxu0
        %2499 = vmatprep.mubr.f32.mxu0 %v2214
        %2500 = vmatmul.mubr.f32.gmra.mrb[0].mxu0 %v2195
        %v2501 = vpop.f32.mrb[0].mxu0
        %v2502 = vadd.f32 %v2407, %v2501
        %v2503 = vpop.f32.mrb[0].mxu0
        %2504 = vmatprep.mubr.f32.mxu0 %v2216
        %2505 = vmatmul.mubr.f32.gmra.mrb[0].mxu0 %v2197
        %v2506 = vpop.f32.mrb[0].mxu0
        %v2507 = vadd.f32 %v2412, %v2506
        %v2508 = vpop.f32.mrb[0].mxu0
        %2509 = vmatprep.mubr.f32.mxu0 %v2218
        %2510 = vmatmul.mubr.f32.gmra.mrb[0].mxu0 %v2199
        %v2511 = vpop.f32.mrb[0].mxu0
        %v2512 = vadd.f32 %v2417, %v2511
        %v2513 = vpop.f32.mrb[0].mxu0
        %2514 = vmatprep.mubr.f32.mxu0 %v2220
        %2515 = vmatmul.mubr.f32.gmra.mrb[0].mxu0 %v2201
        %v2516 = vpop.f32.mrb[0].mxu0
        %v2517 = vadd.f32 %v2422, %v2516
        %v2518 = vpop.f32.mrb[0].mxu0
        %2519 = vmatprep.mubr.f32.mxu0 %v2222
        %2520 = vmatmul.mubr.f32.gmra.mrb[0].mxu0 %v2203
        %v2521 = vpop.f32.mrb[0].mxu0
        %v2522 = vadd.f32 %v2427, %v2521
        %v2523 = vpop.f32.mrb[0].mxu0
        %2524 = vdwg.mxu0
        %2525 = vmatprep.subr.mxu0 0.0
        %2526 = vmatpush1.msra.mxu0 %v2312
        %2527 = vmatprep.subr.mxu0 0.0
        %2528 = vmatpush1.msra.mxu0 %v2313
        %2529 = vmatprep.subr.mxu0 0.0
        %2530 = vmatpush1.msra.mxu0 %v2314
        %2531 = vmatprep.subr.mxu0 0.0
        %2532 = vmatpush1.msra.mxu0 %v2315
        %2533 = vmatprep.subr.mxu0 0.0
        %2534 = vmatpush1.msra.mxu0 %v2316
        %2535 = vmatprep.subr.mxu0 0.0
        %2536 = vmatpush1.msra.mxu0 %v2317
        %2537 = vmatprep.subr.mxu0 0.0
        %2538 = vmatpush1.msra.mxu0 %v2318
        %2539 = vmatprep.subr.mxu0 0.0
        %2540 = vmatpush1.msra.mxu0 %v2319
        %2541 = vmatprep.subr.mxu0 0.0
        %2542 = vmatpush1.msra.mxu0 %v2320
        %2543 = vmatprep.subr.mxu0 0.0
        %2544 = vmatpush1.msra.mxu0 %v2321
        %2545 = vmatprep.subr.mxu0 0.0
        %2546 = vmatpush1.msra.mxu0 %v2322
        %2547 = vmatprep.subr.mxu0 0.0
        %2548 = vmatpush1.msra.mxu0 %v2323
        %2549 = vmatprep.subr.mxu0 0.0
        %2550 = vmatpush1.msra.mxu0 %v2324
        %2551 = vmatprep.subr.mxu0 0.0
        %2552 = vmatpush1.msra.mxu0 %v2325
        %2553 = vmatprep.subr.mxu0 0.0
        %2554 = vmatpush1.msra.mxu0 %v2326
        %2555 = vmatprep.subr.mxu0 0.0
        %2556 = vmatpush1.msra.mxu0 %v2327
        %2557 = vmatprep.subr.mxu0 0.0
        %2558 = vmatpush1.msra.mxu0 0.0
        %2559 = vmatprep.subr.mxu0 0.0
        %2560 = vmatpush1.msra.mxu0 0.0
        %2561 = vmatprep.subr.mxu0 0.0
        %2562 = vmatpush1.msra.mxu0 0.0
        %2563 = vmatprep.subr.mxu0 0.0
        %2564 = vmatpush1.msra.mxu0 0.0
        %2565 = vmatprep.subr.mxu0 0.0
        %2566 = vmatpush1.msra.mxu0 0.0
        %2567 = vmatprep.subr.mxu0 0.0
        %2568 = vmatpush1.msra.mxu0 0.0
        %2569 = vmatprep.subr.mxu0 0.0
        %2570 = vmatpush1.msra.mxu0 0.0
        %2571 = vmatprep.subr.mxu0 0.0
        %2572 = vmatpush1.msra.mxu0 0.0
        %2573 = vmatprep.subr.mxu0 0.0
        %2574 = vmatpush1.msra.mxu0 0.0
        %2575 = vmatprep.subr.mxu0 0.0
        %2576 = vmatpush1.msra.mxu0 0.0
        %2577 = vmatprep.subr.mxu0 0.0
        %2578 = vmatpush1.msra.mxu0 0.0
        %2579 = vmatprep.subr.mxu0 0.0
        %2580 = vmatpush1.msra.mxu0 0.0
        %2581 = vmatprep.subr.mxu0 0.0
        %2582 = vmatpush1.msra.mxu0 0.0
        %2583 = vmatprep.subr.mxu0 0.0
        %2584 = vmatpush1.msra.mxu0 0.0
        %2585 = vmatprep.subr.mxu0 0.0
        %2586 = vmatpush1.msra.mxu0 0.0
        %2587 = vmatprep.subr.mxu0 0.0
        %2588 = vmatpush1.msra.mxu0 0.0
        %2589 = vmatprep.mubr.f32.mxu0 0.0
        %2590 = vmatmul.mubr.f32.gmra.mrb[0].mxu0 %v2231
        %v2591 = vpop.f32.mrb[0].mxu0
        %v2592 = vadd.f32 %v2497, %v2591
        %v2593 = vpop.f32.mrb[0].mxu0
        %2594 = vmatprep.mubr.f32.mxu0 0.0
        %2595 = vmatmul.mubr.f32.gmra.mrb[0].mxu0 %v2233
        %v2596 = vpop.f32.mrb[0].mxu0
        %v2597 = vadd.f32 %v2502, %v2596
        %v2598 = vpop.f32.mrb[0].mxu0
        %2599 = vmatprep.mubr.f32.mxu0 0.0
        %2600 = vmatmul.mubr.f32.gmra.mrb[0].mxu0 %v2235
        %v2601 = vpop.f32.mrb[0].mxu0
        %v2602 = vadd.f32 %v2507, %v2601
        %v2603 = vpop.f32.mrb[0].mxu0
        %2604 = vmatprep.mubr.f32.mxu0 0.0
        %2605 = vmatmul.mubr.f32.gmra.mrb[0].mxu0 %v2237
        %v2606 = vpop.f32.mrb[0].mxu0
        %v2607 = vadd.f32 %v2512, %v2606
        %v2608 = vpop.f32.mrb[0].mxu0
        %2609 = vmatprep.mubr.f32.mxu0 0.0
        %2610 = vmatmul.mubr.f32.gmra.mrb[0].mxu0 %v2239
        %v2611 = vpop.f32.mrb[0].mxu0
        %v2612 = vadd.f32 %v2517, %v2611
        %v2613 = vpop.f32.mrb[0].mxu0
        %2614 = vmatprep.mubr.f32.mxu0 0.0
        %2615 = vmatmul.mubr.f32.gmra.mrb[0].mxu0 %v2241
        %v2616 = vpop.f32.mrb[0].mxu0
        %v2617 = vadd.f32 %v2522, %v2616
        %v2618 = vpop.f32.mrb[0].mxu0
        %2619 = vdwg.mxu0
        %v2620 = vtanh.pop %v2592
        %v2621 = vtanh.pop %v2597
        %v2622 = vtanh.pop %v2602
        %v2623 = vtanh.pop %v2607
        %v2624 = vtanh.pop %v2612
        %v2625 = vtanh.pop %v2617
        %s2626 = ssub.s32 16, %s568
        %v2627 = vstv %s2626
        %vm2628 = vcmp.lt.s32.totalorder %v1093, %v2627
        %vm2629 = vcmp.lt.s32.totalorder %v1094, %v2627
        %vm2630 = vcmp.lt.s32.totalorder %v1095, %v2627
        %vm2631 = vcmp.lt.s32.totalorder %v1096, %v2627
        %vm2632 = vcmp.lt.s32.totalorder %v1097, %v2627
        %vm2633 = vcmp.lt.s32.totalorder %v1098, %v2627
        %v2634 = vsel %vm2628, 1, 0
        %v2635 = vsel %vm2629, 1, 0
        %v2636 = vsel %vm2630, 1, 0
        %v2637 = vsel %vm2631, 1, 0
        %v2638 = vsel %vm2632, 1, 0
        %v2639 = vsel %vm2633, 1, 0
        %vm2640 = vcmp.eq.s32.totalorder %v2634, 1
        %vm2641 = vcmp.eq.s32.totalorder %v2635, 1
        %vm2642 = vcmp.eq.s32.totalorder %v2636, 1
        %vm2643 = vcmp.eq.s32.totalorder %v2637, 1
        %vm2644 = vcmp.eq.s32.totalorder %v2638, 1
        %vm2645 = vcmp.eq.s32.totalorder %v2639, 1
        %v2646 = vsel %vm2640, 0.0, %v2620
        %v2647 = vsel %vm2641, 0.0, %v2621
        %v2648 = vsel %vm2642, 0.0, %v2622
        %v2649 = vsel %vm2643, 0.0, %v2623
        %v2650 = vsel %vm2644, 0.0, %v2624
        %v2651 = vsel %vm2645, 0.0, %v2625
        %v2658 = vrot.slane %v2646, 1
        %v2659 = vrot.slane %v2647, 1
        %v2660 = vsel %vm585, %v2658, %v2659
        %v2661 = vrot.slane %v2648, 1
        %v2662 = vsel %vm585, %v2659, %v2661
        %v2663 = vrot.slane %v2649, 1
        %v2664 = vsel %vm585, %v2661, %v2663
        %v2665 = vrot.slane %v2650, 1
        %v2666 = vsel %vm585, %v2663, %v2665
        %v2667 = vrot.slane %v2651, 1
        %v2668 = vsel %vm585, %v2665, %v2667
        %v2675 = vrot.slane %v2646, 2
        %v2676 = vrot.slane %v2647, 2
        %v2677 = vsel %vm609, %v2675, %v2676
        %v2678 = vrot.slane %v2648, 2
        %v2679 = vsel %vm609, %v2676, %v2678
        %v2680 = vrot.slane %v2649, 2
        %v2681 = vsel %vm609, %v2678, %v2680
        %v2682 = vrot.slane %v2650, 2
        %v2683 = vsel %vm609, %v2680, %v2682
        %v2684 = vrot.slane %v2651, 2
        %v2685 = vsel %vm609, %v2682, %v2684
        %v2692 = vrot.slane %v2646, 3
        %v2693 = vrot.slane %v2647, 3
        %v2694 = vsel %vm633, %v2692, %v2693
        %v2695 = vrot.slane %v2648, 3
        %v2696 = vsel %vm633, %v2693, %v2695
        %v2697 = vrot.slane %v2649, 3
        %v2698 = vsel %vm633, %v2695, %v2697
        %v2699 = vrot.slane %v2650, 3
        %v2700 = vsel %vm633, %v2697, %v2699
        %v2701 = vrot.slane %v2651, 3
        %v2702 = vsel %vm633, %v2699, %v2701
        %v2709 = vrot.slane %v2646, 4
        %v2710 = vrot.slane %v2647, 4
        %v2711 = vsel %vm657, %v2709, %v2710
        %v2712 = vrot.slane %v2648, 4
        %v2713 = vsel %vm657, %v2710, %v2712
        %v2714 = vrot.slane %v2649, 4
        %v2715 = vsel %vm657, %v2712, %v2714
        %v2716 = vrot.slane %v2650, 4
        %v2717 = vsel %vm657, %v2714, %v2716
        %v2718 = vrot.slane %v2651, 4
        %v2719 = vsel %vm657, %v2716, %v2718
        %v2726 = vld [vmem:[#allocation13] sm:$0xff]
        %v2727 = vld [vmem:[#allocation13 + $0x8] sm:$0xff]
        %v2728 = vld [vmem:[#allocation13 + $0x10] sm:$0xff]
        %v2729 = vld [vmem:[#allocation13 + $0x18] sm:$0xff]
        %v2730 = vld [vmem:[#allocation13 + $0x20] sm:$0xff]
        %v2731 = vld [vmem:[#allocation13 + $0x28] sm:$0xff]
        %v2732 = vld [vmem:[#allocation13 + $0x30] sm:$0xff]
        %v2733 = vld [vmem:[#allocation13 + $0x38] sm:$0xff]
        %v2734 = vld [vmem:[#allocation13 + $0x40] sm:$0xff]
        %v2735 = vld [vmem:[#allocation13 + $0x48] sm:$0xff]
        %v2736 = vld [vmem:[#allocation13 + $0x50] sm:$0xff]
        %v2737 = vld [vmem:[#allocation13 + $0x58] sm:$0xff]
        %v2738 = vld [vmem:[#allocation13 + $0x60] sm:$0xff]
        %v2739 = vld [vmem:[#allocation13 + $0x68] sm:$0xff]
        %v2740 = vld [vmem:[#allocation13 + $0x70] sm:$0xff]
        %v2741 = vld [vmem:[#allocation13 + $0x78] sm:$0xff]
        %v2742 = vld [vmem:[#allocation13 + $0x80] sm:$0xff]
        %v2743 = vld [vmem:[#allocation13 + $0x88] sm:$0xff]
        %v2744 = vld [vmem:[#allocation13 + $0x90] sm:$0xff]
        %v2745 = vld [vmem:[#allocation13 + $0x98] sm:$0xff]
        %v2746 = vld [vmem:[#allocation13 + $0xa0] sm:$0xff]
        %v2747 = vld [vmem:[#allocation13 + $0xa8] sm:$0xff]
        %v2748 = vld [vmem:[#allocation13 + $0xb0] sm:$0xff]
        %v2749 = vld [vmem:[#allocation13 + $0xb8] sm:$0xff]
        %v2750 = vld [vmem:[#allocation13 + $0xc0] sm:$0xff]
        %v2751 = vld [vmem:[#allocation13 + $0xc8] sm:$0xff]
        %v2752 = vld [vmem:[#allocation13 + $0xd0] sm:$0xff]
        %v2753 = vld [vmem:[#allocation13 + $0xd8] sm:$0xff]
        %v2754 = vld [vmem:[#allocation13 + $0xe0] sm:$0xff]
        %v2755 = vld [vmem:[#allocation13 + $0xe8] sm:$0xff]
        %v2756 = vld [vmem:[#allocation13 + $0xf0] sm:$0xff]
        %v2757 = vld [vmem:[#allocation13 + $0xf8] sm:$0xff]
        %v2758 = vld [vmem:[#allocation13 + $0x100] sm:$0xff]
        %v2759 = vld [vmem:[#allocation13 + $0x108] sm:$0xff]
        %v2760 = vld [vmem:[#allocation13 + $0x110] sm:$0xff]
        %v2761 = vld [vmem:[#allocation13 + $0x118] sm:$0xff]
        %v2762 = vld [vmem:[#allocation13 + $0x120] sm:$0xff]
        %v2763 = vld [vmem:[#allocation13 + $0x128] sm:$0xff]
        %v2764 = vld [vmem:[#allocation13 + $0x130] sm:$0xff]
        %v2765 = vld [vmem:[#allocation13 + $0x138] sm:$0xff]
        %v2766 = vld [vmem:[#allocation13 + $0x140] sm:$0xff]
        %v2767 = vld [vmem:[#allocation13 + $0x148] sm:$0xff]
        %v2768 = vld [vmem:[#allocation13 + $0x150] sm:$0xff]
        %v2769 = vld [vmem:[#allocation13 + $0x158] sm:$0xff]
        %v2770 = vld [vmem:[#allocation13 + $0x160] sm:$0xff]
        %v2771 = vld [vmem:[#allocation13 + $0x168] sm:$0xff]
        %v2772 = vld [vmem:[#allocation13 + $0x170] sm:$0xff]
        %v2773 = vld [vmem:[#allocation13 + $0x178] sm:$0xff]
        %v2774 = vld [vmem:[#allocation13 + $0x180] sm:$0xff]
        %v2775 = vld [vmem:[#allocation13 + $0x188] sm:$0xff]
        %v2776 = vld [vmem:[#allocation13 + $0x190] sm:$0xff]
        %v2777 = vld [vmem:[#allocation13 + $0x198] sm:$0xff]
        %v2778 = vld [vmem:[#allocation13 + $0x1a0] sm:$0xff]
        %v2779 = vld [vmem:[#allocation13 + $0x1a8] sm:$0xff]
        %v2780 = vld [vmem:[#allocation13 + $0x1b0] sm:$0xff]
        %v2781 = vld [vmem:[#allocation13 + $0x1b8] sm:$0xff]
        %v2782 = vld [vmem:[#allocation13 + $0x1c0] sm:$0xff]
        %v2783 = vld [vmem:[#allocation13 + $0x1c8] sm:$0xff]
        %v2784 = vld [vmem:[#allocation13 + $0x1d0] sm:$0xff]
        %v2785 = vld [vmem:[#allocation13 + $0x1d8] sm:$0xff]
        %v2786 = vld [vmem:[#allocation13 + $0x1e0] sm:$0xff]
        %v2787 = vld [vmem:[#allocation13 + $0x1e8] sm:$0xff]
        %v2788 = vld [vmem:[#allocation13 + $0x1f0] sm:$0xff]
        %v2789 = vld [vmem:[#allocation13 + $0x1f8] sm:$0xff]
        %v2790 = vld [vmem:[#allocation13 + $0x200] sm:$0xff]
        %v2791 = vld [vmem:[#allocation13 + $0x208] sm:$0xff]
        %v2792 = vld [vmem:[#allocation13 + $0x210] sm:$0xff]
        %v2793 = vld [vmem:[#allocation13 + $0x218] sm:$0xff]
        %v2794 = vld [vmem:[#allocation13 + $0x220] sm:$0xff]
        %v2795 = vld [vmem:[#allocation13 + $0x228] sm:$0xff]
        %v2796 = vld [vmem:[#allocation13 + $0x230] sm:$0xff]
        %v2797 = vld [vmem:[#allocation13 + $0x238] sm:$0xff]
        %v2798 = vld [vmem:[#allocation13 + $0x240] sm:$0xff]
        %v2799 = vld [vmem:[#allocation13 + $0x248] sm:$0xff]
        %v2800 = vld [vmem:[#allocation13 + $0x250] sm:$0xff]
        %v2801 = vld [vmem:[#allocation13 + $0x258] sm:$0xff]
        %v2802 = vld [vmem:[#allocation13 + $0x260] sm:$0xff]
        %v2803 = vld [vmem:[#allocation13 + $0x268] sm:$0xff]
        %v2804 = vld [vmem:[#allocation13 + $0x270] sm:$0xff]
        %v2805 = vld [vmem:[#allocation13 + $0x278] sm:$0xff]
        %v2806 = vld [vmem:[%s11] sm:$0x1]
        %v2808 = vlaneseq
        %v2809 = vshrl.u32 %v2808, 7
        %v2810 = vsub.s32 0, %v2809
        %v2811 = vrot.slane %v2806, %v2810
        %2813 = vmatprep.subr.mxu0 0.0
        %2814 = vmatpush1.msra.mxu0 %v2726
        %2815 = vmatprep.subr.mxu0 0.0
        %2816 = vmatpush1.msra.mxu0 %v2727
        %2817 = vmatprep.subr.mxu0 0.0
        %2818 = vmatpush1.msra.mxu0 %v2728
        %2819 = vmatprep.subr.mxu0 0.0
        %2820 = vmatpush1.msra.mxu0 %v2729
        %2821 = vmatprep.subr.mxu0 0.0
        %2822 = vmatpush1.msra.mxu0 %v2730
        %2823 = vmatprep.subr.mxu0 0.0
        %2824 = vmatpush1.msra.mxu0 %v2731
        %2825 = vmatprep.subr.mxu0 0.0
        %2826 = vmatpush1.msra.mxu0 %v2732
        %2827 = vmatprep.subr.mxu0 0.0
        %2828 = vmatpush1.msra.mxu0 %v2733
        %2829 = vmatprep.subr.mxu0 0.0
        %2830 = vmatpush1.msra.mxu0 %v2734
        %2831 = vmatprep.subr.mxu0 0.0
        %2832 = vmatpush1.msra.mxu0 %v2735
        %2833 = vmatprep.subr.mxu0 0.0
        %2834 = vmatpush1.msra.mxu0 %v2736
        %2835 = vmatprep.subr.mxu0 0.0
        %2836 = vmatpush1.msra.mxu0 %v2737
        %2837 = vmatprep.subr.mxu0 0.0
        %2838 = vmatpush1.msra.mxu0 %v2738
        %2839 = vmatprep.subr.mxu0 0.0
        %2840 = vmatpush1.msra.mxu0 %v2739
        %2841 = vmatprep.subr.mxu0 0.0
        %2842 = vmatpush1.msra.mxu0 %v2740
        %2843 = vmatprep.subr.mxu0 0.0
        %2844 = vmatpush1.msra.mxu0 %v2741
        %2845 = vmatprep.subr.mxu0 0.0
        %2846 = vmatpush1.msra.mxu0 %v2742
        %2847 = vmatprep.subr.mxu0 0.0
        %2848 = vmatpush1.msra.mxu0 %v2743
        %2849 = vmatprep.subr.mxu0 0.0
        %2850 = vmatpush1.msra.mxu0 %v2744
        %2851 = vmatprep.subr.mxu0 0.0
        %2852 = vmatpush1.msra.mxu0 %v2745
        %2853 = vmatprep.subr.mxu0 0.0
        %2854 = vmatpush1.msra.mxu0 %v2746
        %2855 = vmatprep.subr.mxu0 0.0
        %2856 = vmatpush1.msra.mxu0 %v2747
        %2857 = vmatprep.subr.mxu0 0.0
        %2858 = vmatpush1.msra.mxu0 %v2748
        %2859 = vmatprep.subr.mxu0 0.0
        %2860 = vmatpush1.msra.mxu0 %v2749
        %2861 = vmatprep.subr.mxu0 0.0
        %2862 = vmatpush1.msra.mxu0 %v2750
        %2863 = vmatprep.subr.mxu0 0.0
        %2864 = vmatpush1.msra.mxu0 %v2751
        %2865 = vmatprep.subr.mxu0 0.0
        %2866 = vmatpush1.msra.mxu0 %v2752
        %2867 = vmatprep.subr.mxu0 0.0
        %2868 = vmatpush1.msra.mxu0 %v2753
        %2869 = vmatprep.subr.mxu0 0.0
        %2870 = vmatpush1.msra.mxu0 %v2754
        %2871 = vmatprep.subr.mxu0 0.0
        %2872 = vmatpush1.msra.mxu0 %v2755
        %2873 = vmatprep.subr.mxu0 0.0
        %2874 = vmatpush1.msra.mxu0 %v2756
        %2875 = vmatprep.subr.mxu0 0.0
        %2876 = vmatpush1.msra.mxu0 %v2757
        %2877 = vmatprep.mubr.f32.mxu0 %v2660
        %2878 = vmatmul.mubr.f32.gmra.mrb[0].mxu0 %v2646
        %v2879 = vpop.f32.mrb[0].mxu0
        %v2880 = vpop.f32.mrb[0].mxu0
        %2881 = vmatprep.mubr.f32.mxu0 %v2662
        %2882 = vmatmul.mubr.f32.gmra.mrb[0].mxu0 %v2647
        %v2883 = vpop.f32.mrb[0].mxu0
        %v2884 = vadd.f32 %v2811, %v2883
        %v2885 = vpop.f32.mrb[0].mxu0
        %2886 = vmatprep.mubr.f32.mxu0 %v2664
        %2887 = vmatmul.mubr.f32.gmra.mrb[0].mxu0 %v2648
        %v2888 = vpop.f32.mrb[0].mxu0
        %v2889 = vadd.f32 %v2811, %v2888
        %v2890 = vpop.f32.mrb[0].mxu0
        %2891 = vmatprep.mubr.f32.mxu0 %v2666
        %2892 = vmatmul.mubr.f32.gmra.mrb[0].mxu0 %v2649
        %v2893 = vpop.f32.mrb[0].mxu0
        %v2894 = vadd.f32 %v2811, %v2893
        %v2895 = vpop.f32.mrb[0].mxu0
        %2896 = vmatprep.mubr.f32.mxu0 %v2668
        %2897 = vmatmul.mubr.f32.gmra.mrb[0].mxu0 %v2650
        %v2898 = vpop.f32.mrb[0].mxu0
        %v2899 = vadd.f32 %v2811, %v2898
        %v2900 = vpop.f32.mrb[0].mxu0
        %2901 = vmatprep.mubr.f32.mxu0 %v2667
        %2902 = vmatmul.mubr.f32.gmra.mrb[0].mxu0 %v2651
        %v2903 = vpop.f32.mrb[0].mxu0
        %v2904 = vadd.f32 %v2811, %v2903
        %v2905 = vpop.f32.mrb[0].mxu0
        %2906 = vdwg.mxu0
        %2907 = vmatprep.subr.mxu0 0.0
        %2908 = vmatpush1.msra.mxu0 %v2758
        %2909 = vmatprep.subr.mxu0 0.0
        %2910 = vmatpush1.msra.mxu0 %v2759
        %2911 = vmatprep.subr.mxu0 0.0
        %2912 = vmatpush1.msra.mxu0 %v2760
        %2913 = vmatprep.subr.mxu0 0.0
        %2914 = vmatpush1.msra.mxu0 %v2761
        %2915 = vmatprep.subr.mxu0 0.0
        %2916 = vmatpush1.msra.mxu0 %v2762
        %2917 = vmatprep.subr.mxu0 0.0
        %2918 = vmatpush1.msra.mxu0 %v2763
        %2919 = vmatprep.subr.mxu0 0.0
        %2920 = vmatpush1.msra.mxu0 %v2764
        %2921 = vmatprep.subr.mxu0 0.0
        %2922 = vmatpush1.msra.mxu0 %v2765
        %2923 = vmatprep.subr.mxu0 0.0
        %2924 = vmatpush1.msra.mxu0 %v2766
        %2925 = vmatprep.subr.mxu0 0.0
        %2926 = vmatpush1.msra.mxu0 %v2767
        %2927 = vmatprep.subr.mxu0 0.0
        %2928 = vmatpush1.msra.mxu0 %v2768
        %2929 = vmatprep.subr.mxu0 0.0
        %2930 = vmatpush1.msra.mxu0 %v2769
        %2931 = vmatprep.subr.mxu0 0.0
        %2932 = vmatpush1.msra.mxu0 %v2770
        %2933 = vmatprep.subr.mxu0 0.0
        %2934 = vmatpush1.msra.mxu0 %v2771
        %2935 = vmatprep.subr.mxu0 0.0
        %2936 = vmatpush1.msra.mxu0 %v2772
        %2937 = vmatprep.subr.mxu0 0.0
        %2938 = vmatpush1.msra.mxu0 %v2773
        %2939 = vmatprep.subr.mxu0 0.0
        %2940 = vmatpush1.msra.mxu0 %v2774
        %2941 = vmatprep.subr.mxu0 0.0
        %2942 = vmatpush1.msra.mxu0 %v2775
        %2943 = vmatprep.subr.mxu0 0.0
        %2944 = vmatpush1.msra.mxu0 %v2776
        %2945 = vmatprep.subr.mxu0 0.0
        %2946 = vmatpush1.msra.mxu0 %v2777
        %2947 = vmatprep.subr.mxu0 0.0
        %2948 = vmatpush1.msra.mxu0 %v2778
        %2949 = vmatprep.subr.mxu0 0.0
        %2950 = vmatpush1.msra.mxu0 %v2779
        %2951 = vmatprep.subr.mxu0 0.0
        %2952 = vmatpush1.msra.mxu0 %v2780
        %2953 = vmatprep.subr.mxu0 0.0
        %2954 = vmatpush1.msra.mxu0 %v2781
        %2955 = vmatprep.subr.mxu0 0.0
        %2956 = vmatpush1.msra.mxu0 %v2782
        %2957 = vmatprep.subr.mxu0 0.0
        %2958 = vmatpush1.msra.mxu0 %v2783
        %2959 = vmatprep.subr.mxu0 0.0
        %2960 = vmatpush1.msra.mxu0 %v2784
        %2961 = vmatprep.subr.mxu0 0.0
        %2962 = vmatpush1.msra.mxu0 %v2785
        %2963 = vmatprep.subr.mxu0 0.0
        %2964 = vmatpush1.msra.mxu0 %v2786
        %2965 = vmatprep.subr.mxu0 0.0
        %2966 = vmatpush1.msra.mxu0 %v2787
        %2967 = vmatprep.subr.mxu0 0.0
        %2968 = vmatpush1.msra.mxu0 %v2788
        %2969 = vmatprep.subr.mxu0 0.0
        %2970 = vmatpush1.msra.mxu0 %v2789
        %2971 = vmatprep.mubr.f32.mxu0 %v2694
        %2972 = vmatmul.mubr.f32.gmra.mrb[0].mxu0 %v2677
        %v2973 = vpop.f32.mrb[0].mxu0
        %v2974 = vpop.f32.mrb[0].mxu0
        %2975 = vmatprep.mubr.f32.mxu0 %v2696
        %2976 = vmatmul.mubr.f32.gmra.mrb[0].mxu0 %v2679
        %v2977 = vpop.f32.mrb[0].mxu0
        %v2978 = vadd.f32 %v2884, %v2977
        %v2979 = vpop.f32.mrb[0].mxu0
        %2980 = vmatprep.mubr.f32.mxu0 %v2698
        %2981 = vmatmul.mubr.f32.gmra.mrb[0].mxu0 %v2681
        %v2982 = vpop.f32.mrb[0].mxu0
        %v2983 = vadd.f32 %v2889, %v2982
        %v2984 = vpop.f32.mrb[0].mxu0
        %2985 = vmatprep.mubr.f32.mxu0 %v2700
        %2986 = vmatmul.mubr.f32.gmra.mrb[0].mxu0 %v2683
        %v2987 = vpop.f32.mrb[0].mxu0
        %v2988 = vadd.f32 %v2894, %v2987
        %v2989 = vpop.f32.mrb[0].mxu0
        %2990 = vmatprep.mubr.f32.mxu0 %v2702
        %2991 = vmatmul.mubr.f32.gmra.mrb[0].mxu0 %v2685
        %v2992 = vpop.f32.mrb[0].mxu0
        %v2993 = vadd.f32 %v2899, %v2992
        %v2994 = vpop.f32.mrb[0].mxu0
        %2995 = vmatprep.mubr.f32.mxu0 %v2701
        %2996 = vmatmul.mubr.f32.gmra.mrb[0].mxu0 %v2684
        %v2997 = vpop.f32.mrb[0].mxu0
        %v2998 = vadd.f32 %v2904, %v2997
        %v2999 = vpop.f32.mrb[0].mxu0
        %3000 = vdwg.mxu0
        %3001 = vmatprep.subr.mxu0 0.0
        %3002 = vmatpush1.msra.mxu0 %v2790
        %3003 = vmatprep.subr.mxu0 0.0
        %3004 = vmatpush1.msra.mxu0 %v2791
        %3005 = vmatprep.subr.mxu0 0.0
        %3006 = vmatpush1.msra.mxu0 %v2792
        %3007 = vmatprep.subr.mxu0 0.0
        %3008 = vmatpush1.msra.mxu0 %v2793
        %3009 = vmatprep.subr.mxu0 0.0
        %3010 = vmatpush1.msra.mxu0 %v2794
        %3011 = vmatprep.subr.mxu0 0.0
        %3012 = vmatpush1.msra.mxu0 %v2795
        %3013 = vmatprep.subr.mxu0 0.0
        %3014 = vmatpush1.msra.mxu0 %v2796
        %3015 = vmatprep.subr.mxu0 0.0
        %3016 = vmatpush1.msra.mxu0 %v2797
        %3017 = vmatprep.subr.mxu0 0.0
        %3018 = vmatpush1.msra.mxu0 %v2798
        %3019 = vmatprep.subr.mxu0 0.0
        %3020 = vmatpush1.msra.mxu0 %v2799
        %3021 = vmatprep.subr.mxu0 0.0
        %3022 = vmatpush1.msra.mxu0 %v2800
        %3023 = vmatprep.subr.mxu0 0.0
        %3024 = vmatpush1.msra.mxu0 %v2801
        %3025 = vmatprep.subr.mxu0 0.0
        %3026 = vmatpush1.msra.mxu0 %v2802
        %3027 = vmatprep.subr.mxu0 0.0
        %3028 = vmatpush1.msra.mxu0 %v2803
        %3029 = vmatprep.subr.mxu0 0.0
        %3030 = vmatpush1.msra.mxu0 %v2804
        %3031 = vmatprep.subr.mxu0 0.0
        %3032 = vmatpush1.msra.mxu0 %v2805
        %3033 = vmatprep.subr.mxu0 0.0
        %3034 = vmatpush1.msra.mxu0 0.0
        %3035 = vmatprep.subr.mxu0 0.0
        %3036 = vmatpush1.msra.mxu0 0.0
        %3037 = vmatprep.subr.mxu0 0.0
        %3038 = vmatpush1.msra.mxu0 0.0
        %3039 = vmatprep.subr.mxu0 0.0
        %3040 = vmatpush1.msra.mxu0 0.0
        %3041 = vmatprep.subr.mxu0 0.0
        %3042 = vmatpush1.msra.mxu0 0.0
        %3043 = vmatprep.subr.mxu0 0.0
        %3044 = vmatpush1.msra.mxu0 0.0
        %3045 = vmatprep.subr.mxu0 0.0
        %3046 = vmatpush1.msra.mxu0 0.0
        %3047 = vmatprep.subr.mxu0 0.0
        %3048 = vmatpush1.msra.mxu0 0.0
        %3049 = vmatprep.subr.mxu0 0.0
        %3050 = vmatpush1.msra.mxu0 0.0
        %3051 = vmatprep.subr.mxu0 0.0
        %3052 = vmatpush1.msra.mxu0 0.0
        %3053 = vmatprep.subr.mxu0 0.0
        %3054 = vmatpush1.msra.mxu0 0.0
        %3055 = vmatprep.subr.mxu0 0.0
        %3056 = vmatpush1.msra.mxu0 0.0
        %3057 = vmatprep.subr.mxu0 0.0
        %3058 = vmatpush1.msra.mxu0 0.0
        %3059 = vmatprep.subr.mxu0 0.0
        %3060 = vmatpush1.msra.mxu0 0.0
        %3061 = vmatprep.subr.mxu0 0.0
        %3062 = vmatpush1.msra.mxu0 0.0
        %3063 = vmatprep.subr.mxu0 0.0
        %3064 = vmatpush1.msra.mxu0 0.0
        %3065 = vmatprep.mubr.f32.mxu0 0.0
        %3066 = vmatmul.mubr.f32.gmra.mrb[0].mxu0 %v2711
        %v3067 = vpop.f32.mrb[0].mxu0
        %v3068 = vpop.f32.mrb[0].mxu0
        %3069 = vmatprep.mubr.f32.mxu0 0.0
        %3070 = vmatmul.mubr.f32.gmra.mrb[0].mxu0 %v2713
        %v3071 = vpop.f32.mrb[0].mxu0
        %v3072 = vadd.f32 %v2978, %v3071
        %v3073 = vpop.f32.mrb[0].mxu0
        %3074 = vmatprep.mubr.f32.mxu0 0.0
        %3075 = vmatmul.mubr.f32.gmra.mrb[0].mxu0 %v2715
        %v3076 = vpop.f32.mrb[0].mxu0
        %v3077 = vadd.f32 %v2983, %v3076
        %v3078 = vpop.f32.mrb[0].mxu0
        %3079 = vmatprep.mubr.f32.mxu0 0.0
        %3080 = vmatmul.mubr.f32.gmra.mrb[0].mxu0 %v2717
        %v3081 = vpop.f32.mrb[0].mxu0
        %v3082 = vadd.f32 %v2988, %v3081
        %v3083 = vpop.f32.mrb[0].mxu0
        %3084 = vmatprep.mubr.f32.mxu0 0.0
        %3085 = vmatmul.mubr.f32.gmra.mrb[0].mxu0 %v2719
        %v3086 = vpop.f32.mrb[0].mxu0
        %v3087 = vadd.f32 %v2993, %v3086
        %v3088 = vpop.f32.mrb[0].mxu0
        %3089 = vmatprep.mubr.f32.mxu0 0.0
        %3090 = vmatmul.mubr.f32.gmra.mrb[0].mxu0 %v2718
        %v3091 = vpop.f32.mrb[0].mxu0
        %v3092 = vadd.f32 %v2998, %v3091
        %v3093 = vpop.f32.mrb[0].mxu0
        %3094 = vdwg.mxu0
        %3095 = vst [vmem:[%s565 - $0x4] sm:$0xf0] %v3072
        %3096 = vst [vmem:[%s565 + $0x4] sm:$0xff] %v3077
        %3097 = vst [vmem:[%s565 + $0xc] sm:$0xff] %v3082
        %3098 = vst [vmem:[%s565 + $0x14] sm:$0xff] %v3087
        %3099 = vst [vmem:[%s565 + $0x1c] sm:$0xf] %v3092
        %s3100 = sand.u32 %s322, 1
        %s3101 = scalar_lea.sflag [#allocation4], %s3100
        %s3102 = sand.u32 %s322, 1
        %s3103 = smul.addr %s3102, 32
        %s3104 = scalar_lea.vmem [#allocation14], %s3103
        // Predicated region
        $region97: #{tpu_custom_call.1} parent=67 // pred_check
          %p3105 = pneg %p332
        $region98: #{tpu_custom_call.1} parent=67 // pred_check_branch
          %3107 = sbr.rel (%p3105) target = $region100
        $region99: #{tpu_custom_call.1} parent=67 // pred_region
          %s3108 = smul.u32 4, %s39
          %s3110 = ssub.s32 512, 512
          %3111 = vsyncadd %s3101, %s3110
          %s3112 = smul.addr %s38, 4
          %s3113 = sadd.s32 %s3108, %s3112
          %s3114 = smul.addr %s3113, 128
          %s3115 = scalar_lea.hbm %s12, %s3114
          %s3116 = sshll.u32 %s3104, 4
          %s3117 = int_to_ptr.vmem [resolvable:$true] %s3116
          %3122 = dma.vmem_to_hbm [thread:$0]  %s3117, 512, %s3115, %s3101, 128, 128, 8
        $region100: #{tpu_custom_call.1} parent=67 // pred_fallthru
          _
      $region68: #{tpu_custom_call.1} parent=5 // pred_fallthru
        _
      %p3123 = scmp.le.s32.totalorder 2, %s29
      // Predicated region
      $region101: #{tpu_custom_call.1} parent=5 // pred_check
        %p3124 = pneg %p3123
      $region102: #{tpu_custom_call.1} parent=5 // pred_check_branch
        %3126 = sbr.rel (%p3124) target = $region104
      $region103: #{tpu_custom_call.1} parent=5 // pred_region
        %s3127 = ssub.s32 %s29, 2
        // Predicated region
        $region105: #{tpu_custom_call.1} parent=103 // pred_check
          %p3128 = pneg %p338
        $region106: #{tpu_custom_call.1} parent=103 // pred_check_branch
          %3130 = sbr.rel (%p3128) target = $region108
        $region107: #{tpu_custom_call.1} parent=103 // pred_region
          %s3131 = sand.u32 %s323, 1
          %s3132 = scalar_lea.sflag [#allocation4], %s3131
          %s3133 = sand.u32 %s323, 1
          %s3134 = smul.addr %s3133, 32
          %s3135 = scalar_lea.vmem [#allocation14], %s3134
          %3136 = dma.done %s3132, 512
        $region108: #{tpu_custom_call.1} parent=103 // pred_fallthru
          _
      $region104: #{tpu_custom_call.1} parent=5 // pred_fallthru
        _
    $region6: #{tpu_custom_call.1} parent=1 // loop_footer
      %s33 = sadd.s32 1, %s29
    $region7: #{tpu_custom_call.1} parent=1 // loop_footer_branch
      %28 = sbr.rel target = $region3
    $region8: #{tpu_custom_call.1} parent=1 // loop_exit
      _
    %3137 = vsyncpa [#allocation3], 1
    %s3138 = scalar_lea.sflag [#allocation3], 1
    %3139 = vsyncpa %s3138, 1
    %3140 = vsyncpa [#allocation6], 1
    %s3141 = scalar_lea.sflag [#allocation6], 1
    %3142 = vsyncpa %s3141, 1
    %3143 = vsyncpa [#allocation9], 1
    %3144 = vsyncpa [#allocation12], 1
    %3145 = vsyncpa [#allocation4], 1
    %s3146 = scalar_lea.sflag [#allocation4], 1
    %3147 = vsyncpa %s3146, 1

// kernel: tpu_custom_call.1
$region0: #{tpu_custom_call.1}
  #allocation0 [shape = 'u32[]', space=smem, size = 0x4, offset = 0x4, fixed_abs, tag = 'smem constant byte address 0x4 - core index']
  #allocation1 [shape = 'u32[144,128]{1,0:T(1,128)}', space=vmem, size = 0x12000, scoped, tag = 'internal scratch']
  %s0 = inlined_call_operand.hbm [shape: f32[2,1,32,128], index: 0, kind: input, shape index: {}]
  %s1 = inlined_call_operand.hbm [shape: f32[2,32,128], index: 1, kind: input, shape index: {}]
  %s2 = inlined_call_operand.hbm [shape: f32[640,128], index: 2, kind: input, shape index: {}]
  %s3 = inlined_call_operand.hbm [shape: f32[640,128], index: 3, kind: input, shape index: {}]
  %s4 = inlined_call_operand.hbm [shape: f32[640,128], index: 4, kind: input, shape index: {}]
  %s5 = inlined_call_operand.hbm [shape: f32[640,128], index: 5, kind: input, shape index: {}]
  %s6 = inlined_call_operand.hbm [shape: f32[640,128], index: 6, kind: input, shape index: {}]
  %s7 = inlined_call_operand.vmem [shape: f32[1,128], index: 7, kind: input, shape index: {}]
  %s8 = inlined_call_operand.vmem [shape: f32[1,128], index: 8, kind: input, shape index: {}]
  %s9 = inlined_call_operand.vmem [shape: f32[1,128], index: 9, kind: input, shape index: {}]
  %s10 = inlined_call_operand.vmem [shape: f32[1,128], index: 10, kind: input, shape index: {}]
  %s11 = inlined_call_operand.vmem [shape: f32[1,128], index: 11, kind: input, shape index: {}]
  %s12 = inlined_call_operand.hbm [shape: f32[2,32,128], index: 12, kind: output, shape index: {}]
  %s13 = sld [smem:[#allocation0]]
  $region109: #{tpu_custom_call.1} parent=0
    _
  %s15 = ssub.s32 1, %s13
  %s16 = scalar_select 0, %s15, %s13
  $region1: #{tpu_custom_call.1} parent=0
    #allocation2 [shape = 'u8[32768]{0}', space=vmem, size = 0x8000, scoped, tag = 'input window, operand 0']
    #allocation3 [shape = 's32[2]{0}', space=sflag, size = 0x8, scoped, tag = 'scoped memory for tpu_custom_call.1']
    #allocation4 [shape = 's32[2]{0}', space=sflag, size = 0x8, scoped, tag = 'scoped memory for tpu_custom_call.1']
    #allocation5 [shape = 'u8[32768]{0}', space=vmem, size = 0x8000, scoped, tag = 'input window, operand 1']
    #allocation6 [shape = 's32[2]{0}', space=sflag, size = 0x8, scoped, tag = 'scoped memory for tpu_custom_call.1']
    #allocation7 [shape = 'u8[327680]{0}', space=vmem, size = 0x50000, scoped, tag = 'input window, operand 2, single buffered']
    #allocation8 [shape = 'u8[327680]{0}', space=vmem, size = 0x50000, scoped, tag = 'input window, operand 3, single buffered']
    #allocation9 [shape = 's32[1]{0}', space=sflag, size = 0x4, scoped, tag = 'scoped memory for tpu_custom_call.1']
    #allocation10 [shape = 'u8[327680]{0}', space=vmem, size = 0x50000, scoped, tag = 'input window, operand 4, single buffered']
    #allocation11 [shape = 'u8[327680]{0}', space=vmem, size = 0x50000, scoped, tag = 'input window, operand 5, single buffered']
    #allocation12 [shape = 's32[1]{0}', space=sflag, size = 0x4, scoped, tag = 'scoped memory for tpu_custom_call.1']
    #allocation13 [shape = 'u8[327680]{0}', space=vmem, size = 0x50000, scoped, tag = 'input window, operand 6, single buffered']
    #allocation14 [shape = 'u8[32768]{0}', space=vmem, size = 0x8000, scoped, tag = 'output window, operand 0']
    %17 = vsyncpa [#allocation3], 0
    %s18 = scalar_lea.sflag [#allocation3], 1
    %19 = vsyncpa %s18, 0
    %20 = vsyncpa [#allocation6], 0
    %s21 = scalar_lea.sflag [#allocation6], 1
    %22 = vsyncpa %s21, 0
    %23 = vsyncpa [#allocation9], 0
    %24 = vsyncpa [#allocation12], 0
    %25 = vsyncpa [#allocation4], 0
    %s26 = scalar_lea.sflag [#allocation4], 1
    %27 = vsyncpa %s26, 0
    loop: start=0, step=1, limit=4
    $region2: #{tpu_custom_call.1} parent=1 // loop_pre_header
      _
    $region3: #{tpu_custom_call.1} parent=1 // loop_header
      %s29 = sphi 0, %s33
      %p30 = scmp.ge.s32.totalorder %s29, 4
      %s36 = sphi 0, %s48
      %s37 = sphi 0, %s44
      %s38 = sphi 0, %s36
      %s39 = sphi 0, %s37
      %s40 = sphi 0, %s38
      %s41 = sphi 0, %s39
      %s53 = sphi 0, %s55
      %s56 = sphi 0, %s53
      %s57 = sphi 0, %s56
      %s73 = sphi 0, %s57
      %s81 = sphi 0, %s83
      %s84 = sphi 0, %s81
      %s85 = sphi 0, %s84
      %s101 = sphi 0, %s85
      %s105 = sphi 0, %s105
      %s107 = sphi 0, %s105
      %s108 = sphi 0, %s107
      %s122 = sphi 0, %s108
      %s126 = sphi 0, %s126
      %s128 = sphi 0, %s126
      %s129 = sphi 0, %s128
      %s143 = sphi 0, %s129
      %s147 = sphi 0, %s147
      %s149 = sphi 0, %s147
      %s150 = sphi 0, %s149
      %s164 = sphi 0, %s150
      %s168 = sphi 0, %s168
      %s170 = sphi 0, %s168
      %s171 = sphi 0, %s170
      %s185 = sphi 0, %s171
      %s189 = sphi 0, %s189
      %s191 = sphi 0, %s189
      %s192 = sphi 0, %s191
      %s206 = sphi 0, %s192
      %s210 = sphi 0, %s210
      %s212 = sphi 0, %s210
      %s213 = sphi 0, %s212
      %s227 = sphi 0, %s213
      %s231 = sphi 0, %s231
      %s233 = sphi 0, %s231
      %s234 = sphi 0, %s233
      %s248 = sphi 0, %s234
      %s252 = sphi 0, %s252
      %s254 = sphi 0, %s252
      %s255 = sphi 0, %s254
      %s269 = sphi 0, %s255
      %s273 = sphi 0, %s273
      %s275 = sphi 0, %s273
      %s276 = sphi 0, %s275
      %s290 = sphi 0, %s276
      %s294 = sphi 0, %s294
      %s296 = sphi 0, %s294
      %s297 = sphi 0, %s296
      %s311 = sphi 0, %s297
      %s319 = sphi 0, %s321
      %s322 = sphi 0, %s319
      %s323 = sphi 0, %s322
      %s339 = sphi 0, %s323
    $region4: #{tpu_custom_call.1} parent=1 // loop_header_branch
      %32 = sbr.rel (%p30) target = $region8
    $region5: #{tpu_custom_call.1} parent=1 // loop_body
      %s34 = ssub.s32 %s29, 1
      %s35 = ssub.s32 %s29, 2
      %s42 = sadd.s32 1, %s37
      %p43 = scmp.ge.s32.totalorder %s42, 1
      %s44 = scalar_select %p43, 0, %s42
      %s45 = sadd.s32 1, %s36
      %s46 = scalar_select %p43, %s45, %s36
      %p47 = scmp.ge.s32.totalorder %s46, 2
      %s48 = scalar_select %p47, 0, %s46
      %s49 = ssub.s32 %s36, %s48
      %s50 = ssub.s32 %s37, %s44
      %s51 = sor.u32 %s49, %s50
      %p52 = scmp.eq.s32.totalorder %s51, 0
      %s54 = sadd.s32 %s53, 1
      %s55 = scalar_select %p52, %s53, %s54
      %p58 = pneg %p52
      %p59 = scmp.eq.s32.totalorder %s29, 1
      %p60 = por %p58, %p59
      %p61 = scmp.ne.s32.totalorder %s53, %s56
      %p62 = scmp.eq.s32.totalorder %s29, 0
      %p63 = por %p61, %p62
      %p64 = scmp.ne.s32.totalorder %s53, %s56
      %p65 = scmp.eq.s32.totalorder %s34, 1
      %p66 = por %p64, %p65
      %p67 = scmp.ne.s32.totalorder %s56, %s57
      %p68 = scmp.eq.s32.totalorder %s34, 0
      %p69 = por %p67, %p68
      %p70 = scmp.ne.s32.totalorder %s56, %s57
      %p71 = scmp.eq.s32.totalorder %s35, 1
      %p72 = por %p70, %p71
      %p74 = scmp.ne.s32.totalorder %s57, %s73
      %p75 = scmp.eq.s32.totalorder %s35, 0
      %p76 = por %p74, %p75
      %s77 = ssub.s32 %s36, %s48
      %s78 = ssub.s32 %s37, %s44
      %s79 = sor.u32 %s77, %s78
      %p80 = scmp.eq.s32.totalorder %s79, 0
      %s82 = sadd.s32 %s81, 1
      %s83 = scalar_select %p80, %s81, %s82
      %p86 = pneg %p80
      %p87 = scmp.eq.s32.totalorder %s29, 1
      %p88 = por %p86, %p87
      %p89 = scmp.ne.s32.totalorder %s81, %s84
      %p90 = scmp.eq.s32.totalorder %s29, 0
      %p91 = por %p89, %p90
      %p92 = scmp.ne.s32.totalorder %s81, %s84
      %p93 = scmp.eq.s32.totalorder %s34, 1
      %p94 = por %p92, %p93
      %p95 = scmp.ne.s32.totalorder %s84, %s85
      %p96 = scmp.eq.s32.totalorder %s34, 0
      %p97 = por %p95, %p96
      %p98 = scmp.ne.s32.totalorder %s84, %s85
      %p99 = scmp.eq.s32.totalorder %s35, 1
      %p100 = por %p98, %p99
      %p102 = scmp.ne.s32.totalorder %s85, %s101
      %p103 = scmp.eq.s32.totalorder %s35, 0
      %p104 = por %p102, %p103
      %s106 = sadd.s32 %s105, 1
      %p109 = scmp.eq.s32.totalorder %s29, 1
      %p110 = scmp.ne.s32.totalorder %s105, %s107
      %p111 = scmp.eq.s32.totalorder %s29, 0
      %p112 = por %p110, %p111
      %p113 = scmp.ne.s32.totalorder %s105, %s107
      %p114 = scmp.eq.s32.totalorder %s34, 1
      %p115 = por %p113, %p114
      %p116 = scmp.ne.s32.totalorder %s107, %s108
      %p117 = scmp.eq.s32.totalorder %s34, 0
      %p118 = por %p116, %p117
      %p119 = scmp.ne.s32.totalorder %s107, %s108
      %p120 = scmp.eq.s32.totalorder %s35, 1
      %p121 = por %p119, %p120
      %p123 = scmp.ne.s32.totalorder %s108, %s122
      %p124 = scmp.eq.s32.totalorder %s35, 0
      %p125 = por %p123, %p124
      %s127 = sadd.s32 %s126, 1
      %p130 = scmp.eq.s32.totalorder %s29, 1
      %p131 = scmp.ne.s32.totalorder %s126, %s128
      %p132 = scmp.eq.s32.totalorder %s29, 0
      %p133 = por %p131, %p132
      %p134 = scmp.ne.s32.totalorder %s126, %s128
      %p135 = scmp.eq.s32.totalorder %s34, 1
      %p136 = por %p134, %p135
      %p137 = scmp.ne.s32.totalorder %s128, %s129
      %p138 = scmp.eq.s32.totalorder %s34, 0
      %p139 = por %p137, %p138
      %p140 = scmp.ne.s32.totalorder %s128, %s129
      %p141 = scmp.eq.s32.totalorder %s35, 1
      %p142 = por %p140, %p141
      %p144 = scmp.ne.s32.totalorder %s129, %s143
      %p145 = scmp.eq.s32.totalorder %s35, 0
      %p146 = por %p144, %p145
      %s148 = sadd.s32 %s147, 1
      %p151 = scmp.eq.s32.totalorder %s29, 1
      %p152 = scmp.ne.s32.totalorder %s147, %s149
      %p153 = scmp.eq.s32.totalorder %s29, 0
      %p154 = por %p152, %p153
      %p155 = scmp.ne.s32.totalorder %s147, %s149
      %p156 = scmp.eq.s32.totalorder %s34, 1
      %p157 = por %p155, %p156
      %p158 = scmp.ne.s32.totalorder %s149, %s150
      %p159 = scmp.eq.s32.totalorder %s34, 0
      %p160 = por %p158, %p159
      %p161 = scmp.ne.s32.totalorder %s149, %s150
      %p162 = scmp.eq.s32.totalorder %s35, 1
      %p163 = por %p161, %p162
      %p165 = scmp.ne.s32.totalorder %s150, %s164
      %p166 = scmp.eq.s32.totalorder %s35, 0
      %p167 = por %p165, %p166
      %s169 = sadd.s32 %s168, 1
      %p172 = scmp.eq.s32.totalorder %s29, 1
      %p173 = scmp.ne.s32.totalorder %s168, %s170
      %p174 = scmp.eq.s32.totalorder %s29, 0
      %p175 = por %p173, %p174
      %p176 = scmp.ne.s32.totalorder %s168, %s170
      %p177 = scmp.eq.s32.totalorder %s34, 1
      %p178 = por %p176, %p177
      %p179 = scmp.ne.s32.totalorder %s170, %s171
      %p180 = scmp.eq.s32.totalorder %s34, 0
      %p181 = por %p179, %p180
      %p182 = scmp.ne.s32.totalorder %s170, %s171
      %p183 = scmp.eq.s32.totalorder %s35, 1
      %p184 = por %p182, %p183
      %p186 = scmp.ne.s32.totalorder %s171, %s185
      %p187 = scmp.eq.s32.totalorder %s35, 0
      %p188 = por %p186, %p187
      %s190 = sadd.s32 %s189, 1
      %p193 = scmp.eq.s32.totalorder %s29, 1
      %p194 = scmp.ne.s32.totalorder %s189, %s191
      %p195 = scmp.eq.s32.totalorder %s29, 0
      %p196 = por %p194, %p195
      %p197 = scmp.ne.s32.totalorder %s189, %s191
      %p198 = scmp.eq.s32.totalorder %s34, 1
      %p199 = por %p197, %p198
      %p200 = scmp.ne.s32.totalorder %s191, %s192
      %p201 = scmp.eq.s32.totalorder %s34, 0
      %p202 = por %p200, %p201
      %p203 = scmp.ne.s32.totalorder %s191, %s192
      %p204 = scmp.eq.s32.totalorder %s35, 1
      %p205 = por %p203, %p204
      %p207 = scmp.ne.s32.totalorder %s192, %s206
      %p208 = scmp.eq.s32.totalorder %s35, 0
      %p209 = por %p207, %p208
      %s211 = sadd.s32 %s210, 1
      %p214 = scmp.eq.s32.totalorder %s29, 1
      %p215 = scmp.ne.s32.totalorder %s210, %s212
      %p216 = scmp.eq.s32.totalorder %s29, 0
      %p217 = por %p215, %p216
      %p218 = scmp.ne.s32.totalorder %s210, %s212
      %p219 = scmp.eq.s32.totalorder %s34, 1
      %p220 = por %p218, %p219
      %p221 = scmp.ne.s32.totalorder %s212, %s213
      %p222 = scmp.eq.s32.totalorder %s34, 0
      %p223 = por %p221, %p222
      %p224 = scmp.ne.s32.totalorder %s212, %s213
      %p225 = scmp.eq.s32.totalorder %s35, 1
      %p226 = por %p224, %p225
      %p228 = scmp.ne.s32.totalorder %s213, %s227
      %p229 = scmp.eq.s32.totalorder %s35, 0
      %p230 = por %p228, %p229
      %s232 = sadd.s32 %s231, 1
      %p235 = scmp.eq.s32.totalorder %s29, 1
      %p236 = scmp.ne.s32.totalorder %s231, %s233
      %p237 = scmp.eq.s32.totalorder %s29, 0
      %p238 = por %p236, %p237
      %p239 = scmp.ne.s32.totalorder %s231, %s233
      %p240 = scmp.eq.s32.totalorder %s34, 1
      %p241 = por %p239, %p240
      %p242 = scmp.ne.s32.totalorder %s233, %s234
      %p243 = scmp.eq.s32.totalorder %s34, 0
      %p244 = por %p242, %p243
      %p245 = scmp.ne.s32.totalorder %s233, %s234
      %p246 = scmp.eq.s32.totalorder %s35, 1
      %p247 = por %p245, %p246
      %p249 = scmp.ne.s32.totalorder %s234, %s248
      %p250 = scmp.eq.s32.totalorder %s35, 0
      %p251 = por %p249, %p250
      %s253 = sadd.s32 %s252, 1
      %p256 = scmp.eq.s32.totalorder %s29, 1
      %p257 = scmp.ne.s32.totalorder %s252, %s254
      %p258 = scmp.eq.s32.totalorder %s29, 0
      %p259 = por %p257, %p258
      %p260 = scmp.ne.s32.totalorder %s252, %s254
      %p261 = scmp.eq.s32.totalorder %s34, 1
      %p262 = por %p260, %p261
      %p263 = scmp.ne.s32.totalorder %s254, %s255
      %p264 = scmp.eq.s32.totalorder %s34, 0
      %p265 = por %p263, %p264
      %p266 = scmp.ne.s32.totalorder %s254, %s255
      %p267 = scmp.eq.s32.totalorder %s35, 1
      %p268 = por %p266, %p267
      %p270 = scmp.ne.s32.totalorder %s255, %s269
      %p271 = scmp.eq.s32.totalorder %s35, 0
      %p272 = por %p270, %p271
      %s274 = sadd.s32 %s273, 1
      %p277 = scmp.eq.s32.totalorder %s29, 1
      %p278 = scmp.ne.s32.totalorder %s273, %s275
      %p279 = scmp.eq.s32.totalorder %s29, 0
      %p280 = por %p278, %p279
      %p281 = scmp.ne.s32.totalorder %s273, %s275
      %p282 = scmp.eq.s32.totalorder %s34, 1
      %p283 = por %p281, %p282
      %p284 = scmp.ne.s32.totalorder %s275, %s276
      %p285 = scmp.eq.s32.totalorder %s34, 0
      %p286 = por %p284, %p285
      %p287 = scmp.ne.s32.totalorder %s275, %s276
      %p288 = scmp.eq.s32.totalorder %s35, 1
      %p289 = por %p287, %p288
      %p291 = scmp.ne.s32.totalorder %s276, %s290
      %p292 = scmp.eq.s32.totalorder %s35, 0
      %p293 = por %p291, %p292
      %s295 = sadd.s32 %s294, 1
      %p298 = scmp.eq.s32.totalorder %s29, 1
      %p299 = scmp.ne.s32.totalorder %s294, %s296
      %p300 = scmp.eq.s32.totalorder %s29, 0
      %p301 = por %p299, %p300
      %p302 = scmp.ne.s32.totalorder %s294, %s296
      %p303 = scmp.eq.s32.totalorder %s34, 1
      %p304 = por %p302, %p303
      %p305 = scmp.ne.s32.totalorder %s296, %s297
      %p306 = scmp.eq.s32.totalorder %s34, 0
      %p307 = por %p305, %p306
      %p308 = scmp.ne.s32.totalorder %s296, %s297
      %p309 = scmp.eq.s32.totalorder %s35, 1
      %p310 = por %p308, %p309
      %p312 = scmp.ne.s32.totalorder %s297, %s311
      %p313 = scmp.eq.s32.totalorder %s35, 0
      %p314 = por %p312, %p313
      %s315 = ssub.s32 %s36, %s48
      %s316 = ssub.s32 %s37, %s44
      %s317 = sor.u32 %s315, %s316
      %p318 = scmp.eq.s32.totalorder %s317, 0
      %s320 = sadd.s32 %s319, 1
      %s321 = scalar_select %p318, %s319, %s320
      %p324 = pneg %p318
      %p325 = scmp.eq.s32.totalorder %s29, 1
      %p326 = por %p324, %p325
      %p327 = scmp.ne.s32.totalorder %s319, %s322
      %p328 = scmp.eq.s32.totalorder %s29, 0
      %p329 = por %p327, %p328
      %p330 = scmp.ne.s32.totalorder %s319, %s322
      %p331 = scmp.eq.s32.totalorder %s34, 1
      %p332 = por %p330, %p331
      %p333 = scmp.ne.s32.totalorder %s322, %s323
      %p334 = scmp.eq.s32.totalorder %s34, 0
      %p335 = por %p333, %p334
      %p336 = scmp.ne.s32.totalorder %s322, %s323
      %p337 = scmp.eq.s32.totalorder %s35, 1
      %p338 = por %p336, %p337
      %p340 = scmp.ne.s32.totalorder %s323, %s339
      %p341 = scmp.eq.s32.totalorder %s35, 0
      %p342 = por %p340, %p341
      %p343 = scmp.le.s32.totalorder 1, %s29
      %p344 = scmp.lt.s32.totalorder %s29, 3
      %p345 = pnand %p343, %p344
      %p346 = pneg %p345
      // Predicated region
      $region9: #{tpu_custom_call.1} parent=5 // pred_check
        _
      $region10: #{tpu_custom_call.1} parent=5 // pred_check_branch
        %348 = sbr.rel (%p345) target = $region12
      $region11: #{tpu_custom_call.1} parent=5 // pred_region
        %s349 = ssub.s32 %s29, 1
        // Predicated region
        $region13: #{tpu_custom_call.1} parent=11 // pred_check
          %p350 = pneg %p118
        $region14: #{tpu_custom_call.1} parent=11 // pred_check_branch
          %352 = sbr.rel (%p350) target = $region16
        $region15: #{tpu_custom_call.1} parent=11 // pred_region
          %s354 = ssub.s32 10240, 10240
          %355 = vsyncadd [#allocation6], %s354
          %s356 = sshll.u32 [#allocation7], 4
          %s357 = int_to_ptr.vmem [resolvable:$true] %s356
          %362 = dma.hbm_to_vmem [thread:$0]  %s2, 10240, %s357, [#allocation6], 128, 128, 8
        $region16: #{tpu_custom_call.1} parent=11 // pred_fallthru
          _
        // Predicated region
        $region17: #{tpu_custom_call.1} parent=11 // pred_check
          %p363 = pneg %p139
        $region18: #{tpu_custom_call.1} parent=11 // pred_check_branch
          %365 = sbr.rel (%p363) target = $region20
        $region19: #{tpu_custom_call.1} parent=11 // pred_region
          %s367 = ssub.s32 10240, 10240
          %368 = vsyncadd [#allocation9], %s367
          %s369 = sshll.u32 [#allocation8], 4
          %s370 = int_to_ptr.vmem [resolvable:$true] %s369
          %375 = dma.hbm_to_vmem [thread:$0]  %s3, 10240, %s370, [#allocation9], 128, 128, 8
        $region20: #{tpu_custom_call.1} parent=11 // pred_fallthru
          _
        // Predicated region
        $region21: #{tpu_custom_call.1} parent=11 // pred_check
          %p376 = pneg %p160
        $region22: #{tpu_custom_call.1} parent=11 // pred_check_branch
          %378 = sbr.rel (%p376) target = $region24
        $region23: #{tpu_custom_call.1} parent=11 // pred_region
          %s380 = ssub.s32 10240, 10240
          %381 = vsyncadd [#allocation9], %s380
          %s382 = sshll.u32 [#allocation10], 4
          %s383 = int_to_ptr.vmem [resolvable:$true] %s382
          %388 = dma.hbm_to_vmem [thread:$0]  %s4, 10240, %s383, [#allocation9], 128, 128, 8
        $region24: #{tpu_custom_call.1} parent=11 // pred_fallthru
          _
        // Predicated region
        $region25: #{tpu_custom_call.1} parent=11 // pred_check
          %p389 = pneg %p181
        $region26: #{tpu_custom_call.1} parent=11 // pred_check_branch
          %391 = sbr.rel (%p389) target = $region28
        $region27: #{tpu_custom_call.1} parent=11 // pred_region
          %s393 = ssub.s32 10240, 10240
          %394 = vsyncadd [#allocation12], %s393
          %s395 = sshll.u32 [#allocation11], 4
          %s396 = int_to_ptr.vmem [resolvable:$true] %s395
          %401 = dma.hbm_to_vmem [thread:$0]  %s5, 10240, %s396, [#allocation12], 128, 128, 8
        $region28: #{tpu_custom_call.1} parent=11 // pred_fallthru
          _
        // Predicated region
        $region29: #{tpu_custom_call.1} parent=11 // pred_check
          %p402 = pneg %p202
        $region30: #{tpu_custom_call.1} parent=11 // pred_check_branch
          %404 = sbr.rel (%p402) target = $region32
        $region31: #{tpu_custom_call.1} parent=11 // pred_region
          %s406 = ssub.s32 10240, 10240
          %407 = vsyncadd [#allocation12], %s406
          %s408 = sshll.u32 [#allocation13], 4
          %s409 = int_to_ptr.vmem [resolvable:$true] %s408
          %414 = dma.hbm_to_vmem [thread:$0]  %s6, 10240, %s409, [#allocation12], 128, 128, 8
        $region32: #{tpu_custom_call.1} parent=11 // pred_fallthru
          _
        // Predicated region
        $region33: #{tpu_custom_call.1} parent=11 // pred_check
          %p415 = pneg %p223
        $region34: #{tpu_custom_call.1} parent=11 // pred_check_branch
          %417 = sbr.rel (%p415) target = $region36
        $region35: #{tpu_custom_call.1} parent=11 // pred_region
          _
        $region36: #{tpu_custom_call.1} parent=11 // pred_fallthru
          _
        // Predicated region
        $region37: #{tpu_custom_call.1} parent=11 // pred_check
          %p418 = pneg %p244
        $region38: #{tpu_custom_call.1} parent=11 // pred_check_branch
          %420 = sbr.rel (%p418) target = $region40
        $region39: #{tpu_custom_call.1} parent=11 // pred_region
          _
        $region40: #{tpu_custom_call.1} parent=11 // pred_fallthru
          _
        // Predicated region
        $region41: #{tpu_custom_call.1} parent=11 // pred_check
          %p421 = pneg %p265
        $region42: #{tpu_custom_call.1} parent=11 // pred_check_branch
          %423 = sbr.rel (%p421) target = $region44
        $region43: #{tpu_custom_call.1} parent=11 // pred_region
          _
        $region44: #{tpu_custom_call.1} parent=11 // pred_fallthru
          _
        // Predicated region
        $region45: #{tpu_custom_call.1} parent=11 // pred_check
          %p424 = pneg %p286
        $region46: #{tpu_custom_call.1} parent=11 // pred_check_branch
          %426 = sbr.rel (%p424) target = $region48
        $region47: #{tpu_custom_call.1} parent=11 // pred_region
          _
        $region48: #{tpu_custom_call.1} parent=11 // pred_fallthru
          _
        // Predicated region
        $region49: #{tpu_custom_call.1} parent=11 // pred_check
          %p427 = pneg %p307
        $region50: #{tpu_custom_call.1} parent=11 // pred_check_branch
          %429 = sbr.rel (%p427) target = $region52
        $region51: #{tpu_custom_call.1} parent=11 // pred_region
          _
        $region52: #{tpu_custom_call.1} parent=11 // pred_fallthru
          _
      $region12: #{tpu_custom_call.1} parent=5 // pred_fallthru
        _
      %p430 = scmp.lt.s32.totalorder %s29, 2
      // Predicated region
      $region53: #{tpu_custom_call.1} parent=5 // pred_check
        %p431 = pneg %p430
      $region54: #{tpu_custom_call.1} parent=5 // pred_check_branch
        %433 = sbr.rel (%p431) target = $region56
      $region55: #{tpu_custom_call.1} parent=5 // pred_region
        // Predicated region
        $region57: #{tpu_custom_call.1} parent=55 // pred_check
          %p434 = pneg %p63
        $region58: #{tpu_custom_call.1} parent=55 // pred_check_branch
          %436 = sbr.rel (%p434) target = $region60
        $region59: #{tpu_custom_call.1} parent=55 // pred_region
          %s437 = sand.u32 %s53, 1
          %s438 = scalar_lea.sflag [#allocation3], %s437
          %s439 = sand.u32 %s53, 1
          %s440 = smul.addr %s439, 32
          %s441 = scalar_lea.vmem [#allocation2], %s440
          %s443 = ssub.s32 512, 512
          %444 = vsyncadd %s438, %s443
          %s445 = smul.addr %s37, 4
          %s446 = smul.addr %s36, 4
          %s447 = sadd.s32 %s445, %s446
          %s448 = smul.addr %s447, 128
          %s449 = scalar_lea.hbm %s0, %s448
          %s450 = sshll.u32 %s441, 4
          %s451 = int_to_ptr.vmem [resolvable:$true] %s450
          %456 = dma.hbm_to_vmem [thread:$0]  %s449, 512, %s451, %s438, 128, 128, 8
        $region60: #{tpu_custom_call.1} parent=55 // pred_fallthru
          _
        // Predicated region
        $region61: #{tpu_custom_call.1} parent=55 // pred_check
          %p457 = pneg %p91
        $region62: #{tpu_custom_call.1} parent=55 // pred_check_branch
          %459 = sbr.rel (%p457) target = $region64
        $region63: #{tpu_custom_call.1} parent=55 // pred_region
          %s460 = sand.u32 %s29, 1
          %s461 = scalar_lea.sflag [#allocation6], %s460
          %s462 = sand.u32 %s81, 1
          %s463 = smul.addr %s462, 32
          %s464 = scalar_lea.vmem [#allocation5], %s463
          %s465 = smul.u32 4, %s37
          %s467 = ssub.s32 512, 512
          %468 = vsyncadd %s461, %s467
          %s469 = smul.addr %s36, 4
          %s470 = sadd.s32 %s465, %s469
          %s471 = smul.addr %s470, 128
          %s472 = scalar_lea.hbm %s1, %s471
          %s473 = sshll.u32 %s464, 4
          %s474 = int_to_ptr.vmem [resolvable:$true] %s473
          %479 = dma.hbm_to_vmem [thread:$0]  %s472, 512, %s474, %s461, 128, 128, 8
        $region64: #{tpu_custom_call.1} parent=55 // pred_fallthru
          _
      $region56: #{tpu_custom_call.1} parent=5 // pred_fallthru
        _
      %p480 = scmp.le.s32.totalorder 1, %s29
      %p481 = scmp.lt.s32.totalorder %s29, 3
      %p482 = pnand %p480, %p481
      %p483 = pneg %p482
      // Predicated region
      $region65: #{tpu_custom_call.1} parent=5 // pred_check
        _
      $region66: #{tpu_custom_call.1} parent=5 // pred_check_branch
        %485 = sbr.rel (%p482) target = $region68
      $region67: #{tpu_custom_call.1} parent=5 // pred_region
        %s486 = ssub.s32 %s29, 1
        %s487 = sand.u32 %s56, 1
        %s488 = scalar_lea.sflag [#allocation3], %s487
        %s489 = sand.u32 %s56, 1
        %s490 = smul.addr %s489, 32
        %s491 = scalar_lea.vmem [#allocation2], %s490
        // Predicated region
        $region69: #{tpu_custom_call.1} parent=67 // pred_check
          %p492 = pneg %p69
        $region70: #{tpu_custom_call.1} parent=67 // pred_check_branch
          %494 = sbr.rel (%p492) target = $region72
        $region71: #{tpu_custom_call.1} parent=67 // pred_region
          %495 = dma.done %s488, 512
        $region72: #{tpu_custom_call.1} parent=67 // pred_fallthru
          _
        %s496 = sand.u32 %s34, 1
        %s497 = scalar_lea.sflag [#allocation6], %s496
        %s498 = sand.u32 %s84, 1
        %s499 = smul.addr %s498, 32
        %s500 = scalar_lea.vmem [#allocation5], %s499
        // Predicated region
        $region73: #{tpu_custom_call.1} parent=67 // pred_check
          %p501 = pneg %p97
        $region74: #{tpu_custom_call.1} parent=67 // pred_check_branch
          %503 = sbr.rel (%p501) target = $region76
        $region75: #{tpu_custom_call.1} parent=67 // pred_region
          %504 = dma.done %s497, 512
        $region76: #{tpu_custom_call.1} parent=67 // pred_fallthru
          _
        // Predicated region
        $region77: #{tpu_custom_call.1} parent=67 // pred_check
          %p505 = pneg %p118
        $region78: #{tpu_custom_call.1} parent=67 // pred_check_branch
          %507 = sbr.rel (%p505) target = $region80
        $region79: #{tpu_custom_call.1} parent=67 // pred_region
          %508 = dma.done [#allocation6], 10240
        $region80: #{tpu_custom_call.1} parent=67 // pred_fallthru
          _
        // Predicated region
        $region81: #{tpu_custom_call.1} parent=67 // pred_check
          %p509 = pneg %p139
        $region82: #{tpu_custom_call.1} parent=67 // pred_check_branch
          %511 = sbr.rel (%p509) target = $region84
        $region83: #{tpu_custom_call.1} parent=67 // pred_region
          %512 = dma.done [#allocation9], 10240
        $region84: #{tpu_custom_call.1} parent=67 // pred_fallthru
          _
        // Predicated region
        $region85: #{tpu_custom_call.1} parent=67 // pred_check
          %p513 = pneg %p160
        $region86: #{tpu_custom_call.1} parent=67 // pred_check_branch
          %515 = sbr.rel (%p513) target = $region88
        $region87: #{tpu_custom_call.1} parent=67 // pred_region
          %516 = dma.done [#allocation9], 10240
        $region88: #{tpu_custom_call.1} parent=67 // pred_fallthru
          _
        // Predicated region
        $region89: #{tpu_custom_call.1} parent=67 // pred_check
          %p517 = pneg %p181
        $region90: #{tpu_custom_call.1} parent=67 // pred_check_branch
          %519 = sbr.rel (%p517) target = $region92
        $region91: #{tpu_custom_call.1} parent=67 // pred_region
          %520 = dma.done [#allocation12], 10240
        $region92: #{tpu_custom_call.1} parent=67 // pred_fallthru
          _
        // Predicated region
        $region93: #{tpu_custom_call.1} parent=67 // pred_check
          %p521 = pneg %p202
        $region94: #{tpu_custom_call.1} parent=67 // pred_check_branch
          %523 = sbr.rel (%p521) target = $region96
        $region95: #{tpu_custom_call.1} parent=67 // pred_region
          %524 = dma.done [#allocation12], 10240
        $region96: #{tpu_custom_call.1} parent=67 // pred_fallthru
          _
        %s525 = sand.u32 %s56, 1
        %s526 = scalar_lea.sflag [#allocation3], %s525
        %s527 = sand.u32 %s56, 1
        %s528 = smul.addr %s527, 32
        %s529 = scalar_lea.vmem [#allocation2], %s528
        %p530 = pneg %p69
        %p531 = pneg %p66
        %s532 = sand.u32 %s34, 1
        %s533 = scalar_lea.sflag [#allocation6], %s532
        %s534 = sand.u32 %s84, 1
        %s535 = smul.addr %s534, 32
        %s536 = scalar_lea.vmem [#allocation5], %s535
        %p537 = pneg %p97
        %p538 = pneg %p94
        %p539 = pneg %p118
        %p540 = pneg %p115
        %p541 = pneg %p139
        %p542 = pneg %p136
        %p543 = pneg %p160
        %p544 = pneg %p157
        %p545 = pneg %p181
        %p546 = pneg %p178
        %p547 = pneg %p202
        %p548 = pneg %p199
        %p549 = pneg %p223
        %p550 = pneg %p220
        %p551 = pneg %p244
        %p552 = pneg %p241
        %p553 = pneg %p265
        %p554 = pneg %p262
        %p555 = pneg %p286
        %p556 = pneg %p283
        %p557 = pneg %p307
        %p558 = pneg %p304
        %p559 = pneg %p335
        %p560 = pneg %p332
        %s561 = sand.u32 %s322, 1
        %s562 = scalar_lea.sflag [#allocation4], %s561
        %s563 = sand.u32 %s322, 1
        %s564 = smul.addr %s563, 32
        %s565 = scalar_lea.vmem [#allocation14], %s564
        %s566 = smul.u32 4, %s39
        %s567 = smul.u32 4, %s39
        %s568 = smul.u32 %s39, 32
        %v569 = vld [vmem:[%s491] sm:$0xff]
        %v570 = vld [vmem:[%s491 + $0x8] sm:$0xff]
        %v571 = vld [vmem:[%s491 + $0x10] sm:$0xff]
        %v572 = vld [vmem:[%s491 + $0x18] sm:$0xff]
        %v573 = vld [vmem:[%s500] sm:$0xff]
        %v574 = vld [vmem:[%s500 + $0x8] sm:$0xff]
        %v575 = vld [vmem:[%s500 + $0x10] sm:$0xff]
        %v576 = vld [vmem:[%s500 + $0x18] sm:$0xff]
        %vm585 = vcmask 1046528
        %v586 = vrot.slane %v569, 1
        %v587 = vrot.slane %v570, 1
        %v588 = vsel %vm585, %v586, %v587
        %v589 = vrot.slane %v571, 1
        %v590 = vsel %vm585, %v587, %v589
        %v591 = vrot.slane %v572, 1
        %v592 = vsel %vm585, %v589, %v591
        %v593 = vrot.slane %v573, 1
        %v594 = vsel %vm585, %v591, %v593
        %v595 = vrot.slane %v574, 1
        %v596 = vsel %vm585, %v593, %v595
        %v597 = vrot.slane %v575, 1
        %v598 = vsel %vm585, %v595, %v597
        %v599 = vrot.slane %v576, 1
        %v600 = vsel %vm585, %v597, %v599
        %vm609 = vcmask 1045504
        %v610 = vrot.slane %v569, 2
        %v611 = vrot.slane %v570, 2
        %v612 = vsel %vm609, %v610, %v611
        %v613 = vrot.slane %v571, 2
        %v614 = vsel %vm609, %v611, %v613
        %v615 = vrot.slane %v572, 2
        %v616 = vsel %vm609, %v613, %v615
        %v617 = vrot.slane %v573, 2
        %v618 = vsel %vm609, %v615, %v617
        %v619 = vrot.slane %v574, 2
        %v620 = vsel %vm609, %v617, %v619
        %v621 = vrot.slane %v575, 2
        %v622 = vsel %vm609, %v619, %v621
        %v623 = vrot.slane %v576, 2
        %v624 = vsel %vm609, %v621, %v623
        %vm633 = vcmask 1044480
        %v634 = vrot.slane %v569, 3
        %v635 = vrot.slane %v570, 3
        %v636 = vsel %vm633, %v634, %v635
        %v637 = vrot.slane %v571, 3
        %v638 = vsel %vm633, %v635, %v637
        %v639 = vrot.slane %v572, 3
        %v640 = vsel %vm633, %v637, %v639
        %v641 = vrot.slane %v573, 3
        %v642 = vsel %vm633, %v639, %v641
        %v643 = vrot.slane %v574, 3
        %v644 = vsel %vm633, %v641, %v643
        %v645 = vrot.slane %v575, 3
        %v646 = vsel %vm633, %v643, %v645
        %v647 = vrot.slane %v576, 3
        %v648 = vsel %vm633, %v645, %v647
        %vm657 = vcmask 1043456
        %v658 = vrot.slane %v569, 4
        %v659 = vrot.slane %v570, 4
        %v660 = vsel %vm657, %v658, %v659
        %v661 = vrot.slane %v571, 4
        %v662 = vsel %vm657, %v659, %v661
        %v663 = vrot.slane %v572, 4
        %v664 = vsel %vm657, %v661, %v663
        %v665 = vrot.slane %v573, 4
        %v666 = vsel %vm657, %v663, %v665
        %v667 = vrot.slane %v574, 4
        %v668 = vsel %vm657, %v665, %v667
        %v669 = vrot.slane %v575, 4
        %v670 = vsel %vm657, %v667, %v669
        %v671 = vrot.slane %v576, 4
        %v672 = vsel %vm657, %v669, %v671
        %v681 = vld [vmem:[#allocation7] sm:$0xff]
        %v682 = vld [vmem:[#allocation7 + $0x8] sm:$0xff]
        %v683 = vld [vmem:[#allocation7 + $0x10] sm:$0xff]
        %v684 = vld [vmem:[#allocation7 + $0x18] sm:$0xff]
        %v685 = vld [vmem:[#allocation7 + $0x20] sm:$0xff]
        %v686 = vld [vmem:[#allocation7 + $0x28] sm:$0xff]
        %v687 = vld [vmem:[#allocation7 + $0x30] sm:$0xff]
        %v688 = vld [vmem:[#allocation7 + $0x38] sm:$0xff]
        %v689 = vld [vmem:[#allocation7 + $0x40] sm:$0xff]
        %v690 = vld [vmem:[#allocation7 + $0x48] sm:$0xff]
        %v691 = vld [vmem:[#allocation7 + $0x50] sm:$0xff]
        %v692 = vld [vmem:[#allocation7 + $0x58] sm:$0xff]
        %v693 = vld [vmem:[#allocation7 + $0x60] sm:$0xff]
        %v694 = vld [vmem:[#allocation7 + $0x68] sm:$0xff]
        %v695 = vld [vmem:[#allocation7 + $0x70] sm:$0xff]
        %v696 = vld [vmem:[#allocation7 + $0x78] sm:$0xff]
        %v697 = vld [vmem:[#allocation7 + $0x80] sm:$0xff]
        %v698 = vld [vmem:[#allocation7 + $0x88] sm:$0xff]
        %v699 = vld [vmem:[#allocation7 + $0x90] sm:$0xff]
        %v700 = vld [vmem:[#allocation7 + $0x98] sm:$0xff]
        %v701 = vld [vmem:[#allocation7 + $0xa0] sm:$0xff]
        %v702 = vld [vmem:[#allocation7 + $0xa8] sm:$0xff]
        %v703 = vld [vmem:[#allocation7 + $0xb0] sm:$0xff]
        %v704 = vld [vmem:[#allocation7 + $0xb8] sm:$0xff]
        %v705 = vld [vmem:[#allocation7 + $0xc0] sm:$0xff]
        %v706 = vld [vmem:[#allocation7 + $0xc8] sm:$0xff]
        %v707 = vld [vmem:[#allocation7 + $0xd0] sm:$0xff]
        %v708 = vld [vmem:[#allocation7 + $0xd8] sm:$0xff]
        %v709 = vld [vmem:[#allocation7 + $0xe0] sm:$0xff]
        %v710 = vld [vmem:[#allocation7 + $0xe8] sm:$0xff]
        %v711 = vld [vmem:[#allocation7 + $0xf0] sm:$0xff]
        %v712 = vld [vmem:[#allocation7 + $0xf8] sm:$0xff]
        %v713 = vld [vmem:[#allocation7 + $0x100] sm:$0xff]
        %v714 = vld [vmem:[#allocation7 + $0x108] sm:$0xff]
        %v715 = vld [vmem:[#allocation7 + $0x110] sm:$0xff]
        %v716 = vld [vmem:[#allocation7 + $0x118] sm:$0xff]
        %v717 = vld [vmem:[#allocation7 + $0x120] sm:$0xff]
        %v718 = vld [vmem:[#allocation7 + $0x128] sm:$0xff]
        %v719 = vld [vmem:[#allocation7 + $0x130] sm:$0xff]
        %v720 = vld [vmem:[#allocation7 + $0x138] sm:$0xff]
        %v721 = vld [vmem:[#allocation7 + $0x140] sm:$0xff]
        %v722 = vld [vmem:[#allocation7 + $0x148] sm:$0xff]
        %v723 = vld [vmem:[#allocation7 + $0x150] sm:$0xff]
        %v724 = vld [vmem:[#allocation7 + $0x158] sm:$0xff]
        %v725 = vld [vmem:[#allocation7 + $0x160] sm:$0xff]
        %v726 = vld [vmem:[#allocation7 + $0x168] sm:$0xff]
        %v727 = vld [vmem:[#allocation7 + $0x170] sm:$0xff]
        %v728 = vld [vmem:[#allocation7 + $0x178] sm:$0xff]
        %v729 = vld [vmem:[#allocation7 + $0x180] sm:$0xff]
        %v730 = vld [vmem:[#allocation7 + $0x188] sm:$0xff]
        %v731 = vld [vmem:[#allocation7 + $0x190] sm:$0xff]
        %v732 = vld [vmem:[#allocation7 + $0x198] sm:$0xff]
        %v733 = vld [vmem:[#allocation7 + $0x1a0] sm:$0xff]
        %v734 = vld [vmem:[#allocation7 + $0x1a8] sm:$0xff]
        %v735 = vld [vmem:[#allocation7 + $0x1b0] sm:$0xff]
        %v736 = vld [vmem:[#allocation7 + $0x1b8] sm:$0xff]
        %v737 = vld [vmem:[#allocation7 + $0x1c0] sm:$0xff]
        %v738 = vld [vmem:[#allocation7 + $0x1c8] sm:$0xff]
        %v739 = vld [vmem:[#allocation7 + $0x1d0] sm:$0xff]
        %v740 = vld [vmem:[#allocation7 + $0x1d8] sm:$0xff]
        %v741 = vld [vmem:[#allocation7 + $0x1e0] sm:$0xff]
        %v742 = vld [vmem:[#allocation7 + $0x1e8] sm:$0xff]
        %v743 = vld [vmem:[#allocation7 + $0x1f0] sm:$0xff]
        %v744 = vld [vmem:[#allocation7 + $0x1f8] sm:$0xff]
        %v745 = vld [vmem:[#allocation7 + $0x200] sm:$0xff]
        %v746 = vld [vmem:[#allocation7 + $0x208] sm:$0xff]
        %v747 = vld [vmem:[#allocation7 + $0x210] sm:$0xff]
        %v748 = vld [vmem:[#allocation7 + $0x218] sm:$0xff]
        %v749 = vld [vmem:[#allocation7 + $0x220] sm:$0xff]
        %v750 = vld [vmem:[#allocation7 + $0x228] sm:$0xff]
        %v751 = vld [vmem:[#allocation7 + $0x230] sm:$0xff]
        %v752 = vld [vmem:[#allocation7 + $0x238] sm:$0xff]
        %v753 = vld [vmem:[#allocation7 + $0x240] sm:$0xff]
        %v754 = vld [vmem:[#allocation7 + $0x248] sm:$0xff]
        %v755 = vld [vmem:[#allocation7 + $0x250] sm:$0xff]
        %v756 = vld [vmem:[#allocation7 + $0x258] sm:$0xff]
        %v757 = vld [vmem:[#allocation7 + $0x260] sm:$0xff]
        %v758 = vld [vmem:[#allocation7 + $0x268] sm:$0xff]
        %v759 = vld [vmem:[#allocation7 + $0x270] sm:$0xff]
        %v760 = vld [vmem:[#allocation7 + $0x278] sm:$0xff]
        %v761 = vld [vmem:[%s7] sm:$0x1]
        %v763 = vlaneseq
        %v764 = vshrl.u32 %v763, 7
        %v765 = vsub.s32 0, %v764
        %v766 = vrot.slane %v761, %v765
        %768 = vmatprep.subr.mxu0 0.0
        %769 = vmatpush1.msra.mxu0 %v681
        %770 = vmatprep.subr.mxu0 0.0
        %771 = vmatpush1.msra.mxu0 %v682
        %772 = vmatprep.subr.mxu0 0.0
        %773 = vmatpush1.msra.mxu0 %v683
        %774 = vmatprep.subr.mxu0 0.0
        %775 = vmatpush1.msra.mxu0 %v684
        %776 = vmatprep.subr.mxu0 0.0
        %777 = vmatpush1.msra.mxu0 %v685
        %778 = vmatprep.subr.mxu0 0.0
        %779 = vmatpush1.msra.mxu0 %v686
        %780 = vmatprep.subr.mxu0 0.0
        %781 = vmatpush1.msra.mxu0 %v687
        %782 = vmatprep.subr.mxu0 0.0
        %783 = vmatpush1.msra.mxu0 %v688
        %784 = vmatprep.subr.mxu0 0.0
        %785 = vmatpush1.msra.mxu0 %v689
        %786 = vmatprep.subr.mxu0 0.0
        %787 = vmatpush1.msra.mxu0 %v690
        %788 = vmatprep.subr.mxu0 0.0
        %789 = vmatpush1.msra.mxu0 %v691
        %790 = vmatprep.subr.mxu0 0.0
        %791 = vmatpush1.msra.mxu0 %v692
        %792 = vmatprep.subr.mxu0 0.0
        %793 = vmatpush1.msra.mxu0 %v693
        %794 = vmatprep.subr.mxu0 0.0
        %795 = vmatpush1.msra.mxu0 %v694
        %796 = vmatprep.subr.mxu0 0.0
        %797 = vmatpush1.msra.mxu0 %v695
        %798 = vmatprep.subr.mxu0 0.0
        %799 = vmatpush1.msra.mxu0 %v696
        %800 = vmatprep.subr.mxu0 0.0
        %801 = vmatpush1.msra.mxu0 %v697
        %802 = vmatprep.subr.mxu0 0.0
        %803 = vmatpush1.msra.mxu0 %v698
        %804 = vmatprep.subr.mxu0 0.0
        %805 = vmatpush1.msra.mxu0 %v699
        %806 = vmatprep.subr.mxu0 0.0
        %807 = vmatpush1.msra.mxu0 %v700
        %808 = vmatprep.subr.mxu0 0.0
        %809 = vmatpush1.msra.mxu0 %v701
        %810 = vmatprep.subr.mxu0 0.0
        %811 = vmatpush1.msra.mxu0 %v702
        %812 = vmatprep.subr.mxu0 0.0
        %813 = vmatpush1.msra.mxu0 %v703
        %814 = vmatprep.subr.mxu0 0.0
        %815 = vmatpush1.msra.mxu0 %v704
        %816 = vmatprep.subr.mxu0 0.0
        %817 = vmatpush1.msra.mxu0 %v705
        %818 = vmatprep.subr.mxu0 0.0
        %819 = vmatpush1.msra.mxu0 %v706
        %820 = vmatprep.subr.mxu0 0.0
        %821 = vmatpush1.msra.mxu0 %v707
        %822 = vmatprep.subr.mxu0 0.0
        %823 = vmatpush1.msra.mxu0 %v708
        %824 = vmatprep.subr.mxu0 0.0
        %825 = vmatpush1.msra.mxu0 %v709
        %826 = vmatprep.subr.mxu0 0.0
        %827 = vmatpush1.msra.mxu0 %v710
        %828 = vmatprep.subr.mxu0 0.0
        %829 = vmatpush1.msra.mxu0 %v711
        %830 = vmatprep.subr.mxu0 0.0
        %831 = vmatpush1.msra.mxu0 %v712
        %832 = vmatprep.mubr.f32.mxu0 %v588
        %833 = vmatmul.mubr.f32.gmra.mrb[0].mxu0 %v569
        %v834 = vpop.f32.mrb[0].mxu0
        %v835 = vadd.f32 %v766, %v834
        %v836 = vpop.f32.mrb[0].mxu0
        %837 = vmatprep.mubr.f32.mxu0 %v590
        %838 = vmatmul.mubr.f32.gmra.mrb[0].mxu0 %v570
        %v839 = vpop.f32.mrb[0].mxu0
        %v840 = vadd.f32 %v766, %v839
        %v841 = vpop.f32.mrb[0].mxu0
        %842 = vmatprep.mubr.f32.mxu0 %v592
        %843 = vmatmul.mubr.f32.gmra.mrb[0].mxu0 %v571
        %v844 = vpop.f32.mrb[0].mxu0
        %v845 = vadd.f32 %v766, %v844
        %v846 = vpop.f32.mrb[0].mxu0
        %847 = vmatprep.mubr.f32.mxu0 %v594
        %848 = vmatmul.mubr.f32.gmra.mrb[0].mxu0 %v572
        %v849 = vpop.f32.mrb[0].mxu0
        %v850 = vadd.f32 %v766, %v849
        %v851 = vpop.f32.mrb[0].mxu0
        %852 = vmatprep.mubr.f32.mxu0 %v596
        %853 = vmatmul.mubr.f32.gmra.mrb[0].mxu0 %v573
        %v854 = vpop.f32.mrb[0].mxu0
        %v855 = vadd.f32 %v766, %v854
        %v856 = vpop.f32.mrb[0].mxu0
        %857 = vmatprep.mubr.f32.mxu0 %v598
        %858 = vmatmul.mubr.f32.gmra.mrb[0].mxu0 %v574
        %v859 = vpop.f32.mrb[0].mxu0
        %v860 = vadd.f32 %v766, %v859
        %v861 = vpop.f32.mrb[0].mxu0
        %862 = vmatprep.mubr.f32.mxu0 %v600
        %863 = vmatmul.mubr.f32.gmra.mrb[0].mxu0 %v575
        %v864 = vpop.f32.mrb[0].mxu0
        %v865 = vadd.f32 %v766, %v864
        %v866 = vpop.f32.mrb[0].mxu0
        %867 = vmatprep.mubr.f32.mxu0 %v599
        %868 = vmatmul.mubr.f32.gmra.mrb[0].mxu0 %v576
        %v869 = vpop.f32.mrb[0].mxu0
        %v870 = vadd.f32 %v766, %v869
        %v871 = vpop.f32.mrb[0].mxu0
        %872 = vdwg.mxu0
        %873 = vmatprep.subr.mxu0 0.0
        %874 = vmatpush1.msra.mxu0 %v713
        %875 = vmatprep.subr.mxu0 0.0
        %876 = vmatpush1.msra.mxu0 %v714
        %877 = vmatprep.subr.mxu0 0.0
        %878 = vmatpush1.msra.mxu0 %v715
        %879 = vmatprep.subr.mxu0 0.0
        %880 = vmatpush1.msra.mxu0 %v716
        %881 = vmatprep.subr.mxu0 0.0
        %882 = vmatpush1.msra.mxu0 %v717
        %883 = vmatprep.subr.mxu0 0.0
        %884 = vmatpush1.msra.mxu0 %v718
        %885 = vmatprep.subr.mxu0 0.0
        %886 = vmatpush1.msra.mxu0 %v719
        %887 = vmatprep.subr.mxu0 0.0
        %888 = vmatpush1.msra.mxu0 %v720
        %889 = vmatprep.subr.mxu0 0.0
        %890 = vmatpush1.msra.mxu0 %v721
        %891 = vmatprep.subr.mxu0 0.0
        %892 = vmatpush1.msra.mxu0 %v722
        %893 = vmatprep.subr.mxu0 0.0
        %894 = vmatpush1.msra.mxu0 %v723
        %895 = vmatprep.subr.mxu0 0.0
        %896 = vmatpush1.msra.mxu0 %v724
        %897 = vmatprep.subr.mxu0 0.0
        %898 = vmatpush1.msra.mxu0 %v725
        %899 = vmatprep.subr.mxu0 0.0
        %900 = vmatpush1.msra.mxu0 %v726
        %901 = vmatprep.subr.mxu0 0.0
        %902 = vmatpush1.msra.mxu0 %v727
        %903 = vmatprep.subr.mxu0 0.0
        %904 = vmatpush1.msra.mxu0 %v728
        %905 = vmatprep.subr.mxu0 0.0
        %906 = vmatpush1.msra.mxu0 %v729
        %907 = vmatprep.subr.mxu0 0.0
        %908 = vmatpush1.msra.mxu0 %v730
        %909 = vmatprep.subr.mxu0 0.0
        %910 = vmatpush1.msra.mxu0 %v731
        %911 = vmatprep.subr.mxu0 0.0
        %912 = vmatpush1.msra.mxu0 %v732
        %913 = vmatprep.subr.mxu0 0.0
        %914 = vmatpush1.msra.mxu0 %v733
        %915 = vmatprep.subr.mxu0 0.0
        %916 = vmatpush1.msra.mxu0 %v734
        %917 = vmatprep.subr.mxu0 0.0
        %918 = vmatpush1.msra.mxu0 %v735
        %919 = vmatprep.subr.mxu0 0.0
        %920 = vmatpush1.msra.mxu0 %v736
        %921 = vmatprep.subr.mxu0 0.0
        %922 = vmatpush1.msra.mxu0 %v737
        %923 = vmatprep.subr.mxu0 0.0
        %924 = vmatpush1.msra.mxu0 %v738
        %925 = vmatprep.subr.mxu0 0.0
        %926 = vmatpush1.msra.mxu0 %v739
        %927 = vmatprep.subr.mxu0 0.0
        %928 = vmatpush1.msra.mxu0 %v740
        %929 = vmatprep.subr.mxu0 0.0
        %930 = vmatpush1.msra.mxu0 %v741
        %931 = vmatprep.subr.mxu0 0.0
        %932 = vmatpush1.msra.mxu0 %v742
        %933 = vmatprep.subr.mxu0 0.0
        %934 = vmatpush1.msra.mxu0 %v743
        %935 = vmatprep.subr.mxu0 0.0
        %936 = vmatpush1.msra.mxu0 %v744
        %937 = vmatprep.mubr.f32.mxu0 %v636
        %938 = vmatmul.mubr.f32.gmra.mrb[0].mxu0 %v612
        %v939 = vpop.f32.mrb[0].mxu0
        %v940 = vadd.f32 %v835, %v939
        %v941 = vpop.f32.mrb[0].mxu0
        %942 = vmatprep.mubr.f32.mxu0 %v638
        %943 = vmatmul.mubr.f32.gmra.mrb[0].mxu0 %v614
        %v944 = vpop.f32.mrb[0].mxu0
        %v945 = vadd.f32 %v840, %v944
        %v946 = vpop.f32.mrb[0].mxu0
        %947 = vmatprep.mubr.f32.mxu0 %v640
        %948 = vmatmul.mubr.f32.gmra.mrb[0].mxu0 %v616
        %v949 = vpop.f32.mrb[0].mxu0
        %v950 = vadd.f32 %v845, %v949
        %v951 = vpop.f32.mrb[0].mxu0
        %952 = vmatprep.mubr.f32.mxu0 %v642
        %953 = vmatmul.mubr.f32.gmra.mrb[0].mxu0 %v618
        %v954 = vpop.f32.mrb[0].mxu0
        %v955 = vadd.f32 %v850, %v954
        %v956 = vpop.f32.mrb[0].mxu0
        %957 = vmatprep.mubr.f32.mxu0 %v644
        %958 = vmatmul.mubr.f32.gmra.mrb[0].mxu0 %v620
        %v959 = vpop.f32.mrb[0].mxu0
        %v960 = vadd.f32 %v855, %v959
        %v961 = vpop.f32.mrb[0].mxu0
        %962 = vmatprep.mubr.f32.mxu0 %v646
        %963 = vmatmul.mubr.f32.gmra.mrb[0].mxu0 %v622
        %v964 = vpop.f32.mrb[0].mxu0
        %v965 = vadd.f32 %v860, %v964
        %v966 = vpop.f32.mrb[0].mxu0
        %967 = vmatprep.mubr.f32.mxu0 %v648
        %968 = vmatmul.mubr.f32.gmra.mrb[0].mxu0 %v624
        %v969 = vpop.f32.mrb[0].mxu0
        %v970 = vadd.f32 %v865, %v969
        %v971 = vpop.f32.mrb[0].mxu0
        %972 = vmatprep.mubr.f32.mxu0 %v647
        %973 = vmatmul.mubr.f32.gmra.mrb[0].mxu0 %v623
        %v974 = vpop.f32.mrb[0].mxu0
        %v975 = vadd.f32 %v870, %v974
        %v976 = vpop.f32.mrb[0].mxu0
        %977 = vdwg.mxu0
        %978 = vmatprep.subr.mxu0 0.0
        %979 = vmatpush1.msra.mxu0 %v745
        %980 = vmatprep.subr.mxu0 0.0
        %981 = vmatpush1.msra.mxu0 %v746
        %982 = vmatprep.subr.mxu0 0.0
        %983 = vmatpush1.msra.mxu0 %v747
        %984 = vmatprep.subr.mxu0 0.0
        %985 = vmatpush1.msra.mxu0 %v748
        %986 = vmatprep.subr.mxu0 0.0
        %987 = vmatpush1.msra.mxu0 %v749
        %988 = vmatprep.subr.mxu0 0.0
        %989 = vmatpush1.msra.mxu0 %v750
        %990 = vmatprep.subr.mxu0 0.0
        %991 = vmatpush1.msra.mxu0 %v751
        %992 = vmatprep.subr.mxu0 0.0
        %993 = vmatpush1.msra.mxu0 %v752
        %994 = vmatprep.subr.mxu0 0.0
        %995 = vmatpush1.msra.mxu0 %v753
        %996 = vmatprep.subr.mxu0 0.0
        %997 = vmatpush1.msra.mxu0 %v754
        %998 = vmatprep.subr.mxu0 0.0
        %999 = vmatpush1.msra.mxu0 %v755
        %1000 = vmatprep.subr.mxu0 0.0
        %1001 = vmatpush1.msra.mxu0 %v756
        %1002 = vmatprep.subr.mxu0 0.0
        %1003 = vmatpush1.msra.mxu0 %v757
        %1004 = vmatprep.subr.mxu0 0.0
        %1005 = vmatpush1.msra.mxu0 %v758
        %1006 = vmatprep.subr.mxu0 0.0
        %1007 = vmatpush1.msra.mxu0 %v759
        %1008 = vmatprep.subr.mxu0 0.0
        %1009 = vmatpush1.msra.mxu0 %v760
        %1010 = vmatprep.subr.mxu0 0.0
        %1011 = vmatpush1.msra.mxu0 0.0
        %1012 = vmatprep.subr.mxu0 0.0
        %1013 = vmatpush1.msra.mxu0 0.0
        %1014 = vmatprep.subr.mxu0 0.0
        %1015 = vmatpush1.msra.mxu0 0.0
        %1016 = vmatprep.subr.mxu0 0.0
        %1017 = vmatpush1.msra.mxu0 0.0
        %1018 = vmatprep.subr.mxu0 0.0
        %1019 = vmatpush1.msra.mxu0 0.0
        %1020 = vmatprep.subr.mxu0 0.0
        %1021 = vmatpush1.msra.mxu0 0.0
        %1022 = vmatprep.subr.mxu0 0.0
        %1023 = vmatpush1.msra.mxu0 0.0
        %1024 = vmatprep.subr.mxu0 0.0
        %1025 = vmatpush1.msra.mxu0 0.0
        %1026 = vmatprep.subr.mxu0 0.0
        %1027 = vmatpush1.msra.mxu0 0.0
        %1028 = vmatprep.subr.mxu0 0.0
        %1029 = vmatpush1.msra.mxu0 0.0
        %1030 = vmatprep.subr.mxu0 0.0
        %1031 = vmatpush1.msra.mxu0 0.0
        %1032 = vmatprep.subr.mxu0 0.0
        %1033 = vmatpush1.msra.mxu0 0.0
        %1034 = vmatprep.subr.mxu0 0.0
        %1035 = vmatpush1.msra.mxu0 0.0
        %1036 = vmatprep.subr.mxu0 0.0
        %1037 = vmatpush1.msra.mxu0 0.0
        %1038 = vmatprep.subr.mxu0 0.0
        %1039 = vmatpush1.msra.mxu0 0.0
        %1040 = vmatprep.subr.mxu0 0.0
        %1041 = vmatpush1.msra.mxu0 0.0
        %1042 = vmatprep.mubr.f32.mxu0 0.0
        %1043 = vmatmul.mubr.f32.gmra.mrb[0].mxu0 %v660
        %v1044 = vpop.f32.mrb[0].mxu0
        %v1045 = vadd.f32 %v940, %v1044
        %v1046 = vpop.f32.mrb[0].mxu0
        %1047 = vmatprep.mubr.f32.mxu0 0.0
        %1048 = vmatmul.mubr.f32.gmra.mrb[0].mxu0 %v662
        %v1049 = vpop.f32.mrb[0].mxu0
        %v1050 = vadd.f32 %v945, %v1049
        %v1051 = vpop.f32.mrb[0].mxu0
        %1052 = vmatprep.mubr.f32.mxu0 0.0
        %1053 = vmatmul.mubr.f32.gmra.mrb[0].mxu0 %v664
        %v1054 = vpop.f32.mrb[0].mxu0
        %v1055 = vadd.f32 %v950, %v1054
        %v1056 = vpop.f32.mrb[0].mxu0
        %1057 = vmatprep.mubr.f32.mxu0 0.0
        %1058 = vmatmul.mubr.f32.gmra.mrb[0].mxu0 %v666
        %v1059 = vpop.f32.mrb[0].mxu0
        %v1060 = vadd.f32 %v955, %v1059
        %v1061 = vpop.f32.mrb[0].mxu0
        %1062 = vmatprep.mubr.f32.mxu0 0.0
        %1063 = vmatmul.mubr.f32.gmra.mrb[0].mxu0 %v668
        %v1064 = vpop.f32.mrb[0].mxu0
        %v1065 = vadd.f32 %v960, %v1064
        %v1066 = vpop.f32.mrb[0].mxu0
        %1067 = vmatprep.mubr.f32.mxu0 0.0
        %1068 = vmatmul.mubr.f32.gmra.mrb[0].mxu0 %v670
        %v1069 = vpop.f32.mrb[0].mxu0
        %v1070 = vadd.f32 %v965, %v1069
        %v1071 = vpop.f32.mrb[0].mxu0
        %1072 = vmatprep.mubr.f32.mxu0 0.0
        %1073 = vmatmul.mubr.f32.gmra.mrb[0].mxu0 %v672
        %v1074 = vpop.f32.mrb[0].mxu0
        %v1075 = vadd.f32 %v970, %v1074
        %v1076 = vpop.f32.mrb[0].mxu0
        %1077 = vmatprep.mubr.f32.mxu0 0.0
        %1078 = vmatmul.mubr.f32.gmra.mrb[0].mxu0 %v671
        %v1079 = vpop.f32.mrb[0].mxu0
        %v1080 = vadd.f32 %v975, %v1079
        %v1081 = vpop.f32.mrb[0].mxu0
        %1082 = vdwg.mxu0
        %v1083 = vtanh.pop %v1045
        %v1084 = vtanh.pop %v1050
        %v1085 = vtanh.pop %v1055
        %v1086 = vtanh.pop %v1060
        %v1087 = vtanh.pop %v1065
        %v1088 = vtanh.pop %v1070
        %v1089 = vtanh.pop %v1075
        %v1090 = vtanh.pop %v1080
        %s1091 = ssub.s32 28, %s568
        %v1092 = vlaneseq
        %v1093 = vshrl.u32 %v1092, 7
        %v1094 = vadd.s32 %v1093, 8
        %v1095 = vadd.s32 %v1093, 16
        %v1096 = vadd.s32 %v1093, 24
        %v1097 = vadd.s32 %v1093, 32
        %v1098 = vadd.s32 %v1093, 40
        %v1099 = vadd.s32 %v1093, 48
        %v1100 = vadd.s32 %v1093, 56
        %v1101 = vstv %s1091
        %vm1102 = vcmp.lt.s32.totalorder %v1093, %v1101
        %vm1103 = vcmp.lt.s32.totalorder %v1094, %v1101
        %vm1104 = vcmp.lt.s32.totalorder %v1095, %v1101
        %vm1105 = vcmp.lt.s32.totalorder %v1096, %v1101
        %vm1106 = vcmp.lt.s32.totalorder %v1097, %v1101
        %vm1107 = vcmp.lt.s32.totalorder %v1098, %v1101
        %vm1108 = vcmp.lt.s32.totalorder %v1099, %v1101
        %vm1109 = vcmp.lt.s32.totalorder %v1100, %v1101
        %v1110 = vsel %vm1102, 1, 0
        %v1111 = vsel %vm1103, 1, 0
        %v1112 = vsel %vm1104, 1, 0
        %v1113 = vsel %vm1105, 1, 0
        %v1114 = vsel %vm1106, 1, 0
        %v1115 = vsel %vm1107, 1, 0
        %v1116 = vsel %vm1108, 1, 0
        %v1117 = vsel %vm1109, 1, 0
        %vm1118 = vcmp.eq.s32.totalorder %v1110, 1
        %vm1119 = vcmp.eq.s32.totalorder %v1111, 1
        %vm1120 = vcmp.eq.s32.totalorder %v1112, 1
        %vm1121 = vcmp.eq.s32.totalorder %v1113, 1
        %vm1122 = vcmp.eq.s32.totalorder %v1114, 1
        %vm1123 = vcmp.eq.s32.totalorder %v1115, 1
        %vm1124 = vcmp.eq.s32.totalorder %v1116, 1
        %vm1125 = vcmp.eq.s32.totalorder %v1117, 1
        %v1126 = vsel %vm1118, 0.0, %v1083
        %v1127 = vsel %vm1119, 0.0, %v1084
        %v1128 = vsel %vm1120, 0.0, %v1085
        %v1129 = vsel %vm1121, 0.0, %v1086
        %v1130 = vsel %vm1122, 0.0, %v1087
        %v1131 = vsel %vm1123, 0.0, %v1088
        %v1132 = vsel %vm1124, 0.0, %v1089
        %v1133 = vsel %vm1125, 0.0, %v1090
        %v1142 = vrot.slane %v1126, 1
        %v1143 = vrot.slane %v1127, 1
        %v1144 = vsel %vm585, %v1142, %v1143
        %v1145 = vrot.slane %v1128, 1
        %v1146 = vsel %vm585, %v1143, %v1145
        %v1147 = vrot.slane %v1129, 1
        %v1148 = vsel %vm585, %v1145, %v1147
        %v1149 = vrot.slane %v1130, 1
        %v1150 = vsel %vm585, %v1147, %v1149
        %v1151 = vrot.slane %v1131, 1
        %v1152 = vsel %vm585, %v1149, %v1151
        %v1153 = vrot.slane %v1132, 1
        %v1154 = vsel %vm585, %v1151, %v1153
        %v1155 = vrot.slane %v1133, 1
        %v1156 = vsel %vm585, %v1153, %v1155
        %v1164 = vrot.slane %v1126, 2
        %v1165 = vrot.slane %v1127, 2
        %v1166 = vsel %vm609, %v1164, %v1165
        %v1167 = vrot.slane %v1128, 2
        %v1168 = vsel %vm609, %v1165, %v1167
        %v1169 = vrot.slane %v1129, 2
        %v1170 = vsel %vm609, %v1167, %v1169
        %v1171 = vrot.slane %v1130, 2
        %v1172 = vsel %vm609, %v1169, %v1171
        %v1173 = vrot.slane %v1131, 2
        %v1174 = vsel %vm609, %v1171, %v1173
        %v1175 = vrot.slane %v1132, 2
        %v1176 = vsel %vm609, %v1173, %v1175
        %v1177 = vrot.slane %v1133, 2
        %v1178 = vsel %vm609, %v1175, %v1177
        %v1186 = vrot.slane %v1126, 3
        %v1187 = vrot.slane %v1127, 3
        %v1188 = vsel %vm633, %v1186, %v1187
        %v1189 = vrot.slane %v1128, 3
        %v1190 = vsel %vm633, %v1187, %v1189
        %v1191 = vrot.slane %v1129, 3
        %v1192 = vsel %vm633, %v1189, %v1191
        %v1193 = vrot.slane %v1130, 3
        %v1194 = vsel %vm633, %v1191, %v1193
        %v1195 = vrot.slane %v1131, 3
        %v1196 = vsel %vm633, %v1193, %v1195
        %v1197 = vrot.slane %v1132, 3
        %v1198 = vsel %vm633, %v1195, %v1197
        %v1199 = vrot.slane %v1133, 3
        %v1200 = vsel %vm633, %v1197, %v1199
        %v1208 = vrot.slane %v1126, 4
        %v1209 = vrot.slane %v1127, 4
        %v1210 = vsel %vm657, %v1208, %v1209
        %v1211 = vrot.slane %v1128, 4
        %v1212 = vsel %vm657, %v1209, %v1211
        %v1213 = vrot.slane %v1129, 4
        %v1214 = vsel %vm657, %v1211, %v1213
        %v1215 = vrot.slane %v1130, 4
        %v1216 = vsel %vm657, %v1213, %v1215
        %v1217 = vrot.slane %v1131, 4
        %v1218 = vsel %vm657, %v1215, %v1217
        %v1219 = vrot.slane %v1132, 4
        %v1220 = vsel %vm657, %v1217, %v1219
        %v1221 = vrot.slane %v1133, 4
        %v1222 = vsel %vm657, %v1219, %v1221
        %v1230 = vld [vmem:[#allocation8] sm:$0xff]
        %v1231 = vld [vmem:[#allocation8 + $0x8] sm:$0xff]
        %v1232 = vld [vmem:[#allocation8 + $0x10] sm:$0xff]
        %v1233 = vld [vmem:[#allocation8 + $0x18] sm:$0xff]
        %v1234 = vld [vmem:[#allocation8 + $0x20] sm:$0xff]
        %v1235 = vld [vmem:[#allocation8 + $0x28] sm:$0xff]
        %v1236 = vld [vmem:[#allocation8 + $0x30] sm:$0xff]
        %v1237 = vld [vmem:[#allocation8 + $0x38] sm:$0xff]
        %v1238 = vld [vmem:[#allocation8 + $0x40] sm:$0xff]
        %v1239 = vld [vmem:[#allocation8 + $0x48] sm:$0xff]
        %v1240 = vld [vmem:[#allocation8 + $0x50] sm:$0xff]
        %v1241 = vld [vmem:[#allocation8 + $0x58] sm:$0xff]
        %v1242 = vld [vmem:[#allocation8 + $0x60] sm:$0xff]
        %v1243 = vld [vmem:[#allocation8 + $0x68] sm:$0xff]
        %v1244 = vld [vmem:[#allocation8 + $0x70] sm:$0xff]
        %v1245 = vld [vmem:[#allocation8 + $0x78] sm:$0xff]
        %v1246 = vld [vmem:[#allocation8 + $0x80] sm:$0xff]
        %v1247 = vld [vmem:[#allocation8 + $0x88] sm:$0xff]
        %v1248 = vld [vmem:[#allocation8 + $0x90] sm:$0xff]
        %v1249 = vld [vmem:[#allocation8 + $0x98] sm:$0xff]
        %v1250 = vld [vmem:[#allocation8 + $0xa0] sm:$0xff]
        %v1251 = vld [vmem:[#allocation8 + $0xa8] sm:$0xff]
        %v1252 = vld [vmem:[#allocation8 + $0xb0] sm:$0xff]
        %v1253 = vld [vmem:[#allocation8 + $0xb8] sm:$0xff]
        %v1254 = vld [vmem:[#allocation8 + $0xc0] sm:$0xff]
        %v1255 = vld [vmem:[#allocation8 + $0xc8] sm:$0xff]
        %v1256 = vld [vmem:[#allocation8 + $0xd0] sm:$0xff]
        %v1257 = vld [vmem:[#allocation8 + $0xd8] sm:$0xff]
        %v1258 = vld [vmem:[#allocation8 + $0xe0] sm:$0xff]
        %v1259 = vld [vmem:[#allocation8 + $0xe8] sm:$0xff]
        %v1260 = vld [vmem:[#allocation8 + $0xf0] sm:$0xff]
        %v1261 = vld [vmem:[#allocation8 + $0xf8] sm:$0xff]
        %v1262 = vld [vmem:[#allocation8 + $0x100] sm:$0xff]
        %v1263 = vld [vmem:[#allocation8 + $0x108] sm:$0xff]
        %v1264 = vld [vmem:[#allocation8 + $0x110] sm:$0xff]
        %v1265 = vld [vmem:[#allocation8 + $0x118] sm:$0xff]
        %v1266 = vld [vmem:[#allocation8 + $0x120] sm:$0xff]
        %v1267 = vld [vmem:[#allocation8 + $0x128] sm:$0xff]
        %v1268 = vld [vmem:[#allocation8 + $0x130] sm:$0xff]
        %v1269 = vld [vmem:[#allocation8 + $0x138] sm:$0xff]
        %v1270 = vld [vmem:[#allocation8 + $0x140] sm:$0xff]
        %v1271 = vld [vmem:[#allocation8 + $0x148] sm:$0xff]
        %v1272 = vld [vmem:[#allocation8 + $0x150] sm:$0xff]
        %v1273 = vld [vmem:[#allocation8 + $0x158] sm:$0xff]
        %v1274 = vld [vmem:[#allocation8 + $0x160] sm:$0xff]
        %v1275 = vld [vmem:[#allocation8 + $0x168] sm:$0xff]
        %v1276 = vld [vmem:[#allocation8 + $0x170] sm:$0xff]
        %v1277 = vld [vmem:[#allocation8 + $0x178] sm:$0xff]
        %v1278 = vld [vmem:[#allocation8 + $0x180] sm:$0xff]
        %v1279 = vld [vmem:[#allocation8 + $0x188] sm:$0xff]
        %v1280 = vld [vmem:[#allocation8 + $0x190] sm:$0xff]
        %v1281 = vld [vmem:[#allocation8 + $0x198] sm:$0xff]
        %v1282 = vld [vmem:[#allocation8 + $0x1a0] sm:$0xff]
        %v1283 = vld [vmem:[#allocation8 + $0x1a8] sm:$0xff]
        %v1284 = vld [vmem:[#allocation8 + $0x1b0] sm:$0xff]
        %v1285 = vld [vmem:[#allocation8 + $0x1b8] sm:$0xff]
        %v1286 = vld [vmem:[#allocation8 + $0x1c0] sm:$0xff]
        %v1287 = vld [vmem:[#allocation8 + $0x1c8] sm:$0xff]
        %v1288 = vld [vmem:[#allocation8 + $0x1d0] sm:$0xff]
        %v1289 = vld [vmem:[#allocation8 + $0x1d8] sm:$0xff]
        %v1290 = vld [vmem:[#allocation8 + $0x1e0] sm:$0xff]
        %v1291 = vld [vmem:[#allocation8 + $0x1e8] sm:$0xff]
        %v1292 = vld [vmem:[#allocation8 + $0x1f0] sm:$0xff]
        %v1293 = vld [vmem:[#allocation8 + $0x1f8] sm:$0xff]
        %v1294 = vld [vmem:[#allocation8 + $0x200] sm:$0xff]
        %v1295 = vld [vmem:[#allocation8 + $0x208] sm:$0xff]
        %v1296 = vld [vmem:[#allocation8 + $0x210] sm:$0xff]
        %v1297 = vld [vmem:[#allocation8 + $0x218] sm:$0xff]
        %v1298 = vld [vmem:[#allocation8 + $0x220] sm:$0xff]
        %v1299 = vld [vmem:[#allocation8 + $0x228] sm:$0xff]
        %v1300 = vld [vmem:[#allocation8 + $0x230] sm:$0xff]
        %v1301 = vld [vmem:[#allocation8 + $0x238] sm:$0xff]
        %v1302 = vld [vmem:[#allocation8 + $0x240] sm:$0xff]
        %v1303 = vld [vmem:[#allocation8 + $0x248] sm:$0xff]
        %v1304 = vld [vmem:[#allocation8 + $0x250] sm:$0xff]
        %v1305 = vld [vmem:[#allocation8 + $0x258] sm:$0xff]
        %v1306 = vld [vmem:[#allocation8 + $0x260] sm:$0xff]
        %v1307 = vld [vmem:[#allocation8 + $0x268] sm:$0xff]
        %v1308 = vld [vmem:[#allocation8 + $0x270] sm:$0xff]
        %v1309 = vld [vmem:[#allocation8 + $0x278] sm:$0xff]
        %v1310 = vld [vmem:[%s8] sm:$0x1]
        %v1312 = vlaneseq
        %v1313 = vshrl.u32 %v1312, 7
        %v1314 = vsub.s32 0, %v1313
        %v1315 = vrot.slane %v1310, %v1314
        %1317 = vmatprep.subr.mxu0 0.0
        %1318 = vmatpush1.msra.mxu0 %v1230
        %1319 = vmatprep.subr.mxu0 0.0
        %1320 = vmatpush1.msra.mxu0 %v1231
        %1321 = vmatprep.subr.mxu0 0.0
        %1322 = vmatpush1.msra.mxu0 %v1232
        %1323 = vmatprep.subr.mxu0 0.0
        %1324 = vmatpush1.msra.mxu0 %v1233
        %1325 = vmatprep.subr.mxu0 0.0
        %1326 = vmatpush1.msra.mxu0 %v1234
        %1327 = vmatprep.subr.mxu0 0.0
        %1328 = vmatpush1.msra.mxu0 %v1235
        %1329 = vmatprep.subr.mxu0 0.0
        %1330 = vmatpush1.msra.mxu0 %v1236
        %1331 = vmatprep.subr.mxu0 0.0
        %1332 = vmatpush1.msra.mxu0 %v1237
        %1333 = vmatprep.subr.mxu0 0.0
        %1334 = vmatpush1.msra.mxu0 %v1238
        %1335 = vmatprep.subr.mxu0 0.0
        %1336 = vmatpush1.msra.mxu0 %v1239
        %1337 = vmatprep.subr.mxu0 0.0
        %1338 = vmatpush1.msra.mxu0 %v1240
        %1339 = vmatprep.subr.mxu0 0.0
        %1340 = vmatpush1.msra.mxu0 %v1241
        %1341 = vmatprep.subr.mxu0 0.0
        %1342 = vmatpush1.msra.mxu0 %v1242
        %1343 = vmatprep.subr.mxu0 0.0
        %1344 = vmatpush1.msra.mxu0 %v1243
        %1345 = vmatprep.subr.mxu0 0.0
        %1346 = vmatpush1.msra.mxu0 %v1244
        %1347 = vmatprep.subr.mxu0 0.0
        %1348 = vmatpush1.msra.mxu0 %v1245
        %1349 = vmatprep.subr.mxu0 0.0
        %1350 = vmatpush1.msra.mxu0 %v1246
        %1351 = vmatprep.subr.mxu0 0.0
        %1352 = vmatpush1.msra.mxu0 %v1247
        %1353 = vmatprep.subr.mxu0 0.0
        %1354 = vmatpush1.msra.mxu0 %v1248
        %1355 = vmatprep.subr.mxu0 0.0
        %1356 = vmatpush1.msra.mxu0 %v1249
        %1357 = vmatprep.subr.mxu0 0.0
        %1358 = vmatpush1.msra.mxu0 %v1250
        %1359 = vmatprep.subr.mxu0 0.0
        %1360 = vmatpush1.msra.mxu0 %v1251
        %1361 = vmatprep.subr.mxu0 0.0
        %1362 = vmatpush1.msra.mxu0 %v1252
        %1363 = vmatprep.subr.mxu0 0.0
        %1364 = vmatpush1.msra.mxu0 %v1253
        %1365 = vmatprep.subr.mxu0 0.0
        %1366 = vmatpush1.msra.mxu0 %v1254
        %1367 = vmatprep.subr.mxu0 0.0
        %1368 = vmatpush1.msra.mxu0 %v1255
        %1369 = vmatprep.subr.mxu0 0.0
        %1370 = vmatpush1.msra.mxu0 %v1256
        %1371 = vmatprep.subr.mxu0 0.0
        %1372 = vmatpush1.msra.mxu0 %v1257
        %1373 = vmatprep.subr.mxu0 0.0
        %1374 = vmatpush1.msra.mxu0 %v1258
        %1375 = vmatprep.subr.mxu0 0.0
        %1376 = vmatpush1.msra.mxu0 %v1259
        %1377 = vmatprep.subr.mxu0 0.0
        %1378 = vmatpush1.msra.mxu0 %v1260
        %1379 = vmatprep.subr.mxu0 0.0
        %1380 = vmatpush1.msra.mxu0 %v1261
        %1381 = vmatprep.mubr.f32.mxu0 %v1144
        %1382 = vmatmul.mubr.f32.gmra.mrb[0].mxu0 %v1126
        %v1383 = vpop.f32.mrb[0].mxu0
        %v1384 = vadd.f32 %v1315, %v1383
        %v1385 = vpop.f32.mrb[0].mxu0
        %1386 = vmatprep.mubr.f32.mxu0 %v1146
        %1387 = vmatmul.mubr.f32.gmra.mrb[0].mxu0 %v1127
        %v1388 = vpop.f32.mrb[0].mxu0
        %v1389 = vadd.f32 %v1315, %v1388
        %v1390 = vpop.f32.mrb[0].mxu0
        %1391 = vmatprep.mubr.f32.mxu0 %v1148
        %1392 = vmatmul.mubr.f32.gmra.mrb[0].mxu0 %v1128
        %v1393 = vpop.f32.mrb[0].mxu0
        %v1394 = vadd.f32 %v1315, %v1393
        %v1395 = vpop.f32.mrb[0].mxu0
        %1396 = vmatprep.mubr.f32.mxu0 %v1150
        %1397 = vmatmul.mubr.f32.gmra.mrb[0].mxu0 %v1129
        %v1398 = vpop.f32.mrb[0].mxu0
        %v1399 = vadd.f32 %v1315, %v1398
        %v1400 = vpop.f32.mrb[0].mxu0
        %1401 = vmatprep.mubr.f32.mxu0 %v1152
        %1402 = vmatmul.mubr.f32.gmra.mrb[0].mxu0 %v1130
        %v1403 = vpop.f32.mrb[0].mxu0
        %v1404 = vadd.f32 %v1315, %v1403
        %v1405 = vpop.f32.mrb[0].mxu0
        %1406 = vmatprep.mubr.f32.mxu0 %v1154
        %1407 = vmatmul.mubr.f32.gmra.mrb[0].mxu0 %v1131
        %v1408 = vpop.f32.mrb[0].mxu0
        %v1409 = vadd.f32 %v1315, %v1408
        %v1410 = vpop.f32.mrb[0].mxu0
        %1411 = vmatprep.mubr.f32.mxu0 %v1156
        %1412 = vmatmul.mubr.f32.gmra.mrb[0].mxu0 %v1132
        %v1413 = vpop.f32.mrb[0].mxu0
        %v1414 = vadd.f32 %v1315, %v1413
        %v1415 = vpop.f32.mrb[0].mxu0
        %1416 = vdwg.mxu0
        %1417 = vmatprep.subr.mxu0 0.0
        %1418 = vmatpush1.msra.mxu0 %v1262
        %1419 = vmatprep.subr.mxu0 0.0
        %1420 = vmatpush1.msra.mxu0 %v1263
        %1421 = vmatprep.subr.mxu0 0.0
        %1422 = vmatpush1.msra.mxu0 %v1264
        %1423 = vmatprep.subr.mxu0 0.0
        %1424 = vmatpush1.msra.mxu0 %v1265
        %1425 = vmatprep.subr.mxu0 0.0
        %1426 = vmatpush1.msra.mxu0 %v1266
        %1427 = vmatprep.subr.mxu0 0.0
        %1428 = vmatpush1.msra.mxu0 %v1267
        %1429 = vmatprep.subr.mxu0 0.0
        %1430 = vmatpush1.msra.mxu0 %v1268
        %1431 = vmatprep.subr.mxu0 0.0
        %1432 = vmatpush1.msra.mxu0 %v1269
        %1433 = vmatprep.subr.mxu0 0.0
        %1434 = vmatpush1.msra.mxu0 %v1270
        %1435 = vmatprep.subr.mxu0 0.0
        %1436 = vmatpush1.msra.mxu0 %v1271
        %1437 = vmatprep.subr.mxu0 0.0
        %1438 = vmatpush1.msra.mxu0 %v1272
        %1439 = vmatprep.subr.mxu0 0.0
        %1440 = vmatpush1.msra.mxu0 %v1273
        %1441 = vmatprep.subr.mxu0 0.0
        %1442 = vmatpush1.msra.mxu0 %v1274
        %1443 = vmatprep.subr.mxu0 0.0
        %1444 = vmatpush1.msra.mxu0 %v1275
        %1445 = vmatprep.subr.mxu0 0.0
        %1446 = vmatpush1.msra.mxu0 %v1276
        %1447 = vmatprep.subr.mxu0 0.0
        %1448 = vmatpush1.msra.mxu0 %v1277
        %1449 = vmatprep.subr.mxu0 0.0
        %1450 = vmatpush1.msra.mxu0 %v1278
        %1451 = vmatprep.subr.mxu0 0.0
        %1452 = vmatpush1.msra.mxu0 %v1279
        %1453 = vmatprep.subr.mxu0 0.0
        %1454 = vmatpush1.msra.mxu0 %v1280
        %1455 = vmatprep.subr.mxu0 0.0
        %1456 = vmatpush1.msra.mxu0 %v1281
        %1457 = vmatprep.subr.mxu0 0.0
        %1458 = vmatpush1.msra.mxu0 %v1282
        %1459 = vmatprep.subr.mxu0 0.0
        %1460 = vmatpush1.msra.mxu0 %v1283
        %1461 = vmatprep.subr.mxu0 0.0
        %1462 = vmatpush1.msra.mxu0 %v1284
        %1463 = vmatprep.subr.mxu0 0.0
        %1464 = vmatpush1.msra.mxu0 %v1285
        %1465 = vmatprep.subr.mxu0 0.0
        %1466 = vmatpush1.msra.mxu0 %v1286
        %1467 = vmatprep.subr.mxu0 0.0
        %1468 = vmatpush1.msra.mxu0 %v1287
        %1469 = vmatprep.subr.mxu0 0.0
        %1470 = vmatpush1.msra.mxu0 %v1288
        %1471 = vmatprep.subr.mxu0 0.0
        %1472 = vmatpush1.msra.mxu0 %v1289
        %1473 = vmatprep.subr.mxu0 0.0
        %1474 = vmatpush1.msra.mxu0 %v1290
        %1475 = vmatprep.subr.mxu0 0.0
        %1476 = vmatpush1.msra.mxu0 %v1291
        %1477 = vmatprep.subr.mxu0 0.0
        %1478 = vmatpush1.msra.mxu0 %v1292
        %1479 = vmatprep.subr.mxu0 0.0
        %1480 = vmatpush1.msra.mxu0 %v1293
        %1481 = vmatprep.mubr.f32.mxu0 %v1188
        %1482 = vmatmul.mubr.f32.gmra.mrb[0].mxu0 %v1166
        %v1483 = vpop.f32.mrb[0].mxu0
        %v1484 = vadd.f32 %v1384, %v1483
        %v1485 = vpop.f32.mrb[0].mxu0
        %1486 = vmatprep.mubr.f32.mxu0 %v1190
        %1487 = vmatmul.mubr.f32.gmra.mrb[0].mxu0 %v1168
        %v1488 = vpop.f32.mrb[0].mxu0
        %v1489 = vadd.f32 %v1389, %v1488
        %v1490 = vpop.f32.mrb[0].mxu0
        %1491 = vmatprep.mubr.f32.mxu0 %v1192
        %1492 = vmatmul.mubr.f32.gmra.mrb[0].mxu0 %v1170
        %v1493 = vpop.f32.mrb[0].mxu0
        %v1494 = vadd.f32 %v1394, %v1493
        %v1495 = vpop.f32.mrb[0].mxu0
        %1496 = vmatprep.mubr.f32.mxu0 %v1194
        %1497 = vmatmul.mubr.f32.gmra.mrb[0].mxu0 %v1172
        %v1498 = vpop.f32.mrb[0].mxu0
        %v1499 = vadd.f32 %v1399, %v1498
        %v1500 = vpop.f32.mrb[0].mxu0
        %1501 = vmatprep.mubr.f32.mxu0 %v1196
        %1502 = vmatmul.mubr.f32.gmra.mrb[0].mxu0 %v1174
        %v1503 = vpop.f32.mrb[0].mxu0
        %v1504 = vadd.f32 %v1404, %v1503
        %v1505 = vpop.f32.mrb[0].mxu0
        %1506 = vmatprep.mubr.f32.mxu0 %v1198
        %1507 = vmatmul.mubr.f32.gmra.mrb[0].mxu0 %v1176
        %v1508 = vpop.f32.mrb[0].mxu0
        %v1509 = vadd.f32 %v1409, %v1508
        %v1510 = vpop.f32.mrb[0].mxu0
        %1511 = vmatprep.mubr.f32.mxu0 %v1200
        %1512 = vmatmul.mubr.f32.gmra.mrb[0].mxu0 %v1178
        %v1513 = vpop.f32.mrb[0].mxu0
        %v1514 = vadd.f32 %v1414, %v1513
        %v1515 = vpop.f32.mrb[0].mxu0
        %1516 = vdwg.mxu0
        %1517 = vmatprep.subr.mxu0 0.0
        %1518 = vmatpush1.msra.mxu0 %v1294
        %1519 = vmatprep.subr.mxu0 0.0
        %1520 = vmatpush1.msra.mxu0 %v1295
        %1521 = vmatprep.subr.mxu0 0.0
        %1522 = vmatpush1.msra.mxu0 %v1296
        %1523 = vmatprep.subr.mxu0 0.0
        %1524 = vmatpush1.msra.mxu0 %v1297
        %1525 = vmatprep.subr.mxu0 0.0
        %1526 = vmatpush1.msra.mxu0 %v1298
        %1527 = vmatprep.subr.mxu0 0.0
        %1528 = vmatpush1.msra.mxu0 %v1299
        %1529 = vmatprep.subr.mxu0 0.0
        %1530 = vmatpush1.msra.mxu0 %v1300
        %1531 = vmatprep.subr.mxu0 0.0
        %1532 = vmatpush1.msra.mxu0 %v1301
        %1533 = vmatprep.subr.mxu0 0.0
        %1534 = vmatpush1.msra.mxu0 %v1302
        %1535 = vmatprep.subr.mxu0 0.0
        %1536 = vmatpush1.msra.mxu0 %v1303
        %1537 = vmatprep.subr.mxu0 0.0
        %1538 = vmatpush1.msra.mxu0 %v1304
        %1539 = vmatprep.subr.mxu0 0.0
        %1540 = vmatpush1.msra.mxu0 %v1305
        %1541 = vmatprep.subr.mxu0 0.0
        %1542 = vmatpush1.msra.mxu0 %v1306
        %1543 = vmatprep.subr.mxu0 0.0
        %1544 = vmatpush1.msra.mxu0 %v1307
        %1545 = vmatprep.subr.mxu0 0.0
        %1546 = vmatpush1.msra.mxu0 %v1308
        %1547 = vmatprep.subr.mxu0 0.0
        %1548 = vmatpush1.msra.mxu0 %v1309
        %1549 = vmatprep.subr.mxu0 0.0
        %1550 = vmatpush1.msra.mxu0 0.0
        %1551 = vmatprep.subr.mxu0 0.0
        %1552 = vmatpush1.msra.mxu0 0.0
        %1553 = vmatprep.subr.mxu0 0.0
        %1554 = vmatpush1.msra.mxu0 0.0
        %1555 = vmatprep.subr.mxu0 0.0
        %1556 = vmatpush1.msra.mxu0 0.0
        %1557 = vmatprep.subr.mxu0 0.0
        %1558 = vmatpush1.msra.mxu0 0.0
        %1559 = vmatprep.subr.mxu0 0.0
        %1560 = vmatpush1.msra.mxu0 0.0
        %1561 = vmatprep.subr.mxu0 0.0
        %1562 = vmatpush1.msra.mxu0 0.0
        %1563 = vmatprep.subr.mxu0 0.0
        %1564 = vmatpush1.msra.mxu0 0.0
        %1565 = vmatprep.subr.mxu0 0.0
        %1566 = vmatpush1.msra.mxu0 0.0
        %1567 = vmatprep.subr.mxu0 0.0
        %1568 = vmatpush1.msra.mxu0 0.0
        %1569 = vmatprep.subr.mxu0 0.0
        %1570 = vmatpush1.msra.mxu0 0.0
        %1571 = vmatprep.subr.mxu0 0.0
        %1572 = vmatpush1.msra.mxu0 0.0
        %1573 = vmatprep.subr.mxu0 0.0
        %1574 = vmatpush1.msra.mxu0 0.0
        %1575 = vmatprep.subr.mxu0 0.0
        %1576 = vmatpush1.msra.mxu0 0.0
        %1577 = vmatprep.subr.mxu0 0.0
        %1578 = vmatpush1.msra.mxu0 0.0
        %1579 = vmatprep.subr.mxu0 0.0
        %1580 = vmatpush1.msra.mxu0 0.0
        %1581 = vmatprep.mubr.f32.mxu0 0.0
        %1582 = vmatmul.mubr.f32.gmra.mrb[0].mxu0 %v1210
        %v1583 = vpop.f32.mrb[0].mxu0
        %v1584 = vadd.f32 %v1484, %v1583
        %v1585 = vpop.f32.mrb[0].mxu0
        %1586 = vmatprep.mubr.f32.mxu0 0.0
        %1587 = vmatmul.mubr.f32.gmra.mrb[0].mxu0 %v1212
        %v1588 = vpop.f32.mrb[0].mxu0
        %v1589 = vadd.f32 %v1489, %v1588
        %v1590 = vpop.f32.mrb[0].mxu0
        %1591 = vmatprep.mubr.f32.mxu0 0.0
        %1592 = vmatmul.mubr.f32.gmra.mrb[0].mxu0 %v1214
        %v1593 = vpop.f32.mrb[0].mxu0
        %v1594 = vadd.f32 %v1494, %v1593
        %v1595 = vpop.f32.mrb[0].mxu0
        %1596 = vmatprep.mubr.f32.mxu0 0.0
        %1597 = vmatmul.mubr.f32.gmra.mrb[0].mxu0 %v1216
        %v1598 = vpop.f32.mrb[0].mxu0
        %v1599 = vadd.f32 %v1499, %v1598
        %v1600 = vpop.f32.mrb[0].mxu0
        %1601 = vmatprep.mubr.f32.mxu0 0.0
        %1602 = vmatmul.mubr.f32.gmra.mrb[0].mxu0 %v1218
        %v1603 = vpop.f32.mrb[0].mxu0
        %v1604 = vadd.f32 %v1504, %v1603
        %v1605 = vpop.f32.mrb[0].mxu0
        %1606 = vmatprep.mubr.f32.mxu0 0.0
        %1607 = vmatmul.mubr.f32.gmra.mrb[0].mxu0 %v1220
        %v1608 = vpop.f32.mrb[0].mxu0
        %v1609 = vadd.f32 %v1509, %v1608
        %v1610 = vpop.f32.mrb[0].mxu0
        %1611 = vmatprep.mubr.f32.mxu0 0.0
        %1612 = vmatmul.mubr.f32.gmra.mrb[0].mxu0 %v1222
        %v1613 = vpop.f32.mrb[0].mxu0
        %v1614 = vadd.f32 %v1514, %v1613
        %v1615 = vpop.f32.mrb[0].mxu0
        %1616 = vdwg.mxu0
        %v1617 = vtanh.pop %v1584
        %v1618 = vtanh.pop %v1589
        %v1619 = vtanh.pop %v1594
        %v1620 = vtanh.pop %v1599
        %v1621 = vtanh.pop %v1604
        %v1622 = vtanh.pop %v1609
        %v1623 = vtanh.pop %v1614
        %s1624 = ssub.s32 24, %s568
        %v1625 = vstv %s1624
        %vm1626 = vcmp.lt.s32.totalorder %v1093, %v1625
        %vm1627 = vcmp.lt.s32.totalorder %v1094, %v1625
        %vm1628 = vcmp.lt.s32.totalorder %v1095, %v1625
        %vm1629 = vcmp.lt.s32.totalorder %v1096, %v1625
        %vm1630 = vcmp.lt.s32.totalorder %v1097, %v1625
        %vm1631 = vcmp.lt.s32.totalorder %v1098, %v1625
        %vm1632 = vcmp.lt.s32.totalorder %v1099, %v1625
        %v1633 = vsel %vm1626, 1, 0
        %v1634 = vsel %vm1627, 1, 0
        %v1635 = vsel %vm1628, 1, 0
        %v1636 = vsel %vm1629, 1, 0
        %v1637 = vsel %vm1630, 1, 0
        %v1638 = vsel %vm1631, 1, 0
        %v1639 = vsel %vm1632, 1, 0
        %vm1640 = vcmp.eq.s32.totalorder %v1633, 1
        %vm1641 = vcmp.eq.s32.totalorder %v1634, 1
        %vm1642 = vcmp.eq.s32.totalorder %v1635, 1
        %vm1643 = vcmp.eq.s32.totalorder %v1636, 1
        %vm1644 = vcmp.eq.s32.totalorder %v1637, 1
        %vm1645 = vcmp.eq.s32.totalorder %v1638, 1
        %vm1646 = vcmp.eq.s32.totalorder %v1639, 1
        %v1647 = vsel %vm1640, 0.0, %v1617
        %v1648 = vsel %vm1641, 0.0, %v1618
        %v1649 = vsel %vm1642, 0.0, %v1619
        %v1650 = vsel %vm1643, 0.0, %v1620
        %v1651 = vsel %vm1644, 0.0, %v1621
        %v1652 = vsel %vm1645, 0.0, %v1622
        %v1653 = vsel %vm1646, 0.0, %v1623
        %v1661 = vrot.slane %v1647, 1
        %v1662 = vrot.slane %v1648, 1
        %v1663 = vsel %vm585, %v1661, %v1662
        %v1664 = vrot.slane %v1649, 1
        %v1665 = vsel %vm585, %v1662, %v1664
        %v1666 = vrot.slane %v1650, 1
        %v1667 = vsel %vm585, %v1664, %v1666
        %v1668 = vrot.slane %v1651, 1
        %v1669 = vsel %vm585, %v1666, %v1668
        %v1670 = vrot.slane %v1652, 1
        %v1671 = vsel %vm585, %v1668, %v1670
        %v1672 = vrot.slane %v1653, 1
        %v1673 = vsel %vm585, %v1670, %v1672
        %v1681 = vrot.slane %v1647, 2
        %v1682 = vrot.slane %v1648, 2
        %v1683 = vsel %vm609, %v1681, %v1682
        %v1684 = vrot.slane %v1649, 2
        %v1685 = vsel %vm609, %v1682, %v1684
        %v1686 = vrot.slane %v1650, 2
        %v1687 = vsel %vm609, %v1684, %v1686
        %v1688 = vrot.slane %v1651, 2
        %v1689 = vsel %vm609, %v1686, %v1688
        %v1690 = vrot.slane %v1652, 2
        %v1691 = vsel %vm609, %v1688, %v1690
        %v1692 = vrot.slane %v1653, 2
        %v1693 = vsel %vm609, %v1690, %v1692
        %v1701 = vrot.slane %v1647, 3
        %v1702 = vrot.slane %v1648, 3
        %v1703 = vsel %vm633, %v1701, %v1702
        %v1704 = vrot.slane %v1649, 3
        %v1705 = vsel %vm633, %v1702, %v1704
        %v1706 = vrot.slane %v1650, 3
        %v1707 = vsel %vm633, %v1704, %v1706
        %v1708 = vrot.slane %v1651, 3
        %v1709 = vsel %vm633, %v1706, %v1708
        %v1710 = vrot.slane %v1652, 3
        %v1711 = vsel %vm633, %v1708, %v1710
        %v1712 = vrot.slane %v1653, 3
        %v1713 = vsel %vm633, %v1710, %v1712
        %v1721 = vrot.slane %v1647, 4
        %v1722 = vrot.slane %v1648, 4
        %v1723 = vsel %vm657, %v1721, %v1722
        %v1724 = vrot.slane %v1649, 4
        %v1725 = vsel %vm657, %v1722, %v1724
        %v1726 = vrot.slane %v1650, 4
        %v1727 = vsel %vm657, %v1724, %v1726
        %v1728 = vrot.slane %v1651, 4
        %v1729 = vsel %vm657, %v1726, %v1728
        %v1730 = vrot.slane %v1652, 4
        %v1731 = vsel %vm657, %v1728, %v1730
        %v1732 = vrot.slane %v1653, 4
        %v1733 = vsel %vm657, %v1730, %v1732
        %v1741 = vld [vmem:[#allocation10] sm:$0xff]
        %v1742 = vld [vmem:[#allocation10 + $0x8] sm:$0xff]
        %v1743 = vld [vmem:[#allocation10 + $0x10] sm:$0xff]
        %v1744 = vld [vmem:[#allocation10 + $0x18] sm:$0xff]
        %v1745 = vld [vmem:[#allocation10 + $0x20] sm:$0xff]
        %v1746 = vld [vmem:[#allocation10 + $0x28] sm:$0xff]
        %v1747 = vld [vmem:[#allocation10 + $0x30] sm:$0xff]
        %v1748 = vld [vmem:[#allocation10 + $0x38] sm:$0xff]
        %v1749 = vld [vmem:[#allocation10 + $0x40] sm:$0xff]
        %v1750 = vld [vmem:[#allocation10 + $0x48] sm:$0xff]
        %v1751 = vld [vmem:[#allocation10 + $0x50] sm:$0xff]
        %v1752 = vld [vmem:[#allocation10 + $0x58] sm:$0xff]
        %v1753 = vld [vmem:[#allocation10 + $0x60] sm:$0xff]
        %v1754 = vld [vmem:[#allocation10 + $0x68] sm:$0xff]
        %v1755 = vld [vmem:[#allocation10 + $0x70] sm:$0xff]
        %v1756 = vld [vmem:[#allocation10 + $0x78] sm:$0xff]
        %v1757 = vld [vmem:[#allocation10 + $0x80] sm:$0xff]
        %v1758 = vld [vmem:[#allocation10 + $0x88] sm:$0xff]
        %v1759 = vld [vmem:[#allocation10 + $0x90] sm:$0xff]
        %v1760 = vld [vmem:[#allocation10 + $0x98] sm:$0xff]
        %v1761 = vld [vmem:[#allocation10 + $0xa0] sm:$0xff]
        %v1762 = vld [vmem:[#allocation10 + $0xa8] sm:$0xff]
        %v1763 = vld [vmem:[#allocation10 + $0xb0] sm:$0xff]
        %v1764 = vld [vmem:[#allocation10 + $0xb8] sm:$0xff]
        %v1765 = vld [vmem:[#allocation10 + $0xc0] sm:$0xff]
        %v1766 = vld [vmem:[#allocation10 + $0xc8] sm:$0xff]
        %v1767 = vld [vmem:[#allocation10 + $0xd0] sm:$0xff]
        %v1768 = vld [vmem:[#allocation10 + $0xd8] sm:$0xff]
        %v1769 = vld [vmem:[#allocation10 + $0xe0] sm:$0xff]
        %v1770 = vld [vmem:[#allocation10 + $0xe8] sm:$0xff]
        %v1771 = vld [vmem:[#allocation10 + $0xf0] sm:$0xff]
        %v1772 = vld [vmem:[#allocation10 + $0xf8] sm:$0xff]
        %v1773 = vld [vmem:[#allocation10 + $0x100] sm:$0xff]
        %v1774 = vld [vmem:[#allocation10 + $0x108] sm:$0xff]
        %v1775 = vld [vmem:[#allocation10 + $0x110] sm:$0xff]
        %v1776 = vld [vmem:[#allocation10 + $0x118] sm:$0xff]
        %v1777 = vld [vmem:[#allocation10 + $0x120] sm:$0xff]
        %v1778 = vld [vmem:[#allocation10 + $0x128] sm:$0xff]
        %v1779 = vld [vmem:[#allocation10 + $0x130] sm:$0xff]
        %v1780 = vld [vmem:[#allocation10 + $0x138] sm:$0xff]
        %v1781 = vld [vmem:[#allocation10 + $0x140] sm:$0xff]
        %v1782 = vld [vmem:[#allocation10 + $0x148] sm:$0xff]
        %v1783 = vld [vmem:[#allocation10 + $0x150] sm:$0xff]
        %v1784 = vld [vmem:[#allocation10 + $0x158] sm:$0xff]
        %v1785 = vld [vmem:[#allocation10 + $0x160] sm:$0xff]
        %v1786 = vld [vmem:[#allocation10 + $0x168] sm:$0xff]
        %v1787 = vld [vmem:[#allocation10 + $0x170] sm:$0xff]
        %v1788 = vld [vmem:[#allocation10 + $0x178] sm:$0xff]
        %v1789 = vld [vmem:[#allocation10 + $0x180] sm:$0xff]
        %v1790 = vld [vmem:[#allocation10 + $0x188] sm:$0xff]
        %v1791 = vld [vmem:[#allocation10 + $0x190] sm:$0xff]
        %v1792 = vld [vmem:[#allocation10 + $0x198] sm:$0xff]
        %v1793 = vld [vmem:[#allocation10 + $0x1a0] sm:$0xff]
        %v1794 = vld [vmem:[#allocation10 + $0x1a8] sm:$0xff]
        %v1795 = vld [vmem:[#allocation10 + $0x1b0] sm:$0xff]
        %v1796 = vld [vmem:[#allocation10 + $0x1b8] sm:$0xff]
        %v1797 = vld [vmem:[#allocation10 + $0x1c0] sm:$0xff]
        %v1798 = vld [vmem:[#allocation10 + $0x1c8] sm:$0xff]
        %v1799 = vld [vmem:[#allocation10 + $0x1d0] sm:$0xff]
        %v1800 = vld [vmem:[#allocation10 + $0x1d8] sm:$0xff]
        %v1801 = vld [vmem:[#allocation10 + $0x1e0] sm:$0xff]
        %v1802 = vld [vmem:[#allocation10 + $0x1e8] sm:$0xff]
        %v1803 = vld [vmem:[#allocation10 + $0x1f0] sm:$0xff]
        %v1804 = vld [vmem:[#allocation10 + $0x1f8] sm:$0xff]
        %v1805 = vld [vmem:[#allocation10 + $0x200] sm:$0xff]
        %v1806 = vld [vmem:[#allocation10 + $0x208] sm:$0xff]
        %v1807 = vld [vmem:[#allocation10 + $0x210] sm:$0xff]
        %v1808 = vld [vmem:[#allocation10 + $0x218] sm:$0xff]
        %v1809 = vld [vmem:[#allocation10 + $0x220] sm:$0xff]
        %v1810 = vld [vmem:[#allocation10 + $0x228] sm:$0xff]
        %v1811 = vld [vmem:[#allocation10 + $0x230] sm:$0xff]
        %v1812 = vld [vmem:[#allocation10 + $0x238] sm:$0xff]
        %v1813 = vld [vmem:[#allocation10 + $0x240] sm:$0xff]
        %v1814 = vld [vmem:[#allocation10 + $0x248] sm:$0xff]
        %v1815 = vld [vmem:[#allocation10 + $0x250] sm:$0xff]
        %v1816 = vld [vmem:[#allocation10 + $0x258] sm:$0xff]
        %v1817 = vld [vmem:[#allocation10 + $0x260] sm:$0xff]
        %v1818 = vld [vmem:[#allocation10 + $0x268] sm:$0xff]
        %v1819 = vld [vmem:[#allocation10 + $0x270] sm:$0xff]
        %v1820 = vld [vmem:[#allocation10 + $0x278] sm:$0xff]
        %v1821 = vld [vmem:[%s9] sm:$0x1]
        %v1823 = vlaneseq
        %v1824 = vshrl.u32 %v1823, 7
        %v1825 = vsub.s32 0, %v1824
        %v1826 = vrot.slane %v1821, %v1825
        %1828 = vmatprep.subr.mxu0 0.0
        %1829 = vmatpush1.msra.mxu0 %v1741
        %1830 = vmatprep.subr.mxu0 0.0
        %1831 = vmatpush1.msra.mxu0 %v1742
        %1832 = vmatprep.subr.mxu0 0.0
        %1833 = vmatpush1.msra.mxu0 %v1743
        %1834 = vmatprep.subr.mxu0 0.0
        %1835 = vmatpush1.msra.mxu0 %v1744
        %1836 = vmatprep.subr.mxu0 0.0
        %1837 = vmatpush1.msra.mxu0 %v1745
        %1838 = vmatprep.subr.mxu0 0.0
        %1839 = vmatpush1.msra.mxu0 %v1746
        %1840 = vmatprep.subr.mxu0 0.0
        %1841 = vmatpush1.msra.mxu0 %v1747
        %1842 = vmatprep.subr.mxu0 0.0
        %1843 = vmatpush1.msra.mxu0 %v1748
        %1844 = vmatprep.subr.mxu0 0.0
        %1845 = vmatpush1.msra.mxu0 %v1749
        %1846 = vmatprep.subr.mxu0 0.0
        %1847 = vmatpush1.msra.mxu0 %v1750
        %1848 = vmatprep.subr.mxu0 0.0
        %1849 = vmatpush1.msra.mxu0 %v1751
        %1850 = vmatprep.subr.mxu0 0.0
        %1851 = vmatpush1.msra.mxu0 %v1752
        %1852 = vmatprep.subr.mxu0 0.0
        %1853 = vmatpush1.msra.mxu0 %v1753
        %1854 = vmatprep.subr.mxu0 0.0
        %1855 = vmatpush1.msra.mxu0 %v1754
        %1856 = vmatprep.subr.mxu0 0.0
        %1857 = vmatpush1.msra.mxu0 %v1755
        %1858 = vmatprep.subr.mxu0 0.0
        %1859 = vmatpush1.msra.mxu0 %v1756
        %1860 = vmatprep.subr.mxu0 0.0
        %1861 = vmatpush1.msra.mxu0 %v1757
        %1862 = vmatprep.subr.mxu0 0.0
        %1863 = vmatpush1.msra.mxu0 %v1758
        %1864 = vmatprep.subr.mxu0 0.0
        %1865 = vmatpush1.msra.mxu0 %v1759
        %1866 = vmatprep.subr.mxu0 0.0
        %1867 = vmatpush1.msra.mxu0 %v1760
        %1868 = vmatprep.subr.mxu0 0.0
        %1869 = vmatpush1.msra.mxu0 %v1761
        %1870 = vmatprep.subr.mxu0 0.0
        %1871 = vmatpush1.msra.mxu0 %v1762
        %1872 = vmatprep.subr.mxu0 0.0
        %1873 = vmatpush1.msra.mxu0 %v1763
        %1874 = vmatprep.subr.mxu0 0.0
        %1875 = vmatpush1.msra.mxu0 %v1764
        %1876 = vmatprep.subr.mxu0 0.0
        %1877 = vmatpush1.msra.mxu0 %v1765
        %1878 = vmatprep.subr.mxu0 0.0
        %1879 = vmatpush1.msra.mxu0 %v1766
        %1880 = vmatprep.subr.mxu0 0.0
        %1881 = vmatpush1.msra.mxu0 %v1767
        %1882 = vmatprep.subr.mxu0 0.0
        %1883 = vmatpush1.msra.mxu0 %v1768
        %1884 = vmatprep.subr.mxu0 0.0
        %1885 = vmatpush1.msra.mxu0 %v1769
        %1886 = vmatprep.subr.mxu0 0.0
        %1887 = vmatpush1.msra.mxu0 %v1770
        %1888 = vmatprep.subr.mxu0 0.0
        %1889 = vmatpush1.msra.mxu0 %v1771
        %1890 = vmatprep.subr.mxu0 0.0
        %1891 = vmatpush1.msra.mxu0 %v1772
        %1892 = vmatprep.mubr.f32.mxu0 %v1663
        %1893 = vmatmul.mubr.f32.gmra.mrb[0].mxu0 %v1647
        %v1894 = vpop.f32.mrb[0].mxu0
        %v1895 = vadd.f32 %v1826, %v1894
        %v1896 = vpop.f32.mrb[0].mxu0
        %1897 = vmatprep.mubr.f32.mxu0 %v1665
        %1898 = vmatmul.mubr.f32.gmra.mrb[0].mxu0 %v1648
        %v1899 = vpop.f32.mrb[0].mxu0
        %v1900 = vadd.f32 %v1826, %v1899
        %v1901 = vpop.f32.mrb[0].mxu0
        %1902 = vmatprep.mubr.f32.mxu0 %v1667
        %1903 = vmatmul.mubr.f32.gmra.mrb[0].mxu0 %v1649
        %v1904 = vpop.f32.mrb[0].mxu0
        %v1905 = vadd.f32 %v1826, %v1904
        %v1906 = vpop.f32.mrb[0].mxu0
        %1907 = vmatprep.mubr.f32.mxu0 %v1669
        %1908 = vmatmul.mubr.f32.gmra.mrb[0].mxu0 %v1650
        %v1909 = vpop.f32.mrb[0].mxu0
        %v1910 = vadd.f32 %v1826, %v1909
        %v1911 = vpop.f32.mrb[0].mxu0
        %1912 = vmatprep.mubr.f32.mxu0 %v1671
        %1913 = vmatmul.mubr.f32.gmra.mrb[0].mxu0 %v1651
        %v1914 = vpop.f32.mrb[0].mxu0
        %v1915 = vadd.f32 %v1826, %v1914
        %v1916 = vpop.f32.mrb[0].mxu0
        %1917 = vmatprep.mubr.f32.mxu0 %v1673
        %1918 = vmatmul.mubr.f32.gmra.mrb[0].mxu0 %v1652
        %v1919 = vpop.f32.mrb[0].mxu0
        %v1920 = vadd.f32 %v1826, %v1919
        %v1921 = vpop.f32.mrb[0].mxu0
        %1922 = vmatprep.mubr.f32.mxu0 %v1672
        %1923 = vmatmul.mubr.f32.gmra.mrb[0].mxu0 %v1653
        %v1924 = vpop.f32.mrb[0].mxu0
        %v1925 = vadd.f32 %v1826, %v1924
        %v1926 = vpop.f32.mrb[0].mxu0
        %1927 = vdwg.mxu0
        %1928 = vmatprep.subr.mxu0 0.0
        %1929 = vmatpush1.msra.mxu0 %v1773
        %1930 = vmatprep.subr.mxu0 0.0
        %1931 = vmatpush1.msra.mxu0 %v1774
        %1932 = vmatprep.subr.mxu0 0.0
        %1933 = vmatpush1.msra.mxu0 %v1775
        %1934 = vmatprep.subr.mxu0 0.0
        %1935 = vmatpush1.msra.mxu0 %v1776
        %1936 = vmatprep.subr.mxu0 0.0
        %1937 = vmatpush1.msra.mxu0 %v1777
        %1938 = vmatprep.subr.mxu0 0.0
        %1939 = vmatpush1.msra.mxu0 %v1778
        %1940 = vmatprep.subr.mxu0 0.0
        %1941 = vmatpush1.msra.mxu0 %v1779
        %1942 = vmatprep.subr.mxu0 0.0
        %1943 = vmatpush1.msra.mxu0 %v1780
        %1944 = vmatprep.subr.mxu0 0.0
        %1945 = vmatpush1.msra.mxu0 %v1781
        %1946 = vmatprep.subr.mxu0 0.0
        %1947 = vmatpush1.msra.mxu0 %v1782
        %1948 = vmatprep.subr.mxu0 0.0
        %1949 = vmatpush1.msra.mxu0 %v1783
        %1950 = vmatprep.subr.mxu0 0.0
        %1951 = vmatpush1.msra.mxu0 %v1784
        %1952 = vmatprep.subr.mxu0 0.0
        %1953 = vmatpush1.msra.mxu0 %v1785
        %1954 = vmatprep.subr.mxu0 0.0
        %1955 = vmatpush1.msra.mxu0 %v1786
        %1956 = vmatprep.subr.mxu0 0.0
        %1957 = vmatpush1.msra.mxu0 %v1787
        %1958 = vmatprep.subr.mxu0 0.0
        %1959 = vmatpush1.msra.mxu0 %v1788
        %1960 = vmatprep.subr.mxu0 0.0
        %1961 = vmatpush1.msra.mxu0 %v1789
        %1962 = vmatprep.subr.mxu0 0.0
        %1963 = vmatpush1.msra.mxu0 %v1790
        %1964 = vmatprep.subr.mxu0 0.0
        %1965 = vmatpush1.msra.mxu0 %v1791
        %1966 = vmatprep.subr.mxu0 0.0
        %1967 = vmatpush1.msra.mxu0 %v1792
        %1968 = vmatprep.subr.mxu0 0.0
        %1969 = vmatpush1.msra.mxu0 %v1793
        %1970 = vmatprep.subr.mxu0 0.0
        %1971 = vmatpush1.msra.mxu0 %v1794
        %1972 = vmatprep.subr.mxu0 0.0
        %1973 = vmatpush1.msra.mxu0 %v1795
        %1974 = vmatprep.subr.mxu0 0.0
        %1975 = vmatpush1.msra.mxu0 %v1796
        %1976 = vmatprep.subr.mxu0 0.0
        %1977 = vmatpush1.msra.mxu0 %v1797
        %1978 = vmatprep.subr.mxu0 0.0
        %1979 = vmatpush1.msra.mxu0 %v1798
        %1980 = vmatprep.subr.mxu0 0.0
        %1981 = vmatpush1.msra.mxu0 %v1799
        %1982 = vmatprep.subr.mxu0 0.0
        %1983 = vmatpush1.msra.mxu0 %v1800
        %1984 = vmatprep.subr.mxu0 0.0
        %1985 = vmatpush1.msra.mxu0 %v1801
        %1986 = vmatprep.subr.mxu0 0.0
        %1987 = vmatpush1.msra.mxu0 %v1802
        %1988 = vmatprep.subr.mxu0 0.0
        %1989 = vmatpush1.msra.mxu0 %v1803
        %1990 = vmatprep.subr.mxu0 0.0
        %1991 = vmatpush1.msra.mxu0 %v1804
        %1992 = vmatprep.mubr.f32.mxu0 %v1703
        %1993 = vmatmul.mubr.f32.gmra.mrb[0].mxu0 %v1683
        %v1994 = vpop.f32.mrb[0].mxu0
        %v1995 = vadd.f32 %v1895, %v1994
        %v1996 = vpop.f32.mrb[0].mxu0
        %1997 = vmatprep.mubr.f32.mxu0 %v1705
        %1998 = vmatmul.mubr.f32.gmra.mrb[0].mxu0 %v1685
        %v1999 = vpop.f32.mrb[0].mxu0
        %v2000 = vadd.f32 %v1900, %v1999
        %v2001 = vpop.f32.mrb[0].mxu0
        %2002 = vmatprep.mubr.f32.mxu0 %v1707
        %2003 = vmatmul.mubr.f32.gmra.mrb[0].mxu0 %v1687
        %v2004 = vpop.f32.mrb[0].mxu0
        %v2005 = vadd.f32 %v1905, %v2004
        %v2006 = vpop.f32.mrb[0].mxu0
        %2007 = vmatprep.mubr.f32.mxu0 %v1709
        %2008 = vmatmul.mubr.f32.gmra.mrb[0].mxu0 %v1689
        %v2009 = vpop.f32.mrb[0].mxu0
        %v2010 = vadd.f32 %v1910, %v2009
        %v2011 = vpop.f32.mrb[0].mxu0
        %2012 = vmatprep.mubr.f32.mxu0 %v1711
        %2013 = vmatmul.mubr.f32.gmra.mrb[0].mxu0 %v1691
        %v2014 = vpop.f32.mrb[0].mxu0
        %v2015 = vadd.f32 %v1915, %v2014
        %v2016 = vpop.f32.mrb[0].mxu0
        %2017 = vmatprep.mubr.f32.mxu0 %v1713
        %2018 = vmatmul.mubr.f32.gmra.mrb[0].mxu0 %v1693
        %v2019 = vpop.f32.mrb[0].mxu0
        %v2020 = vadd.f32 %v1920, %v2019
        %v2021 = vpop.f32.mrb[0].mxu0
        %2022 = vmatprep.mubr.f32.mxu0 %v1712
        %2023 = vmatmul.mubr.f32.gmra.mrb[0].mxu0 %v1692
        %v2024 = vpop.f32.mrb[0].mxu0
        %v2025 = vadd.f32 %v1925, %v2024
        %v2026 = vpop.f32.mrb[0].mxu0
        %2027 = vdwg.mxu0
        %2028 = vmatprep.subr.mxu0 0.0
        %2029 = vmatpush1.msra.mxu0 %v1805
        %2030 = vmatprep.subr.mxu0 0.0
        %2031 = vmatpush1.msra.mxu0 %v1806
        %2032 = vmatprep.subr.mxu0 0.0
        %2033 = vmatpush1.msra.mxu0 %v1807
        %2034 = vmatprep.subr.mxu0 0.0
        %2035 = vmatpush1.msra.mxu0 %v1808
        %2036 = vmatprep.subr.mxu0 0.0
        %2037 = vmatpush1.msra.mxu0 %v1809
        %2038 = vmatprep.subr.mxu0 0.0
        %2039 = vmatpush1.msra.mxu0 %v1810
        %2040 = vmatprep.subr.mxu0 0.0
        %2041 = vmatpush1.msra.mxu0 %v1811
        %2042 = vmatprep.subr.mxu0 0.0
        %2043 = vmatpush1.msra.mxu0 %v1812
        %2044 = vmatprep.subr.mxu0 0.0
        %2045 = vmatpush1.msra.mxu0 %v1813
        %2046 = vmatprep.subr.mxu0 0.0
        %2047 = vmatpush1.msra.mxu0 %v1814
        %2048 = vmatprep.subr.mxu0 0.0
        %2049 = vmatpush1.msra.mxu0 %v1815
        %2050 = vmatprep.subr.mxu0 0.0
        %2051 = vmatpush1.msra.mxu0 %v1816
        %2052 = vmatprep.subr.mxu0 0.0
        %2053 = vmatpush1.msra.mxu0 %v1817
        %2054 = vmatprep.subr.mxu0 0.0
        %2055 = vmatpush1.msra.mxu0 %v1818
        %2056 = vmatprep.subr.mxu0 0.0
        %2057 = vmatpush1.msra.mxu0 %v1819
        %2058 = vmatprep.subr.mxu0 0.0
        %2059 = vmatpush1.msra.mxu0 %v1820
        %2060 = vmatprep.subr.mxu0 0.0
        %2061 = vmatpush1.msra.mxu0 0.0
        %2062 = vmatprep.subr.mxu0 0.0
        %2063 = vmatpush1.msra.mxu0 0.0
        %2064 = vmatprep.subr.mxu0 0.0
        %2065 = vmatpush1.msra.mxu0 0.0
        %2066 = vmatprep.subr.mxu0 0.0
        %2067 = vmatpush1.msra.mxu0 0.0
        %2068 = vmatprep.subr.mxu0 0.0
        %2069 = vmatpush1.msra.mxu0 0.0
        %2070 = vmatprep.subr.mxu0 0.0
        %2071 = vmatpush1.msra.mxu0 0.0
        %2072 = vmatprep.subr.mxu0 0.0
        %2073 = vmatpush1.msra.mxu0 0.0
        %2074 = vmatprep.subr.mxu0 0.0
        %2075 = vmatpush1.msra.mxu0 0.0
        %2076 = vmatprep.subr.mxu0 0.0
        %2077 = vmatpush1.msra.mxu0 0.0
        %2078 = vmatprep.subr.mxu0 0.0
        %2079 = vmatpush1.msra.mxu0 0.0
        %2080 = vmatprep.subr.mxu0 0.0
        %2081 = vmatpush1.msra.mxu0 0.0
        %2082 = vmatprep.subr.mxu0 0.0
        %2083 = vmatpush1.msra.mxu0 0.0
        %2084 = vmatprep.subr.mxu0 0.0
        %2085 = vmatpush1.msra.mxu0 0.0
        %2086 = vmatprep.subr.mxu0 0.0
        %2087 = vmatpush1.msra.mxu0 0.0
        %2088 = vmatprep.subr.mxu0 0.0
        %2089 = vmatpush1.msra.mxu0 0.0
        %2090 = vmatprep.subr.mxu0 0.0
        %2091 = vmatpush1.msra.mxu0 0.0
        %2092 = vmatprep.mubr.f32.mxu0 0.0
        %2093 = vmatmul.mubr.f32.gmra.mrb[0].mxu0 %v1723
        %v2094 = vpop.f32.mrb[0].mxu0
        %v2095 = vadd.f32 %v1995, %v2094
        %v2096 = vpop.f32.mrb[0].mxu0
        %2097 = vmatprep.mubr.f32.mxu0 0.0
        %2098 = vmatmul.mubr.f32.gmra.mrb[0].mxu0 %v1725
        %v2099 = vpop.f32.mrb[0].mxu0
        %v2100 = vadd.f32 %v2000, %v2099
        %v2101 = vpop.f32.mrb[0].mxu0
        %2102 = vmatprep.mubr.f32.mxu0 0.0
        %2103 = vmatmul.mubr.f32.gmra.mrb[0].mxu0 %v1727
        %v2104 = vpop.f32.mrb[0].mxu0
        %v2105 = vadd.f32 %v2005, %v2104
        %v2106 = vpop.f32.mrb[0].mxu0
        %2107 = vmatprep.mubr.f32.mxu0 0.0
        %2108 = vmatmul.mubr.f32.gmra.mrb[0].mxu0 %v1729
        %v2109 = vpop.f32.mrb[0].mxu0
        %v2110 = vadd.f32 %v2010, %v2109
        %v2111 = vpop.f32.mrb[0].mxu0
        %2112 = vmatprep.mubr.f32.mxu0 0.0
        %2113 = vmatmul.mubr.f32.gmra.mrb[0].mxu0 %v1731
        %v2114 = vpop.f32.mrb[0].mxu0
        %v2115 = vadd.f32 %v2015, %v2114
        %v2116 = vpop.f32.mrb[0].mxu0
        %2117 = vmatprep.mubr.f32.mxu0 0.0
        %2118 = vmatmul.mubr.f32.gmra.mrb[0].mxu0 %v1733
        %v2119 = vpop.f32.mrb[0].mxu0
        %v2120 = vadd.f32 %v2020, %v2119
        %v2121 = vpop.f32.mrb[0].mxu0
        %2122 = vmatprep.mubr.f32.mxu0 0.0
        %2123 = vmatmul.mubr.f32.gmra.mrb[0].mxu0 %v1732
        %v2124 = vpop.f32.mrb[0].mxu0
        %v2125 = vadd.f32 %v2025, %v2124
        %v2126 = vpop.f32.mrb[0].mxu0
        %2127 = vdwg.mxu0
        %v2128 = vtanh.pop %v2095
        %v2129 = vtanh.pop %v2100
        %v2130 = vtanh.pop %v2105
        %v2131 = vtanh.pop %v2110
        %v2132 = vtanh.pop %v2115
        %v2133 = vtanh.pop %v2120
        %v2134 = vtanh.pop %v2125
        %s2135 = ssub.s32 20, %s568
        %v2136 = vstv %s2135
        %vm2137 = vcmp.lt.s32.totalorder %v1093, %v2136
        %vm2138 = vcmp.lt.s32.totalorder %v1094, %v2136
        %vm2139 = vcmp.lt.s32.totalorder %v1095, %v2136
        %vm2140 = vcmp.lt.s32.totalorder %v1096, %v2136
        %vm2141 = vcmp.lt.s32.totalorder %v1097, %v2136
        %vm2142 = vcmp.lt.s32.totalorder %v1098, %v2136
        %vm2143 = vcmp.lt.s32.totalorder %v1099, %v2136
        %v2144 = vsel %vm2137, 1, 0
        %v2145 = vsel %vm2138, 1, 0
        %v2146 = vsel %vm2139, 1, 0
        %v2147 = vsel %vm2140, 1, 0
        %v2148 = vsel %vm2141, 1, 0
        %v2149 = vsel %vm2142, 1, 0
        %v2150 = vsel %vm2143, 1, 0
        %vm2151 = vcmp.eq.s32.totalorder %v2144, 1
        %vm2152 = vcmp.eq.s32.totalorder %v2145, 1
        %vm2153 = vcmp.eq.s32.totalorder %v2146, 1
        %vm2154 = vcmp.eq.s32.totalorder %v2147, 1
        %vm2155 = vcmp.eq.s32.totalorder %v2148, 1
        %vm2156 = vcmp.eq.s32.totalorder %v2149, 1
        %vm2157 = vcmp.eq.s32.totalorder %v2150, 1
        %v2158 = vsel %vm2151, 0.0, %v2128
        %v2159 = vsel %vm2152, 0.0, %v2129
        %v2160 = vsel %vm2153, 0.0, %v2130
        %v2161 = vsel %vm2154, 0.0, %v2131
        %v2162 = vsel %vm2155, 0.0, %v2132
        %v2163 = vsel %vm2156, 0.0, %v2133
        %v2164 = vsel %vm2157, 0.0, %v2134
        %v2172 = vrot.slane %v2158, 1
        %v2173 = vrot.slane %v2159, 1
        %v2174 = vsel %vm585, %v2172, %v2173
        %v2175 = vrot.slane %v2160, 1
        %v2176 = vsel %vm585, %v2173, %v2175
        %v2177 = vrot.slane %v2161, 1
        %v2178 = vsel %vm585, %v2175, %v2177
        %v2179 = vrot.slane %v2162, 1
        %v2180 = vsel %vm585, %v2177, %v2179
        %v2181 = vrot.slane %v2163, 1
        %v2182 = vsel %vm585, %v2179, %v2181
        %v2183 = vrot.slane %v2164, 1
        %v2184 = vsel %vm585, %v2181, %v2183
        %v2191 = vrot.slane %v2158, 2
        %v2192 = vrot.slane %v2159, 2
        %v2193 = vsel %vm609, %v2191, %v2192
        %v2194 = vrot.slane %v2160, 2
        %v2195 = vsel %vm609, %v2192, %v2194
        %v2196 = vrot.slane %v2161, 2
        %v2197 = vsel %vm609, %v2194, %v2196
        %v2198 = vrot.slane %v2162, 2
        %v2199 = vsel %vm609, %v2196, %v2198
        %v2200 = vrot.slane %v2163, 2
        %v2201 = vsel %vm609, %v2198, %v2200
        %v2202 = vrot.slane %v2164, 2
        %v2203 = vsel %vm609, %v2200, %v2202
        %v2210 = vrot.slane %v2158, 3
        %v2211 = vrot.slane %v2159, 3
        %v2212 = vsel %vm633, %v2210, %v2211
        %v2213 = vrot.slane %v2160, 3
        %v2214 = vsel %vm633, %v2211, %v2213
        %v2215 = vrot.slane %v2161, 3
        %v2216 = vsel %vm633, %v2213, %v2215
        %v2217 = vrot.slane %v2162, 3
        %v2218 = vsel %vm633, %v2215, %v2217
        %v2219 = vrot.slane %v2163, 3
        %v2220 = vsel %vm633, %v2217, %v2219
        %v2221 = vrot.slane %v2164, 3
        %v2222 = vsel %vm633, %v2219, %v2221
        %v2229 = vrot.slane %v2158, 4
        %v2230 = vrot.slane %v2159, 4
        %v2231 = vsel %vm657, %v2229, %v2230
        %v2232 = vrot.slane %v2160, 4
        %v2233 = vsel %vm657, %v2230, %v2232
        %v2234 = vrot.slane %v2161, 4
        %v2235 = vsel %vm657, %v2232, %v2234
        %v2236 = vrot.slane %v2162, 4
        %v2237 = vsel %vm657, %v2234, %v2236
        %v2238 = vrot.slane %v2163, 4
        %v2239 = vsel %vm657, %v2236, %v2238
        %v2240 = vrot.slane %v2164, 4
        %v2241 = vsel %vm657, %v2238, %v2240
        %v2248 = vld [vmem:[#allocation11] sm:$0xff]
        %v2249 = vld [vmem:[#allocation11 + $0x8] sm:$0xff]
        %v2250 = vld [vmem:[#allocation11 + $0x10] sm:$0xff]
        %v2251 = vld [vmem:[#allocation11 + $0x18] sm:$0xff]
        %v2252 = vld [vmem:[#allocation11 + $0x20] sm:$0xff]
        %v2253 = vld [vmem:[#allocation11 + $0x28] sm:$0xff]
        %v2254 = vld [vmem:[#allocation11 + $0x30] sm:$0xff]
        %v2255 = vld [vmem:[#allocation11 + $0x38] sm:$0xff]
        %v2256 = vld [vmem:[#allocation11 + $0x40] sm:$0xff]
        %v2257 = vld [vmem:[#allocation11 + $0x48] sm:$0xff]
        %v2258 = vld [vmem:[#allocation11 + $0x50] sm:$0xff]
        %v2259 = vld [vmem:[#allocation11 + $0x58] sm:$0xff]
        %v2260 = vld [vmem:[#allocation11 + $0x60] sm:$0xff]
        %v2261 = vld [vmem:[#allocation11 + $0x68] sm:$0xff]
        %v2262 = vld [vmem:[#allocation11 + $0x70] sm:$0xff]
        %v2263 = vld [vmem:[#allocation11 + $0x78] sm:$0xff]
        %v2264 = vld [vmem:[#allocation11 + $0x80] sm:$0xff]
        %v2265 = vld [vmem:[#allocation11 + $0x88] sm:$0xff]
        %v2266 = vld [vmem:[#allocation11 + $0x90] sm:$0xff]
        %v2267 = vld [vmem:[#allocation11 + $0x98] sm:$0xff]
        %v2268 = vld [vmem:[#allocation11 + $0xa0] sm:$0xff]
        %v2269 = vld [vmem:[#allocation11 + $0xa8] sm:$0xff]
        %v2270 = vld [vmem:[#allocation11 + $0xb0] sm:$0xff]
        %v2271 = vld [vmem:[#allocation11 + $0xb8] sm:$0xff]
        %v2272 = vld [vmem:[#allocation11 + $0xc0] sm:$0xff]
        %v2273 = vld [vmem:[#allocation11 + $0xc8] sm:$0xff]
        %v2274 = vld [vmem:[#allocation11 + $0xd0] sm:$0xff]
        %v2275 = vld [vmem:[#allocation11 + $0xd8] sm:$0xff]
        %v2276 = vld [vmem:[#allocation11 + $0xe0] sm:$0xff]
        %v2277 = vld [vmem:[#allocation11 + $0xe8] sm:$0xff]
        %v2278 = vld [vmem:[#allocation11 + $0xf0] sm:$0xff]
        %v2279 = vld [vmem:[#allocation11 + $0xf8] sm:$0xff]
        %v2280 = vld [vmem:[#allocation11 + $0x100] sm:$0xff]
        %v2281 = vld [vmem:[#allocation11 + $0x108] sm:$0xff]
        %v2282 = vld [vmem:[#allocation11 + $0x110] sm:$0xff]
        %v2283 = vld [vmem:[#allocation11 + $0x118] sm:$0xff]
        %v2284 = vld [vmem:[#allocation11 + $0x120] sm:$0xff]
        %v2285 = vld [vmem:[#allocation11 + $0x128] sm:$0xff]
        %v2286 = vld [vmem:[#allocation11 + $0x130] sm:$0xff]
        %v2287 = vld [vmem:[#allocation11 + $0x138] sm:$0xff]
        %v2288 = vld [vmem:[#allocation11 + $0x140] sm:$0xff]
        %v2289 = vld [vmem:[#allocation11 + $0x148] sm:$0xff]
        %v2290 = vld [vmem:[#allocation11 + $0x150] sm:$0xff]
        %v2291 = vld [vmem:[#allocation11 + $0x158] sm:$0xff]
        %v2292 = vld [vmem:[#allocation11 + $0x160] sm:$0xff]
        %v2293 = vld [vmem:[#allocation11 + $0x168] sm:$0xff]
        %v2294 = vld [vmem:[#allocation11 + $0x170] sm:$0xff]
        %v2295 = vld [vmem:[#allocation11 + $0x178] sm:$0xff]
        %v2296 = vld [vmem:[#allocation11 + $0x180] sm:$0xff]
        %v2297 = vld [vmem:[#allocation11 + $0x188] sm:$0xff]
        %v2298 = vld [vmem:[#allocation11 + $0x190] sm:$0xff]
        %v2299 = vld [vmem:[#allocation11 + $0x198] sm:$0xff]
        %v2300 = vld [vmem:[#allocation11 + $0x1a0] sm:$0xff]
        %v2301 = vld [vmem:[#allocation11 + $0x1a8] sm:$0xff]
        %v2302 = vld [vmem:[#allocation11 + $0x1b0] sm:$0xff]
        %v2303 = vld [vmem:[#allocation11 + $0x1b8] sm:$0xff]
        %v2304 = vld [vmem:[#allocation11 + $0x1c0] sm:$0xff]
        %v2305 = vld [vmem:[#allocation11 + $0x1c8] sm:$0xff]
        %v2306 = vld [vmem:[#allocation11 + $0x1d0] sm:$0xff]
        %v2307 = vld [vmem:[#allocation11 + $0x1d8] sm:$0xff]
        %v2308 = vld [vmem:[#allocation11 + $0x1e0] sm:$0xff]
        %v2309 = vld [vmem:[#allocation11 + $0x1e8] sm:$0xff]
        %v2310 = vld [vmem:[#allocation11 + $0x1f0] sm:$0xff]
        %v2311 = vld [vmem:[#allocation11 + $0x1f8] sm:$0xff]
        %v2312 = vld [vmem:[#allocation11 + $0x200] sm:$0xff]
        %v2313 = vld [vmem:[#allocation11 + $0x208] sm:$0xff]
        %v2314 = vld [vmem:[#allocation11 + $0x210] sm:$0xff]
        %v2315 = vld [vmem:[#allocation11 + $0x218] sm:$0xff]
        %v2316 = vld [vmem:[#allocation11 + $0x220] sm:$0xff]
        %v2317 = vld [vmem:[#allocation11 + $0x228] sm:$0xff]
        %v2318 = vld [vmem:[#allocation11 + $0x230] sm:$0xff]
        %v2319 = vld [vmem:[#allocation11 + $0x238] sm:$0xff]
        %v2320 = vld [vmem:[#allocation11 + $0x240] sm:$0xff]
        %v2321 = vld [vmem:[#allocation11 + $0x248] sm:$0xff]
        %v2322 = vld [vmem:[#allocation11 + $0x250] sm:$0xff]
        %v2323 = vld [vmem:[#allocation11 + $0x258] sm:$0xff]
        %v2324 = vld [vmem:[#allocation11 + $0x260] sm:$0xff]
        %v2325 = vld [vmem:[#allocation11 + $0x268] sm:$0xff]
        %v2326 = vld [vmem:[#allocation11 + $0x270] sm:$0xff]
        %v2327 = vld [vmem:[#allocation11 + $0x278] sm:$0xff]
        %v2328 = vld [vmem:[%s10] sm:$0x1]
        %v2330 = vlaneseq
        %v2331 = vshrl.u32 %v2330, 7
        %v2332 = vsub.s32 0, %v2331
        %v2333 = vrot.slane %v2328, %v2332
        %2335 = vmatprep.subr.mxu0 0.0
        %2336 = vmatpush1.msra.mxu0 %v2248
        %2337 = vmatprep.subr.mxu0 0.0
        %2338 = vmatpush1.msra.mxu0 %v2249
        %2339 = vmatprep.subr.mxu0 0.0
        %2340 = vmatpush1.msra.mxu0 %v2250
        %2341 = vmatprep.subr.mxu0 0.0
        %2342 = vmatpush1.msra.mxu0 %v2251
        %2343 = vmatprep.subr.mxu0 0.0
        %2344 = vmatpush1.msra.mxu0 %v2252
        %2345 = vmatprep.subr.mxu0 0.0
        %2346 = vmatpush1.msra.mxu0 %v2253
        %2347 = vmatprep.subr.mxu0 0.0
        %2348 = vmatpush1.msra.mxu0 %v2254
        %2349 = vmatprep.subr.mxu0 0.0
        %2350 = vmatpush1.msra.mxu0 %v2255
        %2351 = vmatprep.subr.mxu0 0.0
        %2352 = vmatpush1.msra.mxu0 %v2256
        %2353 = vmatprep.subr.mxu0 0.0
        %2354 = vmatpush1.msra.mxu0 %v2257
        %2355 = vmatprep.subr.mxu0 0.0
        %2356 = vmatpush1.msra.mxu0 %v2258
        %2357 = vmatprep.subr.mxu0 0.0
        %2358 = vmatpush1.msra.mxu0 %v2259
        %2359 = vmatprep.subr.mxu0 0.0
        %2360 = vmatpush1.msra.mxu0 %v2260
        %2361 = vmatprep.subr.mxu0 0.0
        %2362 = vmatpush1.msra.mxu0 %v2261
        %2363 = vmatprep.subr.mxu0 0.0
        %2364 = vmatpush1.msra.mxu0 %v2262
        %2365 = vmatprep.subr.mxu0 0.0
        %2366 = vmatpush1.msra.mxu0 %v2263
        %2367 = vmatprep.subr.mxu0 0.0
        %2368 = vmatpush1.msra.mxu0 %v2264
        %2369 = vmatprep.subr.mxu0 0.0
        %2370 = vmatpush1.msra.mxu0 %v2265
        %2371 = vmatprep.subr.mxu0 0.0
        %2372 = vmatpush1.msra.mxu0 %v2266
        %2373 = vmatprep.subr.mxu0 0.0
        %2374 = vmatpush1.msra.mxu0 %v2267
        %2375 = vmatprep.subr.mxu0 0.0
        %2376 = vmatpush1.msra.mxu0 %v2268
        %2377 = vmatprep.subr.mxu0 0.0
        %2378 = vmatpush1.msra.mxu0 %v2269
        %2379 = vmatprep.subr.mxu0 0.0
        %2380 = vmatpush1.msra.mxu0 %v2270
        %2381 = vmatprep.subr.mxu0 0.0
        %2382 = vmatpush1.msra.mxu0 %v2271
        %2383 = vmatprep.subr.mxu0 0.0
        %2384 = vmatpush1.msra.mxu0 %v2272
        %2385 = vmatprep.subr.mxu0 0.0
        %2386 = vmatpush1.msra.mxu0 %v2273
        %2387 = vmatprep.subr.mxu0 0.0
        %2388 = vmatpush1.msra.mxu0 %v2274
        %2389 = vmatprep.subr.mxu0 0.0
        %2390 = vmatpush1.msra.mxu0 %v2275
        %2391 = vmatprep.subr.mxu0 0.0
        %2392 = vmatpush1.msra.mxu0 %v2276
        %2393 = vmatprep.subr.mxu0 0.0
        %2394 = vmatpush1.msra.mxu0 %v2277
        %2395 = vmatprep.subr.mxu0 0.0
        %2396 = vmatpush1.msra.mxu0 %v2278
        %2397 = vmatprep.subr.mxu0 0.0
        %2398 = vmatpush1.msra.mxu0 %v2279
        %2399 = vmatprep.mubr.f32.mxu0 %v2174
        %2400 = vmatmul.mubr.f32.gmra.mrb[0].mxu0 %v2158
        %v2401 = vpop.f32.mrb[0].mxu0
        %v2402 = vadd.f32 %v2333, %v2401
        %v2403 = vpop.f32.mrb[0].mxu0
        %2404 = vmatprep.mubr.f32.mxu0 %v2176
        %2405 = vmatmul.mubr.f32.gmra.mrb[0].mxu0 %v2159
        %v2406 = vpop.f32.mrb[0].mxu0
        %v2407 = vadd.f32 %v2333, %v2406
        %v2408 = vpop.f32.mrb[0].mxu0
        %2409 = vmatprep.mubr.f32.mxu0 %v2178
        %2410 = vmatmul.mubr.f32.gmra.mrb[0].mxu0 %v2160
        %v2411 = vpop.f32.mrb[0].mxu0
        %v2412 = vadd.f32 %v2333, %v2411
        %v2413 = vpop.f32.mrb[0].mxu0
        %2414 = vmatprep.mubr.f32.mxu0 %v2180
        %2415 = vmatmul.mubr.f32.gmra.mrb[0].mxu0 %v2161
        %v2416 = vpop.f32.mrb[0].mxu0
        %v2417 = vadd.f32 %v2333, %v2416
        %v2418 = vpop.f32.mrb[0].mxu0
        %2419 = vmatprep.mubr.f32.mxu0 %v2182
        %2420 = vmatmul.mubr.f32.gmra.mrb[0].mxu0 %v2162
        %v2421 = vpop.f32.mrb[0].mxu0
        %v2422 = vadd.f32 %v2333, %v2421
        %v2423 = vpop.f32.mrb[0].mxu0
        %2424 = vmatprep.mubr.f32.mxu0 %v2184
        %2425 = vmatmul.mubr.f32.gmra.mrb[0].mxu0 %v2163
        %v2426 = vpop.f32.mrb[0].mxu0
        %v2427 = vadd.f32 %v2333, %v2426
        %v2428 = vpop.f32.mrb[0].mxu0
        %2429 = vdwg.mxu0
        %2430 = vmatprep.subr.mxu0 0.0
        %2431 = vmatpush1.msra.mxu0 %v2280
        %2432 = vmatprep.subr.mxu0 0.0
        %2433 = vmatpush1.msra.mxu0 %v2281
        %2434 = vmatprep.subr.mxu0 0.0
        %2435 = vmatpush1.msra.mxu0 %v2282
        %2436 = vmatprep.subr.mxu0 0.0
        %2437 = vmatpush1.msra.mxu0 %v2283
        %2438 = vmatprep.subr.mxu0 0.0
        %2439 = vmatpush1.msra.mxu0 %v2284
        %2440 = vmatprep.subr.mxu0 0.0
        %2441 = vmatpush1.msra.mxu0 %v2285
        %2442 = vmatprep.subr.mxu0 0.0
        %2443 = vmatpush1.msra.mxu0 %v2286
        %2444 = vmatprep.subr.mxu0 0.0
        %2445 = vmatpush1.msra.mxu0 %v2287
        %2446 = vmatprep.subr.mxu0 0.0
        %2447 = vmatpush1.msra.mxu0 %v2288
        %2448 = vmatprep.subr.mxu0 0.0
        %2449 = vmatpush1.msra.mxu0 %v2289
        %2450 = vmatprep.subr.mxu0 0.0
        %2451 = vmatpush1.msra.mxu0 %v2290
        %2452 = vmatprep.subr.mxu0 0.0
        %2453 = vmatpush1.msra.mxu0 %v2291
        %2454 = vmatprep.subr.mxu0 0.0
        %2455 = vmatpush1.msra.mxu0 %v2292
        %2456 = vmatprep.subr.mxu0 0.0
        %2457 = vmatpush1.msra.mxu0 %v2293
        %2458 = vmatprep.subr.mxu0 0.0
        %2459 = vmatpush1.msra.mxu0 %v2294
        %2460 = vmatprep.subr.mxu0 0.0
        %2461 = vmatpush1.msra.mxu0 %v2295
        %2462 = vmatprep.subr.mxu0 0.0
        %2463 = vmatpush1.msra.mxu0 %v2296
        %2464 = vmatprep.subr.mxu0 0.0
        %2465 = vmatpush1.msra.mxu0 %v2297
        %2466 = vmatprep.subr.mxu0 0.0
        %2467 = vmatpush1.msra.mxu0 %v2298
        %2468 = vmatprep.subr.mxu0 0.0
        %2469 = vmatpush1.msra.mxu0 %v2299
        %2470 = vmatprep.subr.mxu0 0.0
        %2471 = vmatpush1.msra.mxu0 %v2300
        %2472 = vmatprep.subr.mxu0 0.0
        %2473 = vmatpush1.msra.mxu0 %v2301
        %2474 = vmatprep.subr.mxu0 0.0
        %2475 = vmatpush1.msra.mxu0 %v2302
        %2476 = vmatprep.subr.mxu0 0.0
        %2477 = vmatpush1.msra.mxu0 %v2303
        %2478 = vmatprep.subr.mxu0 0.0
        %2479 = vmatpush1.msra.mxu0 %v2304
        %2480 = vmatprep.subr.mxu0 0.0
        %2481 = vmatpush1.msra.mxu0 %v2305
        %2482 = vmatprep.subr.mxu0 0.0
        %2483 = vmatpush1.msra.mxu0 %v2306
        %2484 = vmatprep.subr.mxu0 0.0
        %2485 = vmatpush1.msra.mxu0 %v2307
        %2486 = vmatprep.subr.mxu0 0.0
        %2487 = vmatpush1.msra.mxu0 %v2308
        %2488 = vmatprep.subr.mxu0 0.0
        %2489 = vmatpush1.msra.mxu0 %v2309
        %2490 = vmatprep.subr.mxu0 0.0
        %2491 = vmatpush1.msra.mxu0 %v2310
        %2492 = vmatprep.subr.mxu0 0.0
        %2493 = vmatpush1.msra.mxu0 %v2311
        %2494 = vmatprep.mubr.f32.mxu0 %v2212
        %2495 = vmatmul.mubr.f32.gmra.mrb[0].mxu0 %v2193
        %v2496 = vpop.f32.mrb[0].mxu0
        %v2497 = vadd.f32 %v2402, %v2496
        %v2498 = vpop.f32.mrb[0].mxu0
        %2499 = vmatprep.mubr.f32.mxu0 %v2214
        %2500 = vmatmul.mubr.f32.gmra.mrb[0].mxu0 %v2195
        %v2501 = vpop.f32.mrb[0].mxu0
        %v2502 = vadd.f32 %v2407, %v2501
        %v2503 = vpop.f32.mrb[0].mxu0
        %2504 = vmatprep.mubr.f32.mxu0 %v2216
        %2505 = vmatmul.mubr.f32.gmra.mrb[0].mxu0 %v2197
        %v2506 = vpop.f32.mrb[0].mxu0
        %v2507 = vadd.f32 %v2412, %v2506
        %v2508 = vpop.f32.mrb[0].mxu0
        %2509 = vmatprep.mubr.f32.mxu0 %v2218
        %2510 = vmatmul.mubr.f32.gmra.mrb[0].mxu0 %v2199
        %v2511 = vpop.f32.mrb[0].mxu0
        %v2512 = vadd.f32 %v2417, %v2511
        %v2513 = vpop.f32.mrb[0].mxu0
        %2514 = vmatprep.mubr.f32.mxu0 %v2220
        %2515 = vmatmul.mubr.f32.gmra.mrb[0].mxu0 %v2201
        %v2516 = vpop.f32.mrb[0].mxu0
        %v2517 = vadd.f32 %v2422, %v2516
        %v2518 = vpop.f32.mrb[0].mxu0
        %2519 = vmatprep.mubr.f32.mxu0 %v2222
        %2520 = vmatmul.mubr.f32.gmra.mrb[0].mxu0 %v2203
        %v2521 = vpop.f32.mrb[0].mxu0
        %v2522 = vadd.f32 %v2427, %v2521
        %v2523 = vpop.f32.mrb[0].mxu0
        %2524 = vdwg.mxu0
        %2525 = vmatprep.subr.mxu0 0.0
        %2526 = vmatpush1.msra.mxu0 %v2312
        %2527 = vmatprep.subr.mxu0 0.0
        %2528 = vmatpush1.msra.mxu0 %v2313
        %2529 = vmatprep.subr.mxu0 0.0
        %2530 = vmatpush1.msra.mxu0 %v2314
        %2531 = vmatprep.subr.mxu0 0.0
        %2532 = vmatpush1.msra.mxu0 %v2315
        %2533 = vmatprep.subr.mxu0 0.0
        %2534 = vmatpush1.msra.mxu0 %v2316
        %2535 = vmatprep.subr.mxu0 0.0
        %2536 = vmatpush1.msra.mxu0 %v2317
        %2537 = vmatprep.subr.mxu0 0.0
        %2538 = vmatpush1.msra.mxu0 %v2318
        %2539 = vmatprep.subr.mxu0 0.0
        %2540 = vmatpush1.msra.mxu0 %v2319
        %2541 = vmatprep.subr.mxu0 0.0
        %2542 = vmatpush1.msra.mxu0 %v2320
        %2543 = vmatprep.subr.mxu0 0.0
        %2544 = vmatpush1.msra.mxu0 %v2321
        %2545 = vmatprep.subr.mxu0 0.0
        %2546 = vmatpush1.msra.mxu0 %v2322
        %2547 = vmatprep.subr.mxu0 0.0
        %2548 = vmatpush1.msra.mxu0 %v2323
        %2549 = vmatprep.subr.mxu0 0.0
        %2550 = vmatpush1.msra.mxu0 %v2324
        %2551 = vmatprep.subr.mxu0 0.0
        %2552 = vmatpush1.msra.mxu0 %v2325
        %2553 = vmatprep.subr.mxu0 0.0
        %2554 = vmatpush1.msra.mxu0 %v2326
        %2555 = vmatprep.subr.mxu0 0.0
        %2556 = vmatpush1.msra.mxu0 %v2327
        %2557 = vmatprep.subr.mxu0 0.0
        %2558 = vmatpush1.msra.mxu0 0.0
        %2559 = vmatprep.subr.mxu0 0.0
        %2560 = vmatpush1.msra.mxu0 0.0
        %2561 = vmatprep.subr.mxu0 0.0
        %2562 = vmatpush1.msra.mxu0 0.0
        %2563 = vmatprep.subr.mxu0 0.0
        %2564 = vmatpush1.msra.mxu0 0.0
        %2565 = vmatprep.subr.mxu0 0.0
        %2566 = vmatpush1.msra.mxu0 0.0
        %2567 = vmatprep.subr.mxu0 0.0
        %2568 = vmatpush1.msra.mxu0 0.0
        %2569 = vmatprep.subr.mxu0 0.0
        %2570 = vmatpush1.msra.mxu0 0.0
        %2571 = vmatprep.subr.mxu0 0.0
        %2572 = vmatpush1.msra.mxu0 0.0
        %2573 = vmatprep.subr.mxu0 0.0
        %2574 = vmatpush1.msra.mxu0 0.0
        %2575 = vmatprep.subr.mxu0 0.0
        %2576 = vmatpush1.msra.mxu0 0.0
        %2577 = vmatprep.subr.mxu0 0.0
        %2578 = vmatpush1.msra.mxu0 0.0
        %2579 = vmatprep.subr.mxu0 0.0
        %2580 = vmatpush1.msra.mxu0 0.0
        %2581 = vmatprep.subr.mxu0 0.0
        %2582 = vmatpush1.msra.mxu0 0.0
        %2583 = vmatprep.subr.mxu0 0.0
        %2584 = vmatpush1.msra.mxu0 0.0
        %2585 = vmatprep.subr.mxu0 0.0
        %2586 = vmatpush1.msra.mxu0 0.0
        %2587 = vmatprep.subr.mxu0 0.0
        %2588 = vmatpush1.msra.mxu0 0.0
        %2589 = vmatprep.mubr.f32.mxu0 0.0
        %2590 = vmatmul.mubr.f32.gmra.mrb[0].mxu0 %v2231
        %v2591 = vpop.f32.mrb[0].mxu0
        %v2592 = vadd.f32 %v2497, %v2591
        %v2593 = vpop.f32.mrb[0].mxu0
        %2594 = vmatprep.mubr.f32.mxu0 0.0
        %2595 = vmatmul.mubr.f32.gmra.mrb[0].mxu0 %v2233
        %v2596 = vpop.f32.mrb[0].mxu0
        %v2597 = vadd.f32 %v2502, %v2596
        %v2598 = vpop.f32.mrb[0].mxu0
        %2599 = vmatprep.mubr.f32.mxu0 0.0
        %2600 = vmatmul.mubr.f32.gmra.mrb[0].mxu0 %v2235
        %v2601 = vpop.f32.mrb[0].mxu0
        %v2602 = vadd.f32 %v2507, %v2601
        %v2603 = vpop.f32.mrb[0].mxu0
        %2604 = vmatprep.mubr.f32.mxu0 0.0
        %2605 = vmatmul.mubr.f32.gmra.mrb[0].mxu0 %v2237
        %v2606 = vpop.f32.mrb[0].mxu0
        %v2607 = vadd.f32 %v2512, %v2606
        %v2608 = vpop.f32.mrb[0].mxu0
        %2609 = vmatprep.mubr.f32.mxu0 0.0
        %2610 = vmatmul.mubr.f32.gmra.mrb[0].mxu0 %v2239
        %v2611 = vpop.f32.mrb[0].mxu0
        %v2612 = vadd.f32 %v2517, %v2611
        %v2613 = vpop.f32.mrb[0].mxu0
        %2614 = vmatprep.mubr.f32.mxu0 0.0
        %2615 = vmatmul.mubr.f32.gmra.mrb[0].mxu0 %v2241
        %v2616 = vpop.f32.mrb[0].mxu0
        %v2617 = vadd.f32 %v2522, %v2616
        %v2618 = vpop.f32.mrb[0].mxu0
        %2619 = vdwg.mxu0
        %v2620 = vtanh.pop %v2592
        %v2621 = vtanh.pop %v2597
        %v2622 = vtanh.pop %v2602
        %v2623 = vtanh.pop %v2607
        %v2624 = vtanh.pop %v2612
        %v2625 = vtanh.pop %v2617
        %s2626 = ssub.s32 16, %s568
        %v2627 = vstv %s2626
        %vm2628 = vcmp.lt.s32.totalorder %v1093, %v2627
        %vm2629 = vcmp.lt.s32.totalorder %v1094, %v2627
        %vm2630 = vcmp.lt.s32.totalorder %v1095, %v2627
        %vm2631 = vcmp.lt.s32.totalorder %v1096, %v2627
        %vm2632 = vcmp.lt.s32.totalorder %v1097, %v2627
        %vm2633 = vcmp.lt.s32.totalorder %v1098, %v2627
        %v2634 = vsel %vm2628, 1, 0
        %v2635 = vsel %vm2629, 1, 0
        %v2636 = vsel %vm2630, 1, 0
        %v2637 = vsel %vm2631, 1, 0
        %v2638 = vsel %vm2632, 1, 0
        %v2639 = vsel %vm2633, 1, 0
        %vm2640 = vcmp.eq.s32.totalorder %v2634, 1
        %vm2641 = vcmp.eq.s32.totalorder %v2635, 1
        %vm2642 = vcmp.eq.s32.totalorder %v2636, 1
        %vm2643 = vcmp.eq.s32.totalorder %v2637, 1
        %vm2644 = vcmp.eq.s32.totalorder %v2638, 1
        %vm2645 = vcmp.eq.s32.totalorder %v2639, 1
        %v2646 = vsel %vm2640, 0.0, %v2620
        %v2647 = vsel %vm2641, 0.0, %v2621
        %v2648 = vsel %vm2642, 0.0, %v2622
        %v2649 = vsel %vm2643, 0.0, %v2623
        %v2650 = vsel %vm2644, 0.0, %v2624
        %v2651 = vsel %vm2645, 0.0, %v2625
        %v2658 = vrot.slane %v2646, 1
        %v2659 = vrot.slane %v2647, 1
        %v2660 = vsel %vm585, %v2658, %v2659
        %v2661 = vrot.slane %v2648, 1
        %v2662 = vsel %vm585, %v2659, %v2661
        %v2663 = vrot.slane %v2649, 1
        %v2664 = vsel %vm585, %v2661, %v2663
        %v2665 = vrot.slane %v2650, 1
        %v2666 = vsel %vm585, %v2663, %v2665
        %v2667 = vrot.slane %v2651, 1
        %v2668 = vsel %vm585, %v2665, %v2667
        %v2675 = vrot.slane %v2646, 2
        %v2676 = vrot.slane %v2647, 2
        %v2677 = vsel %vm609, %v2675, %v2676
        %v2678 = vrot.slane %v2648, 2
        %v2679 = vsel %vm609, %v2676, %v2678
        %v2680 = vrot.slane %v2649, 2
        %v2681 = vsel %vm609, %v2678, %v2680
        %v2682 = vrot.slane %v2650, 2
        %v2683 = vsel %vm609, %v2680, %v2682
        %v2684 = vrot.slane %v2651, 2
        %v2685 = vsel %vm609, %v2682, %v2684
        %v2692 = vrot.slane %v2646, 3
        %v2693 = vrot.slane %v2647, 3
        %v2694 = vsel %vm633, %v2692, %v2693
        %v2695 = vrot.slane %v2648, 3
        %v2696 = vsel %vm633, %v2693, %v2695
        %v2697 = vrot.slane %v2649, 3
        %v2698 = vsel %vm633, %v2695, %v2697
        %v2699 = vrot.slane %v2650, 3
        %v2700 = vsel %vm633, %v2697, %v2699
        %v2701 = vrot.slane %v2651, 3
        %v2702 = vsel %vm633, %v2699, %v2701
        %v2709 = vrot.slane %v2646, 4
        %v2710 = vrot.slane %v2647, 4
        %v2711 = vsel %vm657, %v2709, %v2710
        %v2712 = vrot.slane %v2648, 4
        %v2713 = vsel %vm657, %v2710, %v2712
        %v2714 = vrot.slane %v2649, 4
        %v2715 = vsel %vm657, %v2712, %v2714
        %v2716 = vrot.slane %v2650, 4
        %v2717 = vsel %vm657, %v2714, %v2716
        %v2718 = vrot.slane %v2651, 4
        %v2719 = vsel %vm657, %v2716, %v2718
        %v2726 = vld [vmem:[#allocation13] sm:$0xff]
        %v2727 = vld [vmem:[#allocation13 + $0x8] sm:$0xff]
        %v2728 = vld [vmem:[#allocation13 + $0x10] sm:$0xff]
        %v2729 = vld [vmem:[#allocation13 + $0x18] sm:$0xff]
        %v2730 = vld [vmem:[#allocation13 + $0x20] sm:$0xff]
        %v2731 = vld [vmem:[#allocation13 + $0x28] sm:$0xff]
        %v2732 = vld [vmem:[#allocation13 + $0x30] sm:$0xff]
        %v2733 = vld [vmem:[#allocation13 + $0x38] sm:$0xff]
        %v2734 = vld [vmem:[#allocation13 + $0x40] sm:$0xff]
        %v2735 = vld [vmem:[#allocation13 + $0x48] sm:$0xff]
        %v2736 = vld [vmem:[#allocation13 + $0x50] sm:$0xff]
        %v2737 = vld [vmem:[#allocation13 + $0x58] sm:$0xff]
        %v2738 = vld [vmem:[#allocation13 + $0x60] sm:$0xff]
        %v2739 = vld [vmem:[#allocation13 + $0x68] sm:$0xff]
        %v2740 = vld [vmem:[#allocation13 + $0x70] sm:$0xff]
        %v2741 = vld [vmem:[#allocation13 + $0x78] sm:$0xff]
        %v2742 = vld [vmem:[#allocation13 + $0x80] sm:$0xff]
        %v2743 = vld [vmem:[#allocation13 + $0x88] sm:$0xff]
        %v2744 = vld [vmem:[#allocation13 + $0x90] sm:$0xff]
        %v2745 = vld [vmem:[#allocation13 + $0x98] sm:$0xff]
        %v2746 = vld [vmem:[#allocation13 + $0xa0] sm:$0xff]
        %v2747 = vld [vmem:[#allocation13 + $0xa8] sm:$0xff]
        %v2748 = vld [vmem:[#allocation13 + $0xb0] sm:$0xff]
        %v2749 = vld [vmem:[#allocation13 + $0xb8] sm:$0xff]
        %v2750 = vld [vmem:[#allocation13 + $0xc0] sm:$0xff]
        %v2751 = vld [vmem:[#allocation13 + $0xc8] sm:$0xff]
        %v2752 = vld [vmem:[#allocation13 + $0xd0] sm:$0xff]
        %v2753 = vld [vmem:[#allocation13 + $0xd8] sm:$0xff]
        %v2754 = vld [vmem:[#allocation13 + $0xe0] sm:$0xff]
        %v2755 = vld [vmem:[#allocation13 + $0xe8] sm:$0xff]
        %v2756 = vld [vmem:[#allocation13 + $0xf0] sm:$0xff]
        %v2757 = vld [vmem:[#allocation13 + $0xf8] sm:$0xff]
        %v2758 = vld [vmem:[#allocation13 + $0x100] sm:$0xff]
        %v2759 = vld [vmem:[#allocation13 + $0x108] sm:$0xff]
        %v2760 = vld [vmem:[#allocation13 + $0x110] sm:$0xff]
        %v2761 = vld [vmem:[#allocation13 + $0x118] sm:$0xff]
        %v2762 = vld [vmem:[#allocation13 + $0x120] sm:$0xff]
        %v2763 = vld [vmem:[#allocation13 + $0x128] sm:$0xff]
        %v2764 = vld [vmem:[#allocation13 + $0x130] sm:$0xff]
        %v2765 = vld [vmem:[#allocation13 + $0x138] sm:$0xff]
        %v2766 = vld [vmem:[#allocation13 + $0x140] sm:$0xff]
        %v2767 = vld [vmem:[#allocation13 + $0x148] sm:$0xff]
        %v2768 = vld [vmem:[#allocation13 + $0x150] sm:$0xff]
        %v2769 = vld [vmem:[#allocation13 + $0x158] sm:$0xff]
        %v2770 = vld [vmem:[#allocation13 + $0x160] sm:$0xff]
        %v2771 = vld [vmem:[#allocation13 + $0x168] sm:$0xff]
        %v2772 = vld [vmem:[#allocation13 + $0x170] sm:$0xff]
        %v2773 = vld [vmem:[#allocation13 + $0x178] sm:$0xff]
        %v2774 = vld [vmem:[#allocation13 + $0x180] sm:$0xff]
        %v2775 = vld [vmem:[#allocation13 + $0x188] sm:$0xff]
        %v2776 = vld [vmem:[#allocation13 + $0x190] sm:$0xff]
        %v2777 = vld [vmem:[#allocation13 + $0x198] sm:$0xff]
        %v2778 = vld [vmem:[#allocation13 + $0x1a0] sm:$0xff]
        %v2779 = vld [vmem:[#allocation13 + $0x1a8] sm:$0xff]
        %v2780 = vld [vmem:[#allocation13 + $0x1b0] sm:$0xff]
        %v2781 = vld [vmem:[#allocation13 + $0x1b8] sm:$0xff]
        %v2782 = vld [vmem:[#allocation13 + $0x1c0] sm:$0xff]
        %v2783 = vld [vmem:[#allocation13 + $0x1c8] sm:$0xff]
        %v2784 = vld [vmem:[#allocation13 + $0x1d0] sm:$0xff]
        %v2785 = vld [vmem:[#allocation13 + $0x1d8] sm:$0xff]
        %v2786 = vld [vmem:[#allocation13 + $0x1e0] sm:$0xff]
        %v2787 = vld [vmem:[#allocation13 + $0x1e8] sm:$0xff]
        %v2788 = vld [vmem:[#allocation13 + $0x1f0] sm:$0xff]
        %v2789 = vld [vmem:[#allocation13 + $0x1f8] sm:$0xff]
        %v2790 = vld [vmem:[#allocation13 + $0x200] sm:$0xff]
        %v2791 = vld [vmem:[#allocation13 + $0x208] sm:$0xff]
        %v2792 = vld [vmem:[#allocation13 + $0x210] sm:$0xff]
        %v2793 = vld [vmem:[#allocation13 + $0x218] sm:$0xff]
        %v2794 = vld [vmem:[#allocation13 + $0x220] sm:$0xff]
        %v2795 = vld [vmem:[#allocation13 + $0x228] sm:$0xff]
        %v2796 = vld [vmem:[#allocation13 + $0x230] sm:$0xff]
        %v2797 = vld [vmem:[#allocation13 + $0x238] sm:$0xff]
        %v2798 = vld [vmem:[#allocation13 + $0x240] sm:$0xff]
        %v2799 = vld [vmem:[#allocation13 + $0x248] sm:$0xff]
        %v2800 = vld [vmem:[#allocation13 + $0x250] sm:$0xff]
        %v2801 = vld [vmem:[#allocation13 + $0x258] sm:$0xff]
        %v2802 = vld [vmem:[#allocation13 + $0x260] sm:$0xff]
        %v2803 = vld [vmem:[#allocation13 + $0x268] sm:$0xff]
        %v2804 = vld [vmem:[#allocation13 + $0x270] sm:$0xff]
        %v2805 = vld [vmem:[#allocation13 + $0x278] sm:$0xff]
        %v2806 = vld [vmem:[%s11] sm:$0x1]
        %v2808 = vlaneseq
        %v2809 = vshrl.u32 %v2808, 7
        %v2810 = vsub.s32 0, %v2809
        %v2811 = vrot.slane %v2806, %v2810
        %2813 = vmatprep.subr.mxu0 0.0
        %2814 = vmatpush1.msra.mxu0 %v2726
        %2815 = vmatprep.subr.mxu0 0.0
        %2816 = vmatpush1.msra.mxu0 %v2727
        %2817 = vmatprep.subr.mxu0 0.0
        %2818 = vmatpush1.msra.mxu0 %v2728
        %2819 = vmatprep.subr.mxu0 0.0
        %2820 = vmatpush1.msra.mxu0 %v2729
        %2821 = vmatprep.subr.mxu0 0.0
        %2822 = vmatpush1.msra.mxu0 %v2730
        %2823 = vmatprep.subr.mxu0 0.0
        %2824 = vmatpush1.msra.mxu0 %v2731
        %2825 = vmatprep.subr.mxu0 0.0
        %2826 = vmatpush1.msra.mxu0 %v2732
        %2827 = vmatprep.subr.mxu0 0.0
        %2828 = vmatpush1.msra.mxu0 %v2733
        %2829 = vmatprep.subr.mxu0 0.0
        %2830 = vmatpush1.msra.mxu0 %v2734
        %2831 = vmatprep.subr.mxu0 0.0
        %2832 = vmatpush1.msra.mxu0 %v2735
        %2833 = vmatprep.subr.mxu0 0.0
        %2834 = vmatpush1.msra.mxu0 %v2736
        %2835 = vmatprep.subr.mxu0 0.0
        %2836 = vmatpush1.msra.mxu0 %v2737
        %2837 = vmatprep.subr.mxu0 0.0
        %2838 = vmatpush1.msra.mxu0 %v2738
        %2839 = vmatprep.subr.mxu0 0.0
        %2840 = vmatpush1.msra.mxu0 %v2739
        %2841 = vmatprep.subr.mxu0 0.0
        %2842 = vmatpush1.msra.mxu0 %v2740
        %2843 = vmatprep.subr.mxu0 0.0
        %2844 = vmatpush1.msra.mxu0 %v2741
        %2845 = vmatprep.subr.mxu0 0.0
        %2846 = vmatpush1.msra.mxu0 %v2742
        %2847 = vmatprep.subr.mxu0 0.0
        %2848 = vmatpush1.msra.mxu0 %v2743
        %2849 = vmatprep.subr.mxu0 0.0
        %2850 = vmatpush1.msra.mxu0 %v2744
        %2851 = vmatprep.subr.mxu0 0.0
        %2852 = vmatpush1.msra.mxu0 %v2745
        %2853 = vmatprep.subr.mxu0 0.0
        %2854 = vmatpush1.msra.mxu0 %v2746
        %2855 = vmatprep.subr.mxu0 0.0
        %2856 = vmatpush1.msra.mxu0 %v2747
        %2857 = vmatprep.subr.mxu0 0.0
        %2858 = vmatpush1.msra.mxu0 %v2748
        %2859 = vmatprep.subr.mxu0 0.0
        %2860 = vmatpush1.msra.mxu0 %v2749
        %2861 = vmatprep.subr.mxu0 0.0
        %2862 = vmatpush1.msra.mxu0 %v2750
        %2863 = vmatprep.subr.mxu0 0.0
        %2864 = vmatpush1.msra.mxu0 %v2751
        %2865 = vmatprep.subr.mxu0 0.0
        %2866 = vmatpush1.msra.mxu0 %v2752
        %2867 = vmatprep.subr.mxu0 0.0
        %2868 = vmatpush1.msra.mxu0 %v2753
        %2869 = vmatprep.subr.mxu0 0.0
        %2870 = vmatpush1.msra.mxu0 %v2754
        %2871 = vmatprep.subr.mxu0 0.0
        %2872 = vmatpush1.msra.mxu0 %v2755
        %2873 = vmatprep.subr.mxu0 0.0
        %2874 = vmatpush1.msra.mxu0 %v2756
        %2875 = vmatprep.subr.mxu0 0.0
        %2876 = vmatpush1.msra.mxu0 %v2757
        %2877 = vmatprep.mubr.f32.mxu0 %v2660
        %2878 = vmatmul.mubr.f32.gmra.mrb[0].mxu0 %v2646
        %v2879 = vpop.f32.mrb[0].mxu0
        %v2880 = vpop.f32.mrb[0].mxu0
        %2881 = vmatprep.mubr.f32.mxu0 %v2662
        %2882 = vmatmul.mubr.f32.gmra.mrb[0].mxu0 %v2647
        %v2883 = vpop.f32.mrb[0].mxu0
        %v2884 = vadd.f32 %v2811, %v2883
        %v2885 = vpop.f32.mrb[0].mxu0
        %2886 = vmatprep.mubr.f32.mxu0 %v2664
        %2887 = vmatmul.mubr.f32.gmra.mrb[0].mxu0 %v2648
        %v2888 = vpop.f32.mrb[0].mxu0
        %v2889 = vadd.f32 %v2811, %v2888
        %v2890 = vpop.f32.mrb[0].mxu0
        %2891 = vmatprep.mubr.f32.mxu0 %v2666
        %2892 = vmatmul.mubr.f32.gmra.mrb[0].mxu0 %v2649
        %v2893 = vpop.f32.mrb[0].mxu0
        %v2894 = vadd.f32 %v2811, %v2893
        %v2895 = vpop.f32.mrb[0].mxu0
        %2896 = vmatprep.mubr.f32.mxu0 %v2668
        %2897 = vmatmul.mubr.f32.gmra.mrb[0].mxu0 %v2650
        %v2898 = vpop.f32.mrb[0].mxu0
        %v2899 = vadd.f32 %v2811, %v2898
        %v2900 = vpop.f32.mrb[0].mxu0
        %2901 = vmatprep.mubr.f32.mxu0 %v2667
        %2902 = vmatmul.mubr.f32.gmra.mrb[0].mxu0 %v2651
        %v2903 = vpop.f32.mrb[0].mxu0
        %v2904 = vadd.f32 %v2811, %v2903
        %v2905 = vpop.f32.mrb[0].mxu0
        %2906 = vdwg.mxu0
        %2907 = vmatprep.subr.mxu0 0.0
        %2908 = vmatpush1.msra.mxu0 %v2758
        %2909 = vmatprep.subr.mxu0 0.0
        %2910 = vmatpush1.msra.mxu0 %v2759
        %2911 = vmatprep.subr.mxu0 0.0
        %2912 = vmatpush1.msra.mxu0 %v2760
        %2913 = vmatprep.subr.mxu0 0.0
        %2914 = vmatpush1.msra.mxu0 %v2761
        %2915 = vmatprep.subr.mxu0 0.0
        %2916 = vmatpush1.msra.mxu0 %v2762
        %2917 = vmatprep.subr.mxu0 0.0
        %2918 = vmatpush1.msra.mxu0 %v2763
        %2919 = vmatprep.subr.mxu0 0.0
        %2920 = vmatpush1.msra.mxu0 %v2764
        %2921 = vmatprep.subr.mxu0 0.0
        %2922 = vmatpush1.msra.mxu0 %v2765
        %2923 = vmatprep.subr.mxu0 0.0
        %2924 = vmatpush1.msra.mxu0 %v2766
        %2925 = vmatprep.subr.mxu0 0.0
        %2926 = vmatpush1.msra.mxu0 %v2767
        %2927 = vmatprep.subr.mxu0 0.0
        %2928 = vmatpush1.msra.mxu0 %v2768
        %2929 = vmatprep.subr.mxu0 0.0
        %2930 = vmatpush1.msra.mxu0 %v2769
        %2931 = vmatprep.subr.mxu0 0.0
        %2932 = vmatpush1.msra.mxu0 %v2770
        %2933 = vmatprep.subr.mxu0 0.0
        %2934 = vmatpush1.msra.mxu0 %v2771
        %2935 = vmatprep.subr.mxu0 0.0
        %2936 = vmatpush1.msra.mxu0 %v2772
        %2937 = vmatprep.subr.mxu0 0.0
        %2938 = vmatpush1.msra.mxu0 %v2773
        %2939 = vmatprep.subr.mxu0 0.0
        %2940 = vmatpush1.msra.mxu0 %v2774
        %2941 = vmatprep.subr.mxu0 0.0
        %2942 = vmatpush1.msra.mxu0 %v2775
        %2943 = vmatprep.subr.mxu0 0.0
        %2944 = vmatpush1.msra.mxu0 %v2776
        %2945 = vmatprep.subr.mxu0 0.0
        %2946 = vmatpush1.msra.mxu0 %v2777
        %2947 = vmatprep.subr.mxu0 0.0
        %2948 = vmatpush1.msra.mxu0 %v2778
        %2949 = vmatprep.subr.mxu0 0.0
        %2950 = vmatpush1.msra.mxu0 %v2779
        %2951 = vmatprep.subr.mxu0 0.0
        %2952 = vmatpush1.msra.mxu0 %v2780
        %2953 = vmatprep.subr.mxu0 0.0
        %2954 = vmatpush1.msra.mxu0 %v2781
        %2955 = vmatprep.subr.mxu0 0.0
        %2956 = vmatpush1.msra.mxu0 %v2782
        %2957 = vmatprep.subr.mxu0 0.0
        %2958 = vmatpush1.msra.mxu0 %v2783
        %2959 = vmatprep.subr.mxu0 0.0
        %2960 = vmatpush1.msra.mxu0 %v2784
        %2961 = vmatprep.subr.mxu0 0.0
        %2962 = vmatpush1.msra.mxu0 %v2785
        %2963 = vmatprep.subr.mxu0 0.0
        %2964 = vmatpush1.msra.mxu0 %v2786
        %2965 = vmatprep.subr.mxu0 0.0
        %2966 = vmatpush1.msra.mxu0 %v2787
        %2967 = vmatprep.subr.mxu0 0.0
        %2968 = vmatpush1.msra.mxu0 %v2788
        %2969 = vmatprep.subr.mxu0 0.0
        %2970 = vmatpush1.msra.mxu0 %v2789
        %2971 = vmatprep.mubr.f32.mxu0 %v2694
        %2972 = vmatmul.mubr.f32.gmra.mrb[0].mxu0 %v2677
        %v2973 = vpop.f32.mrb[0].mxu0
        %v2974 = vpop.f32.mrb[0].mxu0
        %2975 = vmatprep.mubr.f32.mxu0 %v2696
        %2976 = vmatmul.mubr.f32.gmra.mrb[0].mxu0 %v2679
        %v2977 = vpop.f32.mrb[0].mxu0
        %v2978 = vadd.f32 %v2884, %v2977
        %v2979 = vpop.f32.mrb[0].mxu0
        %2980 = vmatprep.mubr.f32.mxu0 %v2698
        %2981 = vmatmul.mubr.f32.gmra.mrb[0].mxu0 %v2681
        %v2982 = vpop.f32.mrb[0].mxu0
        %v2983 = vadd.f32 %v2889, %v2982
        %v2984 = vpop.f32.mrb[0].mxu0
        %2985 = vmatprep.mubr.f32.mxu0 %v2700
        %2986 = vmatmul.mubr.f32.gmra.mrb[0].mxu0 %v2683
        %v2987 = vpop.f32.mrb[0].mxu0
        %v2988 = vadd.f32 %v2894, %v2987
        %v2989 = vpop.f32.mrb[0].mxu0
        %2990 = vmatprep.mubr.f32.mxu0 %v2702
        %2991 = vmatmul.mubr.f32.gmra.mrb[0].mxu0 %v2685
        %v2992 = vpop.f32.mrb[0].mxu0
        %v2993 = vadd.f32 %v2899, %v2992
        %v2994 = vpop.f32.mrb[0].mxu0
        %2995 = vmatprep.mubr.f32.mxu0 %v2701
        %2996 = vmatmul.mubr.f32.gmra.mrb[0].mxu0 %v2684
        %v2997 = vpop.f32.mrb[0].mxu0
        %v2998 = vadd.f32 %v2904, %v2997
        %v2999 = vpop.f32.mrb[0].mxu0
        %3000 = vdwg.mxu0
        %3001 = vmatprep.subr.mxu0 0.0
        %3002 = vmatpush1.msra.mxu0 %v2790
        %3003 = vmatprep.subr.mxu0 0.0
        %3004 = vmatpush1.msra.mxu0 %v2791
        %3005 = vmatprep.subr.mxu0 0.0
        %3006 = vmatpush1.msra.mxu0 %v2792
        %3007 = vmatprep.subr.mxu0 0.0
        %3008 = vmatpush1.msra.mxu0 %v2793
        %3009 = vmatprep.subr.mxu0 0.0
        %3010 = vmatpush1.msra.mxu0 %v2794
        %3011 = vmatprep.subr.mxu0 0.0
        %3012 = vmatpush1.msra.mxu0 %v2795
        %3013 = vmatprep.subr.mxu0 0.0
        %3014 = vmatpush1.msra.mxu0 %v2796
        %3015 = vmatprep.subr.mxu0 0.0
        %3016 = vmatpush1.msra.mxu0 %v2797
        %3017 = vmatprep.subr.mxu0 0.0
        %3018 = vmatpush1.msra.mxu0 %v2798
        %3019 = vmatprep.subr.mxu0 0.0
        %3020 = vmatpush1.msra.mxu0 %v2799
        %3021 = vmatprep.subr.mxu0 0.0
        %3022 = vmatpush1.msra.mxu0 %v2800
        %3023 = vmatprep.subr.mxu0 0.0
        %3024 = vmatpush1.msra.mxu0 %v2801
        %3025 = vmatprep.subr.mxu0 0.0
        %3026 = vmatpush1.msra.mxu0 %v2802
        %3027 = vmatprep.subr.mxu0 0.0
        %3028 = vmatpush1.msra.mxu0 %v2803
        %3029 = vmatprep.subr.mxu0 0.0
        %3030 = vmatpush1.msra.mxu0 %v2804
        %3031 = vmatprep.subr.mxu0 0.0
        %3032 = vmatpush1.msra.mxu0 %v2805
        %3033 = vmatprep.subr.mxu0 0.0
        %3034 = vmatpush1.msra.mxu0 0.0
        %3035 = vmatprep.subr.mxu0 0.0
        %3036 = vmatpush1.msra.mxu0 0.0
        %3037 = vmatprep.subr.mxu0 0.0
        %3038 = vmatpush1.msra.mxu0 0.0
        %3039 = vmatprep.subr.mxu0 0.0
        %3040 = vmatpush1.msra.mxu0 0.0
        %3041 = vmatprep.subr.mxu0 0.0
        %3042 = vmatpush1.msra.mxu0 0.0
        %3043 = vmatprep.subr.mxu0 0.0
        %3044 = vmatpush1.msra.mxu0 0.0
        %3045 = vmatprep.subr.mxu0 0.0
        %3046 = vmatpush1.msra.mxu0 0.0
        %3047 = vmatprep.subr.mxu0 0.0
        %3048 = vmatpush1.msra.mxu0 0.0
        %3049 = vmatprep.subr.mxu0 0.0
        %3050 = vmatpush1.msra.mxu0 0.0
        %3051 = vmatprep.subr.mxu0 0.0
        %3052 = vmatpush1.msra.mxu0 0.0
        %3053 = vmatprep.subr.mxu0 0.0
        %3054 = vmatpush1.msra.mxu0 0.0
        %3055 = vmatprep.subr.mxu0 0.0
        %3056 = vmatpush1.msra.mxu0 0.0
        %3057 = vmatprep.subr.mxu0 0.0
        %3058 = vmatpush1.msra.mxu0 0.0
        %3059 = vmatprep.subr.mxu0 0.0
        %3060 = vmatpush1.msra.mxu0 0.0
        %3061 = vmatprep.subr.mxu0 0.0
        %3062 = vmatpush1.msra.mxu0 0.0
        %3063 = vmatprep.subr.mxu0 0.0
        %3064 = vmatpush1.msra.mxu0 0.0
        %3065 = vmatprep.mubr.f32.mxu0 0.0
        %3066 = vmatmul.mubr.f32.gmra.mrb[0].mxu0 %v2711
        %v3067 = vpop.f32.mrb[0].mxu0
        %v3068 = vpop.f32.mrb[0].mxu0
        %3069 = vmatprep.mubr.f32.mxu0 0.0
        %3070 = vmatmul.mubr.f32.gmra.mrb[0].mxu0 %v2713
        %v3071 = vpop.f32.mrb[0].mxu0
        %v3072 = vadd.f32 %v2978, %v3071
        %v3073 = vpop.f32.mrb[0].mxu0
        %3074 = vmatprep.mubr.f32.mxu0 0.0
        %3075 = vmatmul.mubr.f32.gmra.mrb[0].mxu0 %v2715
        %v3076 = vpop.f32.mrb[0].mxu0
        %v3077 = vadd.f32 %v2983, %v3076
        %v3078 = vpop.f32.mrb[0].mxu0
        %3079 = vmatprep.mubr.f32.mxu0 0.0
        %3080 = vmatmul.mubr.f32.gmra.mrb[0].mxu0 %v2717
        %v3081 = vpop.f32.mrb[0].mxu0
        %v3082 = vadd.f32 %v2988, %v3081
        %v3083 = vpop.f32.mrb[0].mxu0
        %3084 = vmatprep.mubr.f32.mxu0 0.0
        %3085 = vmatmul.mubr.f32.gmra.mrb[0].mxu0 %v2719
        %v3086 = vpop.f32.mrb[0].mxu0
        %v3087 = vadd.f32 %v2993, %v3086
        %v3088 = vpop.f32.mrb[0].mxu0
        %3089 = vmatprep.mubr.f32.mxu0 0.0
        %3090 = vmatmul.mubr.f32.gmra.mrb[0].mxu0 %v2718
        %v3091 = vpop.f32.mrb[0].mxu0
        %v3092 = vadd.f32 %v2998, %v3091
        %v3093 = vpop.f32.mrb[0].mxu0
        %3094 = vdwg.mxu0
        %3095 = vst [vmem:[%s565 - $0x4] sm:$0xf0] %v3072
        %3096 = vst [vmem:[%s565 + $0x4] sm:$0xff] %v3077
        %3097 = vst [vmem:[%s565 + $0xc] sm:$0xff] %v3082
        %3098 = vst [vmem:[%s565 + $0x14] sm:$0xff] %v3087
        %3099 = vst [vmem:[%s565 + $0x1c] sm:$0xf] %v3092
        %s3100 = sand.u32 %s322, 1
        %s3101 = scalar_lea.sflag [#allocation4], %s3100
        %s3102 = sand.u32 %s322, 1
        %s3103 = smul.addr %s3102, 32
        %s3104 = scalar_lea.vmem [#allocation14], %s3103
        // Predicated region
        $region97: #{tpu_custom_call.1} parent=67 // pred_check
          %p3105 = pneg %p332
        $region98: #{tpu_custom_call.1} parent=67 // pred_check_branch
          %3107 = sbr.rel (%p3105) target = $region100
        $region99: #{tpu_custom_call.1} parent=67 // pred_region
          %s3108 = smul.u32 4, %s39
          %s3110 = ssub.s32 512, 512
          %3111 = vsyncadd %s3101, %s3110
          %s3112 = smul.addr %s38, 4
          %s3113 = sadd.s32 %s3108, %s3112
          %s3114 = smul.addr %s3113, 128
          %s3115 = scalar_lea.hbm %s12, %s3114
          %s3116 = sshll.u32 %s3104, 4
          %s3117 = int_to_ptr.vmem [resolvable:$true] %s3116
          %3122 = dma.vmem_to_hbm [thread:$0]  %s3117, 512, %s3115, %s3101, 128, 128, 8
        $region100: #{tpu_custom_call.1} parent=67 // pred_fallthru
          _
      $region68: #{tpu_custom_call.1} parent=5 // pred_fallthru
        _
      %p3123 = scmp.le.s32.totalorder 2, %s29
      // Predicated region
      $region101: #{tpu_custom_call.1} parent=5 // pred_check
        %p3124 = pneg %p3123
      $region102: #{tpu_custom_call.1} parent=5 // pred_check_branch
        %3126 = sbr.rel (%p3124) target = $region104
      $region103: #{tpu_custom_call.1} parent=5 // pred_region
        %s3127 = ssub.s32 %s29, 2
        // Predicated region
        $region105: #{tpu_custom_call.1} parent=103 // pred_check
          %p3128 = pneg %p338
        $region106: #{tpu_custom_call.1} parent=103 // pred_check_branch
          %3130 = sbr.rel (%p3128) target = $region108
        $region107: #{tpu_custom_call.1} parent=103 // pred_region
          %s3131 = sand.u32 %s323, 1
          %s3132 = scalar_lea.sflag [#allocation4], %s3131
          %s3133 = sand.u32 %s323, 1
          %s3134 = smul.addr %s3133, 32
          %s3135 = scalar_lea.vmem [#allocation14], %s3134
          %3136 = dma.done %s3132, 512
        $region108: #{tpu_custom_call.1} parent=103 // pred_fallthru
          _
      $region104: #{tpu_custom_call.1} parent=5 // pred_fallthru
        _
    $region6: #{tpu_custom_call.1} parent=1 // loop_footer
      %s33 = sadd.s32 1, %s29
    $region7: #{tpu_custom_call.1} parent=1 // loop_footer_branch
      %28 = sbr.rel target = $region3
    $region8: #{tpu_custom_call.1} parent=1 // loop_exit
      _
    %3137 = vsyncpa [#allocation3], 1
    %s3138 = scalar_lea.sflag [#allocation3], 1
    %3139 = vsyncpa %s3138, 1
    %3140 = vsyncpa [#allocation6], 1
    %s3141 = scalar_lea.sflag [#allocation6], 1
    %3142 = vsyncpa %s3141, 1
    %3143 = vsyncpa [#allocation9], 1
    %3144 = vsyncpa [#allocation12], 1
    %3145 = vsyncpa [#allocation4], 1
    %s3146 = scalar_lea.sflag [#allocation4], 1
    %3147 = vsyncpa %s3146, 1

</llo_original>
